<compile_context>
chip_gen: v5e
topology: v5e:2x2
jax: 0.10.0
libtpu: 0.0.40
codegen_flags: <defaults>
</compile_context>

<pallas_src>
import functools

import jax
import jax.numpy as jnp
import numpy as np
from jax.experimental import pallas as pl
from jax.experimental.pallas import tpu as pltpu


def _siren_kernel(x_ref, w1c0_ref, w1c1_ref, b1_ref, wh_ref, bh_ref,
                  wo_ref, bo_ref, o_ref, *, hidden_layers):
    # Transposed layout: activations are (features, tile_n) so samples fill the
    # 128-lane vreg width. omega is already folded into weights/biases.

    # First sine layer: K=2 contraction is far too thin for the MXU, so do it
    # as two broadcast multiply-adds on the VPU.
    x0 = x_ref[0:1, :]                                          # (1, tile_n)
    x1 = x_ref[1:2, :]                                          # (1, tile_n)
    h = jnp.sin(w1c0_ref[...] * x0 + w1c1_ref[...] * x1 + b1_ref[...])  # (H, tile_n)

    # Hidden sine layers: (H, H) @ (H, tile_n) on the MXU. Statically unrolled;
    # hidden_layers is small & static (switch to lax.fori_loop if it grows > ~4).
    for l in range(hidden_layers):
        h = jnp.sin(
            jnp.dot(wh_ref[l], h, preferred_element_type=jnp.float32)
            + bh_ref[l]
        )

    # Final plain linear: (1, H) @ (H, tile_n) -> (1, tile_n), lane-dense store.
    o_ref[...] = (
        jnp.dot(wo_ref[...], h, preferred_element_type=jnp.float32)
        + bo_ref[...]
    )


def image_siren_forward(x, params, *, first_omega=30.0, hidden_omega=30.0,
                        tile_n=2048):
    """x: (N, 2) float32 pixel coordinates -> (N, 1) predicted intensities.

    params are PyTorch-native (out_features, in_features) weights:
      w1 (H, 2), b1 (H,), wh (L, H, H), bh (L, H), wo (1, H), bo (1,)
    """
    w1, b1, wh, bh, wo, bo = params
    N, in_f = x.shape
    assert in_f == 2
    H = w1.shape[0]
    L = wh.shape[0]

    # --- one-time parameter transforms (outside the kernel) ---------------
    # Fold omega into the sine-layer weights & biases; split the two columns
    # of the first-layer weight so the first layer is two broadcast FMAs.
    w1f = (w1 * first_omega).astype(jnp.float32)                  # (H, 2)
    w1c0 = w1f[:, 0:1]                                            # (H, 1)
    w1c1 = w1f[:, 1:2]                                            # (H, 1)
    b1f = (b1 * first_omega).astype(jnp.float32).reshape(H, 1)    # (H, 1)
    whf = (wh * hidden_omega).astype(jnp.float32)                 # (L, H, H)
    bhf = (bh * hidden_omega).astype(jnp.float32).reshape(L, H, 1)
    wof = wo.astype(jnp.float32)                                  # (1, H)
    bof = bo.astype(jnp.float32).reshape(1, 1)                    # (1, 1)

    # --- transposed, lane-dense data layout: samples on the lane axis -----
    lane = 128
    tile_n = max(lane, (int(tile_n) // lane) * lane)
    n_pad = ((N + tile_n - 1) // tile_n) * tile_n
    xT = jnp.pad(x.T.astype(jnp.float32), ((0, 0), (0, n_pad - N)))  # (2, n_pad)

    kernel = functools.partial(_siren_kernel, hidden_layers=int(L))

    out_t = pl.pallas_call(
        kernel,
        out_shape=jax.ShapeDtypeStruct((1, n_pad), jnp.float32),
        grid=(n_pad // tile_n,),
        in_specs=[
            pl.BlockSpec((2, tile_n), lambda i: (0, i)),      # x^T tile (lane-dense)
            pl.BlockSpec((H, 1), lambda i: (0, 0)),           # omega * w1[:, 0]
            pl.BlockSpec((H, 1), lambda i: (0, 0)),           # omega * w1[:, 1]
            pl.BlockSpec((H, 1), lambda i: (0, 0)),           # omega * b1
            pl.BlockSpec((L, H, H), lambda i: (0, 0, 0)),     # omega * hidden weights
            pl.BlockSpec((L, H, 1), lambda i: (0, 0, 0)),     # omega * hidden biases
            pl.BlockSpec((1, H), lambda i: (0, 0)),           # final weight
            pl.BlockSpec((1, 1), lambda i: (0, 0)),           # final bias
        ],
        out_specs=pl.BlockSpec((1, tile_n), lambda i: (0, i)),   # lane-dense output
        compiler_params=pltpu.CompilerParams(
            dimension_semantics=("parallel",)),
    )(xT, w1c0, w1c1, b1f, whf, bhf, wof, bof)

    return out_t[0, :N].reshape(N, 1)


def init_params(key, hidden_features, hidden_layers, first_omega, hidden_omega):
    """Deterministic parameter init mirroring paper_init_ + nn.Linear bias init.

    Weights are PyTorch-native: shape (out_features, in_features).
    """
    in_features, out_features = 2, 1
    H = hidden_features
    keys = jax.random.split(key, 6)

    # First sine layer (is_first=True): weight bound = 1 / in_features
    wb = 1.0 / in_features
    w1 = jax.random.uniform(keys[0], (H, in_features), jnp.float32, -wb, wb)
    bb = 1.0 / np.sqrt(in_features)
    b1 = jax.random.uniform(keys[1], (H,), jnp.float32, -bb, bb)

    # Hidden sine layers: bound = sqrt(6 / H) / hidden_omega
    wb = np.sqrt(6.0 / H) / hidden_omega
    wh = jax.random.uniform(keys[2], (hidden_layers, H, H), jnp.float32, -wb, wb)
    bb = 1.0 / np.sqrt(H)
    bh = jax.random.uniform(keys[3], (hidden_layers, H), jnp.float32, -bb, bb)

    # Final linear: paper_init_ with is_first=False, omega=hidden_omega
    wb = np.sqrt(6.0 / H) / hidden_omega
    wo = jax.random.uniform(keys[4], (out_features, H), jnp.float32, -wb, wb)
    bb = 1.0 / np.sqrt(H)
    bo = jax.random.uniform(keys[5], (out_features,), jnp.float32, -bb, bb)

    return (w1, b1, wh, bh, wo, bo)


def reference_forward(x, params, first_omega, hidden_omega):
    """Pure-JAX mirror of the PyTorch module (weights are (out, in))."""
    w1, b1, wh, bh, wo, bo = params
    h = jnp.sin(first_omega * (x @ w1.T + b1))
    for l in range(wh.shape[0]):
        h = jnp.sin(hidden_omega * (h @ wh[l].T + bh[l]))
    return h @ wo.T + bo


if __name__ == "__main__":
    hidden_features = 32
    hidden_layers = 1
    first_omega = 30.0
    hidden_omega = 30.0
    side = 64
    N = side * side          # 4096 pixel coordinates (a small 64x64 image)

    key = jax.random.PRNGKey(0)
    k_params, k_x = jax.random.split(key)
    params = init_params(k_params, hidden_features, hidden_layers,
                         first_omega, hidden_omega)
    # 2D pixel coordinates in [-1, 1], shape (N, 2)
    x = jax.random.uniform(k_x, (N, 2), jnp.float32, -1.0, 1.0)

    # tile_n=1024 -> grid of 4 "parallel" steps (even work split for 2-TC chips).
    out = image_siren_forward(x, params,
                              first_omega=first_omega,
                              hidden_omega=hidden_omega,
                              tile_n=1024)
    out = jax.block_until_ready(out)

    ref = reference_forward(x, params, first_omega, hidden_omega)
    np.testing.assert_allclose(np.asarray(out), np.asarray(ref),
                               rtol=1e-4, atol=1e-4)
    assert out.shape == (N, 1)
    print("KERNEL_OK")
</pallas_src>

<mosaic_0001>
module attributes {stable_mosaic.version = 11 : i64} {
  func.func @_siren_kernel(%arg0: i32, %arg1: memref<2x1024xf32, #tpu.memory_space<vmem>>, %arg2: memref<32x1xf32, #tpu.memory_space<vmem>>, %arg3: memref<32x1xf32, #tpu.memory_space<vmem>>, %arg4: memref<32x1xf32, #tpu.memory_space<vmem>>, %arg5: memref<1x32x32xf32, #tpu.memory_space<vmem>>, %arg6: memref<1x32x1xf32, #tpu.memory_space<vmem>>, %arg7: memref<1x32xf32, #tpu.memory_space<vmem>>, %arg8: memref<1x1xf32, #tpu.memory_space<vmem>>, %arg9: memref<1x1024xf32, #tpu.memory_space<vmem>>) attributes {dimension_semantics = [#tpu.dimension_semantics<parallel>], iteration_bounds = array<i64: 4>, scalar_prefetch = 0 : i64, scratch_operands = 0 : i64, tpu.core_type = #tpu.core_type<tc>, window_params = [{transform_indices = @transform_0, window_bounds = array<i64: 2, 1024>}, {pipeline_mode = #tpu.pipeline_mode<synchronous>, transform_indices = @transform_1, window_bounds = array<i64: 32, 1>}, {pipeline_mode = #tpu.pipeline_mode<synchronous>, transform_indices = @transform_2, window_bounds = array<i64: 32, 1>}, {pipeline_mode = #tpu.pipeline_mode<synchronous>, transform_indices = @transform_3, window_bounds = array<i64: 32, 1>}, {pipeline_mode = #tpu.pipeline_mode<synchronous>, transform_indices = @transform_4, window_bounds = array<i64: 1, 32, 32>}, {pipeline_mode = #tpu.pipeline_mode<synchronous>, transform_indices = @transform_5, window_bounds = array<i64: 1, 32, 1>}, {pipeline_mode = #tpu.pipeline_mode<synchronous>, transform_indices = @transform_6, window_bounds = array<i64: 1, 32>}, {pipeline_mode = #tpu.pipeline_mode<synchronous>, transform_indices = @transform_7, window_bounds = array<i64: 1, 1>}, {transform_indices = @transform_8, window_bounds = array<i64: 1, 1024>}]} {
    %c0 = arith.constant 0 : index
    %c0_0 = arith.constant 0 : index
    %0 = vector.load %arg1[%c0, %c0_0] : memref<2x1024xf32, #tpu.memory_space<vmem>>, vector<1x1024xf32>
    %c1 = arith.constant 1 : index
    %c0_1 = arith.constant 0 : index
    %1 = vector.load %arg1[%c1, %c0_1] : memref<2x1024xf32, #tpu.memory_space<vmem>>, vector<1x1024xf32>
    %c0_2 = arith.constant 0 : index
    %c0_3 = arith.constant 0 : index
    %2 = vector.load %arg2[%c0_2, %c0_3] : memref<32x1xf32, #tpu.memory_space<vmem>>, vector<32x1xf32>
    %3 = vector.broadcast %2 : vector<32x1xf32> to vector<32x1024xf32>
    %4 = vector.broadcast %0 : vector<1x1024xf32> to vector<32x1024xf32>
    %5 = arith.mulf %3, %4 : vector<32x1024xf32>
    %c0_4 = arith.constant 0 : index
    %c0_5 = arith.constant 0 : index
    %6 = vector.load %arg3[%c0_4, %c0_5] : memref<32x1xf32, #tpu.memory_space<vmem>>, vector<32x1xf32>
    %7 = vector.broadcast %6 : vector<32x1xf32> to vector<32x1024xf32>
    %8 = vector.broadcast %1 : vector<1x1024xf32> to vector<32x1024xf32>
    %9 = arith.mulf %7, %8 : vector<32x1024xf32>
    %10 = arith.addf %5, %9 : vector<32x1024xf32>
    %c0_6 = arith.constant 0 : index
    %c0_7 = arith.constant 0 : index
    %11 = vector.load %arg4[%c0_6, %c0_7] : memref<32x1xf32, #tpu.memory_space<vmem>>, vector<32x1xf32>
    %12 = vector.broadcast %11 : vector<32x1xf32> to vector<32x1024xf32>
    %13 = arith.addf %10, %12 : vector<32x1024xf32>
    %14 = math.sin %13 : vector<32x1024xf32>
    %c0_8 = arith.constant 0 : index
    %c0_9 = arith.constant 0 : index
    %c0_10 = arith.constant 0 : index
    %15 = vector.load %arg5[%c0_8, %c0_9, %c0_10] : memref<1x32x32xf32, #tpu.memory_space<vmem>>, vector<1x32x32xf32>
    %16 = vector.shape_cast %15 : vector<1x32x32xf32> to vector<32x32xf32>
    %cst = arith.constant dense<0.000000e+00> : vector<32x1024xf32>
    %17 = tpu.matmul %16, %14, %cst {dimension_numbers = #tpu.dot_dimension_numbers<[1], [0], [0], [1], [0, 0, 1, 1], [], []>} : vector<32x32xf32>, vector<32x1024xf32>, vector<32x1024xf32> -> vector<32x1024xf32>
    %c0_11 = arith.constant 0 : index
    %c0_12 = arith.constant 0 : index
    %c0_13 = arith.constant 0 : index
    %18 = vector.load %arg6[%c0_11, %c0_12, %c0_13] : memref<1x32x1xf32, #tpu.memory_space<vmem>>, vector<1x32x1xf32>
    %19 = vector.shape_cast %18 : vector<1x32x1xf32> to vector<32x1xf32>
    %20 = vector.broadcast %19 : vector<32x1xf32> to vector<32x1024xf32>
    %21 = arith.addf %17, %20 : vector<32x1024xf32>
    %22 = math.sin %21 : vector<32x1024xf32>
    %c0_14 = arith.constant 0 : index
    %c0_15 = arith.constant 0 : index
    %23 = vector.load %arg7[%c0_14, %c0_15] : memref<1x32xf32, #tpu.memory_space<vmem>>, vector<1x32xf32>
    %cst_16 = arith.constant dense<0.000000e+00> : vector<1x1024xf32>
    %24 = tpu.matmul %23, %22, %cst_16 {dimension_numbers = #tpu.dot_dimension_numbers<[1], [0], [0], [1], [0, 0, 1, 1], [], []>} : vector<1x32xf32>, vector<32x1024xf32>, vector<1x1024xf32> -> vector<1x1024xf32>
    %c0_17 = arith.constant 0 : index
    %c0_18 = arith.constant 0 : index
    %25 = vector.load %arg8[%c0_17, %c0_18] : memref<1x1xf32, #tpu.memory_space<vmem>>, vector<1x1xf32>
    %26 = vector.broadcast %25 : vector<1x1xf32> to vector<1x1024xf32>
    %27 = arith.addf %24, %26 : vector<1x1024xf32>
    %c0_19 = arith.constant 0 : index
    %c0_20 = arith.constant 0 : index
    %28 = vector.load %arg9[%c0_19, %c0_20] : memref<1x1024xf32, #tpu.memory_space<vmem>>, vector<1x1024xf32>
    tpu.vector_store %arg9[%c0_19, %c0_20], %27 {strides = array<i32>} : memref<1x1024xf32, #tpu.memory_space<vmem>>, vector<1x1024xf32>,
    return
  }
  func.func @transform_0(%arg0: i32) -> (i32, i32) {
    %c0_i32 = arith.constant 0 : i32
    %c0_i32_0 = arith.constant 0 : i32
    return %c0_i32, %arg0 : i32, i32
  }
  func.func @transform_1(%arg0: i32) -> (i32, i32) {
    %c0_i32 = arith.constant 0 : i32
    %c0_i32_0 = arith.constant 0 : i32
    %c0_i32_1 = arith.constant 0 : i32
    return %c0_i32, %c0_i32_0 : i32, i32
  }
  func.func @transform_2(%arg0: i32) -> (i32, i32) {
    %c0_i32 = arith.constant 0 : i32
    %c0_i32_0 = arith.constant 0 : i32
    %c0_i32_1 = arith.constant 0 : i32
    return %c0_i32, %c0_i32_0 : i32, i32
  }
  func.func @transform_3(%arg0: i32) -> (i32, i32) {
    %c0_i32 = arith.constant 0 : i32
    %c0_i32_0 = arith.constant 0 : i32
    %c0_i32_1 = arith.constant 0 : i32
    return %c0_i32, %c0_i32_0 : i32, i32
  }
  func.func @transform_4(%arg0: i32) -> (i32, i32, i32) {
    %c0_i32 = arith.constant 0 : i32
    %c0_i32_0 = arith.constant 0 : i32
    %c0_i32_1 = arith.constant 0 : i32
    %c0_i32_2 = arith.constant 0 : i32
    return %c0_i32, %c0_i32_0, %c0_i32_1 : i32, i32, i32
  }
  func.func @transform_5(%arg0: i32) -> (i32, i32, i32) {
    %c0_i32 = arith.constant 0 : i32
    %c0_i32_0 = arith.constant 0 : i32
    %c0_i32_1 = arith.constant 0 : i32
    %c0_i32_2 = arith.constant 0 : i32
    return %c0_i32, %c0_i32_0, %c0_i32_1 : i32, i32, i32
  }
  func.func @transform_6(%arg0: i32) -> (i32, i32) {
    %c0_i32 = arith.constant 0 : i32
    %c0_i32_0 = arith.constant 0 : i32
    %c0_i32_1 = arith.constant 0 : i32
    return %c0_i32, %c0_i32_0 : i32, i32
  }
  func.func @transform_7(%arg0: i32) -> (i32, i32) {
    %c0_i32 = arith.constant 0 : i32
    %c0_i32_0 = arith.constant 0 : i32
    %c0_i32_1 = arith.constant 0 : i32
    return %c0_i32, %c0_i32_0 : i32, i32
  }
  func.func @transform_8(%arg0: i32) -> (i32, i32) {
    %c0_i32 = arith.constant 0 : i32
    %c0_i32_0 = arith.constant 0 : i32
    return %c0_i32, %arg0 : i32, i32
  }
}

</mosaic_0001>

<llo_original>
// kernel: tpu_custom_call.1
$region0: #{tpu_custom_call.1}
  #allocation0 [shape = 'u32[]', space=smem, size = 0x4, offset = 0x4, fixed_abs, tag = 'smem constant byte address 0x4 - core index']
  #allocation1 [shape = 'u32[72,128]{1,0:T(1,128)}', space=vmem, size = 0x9000, scoped, tag = 'internal scratch']
  #allocation2 [shape = 'f32[1,1]{1,0:T(1,128)S(1)}', space=vmem, size = 0x200, scoped, tag = 'scoped memory for tpu_custom_call.1']
  %s0 = inlined_call_operand.vmem [shape: f32[2,4096], index: 0, kind: input, shape index: {}]
  %s1 = inlined_call_operand.vmem [shape: f32[32,1], index: 1, kind: input, shape index: {}]
  %s2 = inlined_call_operand.vmem [shape: f32[32,1], index: 2, kind: input, shape index: {}]
  %s3 = inlined_call_operand.vmem [shape: f32[32,1], index: 3, kind: input, shape index: {}]
  %s4 = inlined_call_operand.vmem [shape: f32[1,32,32], index: 4, kind: input, shape index: {}]
  %s5 = inlined_call_operand.vmem [shape: f32[1,32,1], index: 5, kind: input, shape index: {}]
  %s6 = inlined_call_operand.vmem [shape: f32[1,32], index: 6, kind: input, shape index: {}]
  %s7 = inlined_call_operand.<no memory space> [shape: f32[1,1], index: 7, kind: input, shape index: {}]
  %s8 = inlined_call_operand.hbm [shape: f32[1,4096], index: 8, kind: output, shape index: {}]
  %s9 = sld [smem:[#allocation0]]
  $region65: #{tpu_custom_call.1} parent=0
    _
  %s11 = ssub.s32 1, %s9
  %s12 = scalar_select 0, %s11, %s9
  %v13 = vstv %s7
  %14 = vst [vmem:[#allocation2] sm:$0x1] %v13
  $region1: #{tpu_custom_call.1} parent=0
    #allocation3 [shape = 'u8[8192]{0}', space=vmem, size = 0x2000, scoped, tag = 'output window, operand 0']
    #allocation4 [shape = 's32[2]{0}', space=sflag, size = 0x8, scoped, tag = 'scoped memory for tpu_custom_call.1']
    %15 = vsyncpa [#allocation4], 0
    %s16 = scalar_lea.sflag [#allocation4], 1
    %17 = vsyncpa %s16, 0
    loop: start=0, step=1, limit=6
    $region2: #{tpu_custom_call.1} parent=1 // loop_pre_header
      _
    $region3: #{tpu_custom_call.1} parent=1 // loop_header
      %s19 = sphi 0, %s23
      %p20 = scmp.ge.s32.totalorder %s19, 6
      %s29 = sphi 0, %s31
      %s32 = sphi 0, %s29
      %s33 = sphi 0, %s32
      %s49 = sphi 0, %s33
      %s53 = sphi 0, %s53
      %s55 = sphi 0, %s53
      %s56 = sphi 0, %s55
      %s70 = sphi 0, %s56
      %s74 = sphi 0, %s74
      %s76 = sphi 0, %s74
      %s77 = sphi 0, %s76
      %s91 = sphi 0, %s77
      %s95 = sphi 0, %s95
      %s97 = sphi 0, %s95
      %s98 = sphi 0, %s97
      %s112 = sphi 0, %s98
      %s116 = sphi 0, %s116
      %s118 = sphi 0, %s116
      %s119 = sphi 0, %s118
      %s133 = sphi 0, %s119
      %s137 = sphi 0, %s137
      %s139 = sphi 0, %s137
      %s140 = sphi 0, %s139
      %s154 = sphi 0, %s140
      %s158 = sphi 0, %s158
      %s160 = sphi 0, %s158
      %s161 = sphi 0, %s160
      %s175 = sphi 0, %s161
      %s179 = sphi 0, %s179
      %s181 = sphi 0, %s179
      %s182 = sphi 0, %s181
      %s196 = sphi 0, %s182
      %s202 = sphi 0, %s204
      %s205 = sphi 0, %s202
      %s206 = sphi 0, %s205
      %s222 = sphi 0, %s206
    $region4: #{tpu_custom_call.1} parent=1 // loop_header_branch
      %22 = sbr.rel (%p20) target = $region8
    $region5: #{tpu_custom_call.1} parent=1 // loop_body
      %s24 = ssub.s32 %s19, 1
      %s25 = ssub.s32 %s19, 2
      %s26 = sadd.s32 %s19, 1
      %s27 = ssub.s32 %s19, %s26
      %p28 = scmp.eq.s32.totalorder %s27, 0
      %s30 = sadd.s32 %s29, 1
      %s31 = scalar_select %p28, %s29, %s30
      %p34 = pneg %p28
      %p35 = scmp.eq.s32.totalorder %s19, 3
      %p36 = por %p34, %p35
      %p37 = scmp.ne.s32.totalorder %s29, %s32
      %p38 = scmp.eq.s32.totalorder %s19, 0
      %p39 = por %p37, %p38
      %p40 = scmp.ne.s32.totalorder %s29, %s32
      %p41 = scmp.eq.s32.totalorder %s24, 3
      %p42 = por %p40, %p41
      %p43 = scmp.ne.s32.totalorder %s32, %s33
      %p44 = scmp.eq.s32.totalorder %s24, 0
      %p45 = por %p43, %p44
      %p46 = scmp.ne.s32.totalorder %s32, %s33
      %p47 = scmp.eq.s32.totalorder %s25, 3
      %p48 = por %p46, %p47
      %p50 = scmp.ne.s32.totalorder %s33, %s49
      %p51 = scmp.eq.s32.totalorder %s25, 0
      %p52 = por %p50, %p51
      %s54 = sadd.s32 %s53, 1
      %p57 = scmp.eq.s32.totalorder %s19, 3
      %p58 = scmp.ne.s32.totalorder %s53, %s55
      %p59 = scmp.eq.s32.totalorder %s19, 0
      %p60 = por %p58, %p59
      %p61 = scmp.ne.s32.totalorder %s53, %s55
      %p62 = scmp.eq.s32.totalorder %s24, 3
      %p63 = por %p61, %p62
      %p64 = scmp.ne.s32.totalorder %s55, %s56
      %p65 = scmp.eq.s32.totalorder %s24, 0
      %p66 = por %p64, %p65
      %p67 = scmp.ne.s32.totalorder %s55, %s56
      %p68 = scmp.eq.s32.totalorder %s25, 3
      %p69 = por %p67, %p68
      %p71 = scmp.ne.s32.totalorder %s56, %s70
      %p72 = scmp.eq.s32.totalorder %s25, 0
      %p73 = por %p71, %p72
      %s75 = sadd.s32 %s74, 1
      %p78 = scmp.eq.s32.totalorder %s19, 3
      %p79 = scmp.ne.s32.totalorder %s74, %s76
      %p80 = scmp.eq.s32.totalorder %s19, 0
      %p81 = por %p79, %p80
      %p82 = scmp.ne.s32.totalorder %s74, %s76
      %p83 = scmp.eq.s32.totalorder %s24, 3
      %p84 = por %p82, %p83
      %p85 = scmp.ne.s32.totalorder %s76, %s77
      %p86 = scmp.eq.s32.totalorder %s24, 0
      %p87 = por %p85, %p86
      %p88 = scmp.ne.s32.totalorder %s76, %s77
      %p89 = scmp.eq.s32.totalorder %s25, 3
      %p90 = por %p88, %p89
      %p92 = scmp.ne.s32.totalorder %s77, %s91
      %p93 = scmp.eq.s32.totalorder %s25, 0
      %p94 = por %p92, %p93
      %s96 = sadd.s32 %s95, 1
      %p99 = scmp.eq.s32.totalorder %s19, 3
      %p100 = scmp.ne.s32.totalorder %s95, %s97
      %p101 = scmp.eq.s32.totalorder %s19, 0
      %p102 = por %p100, %p101
      %p103 = scmp.ne.s32.totalorder %s95, %s97
      %p104 = scmp.eq.s32.totalorder %s24, 3
      %p105 = por %p103, %p104
      %p106 = scmp.ne.s32.totalorder %s97, %s98
      %p107 = scmp.eq.s32.totalorder %s24, 0
      %p108 = por %p106, %p107
      %p109 = scmp.ne.s32.totalorder %s97, %s98
      %p110 = scmp.eq.s32.totalorder %s25, 3
      %p111 = por %p109, %p110
      %p113 = scmp.ne.s32.totalorder %s98, %s112
      %p114 = scmp.eq.s32.totalorder %s25, 0
      %p115 = por %p113, %p114
      %s117 = sadd.s32 %s116, 1
      %p120 = scmp.eq.s32.totalorder %s19, 3
      %p121 = scmp.ne.s32.totalorder %s116, %s118
      %p122 = scmp.eq.s32.totalorder %s19, 0
      %p123 = por %p121, %p122
      %p124 = scmp.ne.s32.totalorder %s116, %s118
      %p125 = scmp.eq.s32.totalorder %s24, 3
      %p126 = por %p124, %p125
      %p127 = scmp.ne.s32.totalorder %s118, %s119
      %p128 = scmp.eq.s32.totalorder %s24, 0
      %p129 = por %p127, %p128
      %p130 = scmp.ne.s32.totalorder %s118, %s119
      %p131 = scmp.eq.s32.totalorder %s25, 3
      %p132 = por %p130, %p131
      %p134 = scmp.ne.s32.totalorder %s119, %s133
      %p135 = scmp.eq.s32.totalorder %s25, 0
      %p136 = por %p134, %p135
      %s138 = sadd.s32 %s137, 1
      %p141 = scmp.eq.s32.totalorder %s19, 3
      %p142 = scmp.ne.s32.totalorder %s137, %s139
      %p143 = scmp.eq.s32.totalorder %s19, 0
      %p144 = por %p142, %p143
      %p145 = scmp.ne.s32.totalorder %s137, %s139
      %p146 = scmp.eq.s32.totalorder %s24, 3
      %p147 = por %p145, %p146
      %p148 = scmp.ne.s32.totalorder %s139, %s140
      %p149 = scmp.eq.s32.totalorder %s24, 0
      %p150 = por %p148, %p149
      %p151 = scmp.ne.s32.totalorder %s139, %s140
      %p152 = scmp.eq.s32.totalorder %s25, 3
      %p153 = por %p151, %p152
      %p155 = scmp.ne.s32.totalorder %s140, %s154
      %p156 = scmp.eq.s32.totalorder %s25, 0
      %p157 = por %p155, %p156
      %s159 = sadd.s32 %s158, 1
      %p162 = scmp.eq.s32.totalorder %s19, 3
      %p163 = scmp.ne.s32.totalorder %s158, %s160
      %p164 = scmp.eq.s32.totalorder %s19, 0
      %p165 = por %p163, %p164
      %p166 = scmp.ne.s32.totalorder %s158, %s160
      %p167 = scmp.eq.s32.totalorder %s24, 3
      %p168 = por %p166, %p167
      %p169 = scmp.ne.s32.totalorder %s160, %s161
      %p170 = scmp.eq.s32.totalorder %s24, 0
      %p171 = por %p169, %p170
      %p172 = scmp.ne.s32.totalorder %s160, %s161
      %p173 = scmp.eq.s32.totalorder %s25, 3
      %p174 = por %p172, %p173
      %p176 = scmp.ne.s32.totalorder %s161, %s175
      %p177 = scmp.eq.s32.totalorder %s25, 0
      %p178 = por %p176, %p177
      %s180 = sadd.s32 %s179, 1
      %p183 = scmp.eq.s32.totalorder %s19, 3
      %p184 = scmp.ne.s32.totalorder %s179, %s181
      %p185 = scmp.eq.s32.totalorder %s19, 0
      %p186 = por %p184, %p185
      %p187 = scmp.ne.s32.totalorder %s179, %s181
      %p188 = scmp.eq.s32.totalorder %s24, 3
      %p189 = por %p187, %p188
      %p190 = scmp.ne.s32.totalorder %s181, %s182
      %p191 = scmp.eq.s32.totalorder %s24, 0
      %p192 = por %p190, %p191
      %p193 = scmp.ne.s32.totalorder %s181, %s182
      %p194 = scmp.eq.s32.totalorder %s25, 3
      %p195 = por %p193, %p194
      %p197 = scmp.ne.s32.totalorder %s182, %s196
      %p198 = scmp.eq.s32.totalorder %s25, 0
      %p199 = por %p197, %p198
      %s200 = ssub.s32 %s19, %s26
      %p201 = scmp.eq.s32.totalorder %s200, 0
      %s203 = sadd.s32 %s202, 1
      %s204 = scalar_select %p201, %s202, %s203
      %p207 = pneg %p201
      %p208 = scmp.eq.s32.totalorder %s19, 3
      %p209 = por %p207, %p208
      %p210 = scmp.ne.s32.totalorder %s202, %s205
      %p211 = scmp.eq.s32.totalorder %s19, 0
      %p212 = por %p210, %p211
      %p213 = scmp.ne.s32.totalorder %s202, %s205
      %p214 = scmp.eq.s32.totalorder %s24, 3
      %p215 = por %p213, %p214
      %p216 = scmp.ne.s32.totalorder %s205, %s206
      %p217 = scmp.eq.s32.totalorder %s24, 0
      %p218 = por %p216, %p217
      %p219 = scmp.ne.s32.totalorder %s205, %s206
      %p220 = scmp.eq.s32.totalorder %s25, 3
      %p221 = por %p219, %p220
      %p223 = scmp.ne.s32.totalorder %s206, %s222
      %p224 = scmp.eq.s32.totalorder %s25, 0
      %p225 = por %p223, %p224
      %p226 = scmp.le.s32.totalorder 1, %s19
      %p227 = scmp.lt.s32.totalorder %s19, 5
      %p228 = pnand %p226, %p227
      %p229 = pneg %p228
      // Predicated region
      $region9: #{tpu_custom_call.1} parent=5 // pred_check
        _
      $region10: #{tpu_custom_call.1} parent=5 // pred_check_branch
        %231 = sbr.rel (%p228) target = $region12
      $region11: #{tpu_custom_call.1} parent=5 // pred_region
        %s232 = ssub.s32 %s19, 1
        // Predicated region
        $region13: #{tpu_custom_call.1} parent=11 // pred_check
          %p233 = pneg %p66
        $region14: #{tpu_custom_call.1} parent=11 // pred_check_branch
          %235 = sbr.rel (%p233) target = $region16
        $region15: #{tpu_custom_call.1} parent=11 // pred_region
          _
        $region16: #{tpu_custom_call.1} parent=11 // pred_fallthru
          _
        // Predicated region
        $region17: #{tpu_custom_call.1} parent=11 // pred_check
          %p236 = pneg %p87
        $region18: #{tpu_custom_call.1} parent=11 // pred_check_branch
          %238 = sbr.rel (%p236) target = $region20
        $region19: #{tpu_custom_call.1} parent=11 // pred_region
          _
        $region20: #{tpu_custom_call.1} parent=11 // pred_fallthru
          _
        // Predicated region
        $region21: #{tpu_custom_call.1} parent=11 // pred_check
          %p239 = pneg %p108
        $region22: #{tpu_custom_call.1} parent=11 // pred_check_branch
          %241 = sbr.rel (%p239) target = $region24
        $region23: #{tpu_custom_call.1} parent=11 // pred_region
          _
        $region24: #{tpu_custom_call.1} parent=11 // pred_fallthru
          _
        // Predicated region
        $region25: #{tpu_custom_call.1} parent=11 // pred_check
          %p242 = pneg %p129
        $region26: #{tpu_custom_call.1} parent=11 // pred_check_branch
          %244 = sbr.rel (%p242) target = $region28
        $region27: #{tpu_custom_call.1} parent=11 // pred_region
          _
        $region28: #{tpu_custom_call.1} parent=11 // pred_fallthru
          _
        // Predicated region
        $region29: #{tpu_custom_call.1} parent=11 // pred_check
          %p245 = pneg %p150
        $region30: #{tpu_custom_call.1} parent=11 // pred_check_branch
          %247 = sbr.rel (%p245) target = $region32
        $region31: #{tpu_custom_call.1} parent=11 // pred_region
          _
        $region32: #{tpu_custom_call.1} parent=11 // pred_fallthru
          _
        // Predicated region
        $region33: #{tpu_custom_call.1} parent=11 // pred_check
          %p248 = pneg %p171
        $region34: #{tpu_custom_call.1} parent=11 // pred_check_branch
          %250 = sbr.rel (%p248) target = $region36
        $region35: #{tpu_custom_call.1} parent=11 // pred_region
          _
        $region36: #{tpu_custom_call.1} parent=11 // pred_fallthru
          _
        // Predicated region
        $region37: #{tpu_custom_call.1} parent=11 // pred_check
          %p251 = pneg %p192
        $region38: #{tpu_custom_call.1} parent=11 // pred_check_branch
          %253 = sbr.rel (%p251) target = $region40
        $region39: #{tpu_custom_call.1} parent=11 // pred_region
          _
        $region40: #{tpu_custom_call.1} parent=11 // pred_fallthru
          _
      $region12: #{tpu_custom_call.1} parent=5 // pred_fallthru
        _
      %p254 = scmp.lt.s32.totalorder %s19, 4
      // Predicated region
      $region41: #{tpu_custom_call.1} parent=5 // pred_check
        %p255 = pneg %p254
      $region42: #{tpu_custom_call.1} parent=5 // pred_check_branch
        %257 = sbr.rel (%p255) target = $region44
      $region43: #{tpu_custom_call.1} parent=5 // pred_region
        // Predicated region
        $region45: #{tpu_custom_call.1} parent=43 // pred_check
          %p258 = pneg %p39
        $region46: #{tpu_custom_call.1} parent=43 // pred_check_branch
          %260 = sbr.rel (%p258) target = $region48
        $region47: #{tpu_custom_call.1} parent=43 // pred_region
          %s261 = smul.u32 8, %s19
          %p262 = scmp.lt.s32.totalorder %s261, 31
          %s263 = scalar_select %p262, %s261, 31
          %s264 = smul.addr %s263, 2
          %s265 = scalar_lea.vmem %s0, %s264
          %s266 = smul.u32 8, %s19
        $region48: #{tpu_custom_call.1} parent=43 // pred_fallthru
          _
      $region44: #{tpu_custom_call.1} parent=5 // pred_fallthru
        _
      %p267 = scmp.le.s32.totalorder 1, %s19
      %p268 = scmp.lt.s32.totalorder %s19, 5
      %p269 = pnand %p267, %p268
      %p270 = pneg %p269
      // Predicated region
      $region49: #{tpu_custom_call.1} parent=5 // pred_check
        _
      $region50: #{tpu_custom_call.1} parent=5 // pred_check_branch
        %272 = sbr.rel (%p269) target = $region52
      $region51: #{tpu_custom_call.1} parent=5 // pred_region
        %s273 = ssub.s32 %s19, 1
        %s274 = smul.u32 8, %s24
        %p275 = scmp.lt.s32.totalorder %s274, 31
        %s276 = scalar_select %p275, %s274, 31
        %s277 = smul.addr %s276, 2
        %s278 = scalar_lea.vmem %s0, %s277
        %p279 = pneg %p45
        %p280 = pneg %p42
        %p281 = pneg %p66
        %p282 = pneg %p63
        %p283 = pneg %p87
        %p284 = pneg %p84
        %p285 = pneg %p108
        %p286 = pneg %p105
        %p287 = pneg %p129
        %p288 = pneg %p126
        %p289 = pneg %p150
        %p290 = pneg %p147
        %p291 = pneg %p171
        %p292 = pneg %p168
        %p293 = pneg %p192
        %p294 = pneg %p189
        %p295 = pneg %p218
        %p296 = pneg %p215
        %s297 = sand.u32 %s205, 1
        %s298 = scalar_lea.sflag [#allocation4], %s297
        %s299 = sand.u32 %s205, 1
        %s300 = smul.addr %s299, 8
        %s301 = scalar_lea.vmem [#allocation3], %s300
        %s302 = smul.u32 8, %s24
        %p303 = scmp.lt.s32.totalorder %s302, 31
        %s304 = scalar_select %p303, %s302, 31
        %s305 = smul.addr %s304, 2
        %s306 = scalar_lea.vmem %s0, %s305
        %s307 = smul.u32 8, %s24
        %s308 = smul.u32 8, %s24
        %v309 = vld [vmem:[%s306] ss:$2 sm:$0xff]
        %s310 = scalar_lea.vmem %s306, 1
        %v311 = vld [vmem:[%s310] ss:$2 sm:$0xff]
        %v312 = vld [vmem:[%s1] sm:$0xff]
        %v313 = vld [vmem:[%s1 + $0x8] sm:$0xff]
        %v314 = vld [vmem:[%s1 + $0x10] sm:$0xff]
        %v315 = vld [vmem:[%s1 + $0x18] sm:$0xff]
        %317 = vset.pattern.permute.xlu0 0
        %318 = vperm.xlu0 %317, %v312
        %v319 = vpop.permute.xlu0 %318
        %322 = vset.pattern.permute.xlu0 0
        %323 = vperm.xlu0 %322, %v313
        %v324 = vpop.permute.xlu0 %323
        %327 = vset.pattern.permute.xlu0 0
        %328 = vperm.xlu0 %327, %v314
        %v329 = vpop.permute.xlu0 %328
        %332 = vset.pattern.permute.xlu0 0
        %333 = vperm.xlu0 %332, %v315
        %v334 = vpop.permute.xlu0 %333
        %v337 = vperm.slane %v309, 0
        %v338 = vperm.slane %v309, 1
        %v339 = vperm.slane %v309, 2
        %v340 = vperm.slane %v309, 3
        %v341 = vperm.slane %v309, 4
        %v342 = vperm.slane %v309, 5
        %v343 = vperm.slane %v309, 6
        %v344 = vperm.slane %v309, 7
        %v353 = vmul.f32 %v319, %v337
        %v354 = vmul.f32 %v319, %v338
        %v355 = vmul.f32 %v319, %v339
        %v356 = vmul.f32 %v319, %v340
        %v357 = vmul.f32 %v319, %v341
        %v358 = vmul.f32 %v319, %v342
        %v359 = vmul.f32 %v319, %v343
        %v360 = vmul.f32 %v319, %v344
        %v361 = vmul.f32 %v324, %v337
        %v362 = vmul.f32 %v324, %v338
        %v363 = vmul.f32 %v324, %v339
        %v364 = vmul.f32 %v324, %v340
        %v365 = vmul.f32 %v324, %v341
        %v366 = vmul.f32 %v324, %v342
        %v367 = vmul.f32 %v324, %v343
        %v368 = vmul.f32 %v324, %v344
        %v369 = vmul.f32 %v329, %v337
        %v370 = vmul.f32 %v329, %v338
        %v371 = vmul.f32 %v329, %v339
        %v372 = vmul.f32 %v329, %v340
        %v373 = vmul.f32 %v329, %v341
        %v374 = vmul.f32 %v329, %v342
        %v375 = vmul.f32 %v329, %v343
        %v376 = vmul.f32 %v329, %v344
        %v377 = vmul.f32 %v334, %v337
        %v378 = vmul.f32 %v334, %v338
        %v379 = vmul.f32 %v334, %v339
        %v380 = vmul.f32 %v334, %v340
        %v381 = vmul.f32 %v334, %v341
        %v382 = vmul.f32 %v334, %v342
        %v383 = vmul.f32 %v334, %v343
        %v384 = vmul.f32 %v334, %v344
        %v385 = vld [vmem:[%s2] sm:$0xff]
        %v386 = vld [vmem:[%s2 + $0x8] sm:$0xff]
        %v387 = vld [vmem:[%s2 + $0x10] sm:$0xff]
        %v388 = vld [vmem:[%s2 + $0x18] sm:$0xff]
        %390 = vset.pattern.permute.xlu0 0
        %391 = vperm.xlu0 %390, %v385
        %v392 = vpop.permute.xlu0 %391
        %395 = vset.pattern.permute.xlu0 0
        %396 = vperm.xlu0 %395, %v386
        %v397 = vpop.permute.xlu0 %396
        %400 = vset.pattern.permute.xlu0 0
        %401 = vperm.xlu0 %400, %v387
        %v402 = vpop.permute.xlu0 %401
        %405 = vset.pattern.permute.xlu0 0
        %406 = vperm.xlu0 %405, %v388
        %v407 = vpop.permute.xlu0 %406
        %v410 = vperm.slane %v311, 0
        %v411 = vperm.slane %v311, 1
        %v412 = vperm.slane %v311, 2
        %v413 = vperm.slane %v311, 3
        %v414 = vperm.slane %v311, 4
        %v415 = vperm.slane %v311, 5
        %v416 = vperm.slane %v311, 6
        %v417 = vperm.slane %v311, 7
        %v426 = vmul.f32 %v392, %v410
        %v427 = vmul.f32 %v392, %v411
        %v428 = vmul.f32 %v392, %v412
        %v429 = vmul.f32 %v392, %v413
        %v430 = vmul.f32 %v392, %v414
        %v431 = vmul.f32 %v392, %v415
        %v432 = vmul.f32 %v392, %v416
        %v433 = vmul.f32 %v392, %v417
        %v434 = vmul.f32 %v397, %v410
        %v435 = vmul.f32 %v397, %v411
        %v436 = vmul.f32 %v397, %v412
        %v437 = vmul.f32 %v397, %v413
        %v438 = vmul.f32 %v397, %v414
        %v439 = vmul.f32 %v397, %v415
        %v440 = vmul.f32 %v397, %v416
        %v441 = vmul.f32 %v397, %v417
        %v442 = vmul.f32 %v402, %v410
        %v443 = vmul.f32 %v402, %v411
        %v444 = vmul.f32 %v402, %v412
        %v445 = vmul.f32 %v402, %v413
        %v446 = vmul.f32 %v402, %v414
        %v447 = vmul.f32 %v402, %v415
        %v448 = vmul.f32 %v402, %v416
        %v449 = vmul.f32 %v402, %v417
        %v450 = vmul.f32 %v407, %v410
        %v451 = vmul.f32 %v407, %v411
        %v452 = vmul.f32 %v407, %v412
        %v453 = vmul.f32 %v407, %v413
        %v454 = vmul.f32 %v407, %v414
        %v455 = vmul.f32 %v407, %v415
        %v456 = vmul.f32 %v407, %v416
        %v457 = vmul.f32 %v407, %v417
        %v458 = vadd.f32 %v353, %v426
        %v459 = vadd.f32 %v354, %v427
        %v460 = vadd.f32 %v355, %v428
        %v461 = vadd.f32 %v356, %v429
        %v462 = vadd.f32 %v357, %v430
        %v463 = vadd.f32 %v358, %v431
        %v464 = vadd.f32 %v359, %v432
        %v465 = vadd.f32 %v360, %v433
        %v466 = vadd.f32 %v361, %v434
        %v467 = vadd.f32 %v362, %v435
        %v468 = vadd.f32 %v363, %v436
        %v469 = vadd.f32 %v364, %v437
        %v470 = vadd.f32 %v365, %v438
        %v471 = vadd.f32 %v366, %v439
        %v472 = vadd.f32 %v367, %v440
        %v473 = vadd.f32 %v368, %v441
        %v474 = vadd.f32 %v369, %v442
        %v475 = vadd.f32 %v370, %v443
        %v476 = vadd.f32 %v371, %v444
        %v477 = vadd.f32 %v372, %v445
        %v478 = vadd.f32 %v373, %v446
        %v479 = vadd.f32 %v374, %v447
        %v480 = vadd.f32 %v375, %v448
        %v481 = vadd.f32 %v376, %v449
        %v482 = vadd.f32 %v377, %v450
        %v483 = vadd.f32 %v378, %v451
        %v484 = vadd.f32 %v379, %v452
        %v485 = vadd.f32 %v380, %v453
        %v486 = vadd.f32 %v381, %v454
        %v487 = vadd.f32 %v382, %v455
        %v488 = vadd.f32 %v383, %v456
        %v489 = vadd.f32 %v384, %v457
        %v490 = vld [vmem:[%s3] sm:$0xff]
        %v491 = vld [vmem:[%s3 + $0x8] sm:$0xff]
        %v492 = vld [vmem:[%s3 + $0x10] sm:$0xff]
        %v493 = vld [vmem:[%s3 + $0x18] sm:$0xff]
        %495 = vset.pattern.permute.xlu0 0
        %496 = vperm.xlu0 %495, %v490
        %v497 = vpop.permute.xlu0 %496
        %500 = vset.pattern.permute.xlu0 0
        %501 = vperm.xlu0 %500, %v491
        %v502 = vpop.permute.xlu0 %501
        %505 = vset.pattern.permute.xlu0 0
        %506 = vperm.xlu0 %505, %v492
        %v507 = vpop.permute.xlu0 %506
        %510 = vset.pattern.permute.xlu0 0
        %511 = vperm.xlu0 %510, %v493
        %v512 = vpop.permute.xlu0 %511
        %v514 = vadd.f32 %v458, %v497
        %v515 = vadd.f32 %v459, %v497
        %v516 = vadd.f32 %v460, %v497
        %v517 = vadd.f32 %v461, %v497
        %v518 = vadd.f32 %v462, %v497
        %v519 = vadd.f32 %v463, %v497
        %v520 = vadd.f32 %v464, %v497
        %v521 = vadd.f32 %v465, %v497
        %v522 = vadd.f32 %v466, %v502
        %v523 = vadd.f32 %v467, %v502
        %v524 = vadd.f32 %v468, %v502
        %v525 = vadd.f32 %v469, %v502
        %v526 = vadd.f32 %v470, %v502
        %v527 = vadd.f32 %v471, %v502
        %v528 = vadd.f32 %v472, %v502
        %v529 = vadd.f32 %v473, %v502
        %v530 = vadd.f32 %v474, %v507
        %v531 = vadd.f32 %v475, %v507
        %v532 = vadd.f32 %v476, %v507
        %v533 = vadd.f32 %v477, %v507
        %v534 = vadd.f32 %v478, %v507
        %v535 = vadd.f32 %v479, %v507
        %v536 = vadd.f32 %v480, %v507
        %v537 = vadd.f32 %v481, %v507
        %v538 = vadd.f32 %v482, %v512
        %v539 = vadd.f32 %v483, %v512
        %v540 = vadd.f32 %v484, %v512
        %v541 = vadd.f32 %v485, %v512
        %v542 = vadd.f32 %v486, %v512
        %v543 = vadd.f32 %v487, %v512
        %v544 = vadd.f32 %v488, %v512
        %v545 = vadd.f32 %v489, %v512
        %v546 = vand.u32 2147483647, %v514
        %vm547 = vcmp.le.f32.partialorder %v546, 0.7853982
        %vm548 = vcmp.lt.s32.totalorder %v514, 0
        %v549 = vand.u32 %v514, 2139095040
        %v550 = vshrl.u32 %v549, 23
        %v551 = vsub.s32 %v550, 127
        %v552 = vand.u32 2147483647, %v514
        %v553 = vand.u32 %v552, 8388607
        %v554 = vor.u32 %v553, 8388608
        %v555 = vsub.s32 0, %v554
        %v556 = vadd.s32 %v551, 1
        %vm557 = vcmp.gt.s32.totalorder %v556, 0
        %v558 = vsel %vm557, %v556, 0
        %v559 = vshrl.u32 %v558, 5
        %v560 = vand.u32 %v558, 31
        %v561 = vsub.s32 32, %v560
        %v562 = vshrl.u32 683565275, %v561
        %v563 = vshll.u32 683565275, %v560
        %v564 = vshrl.u32 2475754826, %v561
        %v565 = vor.u32 %v563, %v564
        %v566 = vshll.u32 2475754826, %v560
        %v567 = vshrl.u32 2131351028, %v561
        %v568 = vor.u32 %v566, %v567
        %v569 = vshll.u32 2131351028, %v560
        %v570 = vshrl.u32 2102212464, %v561
        %v571 = vor.u32 %v569, %v570
        %v572 = vshll.u32 2102212464, %v560
        %v573 = vshrl.u32 920167782, %v561
        %v574 = vor.u32 %v572, %v573
        %v575 = vshll.u32 920167782, %v560
        %v576 = vshrl.u32 1326507024, %v561
        %v577 = vor.u32 %v575, %v576
        %vm578 = vcmp.lt.s32.totalorder %v559, 1
        %vm579 = vcmp.lt.s32.totalorder %v559, 2
        %vm580 = vcmp.lt.s32.totalorder %v559, 3
        %vm581 = vcmp.lt.s32.totalorder %v559, 4
        %v582 = vsel %vm578, %v562, %v565
        %v583 = vsel %vm581, %v571, 2102212464
        %v584 = vsel %vm580, %v568, %v583
        %v585 = vsel %vm579, %v582, %v584
        %v586 = vsel %vm578, %v565, %v568
        %v587 = vsel %vm581, %v574, 920167782
        %v588 = vsel %vm580, %v571, %v587
        %v589 = vsel %vm579, %v586, %v588
        %v590 = vsel %vm578, %v568, %v571
        %v591 = vsel %vm581, %v577, 1326507024
        %v592 = vsel %vm580, %v574, %v591
        %v593 = vsel %vm579, %v590, %v592
        %v594 = vshll.u32 %v554, 8
        %v595 = vand.u32 %v594, 65535
        %v596 = vshrl.u32 %v594, 16
        %v597 = vand.u32 %v593, 65535
        %v598 = vshrl.u32 %v593, 16
        %v599 = vmul.u32 %v595, %v597
        %v600 = vmul.u32 %v595, %v598
        %v601 = vmul.u32 %v596, %v597
        %v602 = vmul.u32 %v596, %v598
        %v603 = vshll.u32 %v600, 16
        %v604 = vshrl.u32 %v600, 16
        %v605 = vshll.u32 %v601, 16
        %v606 = vshrl.u32 %v601, 16
        %vm607 = vc.u32 %v599, %v603
        %v608 = vsel %vm607, 1, 0
        %v609 = vadd.s32 %v599, %v603
        %v610 = vadd.s32 %v602, %v608
        %vm611 = vc.u32 %v609, %v605
        %v612 = vsel %vm611, 1, 0
        %v613 = vadd.s32 %v609, %v605
        %v614 = vadd.s32 %v610, %v612
        %v615 = vadd.s32 %v614, %v604
        %v616 = vadd.s32 %v615, %v606
        %v617 = vand.u32 %v594, 65535
        %v618 = vshrl.u32 %v594, 16
        %v619 = vand.u32 %v589, 65535
        %v620 = vshrl.u32 %v589, 16
        %v621 = vmul.u32 %v617, %v619
        %v622 = vmul.u32 %v617, %v620
        %v623 = vmul.u32 %v618, %v619
        %v624 = vmul.u32 %v618, %v620
        %v625 = vshll.u32 %v622, 16
        %v626 = vshrl.u32 %v622, 16
        %v627 = vshll.u32 %v623, 16
        %v628 = vshrl.u32 %v623, 16
        %vm629 = vc.u32 %v621, %v625
        %v630 = vsel %vm629, 1, 0
        %v631 = vadd.s32 %v621, %v625
        %v632 = vadd.s32 %v624, %v630
        %vm633 = vc.u32 %v631, %v627
        %v634 = vsel %vm633, 1, 0
        %v635 = vadd.s32 %v631, %v627
        %v636 = vadd.s32 %v632, %v634
        %v637 = vadd.s32 %v636, %v626
        %v638 = vadd.s32 %v637, %v628
        %v639 = vmul.u32 %v594, %v585
        %v640 = vadd.s32 %v616, %v635
        %vm641 = vc.u32 %v616, %v635
        %v642 = vadd.s32 %v638, 1
        %v643 = vsel %vm641, %v642, %v638
        %v644 = vadd.s32 %v639, %v643
        %v645 = vadd.s32 %v644, 536870912
        %v646 = vshrl.u32 %v645, 30
        %v647 = vshll.u32 %v646, 30
        %v648 = vsub.s32 %v644, %v647
        %vm649 = vcmp.lt.s32.totalorder %v648, 0
        %v650 = vsub.s32 0, %v648
        %v651 = vsel %vm649, %v650, %v648
        %v652 = vclz %v651
        %v653 = vsub.s32 %v652, 2
        %vm654 = vcmp.gt.s32.totalorder 0, %v653
        %v655 = vsel %vm654, 0, %v653
        %v656 = vsub.s32 32, %v655
        %v657 = vshll.u32 %v648, %v655
        %v658 = vshrl.u32 %v640, %v656
        %v659 = vor.u32 %v657, %v658
        %v660 = vsub.s32 4294967266, %v655
        %v661 = vadd.s32 %v660, 127
        %v662 = vshll.u32 %v661, 23
        %v663 = vor.u32 4788187, %v662
        %v664 = vand.u32 2147483647, %v663
        %v666 = vcvt.s32.f32 %v659
        %v667 = vmul.f32 %v666, %v664
        %v668 = vxor.u32 %v667, 2147483648
        %v669 = vsel %vm548, %v668, %v667
        %v670 = vsub.s32 4, %v646
        %v671 = vsel %vm548, %v670, %v646
        %v672 = vsel %vm547, %v514, %v669
        %v673 = vsel %vm547, 0, %v671
        %v674 = vmul.f32 %v672, %v672
        %v675 = vmul.f32 %v674, -0.001358992
        %v676 = vadd.f32 %v675, 0.041655596
        %v677 = vmul.f32 %v674, %v676
        %v678 = vadd.f32 %v677, -0.4999988
        %v679 = vmul.f32 %v674, %v678
        %v680 = vadd.f32 1.0, %v679
        %v681 = vmul.f32 %v672, %v672
        %v682 = vmul.f32 %v681, -0.00019511016
        %v683 = vadd.f32 %v682, 0.008332121
        %v684 = vmul.f32 %v681, %v683
        %v685 = vadd.f32 %v684, -0.16666654
        %v686 = vmul.f32 %v681, %v685
        %v687 = vadd.f32 %v686, 1.0
        %v688 = vmul.f32 %v687, %v672
        %vm689 = vweird.f32 %v514
        %v690 = vadd.s32 %v673, 3
        %v691 = vand.u32 %v690, 3
        %vm692 = vcmp.lt.s32.totalorder %v691, 2
        %vm693 = vcmp.eq.s32.totalorder %v691, 0
        %v694 = vxor.u32 %v688, 2147483648
        %v695 = vsel %vm693, %v680, %v694
        %vm696 = vcmp.eq.s32.totalorder %v691, 2
        %v697 = vxor.u32 %v680, 2147483648
        %v698 = vsel %vm696, %v697, %v688
        %v699 = vsel %vm692, %v695, %v698
        %v700 = vsel %vm689, nan, %v699
        %v701 = vand.u32 2147483647, %v515
        %vm702 = vcmp.le.f32.partialorder %v701, 0.7853982
        %vm703 = vcmp.lt.s32.totalorder %v515, 0
        %v704 = vand.u32 %v515, 2139095040
        %v705 = vshrl.u32 %v704, 23
        %v706 = vsub.s32 %v705, 127
        %v707 = vand.u32 2147483647, %v515
        %v708 = vand.u32 %v707, 8388607
        %v709 = vor.u32 %v708, 8388608
        %v710 = vsub.s32 0, %v709
        %v711 = vadd.s32 %v706, 1
        %vm712 = vcmp.gt.s32.totalorder %v711, 0
        %v713 = vsel %vm712, %v711, 0
        %v714 = vshrl.u32 %v713, 5
        %v715 = vand.u32 %v713, 31
        %v716 = vsub.s32 32, %v715
        %v717 = vshrl.u32 683565275, %v716
        %v718 = vshll.u32 683565275, %v715
        %v719 = vshrl.u32 2475754826, %v716
        %v720 = vor.u32 %v718, %v719
        %v721 = vshll.u32 2475754826, %v715
        %v722 = vshrl.u32 2131351028, %v716
        %v723 = vor.u32 %v721, %v722
        %v724 = vshll.u32 2131351028, %v715
        %v725 = vshrl.u32 2102212464, %v716
        %v726 = vor.u32 %v724, %v725
        %v727 = vshll.u32 2102212464, %v715
        %v728 = vshrl.u32 920167782, %v716
        %v729 = vor.u32 %v727, %v728
        %v730 = vshll.u32 920167782, %v715
        %v731 = vshrl.u32 1326507024, %v716
        %v732 = vor.u32 %v730, %v731
        %vm733 = vcmp.lt.s32.totalorder %v714, 1
        %vm734 = vcmp.lt.s32.totalorder %v714, 2
        %vm735 = vcmp.lt.s32.totalorder %v714, 3
        %vm736 = vcmp.lt.s32.totalorder %v714, 4
        %v737 = vsel %vm733, %v717, %v720
        %v738 = vsel %vm736, %v726, 2102212464
        %v739 = vsel %vm735, %v723, %v738
        %v740 = vsel %vm734, %v737, %v739
        %v741 = vsel %vm733, %v720, %v723
        %v742 = vsel %vm736, %v729, 920167782
        %v743 = vsel %vm735, %v726, %v742
        %v744 = vsel %vm734, %v741, %v743
        %v745 = vsel %vm733, %v723, %v726
        %v746 = vsel %vm736, %v732, 1326507024
        %v747 = vsel %vm735, %v729, %v746
        %v748 = vsel %vm734, %v745, %v747
        %v749 = vshll.u32 %v709, 8
        %v750 = vand.u32 %v749, 65535
        %v751 = vshrl.u32 %v749, 16
        %v752 = vand.u32 %v748, 65535
        %v753 = vshrl.u32 %v748, 16
        %v754 = vmul.u32 %v750, %v752
        %v755 = vmul.u32 %v750, %v753
        %v756 = vmul.u32 %v751, %v752
        %v757 = vmul.u32 %v751, %v753
        %v758 = vshll.u32 %v755, 16
        %v759 = vshrl.u32 %v755, 16
        %v760 = vshll.u32 %v756, 16
        %v761 = vshrl.u32 %v756, 16
        %vm762 = vc.u32 %v754, %v758
        %v763 = vsel %vm762, 1, 0
        %v764 = vadd.s32 %v754, %v758
        %v765 = vadd.s32 %v757, %v763
        %vm766 = vc.u32 %v764, %v760
        %v767 = vsel %vm766, 1, 0
        %v768 = vadd.s32 %v764, %v760
        %v769 = vadd.s32 %v765, %v767
        %v770 = vadd.s32 %v769, %v759
        %v771 = vadd.s32 %v770, %v761
        %v772 = vand.u32 %v749, 65535
        %v773 = vshrl.u32 %v749, 16
        %v774 = vand.u32 %v744, 65535
        %v775 = vshrl.u32 %v744, 16
        %v776 = vmul.u32 %v772, %v774
        %v777 = vmul.u32 %v772, %v775
        %v778 = vmul.u32 %v773, %v774
        %v779 = vmul.u32 %v773, %v775
        %v780 = vshll.u32 %v777, 16
        %v781 = vshrl.u32 %v777, 16
        %v782 = vshll.u32 %v778, 16
        %v783 = vshrl.u32 %v778, 16
        %vm784 = vc.u32 %v776, %v780
        %v785 = vsel %vm784, 1, 0
        %v786 = vadd.s32 %v776, %v780
        %v787 = vadd.s32 %v779, %v785
        %vm788 = vc.u32 %v786, %v782
        %v789 = vsel %vm788, 1, 0
        %v790 = vadd.s32 %v786, %v782
        %v791 = vadd.s32 %v787, %v789
        %v792 = vadd.s32 %v791, %v781
        %v793 = vadd.s32 %v792, %v783
        %v794 = vmul.u32 %v749, %v740
        %v795 = vadd.s32 %v771, %v790
        %vm796 = vc.u32 %v771, %v790
        %v797 = vadd.s32 %v793, 1
        %v798 = vsel %vm796, %v797, %v793
        %v799 = vadd.s32 %v794, %v798
        %v800 = vadd.s32 %v799, 536870912
        %v801 = vshrl.u32 %v800, 30
        %v802 = vshll.u32 %v801, 30
        %v803 = vsub.s32 %v799, %v802
        %vm804 = vcmp.lt.s32.totalorder %v803, 0
        %v805 = vsub.s32 0, %v803
        %v806 = vsel %vm804, %v805, %v803
        %v807 = vclz %v806
        %v808 = vsub.s32 %v807, 2
        %vm809 = vcmp.gt.s32.totalorder 0, %v808
        %v810 = vsel %vm809, 0, %v808
        %v811 = vsub.s32 32, %v810
        %v812 = vshll.u32 %v803, %v810
        %v813 = vshrl.u32 %v795, %v811
        %v814 = vor.u32 %v812, %v813
        %v815 = vsub.s32 4294967266, %v810
        %v816 = vadd.s32 %v815, 127
        %v817 = vshll.u32 %v816, 23
        %v818 = vor.u32 4788187, %v817
        %v819 = vand.u32 2147483647, %v818
        %v821 = vcvt.s32.f32 %v814
        %v822 = vmul.f32 %v821, %v819
        %v823 = vxor.u32 %v822, 2147483648
        %v824 = vsel %vm703, %v823, %v822
        %v825 = vsub.s32 4, %v801
        %v826 = vsel %vm703, %v825, %v801
        %v827 = vsel %vm702, %v515, %v824
        %v828 = vsel %vm702, 0, %v826
        %v829 = vmul.f32 %v827, %v827
        %v830 = vmul.f32 %v829, -0.001358992
        %v831 = vadd.f32 %v830, 0.041655596
        %v832 = vmul.f32 %v829, %v831
        %v833 = vadd.f32 %v832, -0.4999988
        %v834 = vmul.f32 %v829, %v833
        %v835 = vadd.f32 1.0, %v834
        %v836 = vmul.f32 %v827, %v827
        %v837 = vmul.f32 %v836, -0.00019511016
        %v838 = vadd.f32 %v837, 0.008332121
        %v839 = vmul.f32 %v836, %v838
        %v840 = vadd.f32 %v839, -0.16666654
        %v841 = vmul.f32 %v836, %v840
        %v842 = vadd.f32 %v841, 1.0
        %v843 = vmul.f32 %v842, %v827
        %vm844 = vweird.f32 %v515
        %v845 = vadd.s32 %v828, 3
        %v846 = vand.u32 %v845, 3
        %vm847 = vcmp.lt.s32.totalorder %v846, 2
        %vm848 = vcmp.eq.s32.totalorder %v846, 0
        %v849 = vxor.u32 %v843, 2147483648
        %v850 = vsel %vm848, %v835, %v849
        %vm851 = vcmp.eq.s32.totalorder %v846, 2
        %v852 = vxor.u32 %v835, 2147483648
        %v853 = vsel %vm851, %v852, %v843
        %v854 = vsel %vm847, %v850, %v853
        %v855 = vsel %vm844, nan, %v854
        %v856 = vand.u32 2147483647, %v516
        %vm857 = vcmp.le.f32.partialorder %v856, 0.7853982
        %vm858 = vcmp.lt.s32.totalorder %v516, 0
        %v859 = vand.u32 %v516, 2139095040
        %v860 = vshrl.u32 %v859, 23
        %v861 = vsub.s32 %v860, 127
        %v862 = vand.u32 2147483647, %v516
        %v863 = vand.u32 %v862, 8388607
        %v864 = vor.u32 %v863, 8388608
        %v865 = vsub.s32 0, %v864
        %v866 = vadd.s32 %v861, 1
        %vm867 = vcmp.gt.s32.totalorder %v866, 0
        %v868 = vsel %vm867, %v866, 0
        %v869 = vshrl.u32 %v868, 5
        %v870 = vand.u32 %v868, 31
        %v871 = vsub.s32 32, %v870
        %v872 = vshrl.u32 683565275, %v871
        %v873 = vshll.u32 683565275, %v870
        %v874 = vshrl.u32 2475754826, %v871
        %v875 = vor.u32 %v873, %v874
        %v876 = vshll.u32 2475754826, %v870
        %v877 = vshrl.u32 2131351028, %v871
        %v878 = vor.u32 %v876, %v877
        %v879 = vshll.u32 2131351028, %v870
        %v880 = vshrl.u32 2102212464, %v871
        %v881 = vor.u32 %v879, %v880
        %v882 = vshll.u32 2102212464, %v870
        %v883 = vshrl.u32 920167782, %v871
        %v884 = vor.u32 %v882, %v883
        %v885 = vshll.u32 920167782, %v870
        %v886 = vshrl.u32 1326507024, %v871
        %v887 = vor.u32 %v885, %v886
        %vm888 = vcmp.lt.s32.totalorder %v869, 1
        %vm889 = vcmp.lt.s32.totalorder %v869, 2
        %vm890 = vcmp.lt.s32.totalorder %v869, 3
        %vm891 = vcmp.lt.s32.totalorder %v869, 4
        %v892 = vsel %vm888, %v872, %v875
        %v893 = vsel %vm891, %v881, 2102212464
        %v894 = vsel %vm890, %v878, %v893
        %v895 = vsel %vm889, %v892, %v894
        %v896 = vsel %vm888, %v875, %v878
        %v897 = vsel %vm891, %v884, 920167782
        %v898 = vsel %vm890, %v881, %v897
        %v899 = vsel %vm889, %v896, %v898
        %v900 = vsel %vm888, %v878, %v881
        %v901 = vsel %vm891, %v887, 1326507024
        %v902 = vsel %vm890, %v884, %v901
        %v903 = vsel %vm889, %v900, %v902
        %v904 = vshll.u32 %v864, 8
        %v905 = vand.u32 %v904, 65535
        %v906 = vshrl.u32 %v904, 16
        %v907 = vand.u32 %v903, 65535
        %v908 = vshrl.u32 %v903, 16
        %v909 = vmul.u32 %v905, %v907
        %v910 = vmul.u32 %v905, %v908
        %v911 = vmul.u32 %v906, %v907
        %v912 = vmul.u32 %v906, %v908
        %v913 = vshll.u32 %v910, 16
        %v914 = vshrl.u32 %v910, 16
        %v915 = vshll.u32 %v911, 16
        %v916 = vshrl.u32 %v911, 16
        %vm917 = vc.u32 %v909, %v913
        %v918 = vsel %vm917, 1, 0
        %v919 = vadd.s32 %v909, %v913
        %v920 = vadd.s32 %v912, %v918
        %vm921 = vc.u32 %v919, %v915
        %v922 = vsel %vm921, 1, 0
        %v923 = vadd.s32 %v919, %v915
        %v924 = vadd.s32 %v920, %v922
        %v925 = vadd.s32 %v924, %v914
        %v926 = vadd.s32 %v925, %v916
        %v927 = vand.u32 %v904, 65535
        %v928 = vshrl.u32 %v904, 16
        %v929 = vand.u32 %v899, 65535
        %v930 = vshrl.u32 %v899, 16
        %v931 = vmul.u32 %v927, %v929
        %v932 = vmul.u32 %v927, %v930
        %v933 = vmul.u32 %v928, %v929
        %v934 = vmul.u32 %v928, %v930
        %v935 = vshll.u32 %v932, 16
        %v936 = vshrl.u32 %v932, 16
        %v937 = vshll.u32 %v933, 16
        %v938 = vshrl.u32 %v933, 16
        %vm939 = vc.u32 %v931, %v935
        %v940 = vsel %vm939, 1, 0
        %v941 = vadd.s32 %v931, %v935
        %v942 = vadd.s32 %v934, %v940
        %vm943 = vc.u32 %v941, %v937
        %v944 = vsel %vm943, 1, 0
        %v945 = vadd.s32 %v941, %v937
        %v946 = vadd.s32 %v942, %v944
        %v947 = vadd.s32 %v946, %v936
        %v948 = vadd.s32 %v947, %v938
        %v949 = vmul.u32 %v904, %v895
        %v950 = vadd.s32 %v926, %v945
        %vm951 = vc.u32 %v926, %v945
        %v952 = vadd.s32 %v948, 1
        %v953 = vsel %vm951, %v952, %v948
        %v954 = vadd.s32 %v949, %v953
        %v955 = vadd.s32 %v954, 536870912
        %v956 = vshrl.u32 %v955, 30
        %v957 = vshll.u32 %v956, 30
        %v958 = vsub.s32 %v954, %v957
        %vm959 = vcmp.lt.s32.totalorder %v958, 0
        %v960 = vsub.s32 0, %v958
        %v961 = vsel %vm959, %v960, %v958
        %v962 = vclz %v961
        %v963 = vsub.s32 %v962, 2
        %vm964 = vcmp.gt.s32.totalorder 0, %v963
        %v965 = vsel %vm964, 0, %v963
        %v966 = vsub.s32 32, %v965
        %v967 = vshll.u32 %v958, %v965
        %v968 = vshrl.u32 %v950, %v966
        %v969 = vor.u32 %v967, %v968
        %v970 = vsub.s32 4294967266, %v965
        %v971 = vadd.s32 %v970, 127
        %v972 = vshll.u32 %v971, 23
        %v973 = vor.u32 4788187, %v972
        %v974 = vand.u32 2147483647, %v973
        %v976 = vcvt.s32.f32 %v969
        %v977 = vmul.f32 %v976, %v974
        %v978 = vxor.u32 %v977, 2147483648
        %v979 = vsel %vm858, %v978, %v977
        %v980 = vsub.s32 4, %v956
        %v981 = vsel %vm858, %v980, %v956
        %v982 = vsel %vm857, %v516, %v979
        %v983 = vsel %vm857, 0, %v981
        %v984 = vmul.f32 %v982, %v982
        %v985 = vmul.f32 %v984, -0.001358992
        %v986 = vadd.f32 %v985, 0.041655596
        %v987 = vmul.f32 %v984, %v986
        %v988 = vadd.f32 %v987, -0.4999988
        %v989 = vmul.f32 %v984, %v988
        %v990 = vadd.f32 1.0, %v989
        %v991 = vmul.f32 %v982, %v982
        %v992 = vmul.f32 %v991, -0.00019511016
        %v993 = vadd.f32 %v992, 0.008332121
        %v994 = vmul.f32 %v991, %v993
        %v995 = vadd.f32 %v994, -0.16666654
        %v996 = vmul.f32 %v991, %v995
        %v997 = vadd.f32 %v996, 1.0
        %v998 = vmul.f32 %v997, %v982
        %vm999 = vweird.f32 %v516
        %v1000 = vadd.s32 %v983, 3
        %v1001 = vand.u32 %v1000, 3
        %vm1002 = vcmp.lt.s32.totalorder %v1001, 2
        %vm1003 = vcmp.eq.s32.totalorder %v1001, 0
        %v1004 = vxor.u32 %v998, 2147483648
        %v1005 = vsel %vm1003, %v990, %v1004
        %vm1006 = vcmp.eq.s32.totalorder %v1001, 2
        %v1007 = vxor.u32 %v990, 2147483648
        %v1008 = vsel %vm1006, %v1007, %v998
        %v1009 = vsel %vm1002, %v1005, %v1008
        %v1010 = vsel %vm999, nan, %v1009
        %v1011 = vand.u32 2147483647, %v517
        %vm1012 = vcmp.le.f32.partialorder %v1011, 0.7853982
        %vm1013 = vcmp.lt.s32.totalorder %v517, 0
        %v1014 = vand.u32 %v517, 2139095040
        %v1015 = vshrl.u32 %v1014, 23
        %v1016 = vsub.s32 %v1015, 127
        %v1017 = vand.u32 2147483647, %v517
        %v1018 = vand.u32 %v1017, 8388607
        %v1019 = vor.u32 %v1018, 8388608
        %v1020 = vsub.s32 0, %v1019
        %v1021 = vadd.s32 %v1016, 1
        %vm1022 = vcmp.gt.s32.totalorder %v1021, 0
        %v1023 = vsel %vm1022, %v1021, 0
        %v1024 = vshrl.u32 %v1023, 5
        %v1025 = vand.u32 %v1023, 31
        %v1026 = vsub.s32 32, %v1025
        %v1027 = vshrl.u32 683565275, %v1026
        %v1028 = vshll.u32 683565275, %v1025
        %v1029 = vshrl.u32 2475754826, %v1026
        %v1030 = vor.u32 %v1028, %v1029
        %v1031 = vshll.u32 2475754826, %v1025
        %v1032 = vshrl.u32 2131351028, %v1026
        %v1033 = vor.u32 %v1031, %v1032
        %v1034 = vshll.u32 2131351028, %v1025
        %v1035 = vshrl.u32 2102212464, %v1026
        %v1036 = vor.u32 %v1034, %v1035
        %v1037 = vshll.u32 2102212464, %v1025
        %v1038 = vshrl.u32 920167782, %v1026
        %v1039 = vor.u32 %v1037, %v1038
        %v1040 = vshll.u32 920167782, %v1025
        %v1041 = vshrl.u32 1326507024, %v1026
        %v1042 = vor.u32 %v1040, %v1041
        %vm1043 = vcmp.lt.s32.totalorder %v1024, 1
        %vm1044 = vcmp.lt.s32.totalorder %v1024, 2
        %vm1045 = vcmp.lt.s32.totalorder %v1024, 3
        %vm1046 = vcmp.lt.s32.totalorder %v1024, 4
        %v1047 = vsel %vm1043, %v1027, %v1030
        %v1048 = vsel %vm1046, %v1036, 2102212464
        %v1049 = vsel %vm1045, %v1033, %v1048
        %v1050 = vsel %vm1044, %v1047, %v1049
        %v1051 = vsel %vm1043, %v1030, %v1033
        %v1052 = vsel %vm1046, %v1039, 920167782
        %v1053 = vsel %vm1045, %v1036, %v1052
        %v1054 = vsel %vm1044, %v1051, %v1053
        %v1055 = vsel %vm1043, %v1033, %v1036
        %v1056 = vsel %vm1046, %v1042, 1326507024
        %v1057 = vsel %vm1045, %v1039, %v1056
        %v1058 = vsel %vm1044, %v1055, %v1057
        %v1059 = vshll.u32 %v1019, 8
        %v1060 = vand.u32 %v1059, 65535
        %v1061 = vshrl.u32 %v1059, 16
        %v1062 = vand.u32 %v1058, 65535
        %v1063 = vshrl.u32 %v1058, 16
        %v1064 = vmul.u32 %v1060, %v1062
        %v1065 = vmul.u32 %v1060, %v1063
        %v1066 = vmul.u32 %v1061, %v1062
        %v1067 = vmul.u32 %v1061, %v1063
        %v1068 = vshll.u32 %v1065, 16
        %v1069 = vshrl.u32 %v1065, 16
        %v1070 = vshll.u32 %v1066, 16
        %v1071 = vshrl.u32 %v1066, 16
        %vm1072 = vc.u32 %v1064, %v1068
        %v1073 = vsel %vm1072, 1, 0
        %v1074 = vadd.s32 %v1064, %v1068
        %v1075 = vadd.s32 %v1067, %v1073
        %vm1076 = vc.u32 %v1074, %v1070
        %v1077 = vsel %vm1076, 1, 0
        %v1078 = vadd.s32 %v1074, %v1070
        %v1079 = vadd.s32 %v1075, %v1077
        %v1080 = vadd.s32 %v1079, %v1069
        %v1081 = vadd.s32 %v1080, %v1071
        %v1082 = vand.u32 %v1059, 65535
        %v1083 = vshrl.u32 %v1059, 16
        %v1084 = vand.u32 %v1054, 65535
        %v1085 = vshrl.u32 %v1054, 16
        %v1086 = vmul.u32 %v1082, %v1084
        %v1087 = vmul.u32 %v1082, %v1085
        %v1088 = vmul.u32 %v1083, %v1084
        %v1089 = vmul.u32 %v1083, %v1085
        %v1090 = vshll.u32 %v1087, 16
        %v1091 = vshrl.u32 %v1087, 16
        %v1092 = vshll.u32 %v1088, 16
        %v1093 = vshrl.u32 %v1088, 16
        %vm1094 = vc.u32 %v1086, %v1090
        %v1095 = vsel %vm1094, 1, 0
        %v1096 = vadd.s32 %v1086, %v1090
        %v1097 = vadd.s32 %v1089, %v1095
        %vm1098 = vc.u32 %v1096, %v1092
        %v1099 = vsel %vm1098, 1, 0
        %v1100 = vadd.s32 %v1096, %v1092
        %v1101 = vadd.s32 %v1097, %v1099
        %v1102 = vadd.s32 %v1101, %v1091
        %v1103 = vadd.s32 %v1102, %v1093
        %v1104 = vmul.u32 %v1059, %v1050
        %v1105 = vadd.s32 %v1081, %v1100
        %vm1106 = vc.u32 %v1081, %v1100
        %v1107 = vadd.s32 %v1103, 1
        %v1108 = vsel %vm1106, %v1107, %v1103
        %v1109 = vadd.s32 %v1104, %v1108
        %v1110 = vadd.s32 %v1109, 536870912
        %v1111 = vshrl.u32 %v1110, 30
        %v1112 = vshll.u32 %v1111, 30
        %v1113 = vsub.s32 %v1109, %v1112
        %vm1114 = vcmp.lt.s32.totalorder %v1113, 0
        %v1115 = vsub.s32 0, %v1113
        %v1116 = vsel %vm1114, %v1115, %v1113
        %v1117 = vclz %v1116
        %v1118 = vsub.s32 %v1117, 2
        %vm1119 = vcmp.gt.s32.totalorder 0, %v1118
        %v1120 = vsel %vm1119, 0, %v1118
        %v1121 = vsub.s32 32, %v1120
        %v1122 = vshll.u32 %v1113, %v1120
        %v1123 = vshrl.u32 %v1105, %v1121
        %v1124 = vor.u32 %v1122, %v1123
        %v1125 = vsub.s32 4294967266, %v1120
        %v1126 = vadd.s32 %v1125, 127
        %v1127 = vshll.u32 %v1126, 23
        %v1128 = vor.u32 4788187, %v1127
        %v1129 = vand.u32 2147483647, %v1128
        %v1131 = vcvt.s32.f32 %v1124
        %v1132 = vmul.f32 %v1131, %v1129
        %v1133 = vxor.u32 %v1132, 2147483648
        %v1134 = vsel %vm1013, %v1133, %v1132
        %v1135 = vsub.s32 4, %v1111
        %v1136 = vsel %vm1013, %v1135, %v1111
        %v1137 = vsel %vm1012, %v517, %v1134
        %v1138 = vsel %vm1012, 0, %v1136
        %v1139 = vmul.f32 %v1137, %v1137
        %v1140 = vmul.f32 %v1139, -0.001358992
        %v1141 = vadd.f32 %v1140, 0.041655596
        %v1142 = vmul.f32 %v1139, %v1141
        %v1143 = vadd.f32 %v1142, -0.4999988
        %v1144 = vmul.f32 %v1139, %v1143
        %v1145 = vadd.f32 1.0, %v1144
        %v1146 = vmul.f32 %v1137, %v1137
        %v1147 = vmul.f32 %v1146, -0.00019511016
        %v1148 = vadd.f32 %v1147, 0.008332121
        %v1149 = vmul.f32 %v1146, %v1148
        %v1150 = vadd.f32 %v1149, -0.16666654
        %v1151 = vmul.f32 %v1146, %v1150
        %v1152 = vadd.f32 %v1151, 1.0
        %v1153 = vmul.f32 %v1152, %v1137
        %vm1154 = vweird.f32 %v517
        %v1155 = vadd.s32 %v1138, 3
        %v1156 = vand.u32 %v1155, 3
        %vm1157 = vcmp.lt.s32.totalorder %v1156, 2
        %vm1158 = vcmp.eq.s32.totalorder %v1156, 0
        %v1159 = vxor.u32 %v1153, 2147483648
        %v1160 = vsel %vm1158, %v1145, %v1159
        %vm1161 = vcmp.eq.s32.totalorder %v1156, 2
        %v1162 = vxor.u32 %v1145, 2147483648
        %v1163 = vsel %vm1161, %v1162, %v1153
        %v1164 = vsel %vm1157, %v1160, %v1163
        %v1165 = vsel %vm1154, nan, %v1164
        %v1166 = vand.u32 2147483647, %v518
        %vm1167 = vcmp.le.f32.partialorder %v1166, 0.7853982
        %vm1168 = vcmp.lt.s32.totalorder %v518, 0
        %v1169 = vand.u32 %v518, 2139095040
        %v1170 = vshrl.u32 %v1169, 23
        %v1171 = vsub.s32 %v1170, 127
        %v1172 = vand.u32 2147483647, %v518
        %v1173 = vand.u32 %v1172, 8388607
        %v1174 = vor.u32 %v1173, 8388608
        %v1175 = vsub.s32 0, %v1174
        %v1176 = vadd.s32 %v1171, 1
        %vm1177 = vcmp.gt.s32.totalorder %v1176, 0
        %v1178 = vsel %vm1177, %v1176, 0
        %v1179 = vshrl.u32 %v1178, 5
        %v1180 = vand.u32 %v1178, 31
        %v1181 = vsub.s32 32, %v1180
        %v1182 = vshrl.u32 683565275, %v1181
        %v1183 = vshll.u32 683565275, %v1180
        %v1184 = vshrl.u32 2475754826, %v1181
        %v1185 = vor.u32 %v1183, %v1184
        %v1186 = vshll.u32 2475754826, %v1180
        %v1187 = vshrl.u32 2131351028, %v1181
        %v1188 = vor.u32 %v1186, %v1187
        %v1189 = vshll.u32 2131351028, %v1180
        %v1190 = vshrl.u32 2102212464, %v1181
        %v1191 = vor.u32 %v1189, %v1190
        %v1192 = vshll.u32 2102212464, %v1180
        %v1193 = vshrl.u32 920167782, %v1181
        %v1194 = vor.u32 %v1192, %v1193
        %v1195 = vshll.u32 920167782, %v1180
        %v1196 = vshrl.u32 1326507024, %v1181
        %v1197 = vor.u32 %v1195, %v1196
        %vm1198 = vcmp.lt.s32.totalorder %v1179, 1
        %vm1199 = vcmp.lt.s32.totalorder %v1179, 2
        %vm1200 = vcmp.lt.s32.totalorder %v1179, 3
        %vm1201 = vcmp.lt.s32.totalorder %v1179, 4
        %v1202 = vsel %vm1198, %v1182, %v1185
        %v1203 = vsel %vm1201, %v1191, 2102212464
        %v1204 = vsel %vm1200, %v1188, %v1203
        %v1205 = vsel %vm1199, %v1202, %v1204
        %v1206 = vsel %vm1198, %v1185, %v1188
        %v1207 = vsel %vm1201, %v1194, 920167782
        %v1208 = vsel %vm1200, %v1191, %v1207
        %v1209 = vsel %vm1199, %v1206, %v1208
        %v1210 = vsel %vm1198, %v1188, %v1191
        %v1211 = vsel %vm1201, %v1197, 1326507024
        %v1212 = vsel %vm1200, %v1194, %v1211
        %v1213 = vsel %vm1199, %v1210, %v1212
        %v1214 = vshll.u32 %v1174, 8
        %v1215 = vand.u32 %v1214, 65535
        %v1216 = vshrl.u32 %v1214, 16
        %v1217 = vand.u32 %v1213, 65535
        %v1218 = vshrl.u32 %v1213, 16
        %v1219 = vmul.u32 %v1215, %v1217
        %v1220 = vmul.u32 %v1215, %v1218
        %v1221 = vmul.u32 %v1216, %v1217
        %v1222 = vmul.u32 %v1216, %v1218
        %v1223 = vshll.u32 %v1220, 16
        %v1224 = vshrl.u32 %v1220, 16
        %v1225 = vshll.u32 %v1221, 16
        %v1226 = vshrl.u32 %v1221, 16
        %vm1227 = vc.u32 %v1219, %v1223
        %v1228 = vsel %vm1227, 1, 0
        %v1229 = vadd.s32 %v1219, %v1223
        %v1230 = vadd.s32 %v1222, %v1228
        %vm1231 = vc.u32 %v1229, %v1225
        %v1232 = vsel %vm1231, 1, 0
        %v1233 = vadd.s32 %v1229, %v1225
        %v1234 = vadd.s32 %v1230, %v1232
        %v1235 = vadd.s32 %v1234, %v1224
        %v1236 = vadd.s32 %v1235, %v1226
        %v1237 = vand.u32 %v1214, 65535
        %v1238 = vshrl.u32 %v1214, 16
        %v1239 = vand.u32 %v1209, 65535
        %v1240 = vshrl.u32 %v1209, 16
        %v1241 = vmul.u32 %v1237, %v1239
        %v1242 = vmul.u32 %v1237, %v1240
        %v1243 = vmul.u32 %v1238, %v1239
        %v1244 = vmul.u32 %v1238, %v1240
        %v1245 = vshll.u32 %v1242, 16
        %v1246 = vshrl.u32 %v1242, 16
        %v1247 = vshll.u32 %v1243, 16
        %v1248 = vshrl.u32 %v1243, 16
        %vm1249 = vc.u32 %v1241, %v1245
        %v1250 = vsel %vm1249, 1, 0
        %v1251 = vadd.s32 %v1241, %v1245
        %v1252 = vadd.s32 %v1244, %v1250
        %vm1253 = vc.u32 %v1251, %v1247
        %v1254 = vsel %vm1253, 1, 0
        %v1255 = vadd.s32 %v1251, %v1247
        %v1256 = vadd.s32 %v1252, %v1254
        %v1257 = vadd.s32 %v1256, %v1246
        %v1258 = vadd.s32 %v1257, %v1248
        %v1259 = vmul.u32 %v1214, %v1205
        %v1260 = vadd.s32 %v1236, %v1255
        %vm1261 = vc.u32 %v1236, %v1255
        %v1262 = vadd.s32 %v1258, 1
        %v1263 = vsel %vm1261, %v1262, %v1258
        %v1264 = vadd.s32 %v1259, %v1263
        %v1265 = vadd.s32 %v1264, 536870912
        %v1266 = vshrl.u32 %v1265, 30
        %v1267 = vshll.u32 %v1266, 30
        %v1268 = vsub.s32 %v1264, %v1267
        %vm1269 = vcmp.lt.s32.totalorder %v1268, 0
        %v1270 = vsub.s32 0, %v1268
        %v1271 = vsel %vm1269, %v1270, %v1268
        %v1272 = vclz %v1271
        %v1273 = vsub.s32 %v1272, 2
        %vm1274 = vcmp.gt.s32.totalorder 0, %v1273
        %v1275 = vsel %vm1274, 0, %v1273
        %v1276 = vsub.s32 32, %v1275
        %v1277 = vshll.u32 %v1268, %v1275
        %v1278 = vshrl.u32 %v1260, %v1276
        %v1279 = vor.u32 %v1277, %v1278
        %v1280 = vsub.s32 4294967266, %v1275
        %v1281 = vadd.s32 %v1280, 127
        %v1282 = vshll.u32 %v1281, 23
        %v1283 = vor.u32 4788187, %v1282
        %v1284 = vand.u32 2147483647, %v1283
        %v1286 = vcvt.s32.f32 %v1279
        %v1287 = vmul.f32 %v1286, %v1284
        %v1288 = vxor.u32 %v1287, 2147483648
        %v1289 = vsel %vm1168, %v1288, %v1287
        %v1290 = vsub.s32 4, %v1266
        %v1291 = vsel %vm1168, %v1290, %v1266
        %v1292 = vsel %vm1167, %v518, %v1289
        %v1293 = vsel %vm1167, 0, %v1291
        %v1294 = vmul.f32 %v1292, %v1292
        %v1295 = vmul.f32 %v1294, -0.001358992
        %v1296 = vadd.f32 %v1295, 0.041655596
        %v1297 = vmul.f32 %v1294, %v1296
        %v1298 = vadd.f32 %v1297, -0.4999988
        %v1299 = vmul.f32 %v1294, %v1298
        %v1300 = vadd.f32 1.0, %v1299
        %v1301 = vmul.f32 %v1292, %v1292
        %v1302 = vmul.f32 %v1301, -0.00019511016
        %v1303 = vadd.f32 %v1302, 0.008332121
        %v1304 = vmul.f32 %v1301, %v1303
        %v1305 = vadd.f32 %v1304, -0.16666654
        %v1306 = vmul.f32 %v1301, %v1305
        %v1307 = vadd.f32 %v1306, 1.0
        %v1308 = vmul.f32 %v1307, %v1292
        %vm1309 = vweird.f32 %v518
        %v1310 = vadd.s32 %v1293, 3
        %v1311 = vand.u32 %v1310, 3
        %vm1312 = vcmp.lt.s32.totalorder %v1311, 2
        %vm1313 = vcmp.eq.s32.totalorder %v1311, 0
        %v1314 = vxor.u32 %v1308, 2147483648
        %v1315 = vsel %vm1313, %v1300, %v1314
        %vm1316 = vcmp.eq.s32.totalorder %v1311, 2
        %v1317 = vxor.u32 %v1300, 2147483648
        %v1318 = vsel %vm1316, %v1317, %v1308
        %v1319 = vsel %vm1312, %v1315, %v1318
        %v1320 = vsel %vm1309, nan, %v1319
        %v1321 = vand.u32 2147483647, %v519
        %vm1322 = vcmp.le.f32.partialorder %v1321, 0.7853982
        %vm1323 = vcmp.lt.s32.totalorder %v519, 0
        %v1324 = vand.u32 %v519, 2139095040
        %v1325 = vshrl.u32 %v1324, 23
        %v1326 = vsub.s32 %v1325, 127
        %v1327 = vand.u32 2147483647, %v519
        %v1328 = vand.u32 %v1327, 8388607
        %v1329 = vor.u32 %v1328, 8388608
        %v1330 = vsub.s32 0, %v1329
        %v1331 = vadd.s32 %v1326, 1
        %vm1332 = vcmp.gt.s32.totalorder %v1331, 0
        %v1333 = vsel %vm1332, %v1331, 0
        %v1334 = vshrl.u32 %v1333, 5
        %v1335 = vand.u32 %v1333, 31
        %v1336 = vsub.s32 32, %v1335
        %v1337 = vshrl.u32 683565275, %v1336
        %v1338 = vshll.u32 683565275, %v1335
        %v1339 = vshrl.u32 2475754826, %v1336
        %v1340 = vor.u32 %v1338, %v1339
        %v1341 = vshll.u32 2475754826, %v1335
        %v1342 = vshrl.u32 2131351028, %v1336
        %v1343 = vor.u32 %v1341, %v1342
        %v1344 = vshll.u32 2131351028, %v1335
        %v1345 = vshrl.u32 2102212464, %v1336
        %v1346 = vor.u32 %v1344, %v1345
        %v1347 = vshll.u32 2102212464, %v1335
        %v1348 = vshrl.u32 920167782, %v1336
        %v1349 = vor.u32 %v1347, %v1348
        %v1350 = vshll.u32 920167782, %v1335
        %v1351 = vshrl.u32 1326507024, %v1336
        %v1352 = vor.u32 %v1350, %v1351
        %vm1353 = vcmp.lt.s32.totalorder %v1334, 1
        %vm1354 = vcmp.lt.s32.totalorder %v1334, 2
        %vm1355 = vcmp.lt.s32.totalorder %v1334, 3
        %vm1356 = vcmp.lt.s32.totalorder %v1334, 4
        %v1357 = vsel %vm1353, %v1337, %v1340
        %v1358 = vsel %vm1356, %v1346, 2102212464
        %v1359 = vsel %vm1355, %v1343, %v1358
        %v1360 = vsel %vm1354, %v1357, %v1359
        %v1361 = vsel %vm1353, %v1340, %v1343
        %v1362 = vsel %vm1356, %v1349, 920167782
        %v1363 = vsel %vm1355, %v1346, %v1362
        %v1364 = vsel %vm1354, %v1361, %v1363
        %v1365 = vsel %vm1353, %v1343, %v1346
        %v1366 = vsel %vm1356, %v1352, 1326507024
        %v1367 = vsel %vm1355, %v1349, %v1366
        %v1368 = vsel %vm1354, %v1365, %v1367
        %v1369 = vshll.u32 %v1329, 8
        %v1370 = vand.u32 %v1369, 65535
        %v1371 = vshrl.u32 %v1369, 16
        %v1372 = vand.u32 %v1368, 65535
        %v1373 = vshrl.u32 %v1368, 16
        %v1374 = vmul.u32 %v1370, %v1372
        %v1375 = vmul.u32 %v1370, %v1373
        %v1376 = vmul.u32 %v1371, %v1372
        %v1377 = vmul.u32 %v1371, %v1373
        %v1378 = vshll.u32 %v1375, 16
        %v1379 = vshrl.u32 %v1375, 16
        %v1380 = vshll.u32 %v1376, 16
        %v1381 = vshrl.u32 %v1376, 16
        %vm1382 = vc.u32 %v1374, %v1378
        %v1383 = vsel %vm1382, 1, 0
        %v1384 = vadd.s32 %v1374, %v1378
        %v1385 = vadd.s32 %v1377, %v1383
        %vm1386 = vc.u32 %v1384, %v1380
        %v1387 = vsel %vm1386, 1, 0
        %v1388 = vadd.s32 %v1384, %v1380
        %v1389 = vadd.s32 %v1385, %v1387
        %v1390 = vadd.s32 %v1389, %v1379
        %v1391 = vadd.s32 %v1390, %v1381
        %v1392 = vand.u32 %v1369, 65535
        %v1393 = vshrl.u32 %v1369, 16
        %v1394 = vand.u32 %v1364, 65535
        %v1395 = vshrl.u32 %v1364, 16
        %v1396 = vmul.u32 %v1392, %v1394
        %v1397 = vmul.u32 %v1392, %v1395
        %v1398 = vmul.u32 %v1393, %v1394
        %v1399 = vmul.u32 %v1393, %v1395
        %v1400 = vshll.u32 %v1397, 16
        %v1401 = vshrl.u32 %v1397, 16
        %v1402 = vshll.u32 %v1398, 16
        %v1403 = vshrl.u32 %v1398, 16
        %vm1404 = vc.u32 %v1396, %v1400
        %v1405 = vsel %vm1404, 1, 0
        %v1406 = vadd.s32 %v1396, %v1400
        %v1407 = vadd.s32 %v1399, %v1405
        %vm1408 = vc.u32 %v1406, %v1402
        %v1409 = vsel %vm1408, 1, 0
        %v1410 = vadd.s32 %v1406, %v1402
        %v1411 = vadd.s32 %v1407, %v1409
        %v1412 = vadd.s32 %v1411, %v1401
        %v1413 = vadd.s32 %v1412, %v1403
        %v1414 = vmul.u32 %v1369, %v1360
        %v1415 = vadd.s32 %v1391, %v1410
        %vm1416 = vc.u32 %v1391, %v1410
        %v1417 = vadd.s32 %v1413, 1
        %v1418 = vsel %vm1416, %v1417, %v1413
        %v1419 = vadd.s32 %v1414, %v1418
        %v1420 = vadd.s32 %v1419, 536870912
        %v1421 = vshrl.u32 %v1420, 30
        %v1422 = vshll.u32 %v1421, 30
        %v1423 = vsub.s32 %v1419, %v1422
        %vm1424 = vcmp.lt.s32.totalorder %v1423, 0
        %v1425 = vsub.s32 0, %v1423
        %v1426 = vsel %vm1424, %v1425, %v1423
        %v1427 = vclz %v1426
        %v1428 = vsub.s32 %v1427, 2
        %vm1429 = vcmp.gt.s32.totalorder 0, %v1428
        %v1430 = vsel %vm1429, 0, %v1428
        %v1431 = vsub.s32 32, %v1430
        %v1432 = vshll.u32 %v1423, %v1430
        %v1433 = vshrl.u32 %v1415, %v1431
        %v1434 = vor.u32 %v1432, %v1433
        %v1435 = vsub.s32 4294967266, %v1430
        %v1436 = vadd.s32 %v1435, 127
        %v1437 = vshll.u32 %v1436, 23
        %v1438 = vor.u32 4788187, %v1437
        %v1439 = vand.u32 2147483647, %v1438
        %v1441 = vcvt.s32.f32 %v1434
        %v1442 = vmul.f32 %v1441, %v1439
        %v1443 = vxor.u32 %v1442, 2147483648
        %v1444 = vsel %vm1323, %v1443, %v1442
        %v1445 = vsub.s32 4, %v1421
        %v1446 = vsel %vm1323, %v1445, %v1421
        %v1447 = vsel %vm1322, %v519, %v1444
        %v1448 = vsel %vm1322, 0, %v1446
        %v1449 = vmul.f32 %v1447, %v1447
        %v1450 = vmul.f32 %v1449, -0.001358992
        %v1451 = vadd.f32 %v1450, 0.041655596
        %v1452 = vmul.f32 %v1449, %v1451
        %v1453 = vadd.f32 %v1452, -0.4999988
        %v1454 = vmul.f32 %v1449, %v1453
        %v1455 = vadd.f32 1.0, %v1454
        %v1456 = vmul.f32 %v1447, %v1447
        %v1457 = vmul.f32 %v1456, -0.00019511016
        %v1458 = vadd.f32 %v1457, 0.008332121
        %v1459 = vmul.f32 %v1456, %v1458
        %v1460 = vadd.f32 %v1459, -0.16666654
        %v1461 = vmul.f32 %v1456, %v1460
        %v1462 = vadd.f32 %v1461, 1.0
        %v1463 = vmul.f32 %v1462, %v1447
        %vm1464 = vweird.f32 %v519
        %v1465 = vadd.s32 %v1448, 3
        %v1466 = vand.u32 %v1465, 3
        %vm1467 = vcmp.lt.s32.totalorder %v1466, 2
        %vm1468 = vcmp.eq.s32.totalorder %v1466, 0
        %v1469 = vxor.u32 %v1463, 2147483648
        %v1470 = vsel %vm1468, %v1455, %v1469
        %vm1471 = vcmp.eq.s32.totalorder %v1466, 2
        %v1472 = vxor.u32 %v1455, 2147483648
        %v1473 = vsel %vm1471, %v1472, %v1463
        %v1474 = vsel %vm1467, %v1470, %v1473
        %v1475 = vsel %vm1464, nan, %v1474
        %v1476 = vand.u32 2147483647, %v520
        %vm1477 = vcmp.le.f32.partialorder %v1476, 0.7853982
        %vm1478 = vcmp.lt.s32.totalorder %v520, 0
        %v1479 = vand.u32 %v520, 2139095040
        %v1480 = vshrl.u32 %v1479, 23
        %v1481 = vsub.s32 %v1480, 127
        %v1482 = vand.u32 2147483647, %v520
        %v1483 = vand.u32 %v1482, 8388607
        %v1484 = vor.u32 %v1483, 8388608
        %v1485 = vsub.s32 0, %v1484
        %v1486 = vadd.s32 %v1481, 1
        %vm1487 = vcmp.gt.s32.totalorder %v1486, 0
        %v1488 = vsel %vm1487, %v1486, 0
        %v1489 = vshrl.u32 %v1488, 5
        %v1490 = vand.u32 %v1488, 31
        %v1491 = vsub.s32 32, %v1490
        %v1492 = vshrl.u32 683565275, %v1491
        %v1493 = vshll.u32 683565275, %v1490
        %v1494 = vshrl.u32 2475754826, %v1491
        %v1495 = vor.u32 %v1493, %v1494
        %v1496 = vshll.u32 2475754826, %v1490
        %v1497 = vshrl.u32 2131351028, %v1491
        %v1498 = vor.u32 %v1496, %v1497
        %v1499 = vshll.u32 2131351028, %v1490
        %v1500 = vshrl.u32 2102212464, %v1491
        %v1501 = vor.u32 %v1499, %v1500
        %v1502 = vshll.u32 2102212464, %v1490
        %v1503 = vshrl.u32 920167782, %v1491
        %v1504 = vor.u32 %v1502, %v1503
        %v1505 = vshll.u32 920167782, %v1490
        %v1506 = vshrl.u32 1326507024, %v1491
        %v1507 = vor.u32 %v1505, %v1506
        %vm1508 = vcmp.lt.s32.totalorder %v1489, 1
        %vm1509 = vcmp.lt.s32.totalorder %v1489, 2
        %vm1510 = vcmp.lt.s32.totalorder %v1489, 3
        %vm1511 = vcmp.lt.s32.totalorder %v1489, 4
        %v1512 = vsel %vm1508, %v1492, %v1495
        %v1513 = vsel %vm1511, %v1501, 2102212464
        %v1514 = vsel %vm1510, %v1498, %v1513
        %v1515 = vsel %vm1509, %v1512, %v1514
        %v1516 = vsel %vm1508, %v1495, %v1498
        %v1517 = vsel %vm1511, %v1504, 920167782
        %v1518 = vsel %vm1510, %v1501, %v1517
        %v1519 = vsel %vm1509, %v1516, %v1518
        %v1520 = vsel %vm1508, %v1498, %v1501
        %v1521 = vsel %vm1511, %v1507, 1326507024
        %v1522 = vsel %vm1510, %v1504, %v1521
        %v1523 = vsel %vm1509, %v1520, %v1522
        %v1524 = vshll.u32 %v1484, 8
        %v1525 = vand.u32 %v1524, 65535
        %v1526 = vshrl.u32 %v1524, 16
        %v1527 = vand.u32 %v1523, 65535
        %v1528 = vshrl.u32 %v1523, 16
        %v1529 = vmul.u32 %v1525, %v1527
        %v1530 = vmul.u32 %v1525, %v1528
        %v1531 = vmul.u32 %v1526, %v1527
        %v1532 = vmul.u32 %v1526, %v1528
        %v1533 = vshll.u32 %v1530, 16
        %v1534 = vshrl.u32 %v1530, 16
        %v1535 = vshll.u32 %v1531, 16
        %v1536 = vshrl.u32 %v1531, 16
        %vm1537 = vc.u32 %v1529, %v1533
        %v1538 = vsel %vm1537, 1, 0
        %v1539 = vadd.s32 %v1529, %v1533
        %v1540 = vadd.s32 %v1532, %v1538
        %vm1541 = vc.u32 %v1539, %v1535
        %v1542 = vsel %vm1541, 1, 0
        %v1543 = vadd.s32 %v1539, %v1535
        %v1544 = vadd.s32 %v1540, %v1542
        %v1545 = vadd.s32 %v1544, %v1534
        %v1546 = vadd.s32 %v1545, %v1536
        %v1547 = vand.u32 %v1524, 65535
        %v1548 = vshrl.u32 %v1524, 16
        %v1549 = vand.u32 %v1519, 65535
        %v1550 = vshrl.u32 %v1519, 16
        %v1551 = vmul.u32 %v1547, %v1549
        %v1552 = vmul.u32 %v1547, %v1550
        %v1553 = vmul.u32 %v1548, %v1549
        %v1554 = vmul.u32 %v1548, %v1550
        %v1555 = vshll.u32 %v1552, 16
        %v1556 = vshrl.u32 %v1552, 16
        %v1557 = vshll.u32 %v1553, 16
        %v1558 = vshrl.u32 %v1553, 16
        %vm1559 = vc.u32 %v1551, %v1555
        %v1560 = vsel %vm1559, 1, 0
        %v1561 = vadd.s32 %v1551, %v1555
        %v1562 = vadd.s32 %v1554, %v1560
        %vm1563 = vc.u32 %v1561, %v1557
        %v1564 = vsel %vm1563, 1, 0
        %v1565 = vadd.s32 %v1561, %v1557
        %v1566 = vadd.s32 %v1562, %v1564
        %v1567 = vadd.s32 %v1566, %v1556
        %v1568 = vadd.s32 %v1567, %v1558
        %v1569 = vmul.u32 %v1524, %v1515
        %v1570 = vadd.s32 %v1546, %v1565
        %vm1571 = vc.u32 %v1546, %v1565
        %v1572 = vadd.s32 %v1568, 1
        %v1573 = vsel %vm1571, %v1572, %v1568
        %v1574 = vadd.s32 %v1569, %v1573
        %v1575 = vadd.s32 %v1574, 536870912
        %v1576 = vshrl.u32 %v1575, 30
        %v1577 = vshll.u32 %v1576, 30
        %v1578 = vsub.s32 %v1574, %v1577
        %vm1579 = vcmp.lt.s32.totalorder %v1578, 0
        %v1580 = vsub.s32 0, %v1578
        %v1581 = vsel %vm1579, %v1580, %v1578
        %v1582 = vclz %v1581
        %v1583 = vsub.s32 %v1582, 2
        %vm1584 = vcmp.gt.s32.totalorder 0, %v1583
        %v1585 = vsel %vm1584, 0, %v1583
        %v1586 = vsub.s32 32, %v1585
        %v1587 = vshll.u32 %v1578, %v1585
        %v1588 = vshrl.u32 %v1570, %v1586
        %v1589 = vor.u32 %v1587, %v1588
        %v1590 = vsub.s32 4294967266, %v1585
        %v1591 = vadd.s32 %v1590, 127
        %v1592 = vshll.u32 %v1591, 23
        %v1593 = vor.u32 4788187, %v1592
        %v1594 = vand.u32 2147483647, %v1593
        %v1596 = vcvt.s32.f32 %v1589
        %v1597 = vmul.f32 %v1596, %v1594
        %v1598 = vxor.u32 %v1597, 2147483648
        %v1599 = vsel %vm1478, %v1598, %v1597
        %v1600 = vsub.s32 4, %v1576
        %v1601 = vsel %vm1478, %v1600, %v1576
        %v1602 = vsel %vm1477, %v520, %v1599
        %v1603 = vsel %vm1477, 0, %v1601
        %v1604 = vmul.f32 %v1602, %v1602
        %v1605 = vmul.f32 %v1604, -0.001358992
        %v1606 = vadd.f32 %v1605, 0.041655596
        %v1607 = vmul.f32 %v1604, %v1606
        %v1608 = vadd.f32 %v1607, -0.4999988
        %v1609 = vmul.f32 %v1604, %v1608
        %v1610 = vadd.f32 1.0, %v1609
        %v1611 = vmul.f32 %v1602, %v1602
        %v1612 = vmul.f32 %v1611, -0.00019511016
        %v1613 = vadd.f32 %v1612, 0.008332121
        %v1614 = vmul.f32 %v1611, %v1613
        %v1615 = vadd.f32 %v1614, -0.16666654
        %v1616 = vmul.f32 %v1611, %v1615
        %v1617 = vadd.f32 %v1616, 1.0
        %v1618 = vmul.f32 %v1617, %v1602
        %vm1619 = vweird.f32 %v520
        %v1620 = vadd.s32 %v1603, 3
        %v1621 = vand.u32 %v1620, 3
        %vm1622 = vcmp.lt.s32.totalorder %v1621, 2
        %vm1623 = vcmp.eq.s32.totalorder %v1621, 0
        %v1624 = vxor.u32 %v1618, 2147483648
        %v1625 = vsel %vm1623, %v1610, %v1624
        %vm1626 = vcmp.eq.s32.totalorder %v1621, 2
        %v1627 = vxor.u32 %v1610, 2147483648
        %v1628 = vsel %vm1626, %v1627, %v1618
        %v1629 = vsel %vm1622, %v1625, %v1628
        %v1630 = vsel %vm1619, nan, %v1629
        %v1631 = vand.u32 2147483647, %v521
        %vm1632 = vcmp.le.f32.partialorder %v1631, 0.7853982
        %vm1633 = vcmp.lt.s32.totalorder %v521, 0
        %v1634 = vand.u32 %v521, 2139095040
        %v1635 = vshrl.u32 %v1634, 23
        %v1636 = vsub.s32 %v1635, 127
        %v1637 = vand.u32 2147483647, %v521
        %v1638 = vand.u32 %v1637, 8388607
        %v1639 = vor.u32 %v1638, 8388608
        %v1640 = vsub.s32 0, %v1639
        %v1641 = vadd.s32 %v1636, 1
        %vm1642 = vcmp.gt.s32.totalorder %v1641, 0
        %v1643 = vsel %vm1642, %v1641, 0
        %v1644 = vshrl.u32 %v1643, 5
        %v1645 = vand.u32 %v1643, 31
        %v1646 = vsub.s32 32, %v1645
        %v1647 = vshrl.u32 683565275, %v1646
        %v1648 = vshll.u32 683565275, %v1645
        %v1649 = vshrl.u32 2475754826, %v1646
        %v1650 = vor.u32 %v1648, %v1649
        %v1651 = vshll.u32 2475754826, %v1645
        %v1652 = vshrl.u32 2131351028, %v1646
        %v1653 = vor.u32 %v1651, %v1652
        %v1654 = vshll.u32 2131351028, %v1645
        %v1655 = vshrl.u32 2102212464, %v1646
        %v1656 = vor.u32 %v1654, %v1655
        %v1657 = vshll.u32 2102212464, %v1645
        %v1658 = vshrl.u32 920167782, %v1646
        %v1659 = vor.u32 %v1657, %v1658
        %v1660 = vshll.u32 920167782, %v1645
        %v1661 = vshrl.u32 1326507024, %v1646
        %v1662 = vor.u32 %v1660, %v1661
        %vm1663 = vcmp.lt.s32.totalorder %v1644, 1
        %vm1664 = vcmp.lt.s32.totalorder %v1644, 2
        %vm1665 = vcmp.lt.s32.totalorder %v1644, 3
        %vm1666 = vcmp.lt.s32.totalorder %v1644, 4
        %v1667 = vsel %vm1663, %v1647, %v1650
        %v1668 = vsel %vm1666, %v1656, 2102212464
        %v1669 = vsel %vm1665, %v1653, %v1668
        %v1670 = vsel %vm1664, %v1667, %v1669
        %v1671 = vsel %vm1663, %v1650, %v1653
        %v1672 = vsel %vm1666, %v1659, 920167782
        %v1673 = vsel %vm1665, %v1656, %v1672
        %v1674 = vsel %vm1664, %v1671, %v1673
        %v1675 = vsel %vm1663, %v1653, %v1656
        %v1676 = vsel %vm1666, %v1662, 1326507024
        %v1677 = vsel %vm1665, %v1659, %v1676
        %v1678 = vsel %vm1664, %v1675, %v1677
        %v1679 = vshll.u32 %v1639, 8
        %v1680 = vand.u32 %v1679, 65535
        %v1681 = vshrl.u32 %v1679, 16
        %v1682 = vand.u32 %v1678, 65535
        %v1683 = vshrl.u32 %v1678, 16
        %v1684 = vmul.u32 %v1680, %v1682
        %v1685 = vmul.u32 %v1680, %v1683
        %v1686 = vmul.u32 %v1681, %v1682
        %v1687 = vmul.u32 %v1681, %v1683
        %v1688 = vshll.u32 %v1685, 16
        %v1689 = vshrl.u32 %v1685, 16
        %v1690 = vshll.u32 %v1686, 16
        %v1691 = vshrl.u32 %v1686, 16
        %vm1692 = vc.u32 %v1684, %v1688
        %v1693 = vsel %vm1692, 1, 0
        %v1694 = vadd.s32 %v1684, %v1688
        %v1695 = vadd.s32 %v1687, %v1693
        %vm1696 = vc.u32 %v1694, %v1690
        %v1697 = vsel %vm1696, 1, 0
        %v1698 = vadd.s32 %v1694, %v1690
        %v1699 = vadd.s32 %v1695, %v1697
        %v1700 = vadd.s32 %v1699, %v1689
        %v1701 = vadd.s32 %v1700, %v1691
        %v1702 = vand.u32 %v1679, 65535
        %v1703 = vshrl.u32 %v1679, 16
        %v1704 = vand.u32 %v1674, 65535
        %v1705 = vshrl.u32 %v1674, 16
        %v1706 = vmul.u32 %v1702, %v1704
        %v1707 = vmul.u32 %v1702, %v1705
        %v1708 = vmul.u32 %v1703, %v1704
        %v1709 = vmul.u32 %v1703, %v1705
        %v1710 = vshll.u32 %v1707, 16
        %v1711 = vshrl.u32 %v1707, 16
        %v1712 = vshll.u32 %v1708, 16
        %v1713 = vshrl.u32 %v1708, 16
        %vm1714 = vc.u32 %v1706, %v1710
        %v1715 = vsel %vm1714, 1, 0
        %v1716 = vadd.s32 %v1706, %v1710
        %v1717 = vadd.s32 %v1709, %v1715
        %vm1718 = vc.u32 %v1716, %v1712
        %v1719 = vsel %vm1718, 1, 0
        %v1720 = vadd.s32 %v1716, %v1712
        %v1721 = vadd.s32 %v1717, %v1719
        %v1722 = vadd.s32 %v1721, %v1711
        %v1723 = vadd.s32 %v1722, %v1713
        %v1724 = vmul.u32 %v1679, %v1670
        %v1725 = vadd.s32 %v1701, %v1720
        %vm1726 = vc.u32 %v1701, %v1720
        %v1727 = vadd.s32 %v1723, 1
        %v1728 = vsel %vm1726, %v1727, %v1723
        %v1729 = vadd.s32 %v1724, %v1728
        %v1730 = vadd.s32 %v1729, 536870912
        %v1731 = vshrl.u32 %v1730, 30
        %v1732 = vshll.u32 %v1731, 30
        %v1733 = vsub.s32 %v1729, %v1732
        %vm1734 = vcmp.lt.s32.totalorder %v1733, 0
        %v1735 = vsub.s32 0, %v1733
        %v1736 = vsel %vm1734, %v1735, %v1733
        %v1737 = vclz %v1736
        %v1738 = vsub.s32 %v1737, 2
        %vm1739 = vcmp.gt.s32.totalorder 0, %v1738
        %v1740 = vsel %vm1739, 0, %v1738
        %v1741 = vsub.s32 32, %v1740
        %v1742 = vshll.u32 %v1733, %v1740
        %v1743 = vshrl.u32 %v1725, %v1741
        %v1744 = vor.u32 %v1742, %v1743
        %v1745 = vsub.s32 4294967266, %v1740
        %v1746 = vadd.s32 %v1745, 127
        %v1747 = vshll.u32 %v1746, 23
        %v1748 = vor.u32 4788187, %v1747
        %v1749 = vand.u32 2147483647, %v1748
        %v1751 = vcvt.s32.f32 %v1744
        %v1752 = vmul.f32 %v1751, %v1749
        %v1753 = vxor.u32 %v1752, 2147483648
        %v1754 = vsel %vm1633, %v1753, %v1752
        %v1755 = vsub.s32 4, %v1731
        %v1756 = vsel %vm1633, %v1755, %v1731
        %v1757 = vsel %vm1632, %v521, %v1754
        %v1758 = vsel %vm1632, 0, %v1756
        %v1759 = vmul.f32 %v1757, %v1757
        %v1760 = vmul.f32 %v1759, -0.001358992
        %v1761 = vadd.f32 %v1760, 0.041655596
        %v1762 = vmul.f32 %v1759, %v1761
        %v1763 = vadd.f32 %v1762, -0.4999988
        %v1764 = vmul.f32 %v1759, %v1763
        %v1765 = vadd.f32 1.0, %v1764
        %v1766 = vmul.f32 %v1757, %v1757
        %v1767 = vmul.f32 %v1766, -0.00019511016
        %v1768 = vadd.f32 %v1767, 0.008332121
        %v1769 = vmul.f32 %v1766, %v1768
        %v1770 = vadd.f32 %v1769, -0.16666654
        %v1771 = vmul.f32 %v1766, %v1770
        %v1772 = vadd.f32 %v1771, 1.0
        %v1773 = vmul.f32 %v1772, %v1757
        %vm1774 = vweird.f32 %v521
        %v1775 = vadd.s32 %v1758, 3
        %v1776 = vand.u32 %v1775, 3
        %vm1777 = vcmp.lt.s32.totalorder %v1776, 2
        %vm1778 = vcmp.eq.s32.totalorder %v1776, 0
        %v1779 = vxor.u32 %v1773, 2147483648
        %v1780 = vsel %vm1778, %v1765, %v1779
        %vm1781 = vcmp.eq.s32.totalorder %v1776, 2
        %v1782 = vxor.u32 %v1765, 2147483648
        %v1783 = vsel %vm1781, %v1782, %v1773
        %v1784 = vsel %vm1777, %v1780, %v1783
        %v1785 = vsel %vm1774, nan, %v1784
        %v1786 = vand.u32 2147483647, %v522
        %vm1787 = vcmp.le.f32.partialorder %v1786, 0.7853982
        %vm1788 = vcmp.lt.s32.totalorder %v522, 0
        %v1789 = vand.u32 %v522, 2139095040
        %v1790 = vshrl.u32 %v1789, 23
        %v1791 = vsub.s32 %v1790, 127
        %v1792 = vand.u32 2147483647, %v522
        %v1793 = vand.u32 %v1792, 8388607
        %v1794 = vor.u32 %v1793, 8388608
        %v1795 = vsub.s32 0, %v1794
        %v1796 = vadd.s32 %v1791, 1
        %vm1797 = vcmp.gt.s32.totalorder %v1796, 0
        %v1798 = vsel %vm1797, %v1796, 0
        %v1799 = vshrl.u32 %v1798, 5
        %v1800 = vand.u32 %v1798, 31
        %v1801 = vsub.s32 32, %v1800
        %v1802 = vshrl.u32 683565275, %v1801
        %v1803 = vshll.u32 683565275, %v1800
        %v1804 = vshrl.u32 2475754826, %v1801
        %v1805 = vor.u32 %v1803, %v1804
        %v1806 = vshll.u32 2475754826, %v1800
        %v1807 = vshrl.u32 2131351028, %v1801
        %v1808 = vor.u32 %v1806, %v1807
        %v1809 = vshll.u32 2131351028, %v1800
        %v1810 = vshrl.u32 2102212464, %v1801
        %v1811 = vor.u32 %v1809, %v1810
        %v1812 = vshll.u32 2102212464, %v1800
        %v1813 = vshrl.u32 920167782, %v1801
        %v1814 = vor.u32 %v1812, %v1813
        %v1815 = vshll.u32 920167782, %v1800
        %v1816 = vshrl.u32 1326507024, %v1801
        %v1817 = vor.u32 %v1815, %v1816
        %vm1818 = vcmp.lt.s32.totalorder %v1799, 1
        %vm1819 = vcmp.lt.s32.totalorder %v1799, 2
        %vm1820 = vcmp.lt.s32.totalorder %v1799, 3
        %vm1821 = vcmp.lt.s32.totalorder %v1799, 4
        %v1822 = vsel %vm1818, %v1802, %v1805
        %v1823 = vsel %vm1821, %v1811, 2102212464
        %v1824 = vsel %vm1820, %v1808, %v1823
        %v1825 = vsel %vm1819, %v1822, %v1824
        %v1826 = vsel %vm1818, %v1805, %v1808
        %v1827 = vsel %vm1821, %v1814, 920167782
        %v1828 = vsel %vm1820, %v1811, %v1827
        %v1829 = vsel %vm1819, %v1826, %v1828
        %v1830 = vsel %vm1818, %v1808, %v1811
        %v1831 = vsel %vm1821, %v1817, 1326507024
        %v1832 = vsel %vm1820, %v1814, %v1831
        %v1833 = vsel %vm1819, %v1830, %v1832
        %v1834 = vshll.u32 %v1794, 8
        %v1835 = vand.u32 %v1834, 65535
        %v1836 = vshrl.u32 %v1834, 16
        %v1837 = vand.u32 %v1833, 65535
        %v1838 = vshrl.u32 %v1833, 16
        %v1839 = vmul.u32 %v1835, %v1837
        %v1840 = vmul.u32 %v1835, %v1838
        %v1841 = vmul.u32 %v1836, %v1837
        %v1842 = vmul.u32 %v1836, %v1838
        %v1843 = vshll.u32 %v1840, 16
        %v1844 = vshrl.u32 %v1840, 16
        %v1845 = vshll.u32 %v1841, 16
        %v1846 = vshrl.u32 %v1841, 16
        %vm1847 = vc.u32 %v1839, %v1843
        %v1848 = vsel %vm1847, 1, 0
        %v1849 = vadd.s32 %v1839, %v1843
        %v1850 = vadd.s32 %v1842, %v1848
        %vm1851 = vc.u32 %v1849, %v1845
        %v1852 = vsel %vm1851, 1, 0
        %v1853 = vadd.s32 %v1849, %v1845
        %v1854 = vadd.s32 %v1850, %v1852
        %v1855 = vadd.s32 %v1854, %v1844
        %v1856 = vadd.s32 %v1855, %v1846
        %v1857 = vand.u32 %v1834, 65535
        %v1858 = vshrl.u32 %v1834, 16
        %v1859 = vand.u32 %v1829, 65535
        %v1860 = vshrl.u32 %v1829, 16
        %v1861 = vmul.u32 %v1857, %v1859
        %v1862 = vmul.u32 %v1857, %v1860
        %v1863 = vmul.u32 %v1858, %v1859
        %v1864 = vmul.u32 %v1858, %v1860
        %v1865 = vshll.u32 %v1862, 16
        %v1866 = vshrl.u32 %v1862, 16
        %v1867 = vshll.u32 %v1863, 16
        %v1868 = vshrl.u32 %v1863, 16
        %vm1869 = vc.u32 %v1861, %v1865
        %v1870 = vsel %vm1869, 1, 0
        %v1871 = vadd.s32 %v1861, %v1865
        %v1872 = vadd.s32 %v1864, %v1870
        %vm1873 = vc.u32 %v1871, %v1867
        %v1874 = vsel %vm1873, 1, 0
        %v1875 = vadd.s32 %v1871, %v1867
        %v1876 = vadd.s32 %v1872, %v1874
        %v1877 = vadd.s32 %v1876, %v1866
        %v1878 = vadd.s32 %v1877, %v1868
        %v1879 = vmul.u32 %v1834, %v1825
        %v1880 = vadd.s32 %v1856, %v1875
        %vm1881 = vc.u32 %v1856, %v1875
        %v1882 = vadd.s32 %v1878, 1
        %v1883 = vsel %vm1881, %v1882, %v1878
        %v1884 = vadd.s32 %v1879, %v1883
        %v1885 = vadd.s32 %v1884, 536870912
        %v1886 = vshrl.u32 %v1885, 30
        %v1887 = vshll.u32 %v1886, 30
        %v1888 = vsub.s32 %v1884, %v1887
        %vm1889 = vcmp.lt.s32.totalorder %v1888, 0
        %v1890 = vsub.s32 0, %v1888
        %v1891 = vsel %vm1889, %v1890, %v1888
        %v1892 = vclz %v1891
        %v1893 = vsub.s32 %v1892, 2
        %vm1894 = vcmp.gt.s32.totalorder 0, %v1893
        %v1895 = vsel %vm1894, 0, %v1893
        %v1896 = vsub.s32 32, %v1895
        %v1897 = vshll.u32 %v1888, %v1895
        %v1898 = vshrl.u32 %v1880, %v1896
        %v1899 = vor.u32 %v1897, %v1898
        %v1900 = vsub.s32 4294967266, %v1895
        %v1901 = vadd.s32 %v1900, 127
        %v1902 = vshll.u32 %v1901, 23
        %v1903 = vor.u32 4788187, %v1902
        %v1904 = vand.u32 2147483647, %v1903
        %v1906 = vcvt.s32.f32 %v1899
        %v1907 = vmul.f32 %v1906, %v1904
        %v1908 = vxor.u32 %v1907, 2147483648
        %v1909 = vsel %vm1788, %v1908, %v1907
        %v1910 = vsub.s32 4, %v1886
        %v1911 = vsel %vm1788, %v1910, %v1886
        %v1912 = vsel %vm1787, %v522, %v1909
        %v1913 = vsel %vm1787, 0, %v1911
        %v1914 = vmul.f32 %v1912, %v1912
        %v1915 = vmul.f32 %v1914, -0.001358992
        %v1916 = vadd.f32 %v1915, 0.041655596
        %v1917 = vmul.f32 %v1914, %v1916
        %v1918 = vadd.f32 %v1917, -0.4999988
        %v1919 = vmul.f32 %v1914, %v1918
        %v1920 = vadd.f32 1.0, %v1919
        %v1921 = vmul.f32 %v1912, %v1912
        %v1922 = vmul.f32 %v1921, -0.00019511016
        %v1923 = vadd.f32 %v1922, 0.008332121
        %v1924 = vmul.f32 %v1921, %v1923
        %v1925 = vadd.f32 %v1924, -0.16666654
        %v1926 = vmul.f32 %v1921, %v1925
        %v1927 = vadd.f32 %v1926, 1.0
        %v1928 = vmul.f32 %v1927, %v1912
        %vm1929 = vweird.f32 %v522
        %v1930 = vadd.s32 %v1913, 3
        %v1931 = vand.u32 %v1930, 3
        %vm1932 = vcmp.lt.s32.totalorder %v1931, 2
        %vm1933 = vcmp.eq.s32.totalorder %v1931, 0
        %v1934 = vxor.u32 %v1928, 2147483648
        %v1935 = vsel %vm1933, %v1920, %v1934
        %vm1936 = vcmp.eq.s32.totalorder %v1931, 2
        %v1937 = vxor.u32 %v1920, 2147483648
        %v1938 = vsel %vm1936, %v1937, %v1928
        %v1939 = vsel %vm1932, %v1935, %v1938
        %v1940 = vsel %vm1929, nan, %v1939
        %v1941 = vand.u32 2147483647, %v523
        %vm1942 = vcmp.le.f32.partialorder %v1941, 0.7853982
        %vm1943 = vcmp.lt.s32.totalorder %v523, 0
        %v1944 = vand.u32 %v523, 2139095040
        %v1945 = vshrl.u32 %v1944, 23
        %v1946 = vsub.s32 %v1945, 127
        %v1947 = vand.u32 2147483647, %v523
        %v1948 = vand.u32 %v1947, 8388607
        %v1949 = vor.u32 %v1948, 8388608
        %v1950 = vsub.s32 0, %v1949
        %v1951 = vadd.s32 %v1946, 1
        %vm1952 = vcmp.gt.s32.totalorder %v1951, 0
        %v1953 = vsel %vm1952, %v1951, 0
        %v1954 = vshrl.u32 %v1953, 5
        %v1955 = vand.u32 %v1953, 31
        %v1956 = vsub.s32 32, %v1955
        %v1957 = vshrl.u32 683565275, %v1956
        %v1958 = vshll.u32 683565275, %v1955
        %v1959 = vshrl.u32 2475754826, %v1956
        %v1960 = vor.u32 %v1958, %v1959
        %v1961 = vshll.u32 2475754826, %v1955
        %v1962 = vshrl.u32 2131351028, %v1956
        %v1963 = vor.u32 %v1961, %v1962
        %v1964 = vshll.u32 2131351028, %v1955
        %v1965 = vshrl.u32 2102212464, %v1956
        %v1966 = vor.u32 %v1964, %v1965
        %v1967 = vshll.u32 2102212464, %v1955
        %v1968 = vshrl.u32 920167782, %v1956
        %v1969 = vor.u32 %v1967, %v1968
        %v1970 = vshll.u32 920167782, %v1955
        %v1971 = vshrl.u32 1326507024, %v1956
        %v1972 = vor.u32 %v1970, %v1971
        %vm1973 = vcmp.lt.s32.totalorder %v1954, 1
        %vm1974 = vcmp.lt.s32.totalorder %v1954, 2
        %vm1975 = vcmp.lt.s32.totalorder %v1954, 3
        %vm1976 = vcmp.lt.s32.totalorder %v1954, 4
        %v1977 = vsel %vm1973, %v1957, %v1960
        %v1978 = vsel %vm1976, %v1966, 2102212464
        %v1979 = vsel %vm1975, %v1963, %v1978
        %v1980 = vsel %vm1974, %v1977, %v1979
        %v1981 = vsel %vm1973, %v1960, %v1963
        %v1982 = vsel %vm1976, %v1969, 920167782
        %v1983 = vsel %vm1975, %v1966, %v1982
        %v1984 = vsel %vm1974, %v1981, %v1983
        %v1985 = vsel %vm1973, %v1963, %v1966
        %v1986 = vsel %vm1976, %v1972, 1326507024
        %v1987 = vsel %vm1975, %v1969, %v1986
        %v1988 = vsel %vm1974, %v1985, %v1987
        %v1989 = vshll.u32 %v1949, 8
        %v1990 = vand.u32 %v1989, 65535
        %v1991 = vshrl.u32 %v1989, 16
        %v1992 = vand.u32 %v1988, 65535
        %v1993 = vshrl.u32 %v1988, 16
        %v1994 = vmul.u32 %v1990, %v1992
        %v1995 = vmul.u32 %v1990, %v1993
        %v1996 = vmul.u32 %v1991, %v1992
        %v1997 = vmul.u32 %v1991, %v1993
        %v1998 = vshll.u32 %v1995, 16
        %v1999 = vshrl.u32 %v1995, 16
        %v2000 = vshll.u32 %v1996, 16
        %v2001 = vshrl.u32 %v1996, 16
        %vm2002 = vc.u32 %v1994, %v1998
        %v2003 = vsel %vm2002, 1, 0
        %v2004 = vadd.s32 %v1994, %v1998
        %v2005 = vadd.s32 %v1997, %v2003
        %vm2006 = vc.u32 %v2004, %v2000
        %v2007 = vsel %vm2006, 1, 0
        %v2008 = vadd.s32 %v2004, %v2000
        %v2009 = vadd.s32 %v2005, %v2007
        %v2010 = vadd.s32 %v2009, %v1999
        %v2011 = vadd.s32 %v2010, %v2001
        %v2012 = vand.u32 %v1989, 65535
        %v2013 = vshrl.u32 %v1989, 16
        %v2014 = vand.u32 %v1984, 65535
        %v2015 = vshrl.u32 %v1984, 16
        %v2016 = vmul.u32 %v2012, %v2014
        %v2017 = vmul.u32 %v2012, %v2015
        %v2018 = vmul.u32 %v2013, %v2014
        %v2019 = vmul.u32 %v2013, %v2015
        %v2020 = vshll.u32 %v2017, 16
        %v2021 = vshrl.u32 %v2017, 16
        %v2022 = vshll.u32 %v2018, 16
        %v2023 = vshrl.u32 %v2018, 16
        %vm2024 = vc.u32 %v2016, %v2020
        %v2025 = vsel %vm2024, 1, 0
        %v2026 = vadd.s32 %v2016, %v2020
        %v2027 = vadd.s32 %v2019, %v2025
        %vm2028 = vc.u32 %v2026, %v2022
        %v2029 = vsel %vm2028, 1, 0
        %v2030 = vadd.s32 %v2026, %v2022
        %v2031 = vadd.s32 %v2027, %v2029
        %v2032 = vadd.s32 %v2031, %v2021
        %v2033 = vadd.s32 %v2032, %v2023
        %v2034 = vmul.u32 %v1989, %v1980
        %v2035 = vadd.s32 %v2011, %v2030
        %vm2036 = vc.u32 %v2011, %v2030
        %v2037 = vadd.s32 %v2033, 1
        %v2038 = vsel %vm2036, %v2037, %v2033
        %v2039 = vadd.s32 %v2034, %v2038
        %v2040 = vadd.s32 %v2039, 536870912
        %v2041 = vshrl.u32 %v2040, 30
        %v2042 = vshll.u32 %v2041, 30
        %v2043 = vsub.s32 %v2039, %v2042
        %vm2044 = vcmp.lt.s32.totalorder %v2043, 0
        %v2045 = vsub.s32 0, %v2043
        %v2046 = vsel %vm2044, %v2045, %v2043
        %v2047 = vclz %v2046
        %v2048 = vsub.s32 %v2047, 2
        %vm2049 = vcmp.gt.s32.totalorder 0, %v2048
        %v2050 = vsel %vm2049, 0, %v2048
        %v2051 = vsub.s32 32, %v2050
        %v2052 = vshll.u32 %v2043, %v2050
        %v2053 = vshrl.u32 %v2035, %v2051
        %v2054 = vor.u32 %v2052, %v2053
        %v2055 = vsub.s32 4294967266, %v2050
        %v2056 = vadd.s32 %v2055, 127
        %v2057 = vshll.u32 %v2056, 23
        %v2058 = vor.u32 4788187, %v2057
        %v2059 = vand.u32 2147483647, %v2058
        %v2061 = vcvt.s32.f32 %v2054
        %v2062 = vmul.f32 %v2061, %v2059
        %v2063 = vxor.u32 %v2062, 2147483648
        %v2064 = vsel %vm1943, %v2063, %v2062
        %v2065 = vsub.s32 4, %v2041
        %v2066 = vsel %vm1943, %v2065, %v2041
        %v2067 = vsel %vm1942, %v523, %v2064
        %v2068 = vsel %vm1942, 0, %v2066
        %v2069 = vmul.f32 %v2067, %v2067
        %v2070 = vmul.f32 %v2069, -0.001358992
        %v2071 = vadd.f32 %v2070, 0.041655596
        %v2072 = vmul.f32 %v2069, %v2071
        %v2073 = vadd.f32 %v2072, -0.4999988
        %v2074 = vmul.f32 %v2069, %v2073
        %v2075 = vadd.f32 1.0, %v2074
        %v2076 = vmul.f32 %v2067, %v2067
        %v2077 = vmul.f32 %v2076, -0.00019511016
        %v2078 = vadd.f32 %v2077, 0.008332121
        %v2079 = vmul.f32 %v2076, %v2078
        %v2080 = vadd.f32 %v2079, -0.16666654
        %v2081 = vmul.f32 %v2076, %v2080
        %v2082 = vadd.f32 %v2081, 1.0
        %v2083 = vmul.f32 %v2082, %v2067
        %vm2084 = vweird.f32 %v523
        %v2085 = vadd.s32 %v2068, 3
        %v2086 = vand.u32 %v2085, 3
        %vm2087 = vcmp.lt.s32.totalorder %v2086, 2
        %vm2088 = vcmp.eq.s32.totalorder %v2086, 0
        %v2089 = vxor.u32 %v2083, 2147483648
        %v2090 = vsel %vm2088, %v2075, %v2089
        %vm2091 = vcmp.eq.s32.totalorder %v2086, 2
        %v2092 = vxor.u32 %v2075, 2147483648
        %v2093 = vsel %vm2091, %v2092, %v2083
        %v2094 = vsel %vm2087, %v2090, %v2093
        %v2095 = vsel %vm2084, nan, %v2094
        %v2096 = vand.u32 2147483647, %v524
        %vm2097 = vcmp.le.f32.partialorder %v2096, 0.7853982
        %vm2098 = vcmp.lt.s32.totalorder %v524, 0
        %v2099 = vand.u32 %v524, 2139095040
        %v2100 = vshrl.u32 %v2099, 23
        %v2101 = vsub.s32 %v2100, 127
        %v2102 = vand.u32 2147483647, %v524
        %v2103 = vand.u32 %v2102, 8388607
        %v2104 = vor.u32 %v2103, 8388608
        %v2105 = vsub.s32 0, %v2104
        %v2106 = vadd.s32 %v2101, 1
        %vm2107 = vcmp.gt.s32.totalorder %v2106, 0
        %v2108 = vsel %vm2107, %v2106, 0
        %v2109 = vshrl.u32 %v2108, 5
        %v2110 = vand.u32 %v2108, 31
        %v2111 = vsub.s32 32, %v2110
        %v2112 = vshrl.u32 683565275, %v2111
        %v2113 = vshll.u32 683565275, %v2110
        %v2114 = vshrl.u32 2475754826, %v2111
        %v2115 = vor.u32 %v2113, %v2114
        %v2116 = vshll.u32 2475754826, %v2110
        %v2117 = vshrl.u32 2131351028, %v2111
        %v2118 = vor.u32 %v2116, %v2117
        %v2119 = vshll.u32 2131351028, %v2110
        %v2120 = vshrl.u32 2102212464, %v2111
        %v2121 = vor.u32 %v2119, %v2120
        %v2122 = vshll.u32 2102212464, %v2110
        %v2123 = vshrl.u32 920167782, %v2111
        %v2124 = vor.u32 %v2122, %v2123
        %v2125 = vshll.u32 920167782, %v2110
        %v2126 = vshrl.u32 1326507024, %v2111
        %v2127 = vor.u32 %v2125, %v2126
        %vm2128 = vcmp.lt.s32.totalorder %v2109, 1
        %vm2129 = vcmp.lt.s32.totalorder %v2109, 2
        %vm2130 = vcmp.lt.s32.totalorder %v2109, 3
        %vm2131 = vcmp.lt.s32.totalorder %v2109, 4
        %v2132 = vsel %vm2128, %v2112, %v2115
        %v2133 = vsel %vm2131, %v2121, 2102212464
        %v2134 = vsel %vm2130, %v2118, %v2133
        %v2135 = vsel %vm2129, %v2132, %v2134
        %v2136 = vsel %vm2128, %v2115, %v2118
        %v2137 = vsel %vm2131, %v2124, 920167782
        %v2138 = vsel %vm2130, %v2121, %v2137
        %v2139 = vsel %vm2129, %v2136, %v2138
        %v2140 = vsel %vm2128, %v2118, %v2121
        %v2141 = vsel %vm2131, %v2127, 1326507024
        %v2142 = vsel %vm2130, %v2124, %v2141
        %v2143 = vsel %vm2129, %v2140, %v2142
        %v2144 = vshll.u32 %v2104, 8
        %v2145 = vand.u32 %v2144, 65535
        %v2146 = vshrl.u32 %v2144, 16
        %v2147 = vand.u32 %v2143, 65535
        %v2148 = vshrl.u32 %v2143, 16
        %v2149 = vmul.u32 %v2145, %v2147
        %v2150 = vmul.u32 %v2145, %v2148
        %v2151 = vmul.u32 %v2146, %v2147
        %v2152 = vmul.u32 %v2146, %v2148
        %v2153 = vshll.u32 %v2150, 16
        %v2154 = vshrl.u32 %v2150, 16
        %v2155 = vshll.u32 %v2151, 16
        %v2156 = vshrl.u32 %v2151, 16
        %vm2157 = vc.u32 %v2149, %v2153
        %v2158 = vsel %vm2157, 1, 0
        %v2159 = vadd.s32 %v2149, %v2153
        %v2160 = vadd.s32 %v2152, %v2158
        %vm2161 = vc.u32 %v2159, %v2155
        %v2162 = vsel %vm2161, 1, 0
        %v2163 = vadd.s32 %v2159, %v2155
        %v2164 = vadd.s32 %v2160, %v2162
        %v2165 = vadd.s32 %v2164, %v2154
        %v2166 = vadd.s32 %v2165, %v2156
        %v2167 = vand.u32 %v2144, 65535
        %v2168 = vshrl.u32 %v2144, 16
        %v2169 = vand.u32 %v2139, 65535
        %v2170 = vshrl.u32 %v2139, 16
        %v2171 = vmul.u32 %v2167, %v2169
        %v2172 = vmul.u32 %v2167, %v2170
        %v2173 = vmul.u32 %v2168, %v2169
        %v2174 = vmul.u32 %v2168, %v2170
        %v2175 = vshll.u32 %v2172, 16
        %v2176 = vshrl.u32 %v2172, 16
        %v2177 = vshll.u32 %v2173, 16
        %v2178 = vshrl.u32 %v2173, 16
        %vm2179 = vc.u32 %v2171, %v2175
        %v2180 = vsel %vm2179, 1, 0
        %v2181 = vadd.s32 %v2171, %v2175
        %v2182 = vadd.s32 %v2174, %v2180
        %vm2183 = vc.u32 %v2181, %v2177
        %v2184 = vsel %vm2183, 1, 0
        %v2185 = vadd.s32 %v2181, %v2177
        %v2186 = vadd.s32 %v2182, %v2184
        %v2187 = vadd.s32 %v2186, %v2176
        %v2188 = vadd.s32 %v2187, %v2178
        %v2189 = vmul.u32 %v2144, %v2135
        %v2190 = vadd.s32 %v2166, %v2185
        %vm2191 = vc.u32 %v2166, %v2185
        %v2192 = vadd.s32 %v2188, 1
        %v2193 = vsel %vm2191, %v2192, %v2188
        %v2194 = vadd.s32 %v2189, %v2193
        %v2195 = vadd.s32 %v2194, 536870912
        %v2196 = vshrl.u32 %v2195, 30
        %v2197 = vshll.u32 %v2196, 30
        %v2198 = vsub.s32 %v2194, %v2197
        %vm2199 = vcmp.lt.s32.totalorder %v2198, 0
        %v2200 = vsub.s32 0, %v2198
        %v2201 = vsel %vm2199, %v2200, %v2198
        %v2202 = vclz %v2201
        %v2203 = vsub.s32 %v2202, 2
        %vm2204 = vcmp.gt.s32.totalorder 0, %v2203
        %v2205 = vsel %vm2204, 0, %v2203
        %v2206 = vsub.s32 32, %v2205
        %v2207 = vshll.u32 %v2198, %v2205
        %v2208 = vshrl.u32 %v2190, %v2206
        %v2209 = vor.u32 %v2207, %v2208
        %v2210 = vsub.s32 4294967266, %v2205
        %v2211 = vadd.s32 %v2210, 127
        %v2212 = vshll.u32 %v2211, 23
        %v2213 = vor.u32 4788187, %v2212
        %v2214 = vand.u32 2147483647, %v2213
        %v2216 = vcvt.s32.f32 %v2209
        %v2217 = vmul.f32 %v2216, %v2214
        %v2218 = vxor.u32 %v2217, 2147483648
        %v2219 = vsel %vm2098, %v2218, %v2217
        %v2220 = vsub.s32 4, %v2196
        %v2221 = vsel %vm2098, %v2220, %v2196
        %v2222 = vsel %vm2097, %v524, %v2219
        %v2223 = vsel %vm2097, 0, %v2221
        %v2224 = vmul.f32 %v2222, %v2222
        %v2225 = vmul.f32 %v2224, -0.001358992
        %v2226 = vadd.f32 %v2225, 0.041655596
        %v2227 = vmul.f32 %v2224, %v2226
        %v2228 = vadd.f32 %v2227, -0.4999988
        %v2229 = vmul.f32 %v2224, %v2228
        %v2230 = vadd.f32 1.0, %v2229
        %v2231 = vmul.f32 %v2222, %v2222
        %v2232 = vmul.f32 %v2231, -0.00019511016
        %v2233 = vadd.f32 %v2232, 0.008332121
        %v2234 = vmul.f32 %v2231, %v2233
        %v2235 = vadd.f32 %v2234, -0.16666654
        %v2236 = vmul.f32 %v2231, %v2235
        %v2237 = vadd.f32 %v2236, 1.0
        %v2238 = vmul.f32 %v2237, %v2222
        %vm2239 = vweird.f32 %v524
        %v2240 = vadd.s32 %v2223, 3
        %v2241 = vand.u32 %v2240, 3
        %vm2242 = vcmp.lt.s32.totalorder %v2241, 2
        %vm2243 = vcmp.eq.s32.totalorder %v2241, 0
        %v2244 = vxor.u32 %v2238, 2147483648
        %v2245 = vsel %vm2243, %v2230, %v2244
        %vm2246 = vcmp.eq.s32.totalorder %v2241, 2
        %v2247 = vxor.u32 %v2230, 2147483648
        %v2248 = vsel %vm2246, %v2247, %v2238
        %v2249 = vsel %vm2242, %v2245, %v2248
        %v2250 = vsel %vm2239, nan, %v2249
        %v2251 = vand.u32 2147483647, %v525
        %vm2252 = vcmp.le.f32.partialorder %v2251, 0.7853982
        %vm2253 = vcmp.lt.s32.totalorder %v525, 0
        %v2254 = vand.u32 %v525, 2139095040
        %v2255 = vshrl.u32 %v2254, 23
        %v2256 = vsub.s32 %v2255, 127
        %v2257 = vand.u32 2147483647, %v525
        %v2258 = vand.u32 %v2257, 8388607
        %v2259 = vor.u32 %v2258, 8388608
        %v2260 = vsub.s32 0, %v2259
        %v2261 = vadd.s32 %v2256, 1
        %vm2262 = vcmp.gt.s32.totalorder %v2261, 0
        %v2263 = vsel %vm2262, %v2261, 0
        %v2264 = vshrl.u32 %v2263, 5
        %v2265 = vand.u32 %v2263, 31
        %v2266 = vsub.s32 32, %v2265
        %v2267 = vshrl.u32 683565275, %v2266
        %v2268 = vshll.u32 683565275, %v2265
        %v2269 = vshrl.u32 2475754826, %v2266
        %v2270 = vor.u32 %v2268, %v2269
        %v2271 = vshll.u32 2475754826, %v2265
        %v2272 = vshrl.u32 2131351028, %v2266
        %v2273 = vor.u32 %v2271, %v2272
        %v2274 = vshll.u32 2131351028, %v2265
        %v2275 = vshrl.u32 2102212464, %v2266
        %v2276 = vor.u32 %v2274, %v2275
        %v2277 = vshll.u32 2102212464, %v2265
        %v2278 = vshrl.u32 920167782, %v2266
        %v2279 = vor.u32 %v2277, %v2278
        %v2280 = vshll.u32 920167782, %v2265
        %v2281 = vshrl.u32 1326507024, %v2266
        %v2282 = vor.u32 %v2280, %v2281
        %vm2283 = vcmp.lt.s32.totalorder %v2264, 1
        %vm2284 = vcmp.lt.s32.totalorder %v2264, 2
        %vm2285 = vcmp.lt.s32.totalorder %v2264, 3
        %vm2286 = vcmp.lt.s32.totalorder %v2264, 4
        %v2287 = vsel %vm2283, %v2267, %v2270
        %v2288 = vsel %vm2286, %v2276, 2102212464
        %v2289 = vsel %vm2285, %v2273, %v2288
        %v2290 = vsel %vm2284, %v2287, %v2289
        %v2291 = vsel %vm2283, %v2270, %v2273
        %v2292 = vsel %vm2286, %v2279, 920167782
        %v2293 = vsel %vm2285, %v2276, %v2292
        %v2294 = vsel %vm2284, %v2291, %v2293
        %v2295 = vsel %vm2283, %v2273, %v2276
        %v2296 = vsel %vm2286, %v2282, 1326507024
        %v2297 = vsel %vm2285, %v2279, %v2296
        %v2298 = vsel %vm2284, %v2295, %v2297
        %v2299 = vshll.u32 %v2259, 8
        %v2300 = vand.u32 %v2299, 65535
        %v2301 = vshrl.u32 %v2299, 16
        %v2302 = vand.u32 %v2298, 65535
        %v2303 = vshrl.u32 %v2298, 16
        %v2304 = vmul.u32 %v2300, %v2302
        %v2305 = vmul.u32 %v2300, %v2303
        %v2306 = vmul.u32 %v2301, %v2302
        %v2307 = vmul.u32 %v2301, %v2303
        %v2308 = vshll.u32 %v2305, 16
        %v2309 = vshrl.u32 %v2305, 16
        %v2310 = vshll.u32 %v2306, 16
        %v2311 = vshrl.u32 %v2306, 16
        %vm2312 = vc.u32 %v2304, %v2308
        %v2313 = vsel %vm2312, 1, 0
        %v2314 = vadd.s32 %v2304, %v2308
        %v2315 = vadd.s32 %v2307, %v2313
        %vm2316 = vc.u32 %v2314, %v2310
        %v2317 = vsel %vm2316, 1, 0
        %v2318 = vadd.s32 %v2314, %v2310
        %v2319 = vadd.s32 %v2315, %v2317
        %v2320 = vadd.s32 %v2319, %v2309
        %v2321 = vadd.s32 %v2320, %v2311
        %v2322 = vand.u32 %v2299, 65535
        %v2323 = vshrl.u32 %v2299, 16
        %v2324 = vand.u32 %v2294, 65535
        %v2325 = vshrl.u32 %v2294, 16
        %v2326 = vmul.u32 %v2322, %v2324
        %v2327 = vmul.u32 %v2322, %v2325
        %v2328 = vmul.u32 %v2323, %v2324
        %v2329 = vmul.u32 %v2323, %v2325
        %v2330 = vshll.u32 %v2327, 16
        %v2331 = vshrl.u32 %v2327, 16
        %v2332 = vshll.u32 %v2328, 16
        %v2333 = vshrl.u32 %v2328, 16
        %vm2334 = vc.u32 %v2326, %v2330
        %v2335 = vsel %vm2334, 1, 0
        %v2336 = vadd.s32 %v2326, %v2330
        %v2337 = vadd.s32 %v2329, %v2335
        %vm2338 = vc.u32 %v2336, %v2332
        %v2339 = vsel %vm2338, 1, 0
        %v2340 = vadd.s32 %v2336, %v2332
        %v2341 = vadd.s32 %v2337, %v2339
        %v2342 = vadd.s32 %v2341, %v2331
        %v2343 = vadd.s32 %v2342, %v2333
        %v2344 = vmul.u32 %v2299, %v2290
        %v2345 = vadd.s32 %v2321, %v2340
        %vm2346 = vc.u32 %v2321, %v2340
        %v2347 = vadd.s32 %v2343, 1
        %v2348 = vsel %vm2346, %v2347, %v2343
        %v2349 = vadd.s32 %v2344, %v2348
        %v2350 = vadd.s32 %v2349, 536870912
        %v2351 = vshrl.u32 %v2350, 30
        %v2352 = vshll.u32 %v2351, 30
        %v2353 = vsub.s32 %v2349, %v2352
        %vm2354 = vcmp.lt.s32.totalorder %v2353, 0
        %v2355 = vsub.s32 0, %v2353
        %v2356 = vsel %vm2354, %v2355, %v2353
        %v2357 = vclz %v2356
        %v2358 = vsub.s32 %v2357, 2
        %vm2359 = vcmp.gt.s32.totalorder 0, %v2358
        %v2360 = vsel %vm2359, 0, %v2358
        %v2361 = vsub.s32 32, %v2360
        %v2362 = vshll.u32 %v2353, %v2360
        %v2363 = vshrl.u32 %v2345, %v2361
        %v2364 = vor.u32 %v2362, %v2363
        %v2365 = vsub.s32 4294967266, %v2360
        %v2366 = vadd.s32 %v2365, 127
        %v2367 = vshll.u32 %v2366, 23
        %v2368 = vor.u32 4788187, %v2367
        %v2369 = vand.u32 2147483647, %v2368
        %v2371 = vcvt.s32.f32 %v2364
        %v2372 = vmul.f32 %v2371, %v2369
        %v2373 = vxor.u32 %v2372, 2147483648
        %v2374 = vsel %vm2253, %v2373, %v2372
        %v2375 = vsub.s32 4, %v2351
        %v2376 = vsel %vm2253, %v2375, %v2351
        %v2377 = vsel %vm2252, %v525, %v2374
        %v2378 = vsel %vm2252, 0, %v2376
        %v2379 = vmul.f32 %v2377, %v2377
        %v2380 = vmul.f32 %v2379, -0.001358992
        %v2381 = vadd.f32 %v2380, 0.041655596
        %v2382 = vmul.f32 %v2379, %v2381
        %v2383 = vadd.f32 %v2382, -0.4999988
        %v2384 = vmul.f32 %v2379, %v2383
        %v2385 = vadd.f32 1.0, %v2384
        %v2386 = vmul.f32 %v2377, %v2377
        %v2387 = vmul.f32 %v2386, -0.00019511016
        %v2388 = vadd.f32 %v2387, 0.008332121
        %v2389 = vmul.f32 %v2386, %v2388
        %v2390 = vadd.f32 %v2389, -0.16666654
        %v2391 = vmul.f32 %v2386, %v2390
        %v2392 = vadd.f32 %v2391, 1.0
        %v2393 = vmul.f32 %v2392, %v2377
        %vm2394 = vweird.f32 %v525
        %v2395 = vadd.s32 %v2378, 3
        %v2396 = vand.u32 %v2395, 3
        %vm2397 = vcmp.lt.s32.totalorder %v2396, 2
        %vm2398 = vcmp.eq.s32.totalorder %v2396, 0
        %v2399 = vxor.u32 %v2393, 2147483648
        %v2400 = vsel %vm2398, %v2385, %v2399
        %vm2401 = vcmp.eq.s32.totalorder %v2396, 2
        %v2402 = vxor.u32 %v2385, 2147483648
        %v2403 = vsel %vm2401, %v2402, %v2393
        %v2404 = vsel %vm2397, %v2400, %v2403
        %v2405 = vsel %vm2394, nan, %v2404
        %v2406 = vand.u32 2147483647, %v526
        %vm2407 = vcmp.le.f32.partialorder %v2406, 0.7853982
        %vm2408 = vcmp.lt.s32.totalorder %v526, 0
        %v2409 = vand.u32 %v526, 2139095040
        %v2410 = vshrl.u32 %v2409, 23
        %v2411 = vsub.s32 %v2410, 127
        %v2412 = vand.u32 2147483647, %v526
        %v2413 = vand.u32 %v2412, 8388607
        %v2414 = vor.u32 %v2413, 8388608
        %v2415 = vsub.s32 0, %v2414
        %v2416 = vadd.s32 %v2411, 1
        %vm2417 = vcmp.gt.s32.totalorder %v2416, 0
        %v2418 = vsel %vm2417, %v2416, 0
        %v2419 = vshrl.u32 %v2418, 5
        %v2420 = vand.u32 %v2418, 31
        %v2421 = vsub.s32 32, %v2420
        %v2422 = vshrl.u32 683565275, %v2421
        %v2423 = vshll.u32 683565275, %v2420
        %v2424 = vshrl.u32 2475754826, %v2421
        %v2425 = vor.u32 %v2423, %v2424
        %v2426 = vshll.u32 2475754826, %v2420
        %v2427 = vshrl.u32 2131351028, %v2421
        %v2428 = vor.u32 %v2426, %v2427
        %v2429 = vshll.u32 2131351028, %v2420
        %v2430 = vshrl.u32 2102212464, %v2421
        %v2431 = vor.u32 %v2429, %v2430
        %v2432 = vshll.u32 2102212464, %v2420
        %v2433 = vshrl.u32 920167782, %v2421
        %v2434 = vor.u32 %v2432, %v2433
        %v2435 = vshll.u32 920167782, %v2420
        %v2436 = vshrl.u32 1326507024, %v2421
        %v2437 = vor.u32 %v2435, %v2436
        %vm2438 = vcmp.lt.s32.totalorder %v2419, 1
        %vm2439 = vcmp.lt.s32.totalorder %v2419, 2
        %vm2440 = vcmp.lt.s32.totalorder %v2419, 3
        %vm2441 = vcmp.lt.s32.totalorder %v2419, 4
        %v2442 = vsel %vm2438, %v2422, %v2425
        %v2443 = vsel %vm2441, %v2431, 2102212464
        %v2444 = vsel %vm2440, %v2428, %v2443
        %v2445 = vsel %vm2439, %v2442, %v2444
        %v2446 = vsel %vm2438, %v2425, %v2428
        %v2447 = vsel %vm2441, %v2434, 920167782
        %v2448 = vsel %vm2440, %v2431, %v2447
        %v2449 = vsel %vm2439, %v2446, %v2448
        %v2450 = vsel %vm2438, %v2428, %v2431
        %v2451 = vsel %vm2441, %v2437, 1326507024
        %v2452 = vsel %vm2440, %v2434, %v2451
        %v2453 = vsel %vm2439, %v2450, %v2452
        %v2454 = vshll.u32 %v2414, 8
        %v2455 = vand.u32 %v2454, 65535
        %v2456 = vshrl.u32 %v2454, 16
        %v2457 = vand.u32 %v2453, 65535
        %v2458 = vshrl.u32 %v2453, 16
        %v2459 = vmul.u32 %v2455, %v2457
        %v2460 = vmul.u32 %v2455, %v2458
        %v2461 = vmul.u32 %v2456, %v2457
        %v2462 = vmul.u32 %v2456, %v2458
        %v2463 = vshll.u32 %v2460, 16
        %v2464 = vshrl.u32 %v2460, 16
        %v2465 = vshll.u32 %v2461, 16
        %v2466 = vshrl.u32 %v2461, 16
        %vm2467 = vc.u32 %v2459, %v2463
        %v2468 = vsel %vm2467, 1, 0
        %v2469 = vadd.s32 %v2459, %v2463
        %v2470 = vadd.s32 %v2462, %v2468
        %vm2471 = vc.u32 %v2469, %v2465
        %v2472 = vsel %vm2471, 1, 0
        %v2473 = vadd.s32 %v2469, %v2465
        %v2474 = vadd.s32 %v2470, %v2472
        %v2475 = vadd.s32 %v2474, %v2464
        %v2476 = vadd.s32 %v2475, %v2466
        %v2477 = vand.u32 %v2454, 65535
        %v2478 = vshrl.u32 %v2454, 16
        %v2479 = vand.u32 %v2449, 65535
        %v2480 = vshrl.u32 %v2449, 16
        %v2481 = vmul.u32 %v2477, %v2479
        %v2482 = vmul.u32 %v2477, %v2480
        %v2483 = vmul.u32 %v2478, %v2479
        %v2484 = vmul.u32 %v2478, %v2480
        %v2485 = vshll.u32 %v2482, 16
        %v2486 = vshrl.u32 %v2482, 16
        %v2487 = vshll.u32 %v2483, 16
        %v2488 = vshrl.u32 %v2483, 16
        %vm2489 = vc.u32 %v2481, %v2485
        %v2490 = vsel %vm2489, 1, 0
        %v2491 = vadd.s32 %v2481, %v2485
        %v2492 = vadd.s32 %v2484, %v2490
        %vm2493 = vc.u32 %v2491, %v2487
        %v2494 = vsel %vm2493, 1, 0
        %v2495 = vadd.s32 %v2491, %v2487
        %v2496 = vadd.s32 %v2492, %v2494
        %v2497 = vadd.s32 %v2496, %v2486
        %v2498 = vadd.s32 %v2497, %v2488
        %v2499 = vmul.u32 %v2454, %v2445
        %v2500 = vadd.s32 %v2476, %v2495
        %vm2501 = vc.u32 %v2476, %v2495
        %v2502 = vadd.s32 %v2498, 1
        %v2503 = vsel %vm2501, %v2502, %v2498
        %v2504 = vadd.s32 %v2499, %v2503
        %v2505 = vadd.s32 %v2504, 536870912
        %v2506 = vshrl.u32 %v2505, 30
        %v2507 = vshll.u32 %v2506, 30
        %v2508 = vsub.s32 %v2504, %v2507
        %vm2509 = vcmp.lt.s32.totalorder %v2508, 0
        %v2510 = vsub.s32 0, %v2508
        %v2511 = vsel %vm2509, %v2510, %v2508
        %v2512 = vclz %v2511
        %v2513 = vsub.s32 %v2512, 2
        %vm2514 = vcmp.gt.s32.totalorder 0, %v2513
        %v2515 = vsel %vm2514, 0, %v2513
        %v2516 = vsub.s32 32, %v2515
        %v2517 = vshll.u32 %v2508, %v2515
        %v2518 = vshrl.u32 %v2500, %v2516
        %v2519 = vor.u32 %v2517, %v2518
        %v2520 = vsub.s32 4294967266, %v2515
        %v2521 = vadd.s32 %v2520, 127
        %v2522 = vshll.u32 %v2521, 23
        %v2523 = vor.u32 4788187, %v2522
        %v2524 = vand.u32 2147483647, %v2523
        %v2526 = vcvt.s32.f32 %v2519
        %v2527 = vmul.f32 %v2526, %v2524
        %v2528 = vxor.u32 %v2527, 2147483648
        %v2529 = vsel %vm2408, %v2528, %v2527
        %v2530 = vsub.s32 4, %v2506
        %v2531 = vsel %vm2408, %v2530, %v2506
        %v2532 = vsel %vm2407, %v526, %v2529
        %v2533 = vsel %vm2407, 0, %v2531
        %v2534 = vmul.f32 %v2532, %v2532
        %v2535 = vmul.f32 %v2534, -0.001358992
        %v2536 = vadd.f32 %v2535, 0.041655596
        %v2537 = vmul.f32 %v2534, %v2536
        %v2538 = vadd.f32 %v2537, -0.4999988
        %v2539 = vmul.f32 %v2534, %v2538
        %v2540 = vadd.f32 1.0, %v2539
        %v2541 = vmul.f32 %v2532, %v2532
        %v2542 = vmul.f32 %v2541, -0.00019511016
        %v2543 = vadd.f32 %v2542, 0.008332121
        %v2544 = vmul.f32 %v2541, %v2543
        %v2545 = vadd.f32 %v2544, -0.16666654
        %v2546 = vmul.f32 %v2541, %v2545
        %v2547 = vadd.f32 %v2546, 1.0
        %v2548 = vmul.f32 %v2547, %v2532
        %vm2549 = vweird.f32 %v526
        %v2550 = vadd.s32 %v2533, 3
        %v2551 = vand.u32 %v2550, 3
        %vm2552 = vcmp.lt.s32.totalorder %v2551, 2
        %vm2553 = vcmp.eq.s32.totalorder %v2551, 0
        %v2554 = vxor.u32 %v2548, 2147483648
        %v2555 = vsel %vm2553, %v2540, %v2554
        %vm2556 = vcmp.eq.s32.totalorder %v2551, 2
        %v2557 = vxor.u32 %v2540, 2147483648
        %v2558 = vsel %vm2556, %v2557, %v2548
        %v2559 = vsel %vm2552, %v2555, %v2558
        %v2560 = vsel %vm2549, nan, %v2559
        %v2561 = vand.u32 2147483647, %v527
        %vm2562 = vcmp.le.f32.partialorder %v2561, 0.7853982
        %vm2563 = vcmp.lt.s32.totalorder %v527, 0
        %v2564 = vand.u32 %v527, 2139095040
        %v2565 = vshrl.u32 %v2564, 23
        %v2566 = vsub.s32 %v2565, 127
        %v2567 = vand.u32 2147483647, %v527
        %v2568 = vand.u32 %v2567, 8388607
        %v2569 = vor.u32 %v2568, 8388608
        %v2570 = vsub.s32 0, %v2569
        %v2571 = vadd.s32 %v2566, 1
        %vm2572 = vcmp.gt.s32.totalorder %v2571, 0
        %v2573 = vsel %vm2572, %v2571, 0
        %v2574 = vshrl.u32 %v2573, 5
        %v2575 = vand.u32 %v2573, 31
        %v2576 = vsub.s32 32, %v2575
        %v2577 = vshrl.u32 683565275, %v2576
        %v2578 = vshll.u32 683565275, %v2575
        %v2579 = vshrl.u32 2475754826, %v2576
        %v2580 = vor.u32 %v2578, %v2579
        %v2581 = vshll.u32 2475754826, %v2575
        %v2582 = vshrl.u32 2131351028, %v2576
        %v2583 = vor.u32 %v2581, %v2582
        %v2584 = vshll.u32 2131351028, %v2575
        %v2585 = vshrl.u32 2102212464, %v2576
        %v2586 = vor.u32 %v2584, %v2585
        %v2587 = vshll.u32 2102212464, %v2575
        %v2588 = vshrl.u32 920167782, %v2576
        %v2589 = vor.u32 %v2587, %v2588
        %v2590 = vshll.u32 920167782, %v2575
        %v2591 = vshrl.u32 1326507024, %v2576
        %v2592 = vor.u32 %v2590, %v2591
        %vm2593 = vcmp.lt.s32.totalorder %v2574, 1
        %vm2594 = vcmp.lt.s32.totalorder %v2574, 2
        %vm2595 = vcmp.lt.s32.totalorder %v2574, 3
        %vm2596 = vcmp.lt.s32.totalorder %v2574, 4
        %v2597 = vsel %vm2593, %v2577, %v2580
        %v2598 = vsel %vm2596, %v2586, 2102212464
        %v2599 = vsel %vm2595, %v2583, %v2598
        %v2600 = vsel %vm2594, %v2597, %v2599
        %v2601 = vsel %vm2593, %v2580, %v2583
        %v2602 = vsel %vm2596, %v2589, 920167782
        %v2603 = vsel %vm2595, %v2586, %v2602
        %v2604 = vsel %vm2594, %v2601, %v2603
        %v2605 = vsel %vm2593, %v2583, %v2586
        %v2606 = vsel %vm2596, %v2592, 1326507024
        %v2607 = vsel %vm2595, %v2589, %v2606
        %v2608 = vsel %vm2594, %v2605, %v2607
        %v2609 = vshll.u32 %v2569, 8
        %v2610 = vand.u32 %v2609, 65535
        %v2611 = vshrl.u32 %v2609, 16
        %v2612 = vand.u32 %v2608, 65535
        %v2613 = vshrl.u32 %v2608, 16
        %v2614 = vmul.u32 %v2610, %v2612
        %v2615 = vmul.u32 %v2610, %v2613
        %v2616 = vmul.u32 %v2611, %v2612
        %v2617 = vmul.u32 %v2611, %v2613
        %v2618 = vshll.u32 %v2615, 16
        %v2619 = vshrl.u32 %v2615, 16
        %v2620 = vshll.u32 %v2616, 16
        %v2621 = vshrl.u32 %v2616, 16
        %vm2622 = vc.u32 %v2614, %v2618
        %v2623 = vsel %vm2622, 1, 0
        %v2624 = vadd.s32 %v2614, %v2618
        %v2625 = vadd.s32 %v2617, %v2623
        %vm2626 = vc.u32 %v2624, %v2620
        %v2627 = vsel %vm2626, 1, 0
        %v2628 = vadd.s32 %v2624, %v2620
        %v2629 = vadd.s32 %v2625, %v2627
        %v2630 = vadd.s32 %v2629, %v2619
        %v2631 = vadd.s32 %v2630, %v2621
        %v2632 = vand.u32 %v2609, 65535
        %v2633 = vshrl.u32 %v2609, 16
        %v2634 = vand.u32 %v2604, 65535
        %v2635 = vshrl.u32 %v2604, 16
        %v2636 = vmul.u32 %v2632, %v2634
        %v2637 = vmul.u32 %v2632, %v2635
        %v2638 = vmul.u32 %v2633, %v2634
        %v2639 = vmul.u32 %v2633, %v2635
        %v2640 = vshll.u32 %v2637, 16
        %v2641 = vshrl.u32 %v2637, 16
        %v2642 = vshll.u32 %v2638, 16
        %v2643 = vshrl.u32 %v2638, 16
        %vm2644 = vc.u32 %v2636, %v2640
        %v2645 = vsel %vm2644, 1, 0
        %v2646 = vadd.s32 %v2636, %v2640
        %v2647 = vadd.s32 %v2639, %v2645
        %vm2648 = vc.u32 %v2646, %v2642
        %v2649 = vsel %vm2648, 1, 0
        %v2650 = vadd.s32 %v2646, %v2642
        %v2651 = vadd.s32 %v2647, %v2649
        %v2652 = vadd.s32 %v2651, %v2641
        %v2653 = vadd.s32 %v2652, %v2643
        %v2654 = vmul.u32 %v2609, %v2600
        %v2655 = vadd.s32 %v2631, %v2650
        %vm2656 = vc.u32 %v2631, %v2650
        %v2657 = vadd.s32 %v2653, 1
        %v2658 = vsel %vm2656, %v2657, %v2653
        %v2659 = vadd.s32 %v2654, %v2658
        %v2660 = vadd.s32 %v2659, 536870912
        %v2661 = vshrl.u32 %v2660, 30
        %v2662 = vshll.u32 %v2661, 30
        %v2663 = vsub.s32 %v2659, %v2662
        %vm2664 = vcmp.lt.s32.totalorder %v2663, 0
        %v2665 = vsub.s32 0, %v2663
        %v2666 = vsel %vm2664, %v2665, %v2663
        %v2667 = vclz %v2666
        %v2668 = vsub.s32 %v2667, 2
        %vm2669 = vcmp.gt.s32.totalorder 0, %v2668
        %v2670 = vsel %vm2669, 0, %v2668
        %v2671 = vsub.s32 32, %v2670
        %v2672 = vshll.u32 %v2663, %v2670
        %v2673 = vshrl.u32 %v2655, %v2671
        %v2674 = vor.u32 %v2672, %v2673
        %v2675 = vsub.s32 4294967266, %v2670
        %v2676 = vadd.s32 %v2675, 127
        %v2677 = vshll.u32 %v2676, 23
        %v2678 = vor.u32 4788187, %v2677
        %v2679 = vand.u32 2147483647, %v2678
        %v2681 = vcvt.s32.f32 %v2674
        %v2682 = vmul.f32 %v2681, %v2679
        %v2683 = vxor.u32 %v2682, 2147483648
        %v2684 = vsel %vm2563, %v2683, %v2682
        %v2685 = vsub.s32 4, %v2661
        %v2686 = vsel %vm2563, %v2685, %v2661
        %v2687 = vsel %vm2562, %v527, %v2684
        %v2688 = vsel %vm2562, 0, %v2686
        %v2689 = vmul.f32 %v2687, %v2687
        %v2690 = vmul.f32 %v2689, -0.001358992
        %v2691 = vadd.f32 %v2690, 0.041655596
        %v2692 = vmul.f32 %v2689, %v2691
        %v2693 = vadd.f32 %v2692, -0.4999988
        %v2694 = vmul.f32 %v2689, %v2693
        %v2695 = vadd.f32 1.0, %v2694
        %v2696 = vmul.f32 %v2687, %v2687
        %v2697 = vmul.f32 %v2696, -0.00019511016
        %v2698 = vadd.f32 %v2697, 0.008332121
        %v2699 = vmul.f32 %v2696, %v2698
        %v2700 = vadd.f32 %v2699, -0.16666654
        %v2701 = vmul.f32 %v2696, %v2700
        %v2702 = vadd.f32 %v2701, 1.0
        %v2703 = vmul.f32 %v2702, %v2687
        %vm2704 = vweird.f32 %v527
        %v2705 = vadd.s32 %v2688, 3
        %v2706 = vand.u32 %v2705, 3
        %vm2707 = vcmp.lt.s32.totalorder %v2706, 2
        %vm2708 = vcmp.eq.s32.totalorder %v2706, 0
        %v2709 = vxor.u32 %v2703, 2147483648
        %v2710 = vsel %vm2708, %v2695, %v2709
        %vm2711 = vcmp.eq.s32.totalorder %v2706, 2
        %v2712 = vxor.u32 %v2695, 2147483648
        %v2713 = vsel %vm2711, %v2712, %v2703
        %v2714 = vsel %vm2707, %v2710, %v2713
        %v2715 = vsel %vm2704, nan, %v2714
        %v2716 = vand.u32 2147483647, %v528
        %vm2717 = vcmp.le.f32.partialorder %v2716, 0.7853982
        %vm2718 = vcmp.lt.s32.totalorder %v528, 0
        %v2719 = vand.u32 %v528, 2139095040
        %v2720 = vshrl.u32 %v2719, 23
        %v2721 = vsub.s32 %v2720, 127
        %v2722 = vand.u32 2147483647, %v528
        %v2723 = vand.u32 %v2722, 8388607
        %v2724 = vor.u32 %v2723, 8388608
        %v2725 = vsub.s32 0, %v2724
        %v2726 = vadd.s32 %v2721, 1
        %vm2727 = vcmp.gt.s32.totalorder %v2726, 0
        %v2728 = vsel %vm2727, %v2726, 0
        %v2729 = vshrl.u32 %v2728, 5
        %v2730 = vand.u32 %v2728, 31
        %v2731 = vsub.s32 32, %v2730
        %v2732 = vshrl.u32 683565275, %v2731
        %v2733 = vshll.u32 683565275, %v2730
        %v2734 = vshrl.u32 2475754826, %v2731
        %v2735 = vor.u32 %v2733, %v2734
        %v2736 = vshll.u32 2475754826, %v2730
        %v2737 = vshrl.u32 2131351028, %v2731
        %v2738 = vor.u32 %v2736, %v2737
        %v2739 = vshll.u32 2131351028, %v2730
        %v2740 = vshrl.u32 2102212464, %v2731
        %v2741 = vor.u32 %v2739, %v2740
        %v2742 = vshll.u32 2102212464, %v2730
        %v2743 = vshrl.u32 920167782, %v2731
        %v2744 = vor.u32 %v2742, %v2743
        %v2745 = vshll.u32 920167782, %v2730
        %v2746 = vshrl.u32 1326507024, %v2731
        %v2747 = vor.u32 %v2745, %v2746
        %vm2748 = vcmp.lt.s32.totalorder %v2729, 1
        %vm2749 = vcmp.lt.s32.totalorder %v2729, 2
        %vm2750 = vcmp.lt.s32.totalorder %v2729, 3
        %vm2751 = vcmp.lt.s32.totalorder %v2729, 4
        %v2752 = vsel %vm2748, %v2732, %v2735
        %v2753 = vsel %vm2751, %v2741, 2102212464
        %v2754 = vsel %vm2750, %v2738, %v2753
        %v2755 = vsel %vm2749, %v2752, %v2754
        %v2756 = vsel %vm2748, %v2735, %v2738
        %v2757 = vsel %vm2751, %v2744, 920167782
        %v2758 = vsel %vm2750, %v2741, %v2757
        %v2759 = vsel %vm2749, %v2756, %v2758
        %v2760 = vsel %vm2748, %v2738, %v2741
        %v2761 = vsel %vm2751, %v2747, 1326507024
        %v2762 = vsel %vm2750, %v2744, %v2761
        %v2763 = vsel %vm2749, %v2760, %v2762
        %v2764 = vshll.u32 %v2724, 8
        %v2765 = vand.u32 %v2764, 65535
        %v2766 = vshrl.u32 %v2764, 16
        %v2767 = vand.u32 %v2763, 65535
        %v2768 = vshrl.u32 %v2763, 16
        %v2769 = vmul.u32 %v2765, %v2767
        %v2770 = vmul.u32 %v2765, %v2768
        %v2771 = vmul.u32 %v2766, %v2767
        %v2772 = vmul.u32 %v2766, %v2768
        %v2773 = vshll.u32 %v2770, 16
        %v2774 = vshrl.u32 %v2770, 16
        %v2775 = vshll.u32 %v2771, 16
        %v2776 = vshrl.u32 %v2771, 16
        %vm2777 = vc.u32 %v2769, %v2773
        %v2778 = vsel %vm2777, 1, 0
        %v2779 = vadd.s32 %v2769, %v2773
        %v2780 = vadd.s32 %v2772, %v2778
        %vm2781 = vc.u32 %v2779, %v2775
        %v2782 = vsel %vm2781, 1, 0
        %v2783 = vadd.s32 %v2779, %v2775
        %v2784 = vadd.s32 %v2780, %v2782
        %v2785 = vadd.s32 %v2784, %v2774
        %v2786 = vadd.s32 %v2785, %v2776
        %v2787 = vand.u32 %v2764, 65535
        %v2788 = vshrl.u32 %v2764, 16
        %v2789 = vand.u32 %v2759, 65535
        %v2790 = vshrl.u32 %v2759, 16
        %v2791 = vmul.u32 %v2787, %v2789
        %v2792 = vmul.u32 %v2787, %v2790
        %v2793 = vmul.u32 %v2788, %v2789
        %v2794 = vmul.u32 %v2788, %v2790
        %v2795 = vshll.u32 %v2792, 16
        %v2796 = vshrl.u32 %v2792, 16
        %v2797 = vshll.u32 %v2793, 16
        %v2798 = vshrl.u32 %v2793, 16
        %vm2799 = vc.u32 %v2791, %v2795
        %v2800 = vsel %vm2799, 1, 0
        %v2801 = vadd.s32 %v2791, %v2795
        %v2802 = vadd.s32 %v2794, %v2800
        %vm2803 = vc.u32 %v2801, %v2797
        %v2804 = vsel %vm2803, 1, 0
        %v2805 = vadd.s32 %v2801, %v2797
        %v2806 = vadd.s32 %v2802, %v2804
        %v2807 = vadd.s32 %v2806, %v2796
        %v2808 = vadd.s32 %v2807, %v2798
        %v2809 = vmul.u32 %v2764, %v2755
        %v2810 = vadd.s32 %v2786, %v2805
        %vm2811 = vc.u32 %v2786, %v2805
        %v2812 = vadd.s32 %v2808, 1
        %v2813 = vsel %vm2811, %v2812, %v2808
        %v2814 = vadd.s32 %v2809, %v2813
        %v2815 = vadd.s32 %v2814, 536870912
        %v2816 = vshrl.u32 %v2815, 30
        %v2817 = vshll.u32 %v2816, 30
        %v2818 = vsub.s32 %v2814, %v2817
        %vm2819 = vcmp.lt.s32.totalorder %v2818, 0
        %v2820 = vsub.s32 0, %v2818
        %v2821 = vsel %vm2819, %v2820, %v2818
        %v2822 = vclz %v2821
        %v2823 = vsub.s32 %v2822, 2
        %vm2824 = vcmp.gt.s32.totalorder 0, %v2823
        %v2825 = vsel %vm2824, 0, %v2823
        %v2826 = vsub.s32 32, %v2825
        %v2827 = vshll.u32 %v2818, %v2825
        %v2828 = vshrl.u32 %v2810, %v2826
        %v2829 = vor.u32 %v2827, %v2828
        %v2830 = vsub.s32 4294967266, %v2825
        %v2831 = vadd.s32 %v2830, 127
        %v2832 = vshll.u32 %v2831, 23
        %v2833 = vor.u32 4788187, %v2832
        %v2834 = vand.u32 2147483647, %v2833
        %v2836 = vcvt.s32.f32 %v2829
        %v2837 = vmul.f32 %v2836, %v2834
        %v2838 = vxor.u32 %v2837, 2147483648
        %v2839 = vsel %vm2718, %v2838, %v2837
        %v2840 = vsub.s32 4, %v2816
        %v2841 = vsel %vm2718, %v2840, %v2816
        %v2842 = vsel %vm2717, %v528, %v2839
        %v2843 = vsel %vm2717, 0, %v2841
        %v2844 = vmul.f32 %v2842, %v2842
        %v2845 = vmul.f32 %v2844, -0.001358992
        %v2846 = vadd.f32 %v2845, 0.041655596
        %v2847 = vmul.f32 %v2844, %v2846
        %v2848 = vadd.f32 %v2847, -0.4999988
        %v2849 = vmul.f32 %v2844, %v2848
        %v2850 = vadd.f32 1.0, %v2849
        %v2851 = vmul.f32 %v2842, %v2842
        %v2852 = vmul.f32 %v2851, -0.00019511016
        %v2853 = vadd.f32 %v2852, 0.008332121
        %v2854 = vmul.f32 %v2851, %v2853
        %v2855 = vadd.f32 %v2854, -0.16666654
        %v2856 = vmul.f32 %v2851, %v2855
        %v2857 = vadd.f32 %v2856, 1.0
        %v2858 = vmul.f32 %v2857, %v2842
        %vm2859 = vweird.f32 %v528
        %v2860 = vadd.s32 %v2843, 3
        %v2861 = vand.u32 %v2860, 3
        %vm2862 = vcmp.lt.s32.totalorder %v2861, 2
        %vm2863 = vcmp.eq.s32.totalorder %v2861, 0
        %v2864 = vxor.u32 %v2858, 2147483648
        %v2865 = vsel %vm2863, %v2850, %v2864
        %vm2866 = vcmp.eq.s32.totalorder %v2861, 2
        %v2867 = vxor.u32 %v2850, 2147483648
        %v2868 = vsel %vm2866, %v2867, %v2858
        %v2869 = vsel %vm2862, %v2865, %v2868
        %v2870 = vsel %vm2859, nan, %v2869
        %v2871 = vand.u32 2147483647, %v529
        %vm2872 = vcmp.le.f32.partialorder %v2871, 0.7853982
        %vm2873 = vcmp.lt.s32.totalorder %v529, 0
        %v2874 = vand.u32 %v529, 2139095040
        %v2875 = vshrl.u32 %v2874, 23
        %v2876 = vsub.s32 %v2875, 127
        %v2877 = vand.u32 2147483647, %v529
        %v2878 = vand.u32 %v2877, 8388607
        %v2879 = vor.u32 %v2878, 8388608
        %v2880 = vsub.s32 0, %v2879
        %v2881 = vadd.s32 %v2876, 1
        %vm2882 = vcmp.gt.s32.totalorder %v2881, 0
        %v2883 = vsel %vm2882, %v2881, 0
        %v2884 = vshrl.u32 %v2883, 5
        %v2885 = vand.u32 %v2883, 31
        %v2886 = vsub.s32 32, %v2885
        %v2887 = vshrl.u32 683565275, %v2886
        %v2888 = vshll.u32 683565275, %v2885
        %v2889 = vshrl.u32 2475754826, %v2886
        %v2890 = vor.u32 %v2888, %v2889
        %v2891 = vshll.u32 2475754826, %v2885
        %v2892 = vshrl.u32 2131351028, %v2886
        %v2893 = vor.u32 %v2891, %v2892
        %v2894 = vshll.u32 2131351028, %v2885
        %v2895 = vshrl.u32 2102212464, %v2886
        %v2896 = vor.u32 %v2894, %v2895
        %v2897 = vshll.u32 2102212464, %v2885
        %v2898 = vshrl.u32 920167782, %v2886
        %v2899 = vor.u32 %v2897, %v2898
        %v2900 = vshll.u32 920167782, %v2885
        %v2901 = vshrl.u32 1326507024, %v2886
        %v2902 = vor.u32 %v2900, %v2901
        %vm2903 = vcmp.lt.s32.totalorder %v2884, 1
        %vm2904 = vcmp.lt.s32.totalorder %v2884, 2
        %vm2905 = vcmp.lt.s32.totalorder %v2884, 3
        %vm2906 = vcmp.lt.s32.totalorder %v2884, 4
        %v2907 = vsel %vm2903, %v2887, %v2890
        %v2908 = vsel %vm2906, %v2896, 2102212464
        %v2909 = vsel %vm2905, %v2893, %v2908
        %v2910 = vsel %vm2904, %v2907, %v2909
        %v2911 = vsel %vm2903, %v2890, %v2893
        %v2912 = vsel %vm2906, %v2899, 920167782
        %v2913 = vsel %vm2905, %v2896, %v2912
        %v2914 = vsel %vm2904, %v2911, %v2913
        %v2915 = vsel %vm2903, %v2893, %v2896
        %v2916 = vsel %vm2906, %v2902, 1326507024
        %v2917 = vsel %vm2905, %v2899, %v2916
        %v2918 = vsel %vm2904, %v2915, %v2917
        %v2919 = vshll.u32 %v2879, 8
        %v2920 = vand.u32 %v2919, 65535
        %v2921 = vshrl.u32 %v2919, 16
        %v2922 = vand.u32 %v2918, 65535
        %v2923 = vshrl.u32 %v2918, 16
        %v2924 = vmul.u32 %v2920, %v2922
        %v2925 = vmul.u32 %v2920, %v2923
        %v2926 = vmul.u32 %v2921, %v2922
        %v2927 = vmul.u32 %v2921, %v2923
        %v2928 = vshll.u32 %v2925, 16
        %v2929 = vshrl.u32 %v2925, 16
        %v2930 = vshll.u32 %v2926, 16
        %v2931 = vshrl.u32 %v2926, 16
        %vm2932 = vc.u32 %v2924, %v2928
        %v2933 = vsel %vm2932, 1, 0
        %v2934 = vadd.s32 %v2924, %v2928
        %v2935 = vadd.s32 %v2927, %v2933
        %vm2936 = vc.u32 %v2934, %v2930
        %v2937 = vsel %vm2936, 1, 0
        %v2938 = vadd.s32 %v2934, %v2930
        %v2939 = vadd.s32 %v2935, %v2937
        %v2940 = vadd.s32 %v2939, %v2929
        %v2941 = vadd.s32 %v2940, %v2931
        %v2942 = vand.u32 %v2919, 65535
        %v2943 = vshrl.u32 %v2919, 16
        %v2944 = vand.u32 %v2914, 65535
        %v2945 = vshrl.u32 %v2914, 16
        %v2946 = vmul.u32 %v2942, %v2944
        %v2947 = vmul.u32 %v2942, %v2945
        %v2948 = vmul.u32 %v2943, %v2944
        %v2949 = vmul.u32 %v2943, %v2945
        %v2950 = vshll.u32 %v2947, 16
        %v2951 = vshrl.u32 %v2947, 16
        %v2952 = vshll.u32 %v2948, 16
        %v2953 = vshrl.u32 %v2948, 16
        %vm2954 = vc.u32 %v2946, %v2950
        %v2955 = vsel %vm2954, 1, 0
        %v2956 = vadd.s32 %v2946, %v2950
        %v2957 = vadd.s32 %v2949, %v2955
        %vm2958 = vc.u32 %v2956, %v2952
        %v2959 = vsel %vm2958, 1, 0
        %v2960 = vadd.s32 %v2956, %v2952
        %v2961 = vadd.s32 %v2957, %v2959
        %v2962 = vadd.s32 %v2961, %v2951
        %v2963 = vadd.s32 %v2962, %v2953
        %v2964 = vmul.u32 %v2919, %v2910
        %v2965 = vadd.s32 %v2941, %v2960
        %vm2966 = vc.u32 %v2941, %v2960
        %v2967 = vadd.s32 %v2963, 1
        %v2968 = vsel %vm2966, %v2967, %v2963
        %v2969 = vadd.s32 %v2964, %v2968
        %v2970 = vadd.s32 %v2969, 536870912
        %v2971 = vshrl.u32 %v2970, 30
        %v2972 = vshll.u32 %v2971, 30
        %v2973 = vsub.s32 %v2969, %v2972
        %vm2974 = vcmp.lt.s32.totalorder %v2973, 0
        %v2975 = vsub.s32 0, %v2973
        %v2976 = vsel %vm2974, %v2975, %v2973
        %v2977 = vclz %v2976
        %v2978 = vsub.s32 %v2977, 2
        %vm2979 = vcmp.gt.s32.totalorder 0, %v2978
        %v2980 = vsel %vm2979, 0, %v2978
        %v2981 = vsub.s32 32, %v2980
        %v2982 = vshll.u32 %v2973, %v2980
        %v2983 = vshrl.u32 %v2965, %v2981
        %v2984 = vor.u32 %v2982, %v2983
        %v2985 = vsub.s32 4294967266, %v2980
        %v2986 = vadd.s32 %v2985, 127
        %v2987 = vshll.u32 %v2986, 23
        %v2988 = vor.u32 4788187, %v2987
        %v2989 = vand.u32 2147483647, %v2988
        %v2991 = vcvt.s32.f32 %v2984
        %v2992 = vmul.f32 %v2991, %v2989
        %v2993 = vxor.u32 %v2992, 2147483648
        %v2994 = vsel %vm2873, %v2993, %v2992
        %v2995 = vsub.s32 4, %v2971
        %v2996 = vsel %vm2873, %v2995, %v2971
        %v2997 = vsel %vm2872, %v529, %v2994
        %v2998 = vsel %vm2872, 0, %v2996
        %v2999 = vmul.f32 %v2997, %v2997
        %v3000 = vmul.f32 %v2999, -0.001358992
        %v3001 = vadd.f32 %v3000, 0.041655596
        %v3002 = vmul.f32 %v2999, %v3001
        %v3003 = vadd.f32 %v3002, -0.4999988
        %v3004 = vmul.f32 %v2999, %v3003
        %v3005 = vadd.f32 1.0, %v3004
        %v3006 = vmul.f32 %v2997, %v2997
        %v3007 = vmul.f32 %v3006, -0.00019511016
        %v3008 = vadd.f32 %v3007, 0.008332121
        %v3009 = vmul.f32 %v3006, %v3008
        %v3010 = vadd.f32 %v3009, -0.16666654
        %v3011 = vmul.f32 %v3006, %v3010
        %v3012 = vadd.f32 %v3011, 1.0
        %v3013 = vmul.f32 %v3012, %v2997
        %vm3014 = vweird.f32 %v529
        %v3015 = vadd.s32 %v2998, 3
        %v3016 = vand.u32 %v3015, 3
        %vm3017 = vcmp.lt.s32.totalorder %v3016, 2
        %vm3018 = vcmp.eq.s32.totalorder %v3016, 0
        %v3019 = vxor.u32 %v3013, 2147483648
        %v3020 = vsel %vm3018, %v3005, %v3019
        %vm3021 = vcmp.eq.s32.totalorder %v3016, 2
        %v3022 = vxor.u32 %v3005, 2147483648
        %v3023 = vsel %vm3021, %v3022, %v3013
        %v3024 = vsel %vm3017, %v3020, %v3023
        %v3025 = vsel %vm3014, nan, %v3024
        %v3026 = vand.u32 2147483647, %v530
        %vm3027 = vcmp.le.f32.partialorder %v3026, 0.7853982
        %vm3028 = vcmp.lt.s32.totalorder %v530, 0
        %v3029 = vand.u32 %v530, 2139095040
        %v3030 = vshrl.u32 %v3029, 23
        %v3031 = vsub.s32 %v3030, 127
        %v3032 = vand.u32 2147483647, %v530
        %v3033 = vand.u32 %v3032, 8388607
        %v3034 = vor.u32 %v3033, 8388608
        %v3035 = vsub.s32 0, %v3034
        %v3036 = vadd.s32 %v3031, 1
        %vm3037 = vcmp.gt.s32.totalorder %v3036, 0
        %v3038 = vsel %vm3037, %v3036, 0
        %v3039 = vshrl.u32 %v3038, 5
        %v3040 = vand.u32 %v3038, 31
        %v3041 = vsub.s32 32, %v3040
        %v3042 = vshrl.u32 683565275, %v3041
        %v3043 = vshll.u32 683565275, %v3040
        %v3044 = vshrl.u32 2475754826, %v3041
        %v3045 = vor.u32 %v3043, %v3044
        %v3046 = vshll.u32 2475754826, %v3040
        %v3047 = vshrl.u32 2131351028, %v3041
        %v3048 = vor.u32 %v3046, %v3047
        %v3049 = vshll.u32 2131351028, %v3040
        %v3050 = vshrl.u32 2102212464, %v3041
        %v3051 = vor.u32 %v3049, %v3050
        %v3052 = vshll.u32 2102212464, %v3040
        %v3053 = vshrl.u32 920167782, %v3041
        %v3054 = vor.u32 %v3052, %v3053
        %v3055 = vshll.u32 920167782, %v3040
        %v3056 = vshrl.u32 1326507024, %v3041
        %v3057 = vor.u32 %v3055, %v3056
        %vm3058 = vcmp.lt.s32.totalorder %v3039, 1
        %vm3059 = vcmp.lt.s32.totalorder %v3039, 2
        %vm3060 = vcmp.lt.s32.totalorder %v3039, 3
        %vm3061 = vcmp.lt.s32.totalorder %v3039, 4
        %v3062 = vsel %vm3058, %v3042, %v3045
        %v3063 = vsel %vm3061, %v3051, 2102212464
        %v3064 = vsel %vm3060, %v3048, %v3063
        %v3065 = vsel %vm3059, %v3062, %v3064
        %v3066 = vsel %vm3058, %v3045, %v3048
        %v3067 = vsel %vm3061, %v3054, 920167782
        %v3068 = vsel %vm3060, %v3051, %v3067
        %v3069 = vsel %vm3059, %v3066, %v3068
        %v3070 = vsel %vm3058, %v3048, %v3051
        %v3071 = vsel %vm3061, %v3057, 1326507024
        %v3072 = vsel %vm3060, %v3054, %v3071
        %v3073 = vsel %vm3059, %v3070, %v3072
        %v3074 = vshll.u32 %v3034, 8
        %v3075 = vand.u32 %v3074, 65535
        %v3076 = vshrl.u32 %v3074, 16
        %v3077 = vand.u32 %v3073, 65535
        %v3078 = vshrl.u32 %v3073, 16
        %v3079 = vmul.u32 %v3075, %v3077
        %v3080 = vmul.u32 %v3075, %v3078
        %v3081 = vmul.u32 %v3076, %v3077
        %v3082 = vmul.u32 %v3076, %v3078
        %v3083 = vshll.u32 %v3080, 16
        %v3084 = vshrl.u32 %v3080, 16
        %v3085 = vshll.u32 %v3081, 16
        %v3086 = vshrl.u32 %v3081, 16
        %vm3087 = vc.u32 %v3079, %v3083
        %v3088 = vsel %vm3087, 1, 0
        %v3089 = vadd.s32 %v3079, %v3083
        %v3090 = vadd.s32 %v3082, %v3088
        %vm3091 = vc.u32 %v3089, %v3085
        %v3092 = vsel %vm3091, 1, 0
        %v3093 = vadd.s32 %v3089, %v3085
        %v3094 = vadd.s32 %v3090, %v3092
        %v3095 = vadd.s32 %v3094, %v3084
        %v3096 = vadd.s32 %v3095, %v3086
        %v3097 = vand.u32 %v3074, 65535
        %v3098 = vshrl.u32 %v3074, 16
        %v3099 = vand.u32 %v3069, 65535
        %v3100 = vshrl.u32 %v3069, 16
        %v3101 = vmul.u32 %v3097, %v3099
        %v3102 = vmul.u32 %v3097, %v3100
        %v3103 = vmul.u32 %v3098, %v3099
        %v3104 = vmul.u32 %v3098, %v3100
        %v3105 = vshll.u32 %v3102, 16
        %v3106 = vshrl.u32 %v3102, 16
        %v3107 = vshll.u32 %v3103, 16
        %v3108 = vshrl.u32 %v3103, 16
        %vm3109 = vc.u32 %v3101, %v3105
        %v3110 = vsel %vm3109, 1, 0
        %v3111 = vadd.s32 %v3101, %v3105
        %v3112 = vadd.s32 %v3104, %v3110
        %vm3113 = vc.u32 %v3111, %v3107
        %v3114 = vsel %vm3113, 1, 0
        %v3115 = vadd.s32 %v3111, %v3107
        %v3116 = vadd.s32 %v3112, %v3114
        %v3117 = vadd.s32 %v3116, %v3106
        %v3118 = vadd.s32 %v3117, %v3108
        %v3119 = vmul.u32 %v3074, %v3065
        %v3120 = vadd.s32 %v3096, %v3115
        %vm3121 = vc.u32 %v3096, %v3115
        %v3122 = vadd.s32 %v3118, 1
        %v3123 = vsel %vm3121, %v3122, %v3118
        %v3124 = vadd.s32 %v3119, %v3123
        %v3125 = vadd.s32 %v3124, 536870912
        %v3126 = vshrl.u32 %v3125, 30
        %v3127 = vshll.u32 %v3126, 30
        %v3128 = vsub.s32 %v3124, %v3127
        %vm3129 = vcmp.lt.s32.totalorder %v3128, 0
        %v3130 = vsub.s32 0, %v3128
        %v3131 = vsel %vm3129, %v3130, %v3128
        %v3132 = vclz %v3131
        %v3133 = vsub.s32 %v3132, 2
        %vm3134 = vcmp.gt.s32.totalorder 0, %v3133
        %v3135 = vsel %vm3134, 0, %v3133
        %v3136 = vsub.s32 32, %v3135
        %v3137 = vshll.u32 %v3128, %v3135
        %v3138 = vshrl.u32 %v3120, %v3136
        %v3139 = vor.u32 %v3137, %v3138
        %v3140 = vsub.s32 4294967266, %v3135
        %v3141 = vadd.s32 %v3140, 127
        %v3142 = vshll.u32 %v3141, 23
        %v3143 = vor.u32 4788187, %v3142
        %v3144 = vand.u32 2147483647, %v3143
        %v3146 = vcvt.s32.f32 %v3139
        %v3147 = vmul.f32 %v3146, %v3144
        %v3148 = vxor.u32 %v3147, 2147483648
        %v3149 = vsel %vm3028, %v3148, %v3147
        %v3150 = vsub.s32 4, %v3126
        %v3151 = vsel %vm3028, %v3150, %v3126
        %v3152 = vsel %vm3027, %v530, %v3149
        %v3153 = vsel %vm3027, 0, %v3151
        %v3154 = vmul.f32 %v3152, %v3152
        %v3155 = vmul.f32 %v3154, -0.001358992
        %v3156 = vadd.f32 %v3155, 0.041655596
        %v3157 = vmul.f32 %v3154, %v3156
        %v3158 = vadd.f32 %v3157, -0.4999988
        %v3159 = vmul.f32 %v3154, %v3158
        %v3160 = vadd.f32 1.0, %v3159
        %v3161 = vmul.f32 %v3152, %v3152
        %v3162 = vmul.f32 %v3161, -0.00019511016
        %v3163 = vadd.f32 %v3162, 0.008332121
        %v3164 = vmul.f32 %v3161, %v3163
        %v3165 = vadd.f32 %v3164, -0.16666654
        %v3166 = vmul.f32 %v3161, %v3165
        %v3167 = vadd.f32 %v3166, 1.0
        %v3168 = vmul.f32 %v3167, %v3152
        %vm3169 = vweird.f32 %v530
        %v3170 = vadd.s32 %v3153, 3
        %v3171 = vand.u32 %v3170, 3
        %vm3172 = vcmp.lt.s32.totalorder %v3171, 2
        %vm3173 = vcmp.eq.s32.totalorder %v3171, 0
        %v3174 = vxor.u32 %v3168, 2147483648
        %v3175 = vsel %vm3173, %v3160, %v3174
        %vm3176 = vcmp.eq.s32.totalorder %v3171, 2
        %v3177 = vxor.u32 %v3160, 2147483648
        %v3178 = vsel %vm3176, %v3177, %v3168
        %v3179 = vsel %vm3172, %v3175, %v3178
        %v3180 = vsel %vm3169, nan, %v3179
        %v3181 = vand.u32 2147483647, %v531
        %vm3182 = vcmp.le.f32.partialorder %v3181, 0.7853982
        %vm3183 = vcmp.lt.s32.totalorder %v531, 0
        %v3184 = vand.u32 %v531, 2139095040
        %v3185 = vshrl.u32 %v3184, 23
        %v3186 = vsub.s32 %v3185, 127
        %v3187 = vand.u32 2147483647, %v531
        %v3188 = vand.u32 %v3187, 8388607
        %v3189 = vor.u32 %v3188, 8388608
        %v3190 = vsub.s32 0, %v3189
        %v3191 = vadd.s32 %v3186, 1
        %vm3192 = vcmp.gt.s32.totalorder %v3191, 0
        %v3193 = vsel %vm3192, %v3191, 0
        %v3194 = vshrl.u32 %v3193, 5
        %v3195 = vand.u32 %v3193, 31
        %v3196 = vsub.s32 32, %v3195
        %v3197 = vshrl.u32 683565275, %v3196
        %v3198 = vshll.u32 683565275, %v3195
        %v3199 = vshrl.u32 2475754826, %v3196
        %v3200 = vor.u32 %v3198, %v3199
        %v3201 = vshll.u32 2475754826, %v3195
        %v3202 = vshrl.u32 2131351028, %v3196
        %v3203 = vor.u32 %v3201, %v3202
        %v3204 = vshll.u32 2131351028, %v3195
        %v3205 = vshrl.u32 2102212464, %v3196
        %v3206 = vor.u32 %v3204, %v3205
        %v3207 = vshll.u32 2102212464, %v3195
        %v3208 = vshrl.u32 920167782, %v3196
        %v3209 = vor.u32 %v3207, %v3208
        %v3210 = vshll.u32 920167782, %v3195
        %v3211 = vshrl.u32 1326507024, %v3196
        %v3212 = vor.u32 %v3210, %v3211
        %vm3213 = vcmp.lt.s32.totalorder %v3194, 1
        %vm3214 = vcmp.lt.s32.totalorder %v3194, 2
        %vm3215 = vcmp.lt.s32.totalorder %v3194, 3
        %vm3216 = vcmp.lt.s32.totalorder %v3194, 4
        %v3217 = vsel %vm3213, %v3197, %v3200
        %v3218 = vsel %vm3216, %v3206, 2102212464
        %v3219 = vsel %vm3215, %v3203, %v3218
        %v3220 = vsel %vm3214, %v3217, %v3219
        %v3221 = vsel %vm3213, %v3200, %v3203
        %v3222 = vsel %vm3216, %v3209, 920167782
        %v3223 = vsel %vm3215, %v3206, %v3222
        %v3224 = vsel %vm3214, %v3221, %v3223
        %v3225 = vsel %vm3213, %v3203, %v3206
        %v3226 = vsel %vm3216, %v3212, 1326507024
        %v3227 = vsel %vm3215, %v3209, %v3226
        %v3228 = vsel %vm3214, %v3225, %v3227
        %v3229 = vshll.u32 %v3189, 8
        %v3230 = vand.u32 %v3229, 65535
        %v3231 = vshrl.u32 %v3229, 16
        %v3232 = vand.u32 %v3228, 65535
        %v3233 = vshrl.u32 %v3228, 16
        %v3234 = vmul.u32 %v3230, %v3232
        %v3235 = vmul.u32 %v3230, %v3233
        %v3236 = vmul.u32 %v3231, %v3232
        %v3237 = vmul.u32 %v3231, %v3233
        %v3238 = vshll.u32 %v3235, 16
        %v3239 = vshrl.u32 %v3235, 16
        %v3240 = vshll.u32 %v3236, 16
        %v3241 = vshrl.u32 %v3236, 16
        %vm3242 = vc.u32 %v3234, %v3238
        %v3243 = vsel %vm3242, 1, 0
        %v3244 = vadd.s32 %v3234, %v3238
        %v3245 = vadd.s32 %v3237, %v3243
        %vm3246 = vc.u32 %v3244, %v3240
        %v3247 = vsel %vm3246, 1, 0
        %v3248 = vadd.s32 %v3244, %v3240
        %v3249 = vadd.s32 %v3245, %v3247
        %v3250 = vadd.s32 %v3249, %v3239
        %v3251 = vadd.s32 %v3250, %v3241
        %v3252 = vand.u32 %v3229, 65535
        %v3253 = vshrl.u32 %v3229, 16
        %v3254 = vand.u32 %v3224, 65535
        %v3255 = vshrl.u32 %v3224, 16
        %v3256 = vmul.u32 %v3252, %v3254
        %v3257 = vmul.u32 %v3252, %v3255
        %v3258 = vmul.u32 %v3253, %v3254
        %v3259 = vmul.u32 %v3253, %v3255
        %v3260 = vshll.u32 %v3257, 16
        %v3261 = vshrl.u32 %v3257, 16
        %v3262 = vshll.u32 %v3258, 16
        %v3263 = vshrl.u32 %v3258, 16
        %vm3264 = vc.u32 %v3256, %v3260
        %v3265 = vsel %vm3264, 1, 0
        %v3266 = vadd.s32 %v3256, %v3260
        %v3267 = vadd.s32 %v3259, %v3265
        %vm3268 = vc.u32 %v3266, %v3262
        %v3269 = vsel %vm3268, 1, 0
        %v3270 = vadd.s32 %v3266, %v3262
        %v3271 = vadd.s32 %v3267, %v3269
        %v3272 = vadd.s32 %v3271, %v3261
        %v3273 = vadd.s32 %v3272, %v3263
        %v3274 = vmul.u32 %v3229, %v3220
        %v3275 = vadd.s32 %v3251, %v3270
        %vm3276 = vc.u32 %v3251, %v3270
        %v3277 = vadd.s32 %v3273, 1
        %v3278 = vsel %vm3276, %v3277, %v3273
        %v3279 = vadd.s32 %v3274, %v3278
        %v3280 = vadd.s32 %v3279, 536870912
        %v3281 = vshrl.u32 %v3280, 30
        %v3282 = vshll.u32 %v3281, 30
        %v3283 = vsub.s32 %v3279, %v3282
        %vm3284 = vcmp.lt.s32.totalorder %v3283, 0
        %v3285 = vsub.s32 0, %v3283
        %v3286 = vsel %vm3284, %v3285, %v3283
        %v3287 = vclz %v3286
        %v3288 = vsub.s32 %v3287, 2
        %vm3289 = vcmp.gt.s32.totalorder 0, %v3288
        %v3290 = vsel %vm3289, 0, %v3288
        %v3291 = vsub.s32 32, %v3290
        %v3292 = vshll.u32 %v3283, %v3290
        %v3293 = vshrl.u32 %v3275, %v3291
        %v3294 = vor.u32 %v3292, %v3293
        %v3295 = vsub.s32 4294967266, %v3290
        %v3296 = vadd.s32 %v3295, 127
        %v3297 = vshll.u32 %v3296, 23
        %v3298 = vor.u32 4788187, %v3297
        %v3299 = vand.u32 2147483647, %v3298
        %v3301 = vcvt.s32.f32 %v3294
        %v3302 = vmul.f32 %v3301, %v3299
        %v3303 = vxor.u32 %v3302, 2147483648
        %v3304 = vsel %vm3183, %v3303, %v3302
        %v3305 = vsub.s32 4, %v3281
        %v3306 = vsel %vm3183, %v3305, %v3281
        %v3307 = vsel %vm3182, %v531, %v3304
        %v3308 = vsel %vm3182, 0, %v3306
        %v3309 = vmul.f32 %v3307, %v3307
        %v3310 = vmul.f32 %v3309, -0.001358992
        %v3311 = vadd.f32 %v3310, 0.041655596
        %v3312 = vmul.f32 %v3309, %v3311
        %v3313 = vadd.f32 %v3312, -0.4999988
        %v3314 = vmul.f32 %v3309, %v3313
        %v3315 = vadd.f32 1.0, %v3314
        %v3316 = vmul.f32 %v3307, %v3307
        %v3317 = vmul.f32 %v3316, -0.00019511016
        %v3318 = vadd.f32 %v3317, 0.008332121
        %v3319 = vmul.f32 %v3316, %v3318
        %v3320 = vadd.f32 %v3319, -0.16666654
        %v3321 = vmul.f32 %v3316, %v3320
        %v3322 = vadd.f32 %v3321, 1.0
        %v3323 = vmul.f32 %v3322, %v3307
        %vm3324 = vweird.f32 %v531
        %v3325 = vadd.s32 %v3308, 3
        %v3326 = vand.u32 %v3325, 3
        %vm3327 = vcmp.lt.s32.totalorder %v3326, 2
        %vm3328 = vcmp.eq.s32.totalorder %v3326, 0
        %v3329 = vxor.u32 %v3323, 2147483648
        %v3330 = vsel %vm3328, %v3315, %v3329
        %vm3331 = vcmp.eq.s32.totalorder %v3326, 2
        %v3332 = vxor.u32 %v3315, 2147483648
        %v3333 = vsel %vm3331, %v3332, %v3323
        %v3334 = vsel %vm3327, %v3330, %v3333
        %v3335 = vsel %vm3324, nan, %v3334
        %v3336 = vand.u32 2147483647, %v532
        %vm3337 = vcmp.le.f32.partialorder %v3336, 0.7853982
        %vm3338 = vcmp.lt.s32.totalorder %v532, 0
        %v3339 = vand.u32 %v532, 2139095040
        %v3340 = vshrl.u32 %v3339, 23
        %v3341 = vsub.s32 %v3340, 127
        %v3342 = vand.u32 2147483647, %v532
        %v3343 = vand.u32 %v3342, 8388607
        %v3344 = vor.u32 %v3343, 8388608
        %v3345 = vsub.s32 0, %v3344
        %v3346 = vadd.s32 %v3341, 1
        %vm3347 = vcmp.gt.s32.totalorder %v3346, 0
        %v3348 = vsel %vm3347, %v3346, 0
        %v3349 = vshrl.u32 %v3348, 5
        %v3350 = vand.u32 %v3348, 31
        %v3351 = vsub.s32 32, %v3350
        %v3352 = vshrl.u32 683565275, %v3351
        %v3353 = vshll.u32 683565275, %v3350
        %v3354 = vshrl.u32 2475754826, %v3351
        %v3355 = vor.u32 %v3353, %v3354
        %v3356 = vshll.u32 2475754826, %v3350
        %v3357 = vshrl.u32 2131351028, %v3351
        %v3358 = vor.u32 %v3356, %v3357
        %v3359 = vshll.u32 2131351028, %v3350
        %v3360 = vshrl.u32 2102212464, %v3351
        %v3361 = vor.u32 %v3359, %v3360
        %v3362 = vshll.u32 2102212464, %v3350
        %v3363 = vshrl.u32 920167782, %v3351
        %v3364 = vor.u32 %v3362, %v3363
        %v3365 = vshll.u32 920167782, %v3350
        %v3366 = vshrl.u32 1326507024, %v3351
        %v3367 = vor.u32 %v3365, %v3366
        %vm3368 = vcmp.lt.s32.totalorder %v3349, 1
        %vm3369 = vcmp.lt.s32.totalorder %v3349, 2
        %vm3370 = vcmp.lt.s32.totalorder %v3349, 3
        %vm3371 = vcmp.lt.s32.totalorder %v3349, 4
        %v3372 = vsel %vm3368, %v3352, %v3355
        %v3373 = vsel %vm3371, %v3361, 2102212464
        %v3374 = vsel %vm3370, %v3358, %v3373
        %v3375 = vsel %vm3369, %v3372, %v3374
        %v3376 = vsel %vm3368, %v3355, %v3358
        %v3377 = vsel %vm3371, %v3364, 920167782
        %v3378 = vsel %vm3370, %v3361, %v3377
        %v3379 = vsel %vm3369, %v3376, %v3378
        %v3380 = vsel %vm3368, %v3358, %v3361
        %v3381 = vsel %vm3371, %v3367, 1326507024
        %v3382 = vsel %vm3370, %v3364, %v3381
        %v3383 = vsel %vm3369, %v3380, %v3382
        %v3384 = vshll.u32 %v3344, 8
        %v3385 = vand.u32 %v3384, 65535
        %v3386 = vshrl.u32 %v3384, 16
        %v3387 = vand.u32 %v3383, 65535
        %v3388 = vshrl.u32 %v3383, 16
        %v3389 = vmul.u32 %v3385, %v3387
        %v3390 = vmul.u32 %v3385, %v3388
        %v3391 = vmul.u32 %v3386, %v3387
        %v3392 = vmul.u32 %v3386, %v3388
        %v3393 = vshll.u32 %v3390, 16
        %v3394 = vshrl.u32 %v3390, 16
        %v3395 = vshll.u32 %v3391, 16
        %v3396 = vshrl.u32 %v3391, 16
        %vm3397 = vc.u32 %v3389, %v3393
        %v3398 = vsel %vm3397, 1, 0
        %v3399 = vadd.s32 %v3389, %v3393
        %v3400 = vadd.s32 %v3392, %v3398
        %vm3401 = vc.u32 %v3399, %v3395
        %v3402 = vsel %vm3401, 1, 0
        %v3403 = vadd.s32 %v3399, %v3395
        %v3404 = vadd.s32 %v3400, %v3402
        %v3405 = vadd.s32 %v3404, %v3394
        %v3406 = vadd.s32 %v3405, %v3396
        %v3407 = vand.u32 %v3384, 65535
        %v3408 = vshrl.u32 %v3384, 16
        %v3409 = vand.u32 %v3379, 65535
        %v3410 = vshrl.u32 %v3379, 16
        %v3411 = vmul.u32 %v3407, %v3409
        %v3412 = vmul.u32 %v3407, %v3410
        %v3413 = vmul.u32 %v3408, %v3409
        %v3414 = vmul.u32 %v3408, %v3410
        %v3415 = vshll.u32 %v3412, 16
        %v3416 = vshrl.u32 %v3412, 16
        %v3417 = vshll.u32 %v3413, 16
        %v3418 = vshrl.u32 %v3413, 16
        %vm3419 = vc.u32 %v3411, %v3415
        %v3420 = vsel %vm3419, 1, 0
        %v3421 = vadd.s32 %v3411, %v3415
        %v3422 = vadd.s32 %v3414, %v3420
        %vm3423 = vc.u32 %v3421, %v3417
        %v3424 = vsel %vm3423, 1, 0
        %v3425 = vadd.s32 %v3421, %v3417
        %v3426 = vadd.s32 %v3422, %v3424
        %v3427 = vadd.s32 %v3426, %v3416
        %v3428 = vadd.s32 %v3427, %v3418
        %v3429 = vmul.u32 %v3384, %v3375
        %v3430 = vadd.s32 %v3406, %v3425
        %vm3431 = vc.u32 %v3406, %v3425
        %v3432 = vadd.s32 %v3428, 1
        %v3433 = vsel %vm3431, %v3432, %v3428
        %v3434 = vadd.s32 %v3429, %v3433
        %v3435 = vadd.s32 %v3434, 536870912
        %v3436 = vshrl.u32 %v3435, 30
        %v3437 = vshll.u32 %v3436, 30
        %v3438 = vsub.s32 %v3434, %v3437
        %vm3439 = vcmp.lt.s32.totalorder %v3438, 0
        %v3440 = vsub.s32 0, %v3438
        %v3441 = vsel %vm3439, %v3440, %v3438
        %v3442 = vclz %v3441
        %v3443 = vsub.s32 %v3442, 2
        %vm3444 = vcmp.gt.s32.totalorder 0, %v3443
        %v3445 = vsel %vm3444, 0, %v3443
        %v3446 = vsub.s32 32, %v3445
        %v3447 = vshll.u32 %v3438, %v3445
        %v3448 = vshrl.u32 %v3430, %v3446
        %v3449 = vor.u32 %v3447, %v3448
        %v3450 = vsub.s32 4294967266, %v3445
        %v3451 = vadd.s32 %v3450, 127
        %v3452 = vshll.u32 %v3451, 23
        %v3453 = vor.u32 4788187, %v3452
        %v3454 = vand.u32 2147483647, %v3453
        %v3456 = vcvt.s32.f32 %v3449
        %v3457 = vmul.f32 %v3456, %v3454
        %v3458 = vxor.u32 %v3457, 2147483648
        %v3459 = vsel %vm3338, %v3458, %v3457
        %v3460 = vsub.s32 4, %v3436
        %v3461 = vsel %vm3338, %v3460, %v3436
        %v3462 = vsel %vm3337, %v532, %v3459
        %v3463 = vsel %vm3337, 0, %v3461
        %v3464 = vmul.f32 %v3462, %v3462
        %v3465 = vmul.f32 %v3464, -0.001358992
        %v3466 = vadd.f32 %v3465, 0.041655596
        %v3467 = vmul.f32 %v3464, %v3466
        %v3468 = vadd.f32 %v3467, -0.4999988
        %v3469 = vmul.f32 %v3464, %v3468
        %v3470 = vadd.f32 1.0, %v3469
        %v3471 = vmul.f32 %v3462, %v3462
        %v3472 = vmul.f32 %v3471, -0.00019511016
        %v3473 = vadd.f32 %v3472, 0.008332121
        %v3474 = vmul.f32 %v3471, %v3473
        %v3475 = vadd.f32 %v3474, -0.16666654
        %v3476 = vmul.f32 %v3471, %v3475
        %v3477 = vadd.f32 %v3476, 1.0
        %v3478 = vmul.f32 %v3477, %v3462
        %vm3479 = vweird.f32 %v532
        %v3480 = vadd.s32 %v3463, 3
        %v3481 = vand.u32 %v3480, 3
        %vm3482 = vcmp.lt.s32.totalorder %v3481, 2
        %vm3483 = vcmp.eq.s32.totalorder %v3481, 0
        %v3484 = vxor.u32 %v3478, 2147483648
        %v3485 = vsel %vm3483, %v3470, %v3484
        %vm3486 = vcmp.eq.s32.totalorder %v3481, 2
        %v3487 = vxor.u32 %v3470, 2147483648
        %v3488 = vsel %vm3486, %v3487, %v3478
        %v3489 = vsel %vm3482, %v3485, %v3488
        %v3490 = vsel %vm3479, nan, %v3489
        %v3491 = vand.u32 2147483647, %v533
        %vm3492 = vcmp.le.f32.partialorder %v3491, 0.7853982
        %vm3493 = vcmp.lt.s32.totalorder %v533, 0
        %v3494 = vand.u32 %v533, 2139095040
        %v3495 = vshrl.u32 %v3494, 23
        %v3496 = vsub.s32 %v3495, 127
        %v3497 = vand.u32 2147483647, %v533
        %v3498 = vand.u32 %v3497, 8388607
        %v3499 = vor.u32 %v3498, 8388608
        %v3500 = vsub.s32 0, %v3499
        %v3501 = vadd.s32 %v3496, 1
        %vm3502 = vcmp.gt.s32.totalorder %v3501, 0
        %v3503 = vsel %vm3502, %v3501, 0
        %v3504 = vshrl.u32 %v3503, 5
        %v3505 = vand.u32 %v3503, 31
        %v3506 = vsub.s32 32, %v3505
        %v3507 = vshrl.u32 683565275, %v3506
        %v3508 = vshll.u32 683565275, %v3505
        %v3509 = vshrl.u32 2475754826, %v3506
        %v3510 = vor.u32 %v3508, %v3509
        %v3511 = vshll.u32 2475754826, %v3505
        %v3512 = vshrl.u32 2131351028, %v3506
        %v3513 = vor.u32 %v3511, %v3512
        %v3514 = vshll.u32 2131351028, %v3505
        %v3515 = vshrl.u32 2102212464, %v3506
        %v3516 = vor.u32 %v3514, %v3515
        %v3517 = vshll.u32 2102212464, %v3505
        %v3518 = vshrl.u32 920167782, %v3506
        %v3519 = vor.u32 %v3517, %v3518
        %v3520 = vshll.u32 920167782, %v3505
        %v3521 = vshrl.u32 1326507024, %v3506
        %v3522 = vor.u32 %v3520, %v3521
        %vm3523 = vcmp.lt.s32.totalorder %v3504, 1
        %vm3524 = vcmp.lt.s32.totalorder %v3504, 2
        %vm3525 = vcmp.lt.s32.totalorder %v3504, 3
        %vm3526 = vcmp.lt.s32.totalorder %v3504, 4
        %v3527 = vsel %vm3523, %v3507, %v3510
        %v3528 = vsel %vm3526, %v3516, 2102212464
        %v3529 = vsel %vm3525, %v3513, %v3528
        %v3530 = vsel %vm3524, %v3527, %v3529
        %v3531 = vsel %vm3523, %v3510, %v3513
        %v3532 = vsel %vm3526, %v3519, 920167782
        %v3533 = vsel %vm3525, %v3516, %v3532
        %v3534 = vsel %vm3524, %v3531, %v3533
        %v3535 = vsel %vm3523, %v3513, %v3516
        %v3536 = vsel %vm3526, %v3522, 1326507024
        %v3537 = vsel %vm3525, %v3519, %v3536
        %v3538 = vsel %vm3524, %v3535, %v3537
        %v3539 = vshll.u32 %v3499, 8
        %v3540 = vand.u32 %v3539, 65535
        %v3541 = vshrl.u32 %v3539, 16
        %v3542 = vand.u32 %v3538, 65535
        %v3543 = vshrl.u32 %v3538, 16
        %v3544 = vmul.u32 %v3540, %v3542
        %v3545 = vmul.u32 %v3540, %v3543
        %v3546 = vmul.u32 %v3541, %v3542
        %v3547 = vmul.u32 %v3541, %v3543
        %v3548 = vshll.u32 %v3545, 16
        %v3549 = vshrl.u32 %v3545, 16
        %v3550 = vshll.u32 %v3546, 16
        %v3551 = vshrl.u32 %v3546, 16
        %vm3552 = vc.u32 %v3544, %v3548
        %v3553 = vsel %vm3552, 1, 0
        %v3554 = vadd.s32 %v3544, %v3548
        %v3555 = vadd.s32 %v3547, %v3553
        %vm3556 = vc.u32 %v3554, %v3550
        %v3557 = vsel %vm3556, 1, 0
        %v3558 = vadd.s32 %v3554, %v3550
        %v3559 = vadd.s32 %v3555, %v3557
        %v3560 = vadd.s32 %v3559, %v3549
        %v3561 = vadd.s32 %v3560, %v3551
        %v3562 = vand.u32 %v3539, 65535
        %v3563 = vshrl.u32 %v3539, 16
        %v3564 = vand.u32 %v3534, 65535
        %v3565 = vshrl.u32 %v3534, 16
        %v3566 = vmul.u32 %v3562, %v3564
        %v3567 = vmul.u32 %v3562, %v3565
        %v3568 = vmul.u32 %v3563, %v3564
        %v3569 = vmul.u32 %v3563, %v3565
        %v3570 = vshll.u32 %v3567, 16
        %v3571 = vshrl.u32 %v3567, 16
        %v3572 = vshll.u32 %v3568, 16
        %v3573 = vshrl.u32 %v3568, 16
        %vm3574 = vc.u32 %v3566, %v3570
        %v3575 = vsel %vm3574, 1, 0
        %v3576 = vadd.s32 %v3566, %v3570
        %v3577 = vadd.s32 %v3569, %v3575
        %vm3578 = vc.u32 %v3576, %v3572
        %v3579 = vsel %vm3578, 1, 0
        %v3580 = vadd.s32 %v3576, %v3572
        %v3581 = vadd.s32 %v3577, %v3579
        %v3582 = vadd.s32 %v3581, %v3571
        %v3583 = vadd.s32 %v3582, %v3573
        %v3584 = vmul.u32 %v3539, %v3530
        %v3585 = vadd.s32 %v3561, %v3580
        %vm3586 = vc.u32 %v3561, %v3580
        %v3587 = vadd.s32 %v3583, 1
        %v3588 = vsel %vm3586, %v3587, %v3583
        %v3589 = vadd.s32 %v3584, %v3588
        %v3590 = vadd.s32 %v3589, 536870912
        %v3591 = vshrl.u32 %v3590, 30
        %v3592 = vshll.u32 %v3591, 30
        %v3593 = vsub.s32 %v3589, %v3592
        %vm3594 = vcmp.lt.s32.totalorder %v3593, 0
        %v3595 = vsub.s32 0, %v3593
        %v3596 = vsel %vm3594, %v3595, %v3593
        %v3597 = vclz %v3596
        %v3598 = vsub.s32 %v3597, 2
        %vm3599 = vcmp.gt.s32.totalorder 0, %v3598
        %v3600 = vsel %vm3599, 0, %v3598
        %v3601 = vsub.s32 32, %v3600
        %v3602 = vshll.u32 %v3593, %v3600
        %v3603 = vshrl.u32 %v3585, %v3601
        %v3604 = vor.u32 %v3602, %v3603
        %v3605 = vsub.s32 4294967266, %v3600
        %v3606 = vadd.s32 %v3605, 127
        %v3607 = vshll.u32 %v3606, 23
        %v3608 = vor.u32 4788187, %v3607
        %v3609 = vand.u32 2147483647, %v3608
        %v3611 = vcvt.s32.f32 %v3604
        %v3612 = vmul.f32 %v3611, %v3609
        %v3613 = vxor.u32 %v3612, 2147483648
        %v3614 = vsel %vm3493, %v3613, %v3612
        %v3615 = vsub.s32 4, %v3591
        %v3616 = vsel %vm3493, %v3615, %v3591
        %v3617 = vsel %vm3492, %v533, %v3614
        %v3618 = vsel %vm3492, 0, %v3616
        %v3619 = vmul.f32 %v3617, %v3617
        %v3620 = vmul.f32 %v3619, -0.001358992
        %v3621 = vadd.f32 %v3620, 0.041655596
        %v3622 = vmul.f32 %v3619, %v3621
        %v3623 = vadd.f32 %v3622, -0.4999988
        %v3624 = vmul.f32 %v3619, %v3623
        %v3625 = vadd.f32 1.0, %v3624
        %v3626 = vmul.f32 %v3617, %v3617
        %v3627 = vmul.f32 %v3626, -0.00019511016
        %v3628 = vadd.f32 %v3627, 0.008332121
        %v3629 = vmul.f32 %v3626, %v3628
        %v3630 = vadd.f32 %v3629, -0.16666654
        %v3631 = vmul.f32 %v3626, %v3630
        %v3632 = vadd.f32 %v3631, 1.0
        %v3633 = vmul.f32 %v3632, %v3617
        %vm3634 = vweird.f32 %v533
        %v3635 = vadd.s32 %v3618, 3
        %v3636 = vand.u32 %v3635, 3
        %vm3637 = vcmp.lt.s32.totalorder %v3636, 2
        %vm3638 = vcmp.eq.s32.totalorder %v3636, 0
        %v3639 = vxor.u32 %v3633, 2147483648
        %v3640 = vsel %vm3638, %v3625, %v3639
        %vm3641 = vcmp.eq.s32.totalorder %v3636, 2
        %v3642 = vxor.u32 %v3625, 2147483648
        %v3643 = vsel %vm3641, %v3642, %v3633
        %v3644 = vsel %vm3637, %v3640, %v3643
        %v3645 = vsel %vm3634, nan, %v3644
        %v3646 = vand.u32 2147483647, %v534
        %vm3647 = vcmp.le.f32.partialorder %v3646, 0.7853982
        %vm3648 = vcmp.lt.s32.totalorder %v534, 0
        %v3649 = vand.u32 %v534, 2139095040
        %v3650 = vshrl.u32 %v3649, 23
        %v3651 = vsub.s32 %v3650, 127
        %v3652 = vand.u32 2147483647, %v534
        %v3653 = vand.u32 %v3652, 8388607
        %v3654 = vor.u32 %v3653, 8388608
        %v3655 = vsub.s32 0, %v3654
        %v3656 = vadd.s32 %v3651, 1
        %vm3657 = vcmp.gt.s32.totalorder %v3656, 0
        %v3658 = vsel %vm3657, %v3656, 0
        %v3659 = vshrl.u32 %v3658, 5
        %v3660 = vand.u32 %v3658, 31
        %v3661 = vsub.s32 32, %v3660
        %v3662 = vshrl.u32 683565275, %v3661
        %v3663 = vshll.u32 683565275, %v3660
        %v3664 = vshrl.u32 2475754826, %v3661
        %v3665 = vor.u32 %v3663, %v3664
        %v3666 = vshll.u32 2475754826, %v3660
        %v3667 = vshrl.u32 2131351028, %v3661
        %v3668 = vor.u32 %v3666, %v3667
        %v3669 = vshll.u32 2131351028, %v3660
        %v3670 = vshrl.u32 2102212464, %v3661
        %v3671 = vor.u32 %v3669, %v3670
        %v3672 = vshll.u32 2102212464, %v3660
        %v3673 = vshrl.u32 920167782, %v3661
        %v3674 = vor.u32 %v3672, %v3673
        %v3675 = vshll.u32 920167782, %v3660
        %v3676 = vshrl.u32 1326507024, %v3661
        %v3677 = vor.u32 %v3675, %v3676
        %vm3678 = vcmp.lt.s32.totalorder %v3659, 1
        %vm3679 = vcmp.lt.s32.totalorder %v3659, 2
        %vm3680 = vcmp.lt.s32.totalorder %v3659, 3
        %vm3681 = vcmp.lt.s32.totalorder %v3659, 4
        %v3682 = vsel %vm3678, %v3662, %v3665
        %v3683 = vsel %vm3681, %v3671, 2102212464
        %v3684 = vsel %vm3680, %v3668, %v3683
        %v3685 = vsel %vm3679, %v3682, %v3684
        %v3686 = vsel %vm3678, %v3665, %v3668
        %v3687 = vsel %vm3681, %v3674, 920167782
        %v3688 = vsel %vm3680, %v3671, %v3687
        %v3689 = vsel %vm3679, %v3686, %v3688
        %v3690 = vsel %vm3678, %v3668, %v3671
        %v3691 = vsel %vm3681, %v3677, 1326507024
        %v3692 = vsel %vm3680, %v3674, %v3691
        %v3693 = vsel %vm3679, %v3690, %v3692
        %v3694 = vshll.u32 %v3654, 8
        %v3695 = vand.u32 %v3694, 65535
        %v3696 = vshrl.u32 %v3694, 16
        %v3697 = vand.u32 %v3693, 65535
        %v3698 = vshrl.u32 %v3693, 16
        %v3699 = vmul.u32 %v3695, %v3697
        %v3700 = vmul.u32 %v3695, %v3698
        %v3701 = vmul.u32 %v3696, %v3697
        %v3702 = vmul.u32 %v3696, %v3698
        %v3703 = vshll.u32 %v3700, 16
        %v3704 = vshrl.u32 %v3700, 16
        %v3705 = vshll.u32 %v3701, 16
        %v3706 = vshrl.u32 %v3701, 16
        %vm3707 = vc.u32 %v3699, %v3703
        %v3708 = vsel %vm3707, 1, 0
        %v3709 = vadd.s32 %v3699, %v3703
        %v3710 = vadd.s32 %v3702, %v3708
        %vm3711 = vc.u32 %v3709, %v3705
        %v3712 = vsel %vm3711, 1, 0
        %v3713 = vadd.s32 %v3709, %v3705
        %v3714 = vadd.s32 %v3710, %v3712
        %v3715 = vadd.s32 %v3714, %v3704
        %v3716 = vadd.s32 %v3715, %v3706
        %v3717 = vand.u32 %v3694, 65535
        %v3718 = vshrl.u32 %v3694, 16
        %v3719 = vand.u32 %v3689, 65535
        %v3720 = vshrl.u32 %v3689, 16
        %v3721 = vmul.u32 %v3717, %v3719
        %v3722 = vmul.u32 %v3717, %v3720
        %v3723 = vmul.u32 %v3718, %v3719
        %v3724 = vmul.u32 %v3718, %v3720
        %v3725 = vshll.u32 %v3722, 16
        %v3726 = vshrl.u32 %v3722, 16
        %v3727 = vshll.u32 %v3723, 16
        %v3728 = vshrl.u32 %v3723, 16
        %vm3729 = vc.u32 %v3721, %v3725
        %v3730 = vsel %vm3729, 1, 0
        %v3731 = vadd.s32 %v3721, %v3725
        %v3732 = vadd.s32 %v3724, %v3730
        %vm3733 = vc.u32 %v3731, %v3727
        %v3734 = vsel %vm3733, 1, 0
        %v3735 = vadd.s32 %v3731, %v3727
        %v3736 = vadd.s32 %v3732, %v3734
        %v3737 = vadd.s32 %v3736, %v3726
        %v3738 = vadd.s32 %v3737, %v3728
        %v3739 = vmul.u32 %v3694, %v3685
        %v3740 = vadd.s32 %v3716, %v3735
        %vm3741 = vc.u32 %v3716, %v3735
        %v3742 = vadd.s32 %v3738, 1
        %v3743 = vsel %vm3741, %v3742, %v3738
        %v3744 = vadd.s32 %v3739, %v3743
        %v3745 = vadd.s32 %v3744, 536870912
        %v3746 = vshrl.u32 %v3745, 30
        %v3747 = vshll.u32 %v3746, 30
        %v3748 = vsub.s32 %v3744, %v3747
        %vm3749 = vcmp.lt.s32.totalorder %v3748, 0
        %v3750 = vsub.s32 0, %v3748
        %v3751 = vsel %vm3749, %v3750, %v3748
        %v3752 = vclz %v3751
        %v3753 = vsub.s32 %v3752, 2
        %vm3754 = vcmp.gt.s32.totalorder 0, %v3753
        %v3755 = vsel %vm3754, 0, %v3753
        %v3756 = vsub.s32 32, %v3755
        %v3757 = vshll.u32 %v3748, %v3755
        %v3758 = vshrl.u32 %v3740, %v3756
        %v3759 = vor.u32 %v3757, %v3758
        %v3760 = vsub.s32 4294967266, %v3755
        %v3761 = vadd.s32 %v3760, 127
        %v3762 = vshll.u32 %v3761, 23
        %v3763 = vor.u32 4788187, %v3762
        %v3764 = vand.u32 2147483647, %v3763
        %v3766 = vcvt.s32.f32 %v3759
        %v3767 = vmul.f32 %v3766, %v3764
        %v3768 = vxor.u32 %v3767, 2147483648
        %v3769 = vsel %vm3648, %v3768, %v3767
        %v3770 = vsub.s32 4, %v3746
        %v3771 = vsel %vm3648, %v3770, %v3746
        %v3772 = vsel %vm3647, %v534, %v3769
        %v3773 = vsel %vm3647, 0, %v3771
        %v3774 = vmul.f32 %v3772, %v3772
        %v3775 = vmul.f32 %v3774, -0.001358992
        %v3776 = vadd.f32 %v3775, 0.041655596
        %v3777 = vmul.f32 %v3774, %v3776
        %v3778 = vadd.f32 %v3777, -0.4999988
        %v3779 = vmul.f32 %v3774, %v3778
        %v3780 = vadd.f32 1.0, %v3779
        %v3781 = vmul.f32 %v3772, %v3772
        %v3782 = vmul.f32 %v3781, -0.00019511016
        %v3783 = vadd.f32 %v3782, 0.008332121
        %v3784 = vmul.f32 %v3781, %v3783
        %v3785 = vadd.f32 %v3784, -0.16666654
        %v3786 = vmul.f32 %v3781, %v3785
        %v3787 = vadd.f32 %v3786, 1.0
        %v3788 = vmul.f32 %v3787, %v3772
        %vm3789 = vweird.f32 %v534
        %v3790 = vadd.s32 %v3773, 3
        %v3791 = vand.u32 %v3790, 3
        %vm3792 = vcmp.lt.s32.totalorder %v3791, 2
        %vm3793 = vcmp.eq.s32.totalorder %v3791, 0
        %v3794 = vxor.u32 %v3788, 2147483648
        %v3795 = vsel %vm3793, %v3780, %v3794
        %vm3796 = vcmp.eq.s32.totalorder %v3791, 2
        %v3797 = vxor.u32 %v3780, 2147483648
        %v3798 = vsel %vm3796, %v3797, %v3788
        %v3799 = vsel %vm3792, %v3795, %v3798
        %v3800 = vsel %vm3789, nan, %v3799
        %v3801 = vand.u32 2147483647, %v535
        %vm3802 = vcmp.le.f32.partialorder %v3801, 0.7853982
        %vm3803 = vcmp.lt.s32.totalorder %v535, 0
        %v3804 = vand.u32 %v535, 2139095040
        %v3805 = vshrl.u32 %v3804, 23
        %v3806 = vsub.s32 %v3805, 127
        %v3807 = vand.u32 2147483647, %v535
        %v3808 = vand.u32 %v3807, 8388607
        %v3809 = vor.u32 %v3808, 8388608
        %v3810 = vsub.s32 0, %v3809
        %v3811 = vadd.s32 %v3806, 1
        %vm3812 = vcmp.gt.s32.totalorder %v3811, 0
        %v3813 = vsel %vm3812, %v3811, 0
        %v3814 = vshrl.u32 %v3813, 5
        %v3815 = vand.u32 %v3813, 31
        %v3816 = vsub.s32 32, %v3815
        %v3817 = vshrl.u32 683565275, %v3816
        %v3818 = vshll.u32 683565275, %v3815
        %v3819 = vshrl.u32 2475754826, %v3816
        %v3820 = vor.u32 %v3818, %v3819
        %v3821 = vshll.u32 2475754826, %v3815
        %v3822 = vshrl.u32 2131351028, %v3816
        %v3823 = vor.u32 %v3821, %v3822
        %v3824 = vshll.u32 2131351028, %v3815
        %v3825 = vshrl.u32 2102212464, %v3816
        %v3826 = vor.u32 %v3824, %v3825
        %v3827 = vshll.u32 2102212464, %v3815
        %v3828 = vshrl.u32 920167782, %v3816
        %v3829 = vor.u32 %v3827, %v3828
        %v3830 = vshll.u32 920167782, %v3815
        %v3831 = vshrl.u32 1326507024, %v3816
        %v3832 = vor.u32 %v3830, %v3831
        %vm3833 = vcmp.lt.s32.totalorder %v3814, 1
        %vm3834 = vcmp.lt.s32.totalorder %v3814, 2
        %vm3835 = vcmp.lt.s32.totalorder %v3814, 3
        %vm3836 = vcmp.lt.s32.totalorder %v3814, 4
        %v3837 = vsel %vm3833, %v3817, %v3820
        %v3838 = vsel %vm3836, %v3826, 2102212464
        %v3839 = vsel %vm3835, %v3823, %v3838
        %v3840 = vsel %vm3834, %v3837, %v3839
        %v3841 = vsel %vm3833, %v3820, %v3823
        %v3842 = vsel %vm3836, %v3829, 920167782
        %v3843 = vsel %vm3835, %v3826, %v3842
        %v3844 = vsel %vm3834, %v3841, %v3843
        %v3845 = vsel %vm3833, %v3823, %v3826
        %v3846 = vsel %vm3836, %v3832, 1326507024
        %v3847 = vsel %vm3835, %v3829, %v3846
        %v3848 = vsel %vm3834, %v3845, %v3847
        %v3849 = vshll.u32 %v3809, 8
        %v3850 = vand.u32 %v3849, 65535
        %v3851 = vshrl.u32 %v3849, 16
        %v3852 = vand.u32 %v3848, 65535
        %v3853 = vshrl.u32 %v3848, 16
        %v3854 = vmul.u32 %v3850, %v3852
        %v3855 = vmul.u32 %v3850, %v3853
        %v3856 = vmul.u32 %v3851, %v3852
        %v3857 = vmul.u32 %v3851, %v3853
        %v3858 = vshll.u32 %v3855, 16
        %v3859 = vshrl.u32 %v3855, 16
        %v3860 = vshll.u32 %v3856, 16
        %v3861 = vshrl.u32 %v3856, 16
        %vm3862 = vc.u32 %v3854, %v3858
        %v3863 = vsel %vm3862, 1, 0
        %v3864 = vadd.s32 %v3854, %v3858
        %v3865 = vadd.s32 %v3857, %v3863
        %vm3866 = vc.u32 %v3864, %v3860
        %v3867 = vsel %vm3866, 1, 0
        %v3868 = vadd.s32 %v3864, %v3860
        %v3869 = vadd.s32 %v3865, %v3867
        %v3870 = vadd.s32 %v3869, %v3859
        %v3871 = vadd.s32 %v3870, %v3861
        %v3872 = vand.u32 %v3849, 65535
        %v3873 = vshrl.u32 %v3849, 16
        %v3874 = vand.u32 %v3844, 65535
        %v3875 = vshrl.u32 %v3844, 16
        %v3876 = vmul.u32 %v3872, %v3874
        %v3877 = vmul.u32 %v3872, %v3875
        %v3878 = vmul.u32 %v3873, %v3874
        %v3879 = vmul.u32 %v3873, %v3875
        %v3880 = vshll.u32 %v3877, 16
        %v3881 = vshrl.u32 %v3877, 16
        %v3882 = vshll.u32 %v3878, 16
        %v3883 = vshrl.u32 %v3878, 16
        %vm3884 = vc.u32 %v3876, %v3880
        %v3885 = vsel %vm3884, 1, 0
        %v3886 = vadd.s32 %v3876, %v3880
        %v3887 = vadd.s32 %v3879, %v3885
        %vm3888 = vc.u32 %v3886, %v3882
        %v3889 = vsel %vm3888, 1, 0
        %v3890 = vadd.s32 %v3886, %v3882
        %v3891 = vadd.s32 %v3887, %v3889
        %v3892 = vadd.s32 %v3891, %v3881
        %v3893 = vadd.s32 %v3892, %v3883
        %v3894 = vmul.u32 %v3849, %v3840
        %v3895 = vadd.s32 %v3871, %v3890
        %vm3896 = vc.u32 %v3871, %v3890
        %v3897 = vadd.s32 %v3893, 1
        %v3898 = vsel %vm3896, %v3897, %v3893
        %v3899 = vadd.s32 %v3894, %v3898
        %v3900 = vadd.s32 %v3899, 536870912
        %v3901 = vshrl.u32 %v3900, 30
        %v3902 = vshll.u32 %v3901, 30
        %v3903 = vsub.s32 %v3899, %v3902
        %vm3904 = vcmp.lt.s32.totalorder %v3903, 0
        %v3905 = vsub.s32 0, %v3903
        %v3906 = vsel %vm3904, %v3905, %v3903
        %v3907 = vclz %v3906
        %v3908 = vsub.s32 %v3907, 2
        %vm3909 = vcmp.gt.s32.totalorder 0, %v3908
        %v3910 = vsel %vm3909, 0, %v3908
        %v3911 = vsub.s32 32, %v3910
        %v3912 = vshll.u32 %v3903, %v3910
        %v3913 = vshrl.u32 %v3895, %v3911
        %v3914 = vor.u32 %v3912, %v3913
        %v3915 = vsub.s32 4294967266, %v3910
        %v3916 = vadd.s32 %v3915, 127
        %v3917 = vshll.u32 %v3916, 23
        %v3918 = vor.u32 4788187, %v3917
        %v3919 = vand.u32 2147483647, %v3918
        %v3921 = vcvt.s32.f32 %v3914
        %v3922 = vmul.f32 %v3921, %v3919
        %v3923 = vxor.u32 %v3922, 2147483648
        %v3924 = vsel %vm3803, %v3923, %v3922
        %v3925 = vsub.s32 4, %v3901
        %v3926 = vsel %vm3803, %v3925, %v3901
        %v3927 = vsel %vm3802, %v535, %v3924
        %v3928 = vsel %vm3802, 0, %v3926
        %v3929 = vmul.f32 %v3927, %v3927
        %v3930 = vmul.f32 %v3929, -0.001358992
        %v3931 = vadd.f32 %v3930, 0.041655596
        %v3932 = vmul.f32 %v3929, %v3931
        %v3933 = vadd.f32 %v3932, -0.4999988
        %v3934 = vmul.f32 %v3929, %v3933
        %v3935 = vadd.f32 1.0, %v3934
        %v3936 = vmul.f32 %v3927, %v3927
        %v3937 = vmul.f32 %v3936, -0.00019511016
        %v3938 = vadd.f32 %v3937, 0.008332121
        %v3939 = vmul.f32 %v3936, %v3938
        %v3940 = vadd.f32 %v3939, -0.16666654
        %v3941 = vmul.f32 %v3936, %v3940
        %v3942 = vadd.f32 %v3941, 1.0
        %v3943 = vmul.f32 %v3942, %v3927
        %vm3944 = vweird.f32 %v535
        %v3945 = vadd.s32 %v3928, 3
        %v3946 = vand.u32 %v3945, 3
        %vm3947 = vcmp.lt.s32.totalorder %v3946, 2
        %vm3948 = vcmp.eq.s32.totalorder %v3946, 0
        %v3949 = vxor.u32 %v3943, 2147483648
        %v3950 = vsel %vm3948, %v3935, %v3949
        %vm3951 = vcmp.eq.s32.totalorder %v3946, 2
        %v3952 = vxor.u32 %v3935, 2147483648
        %v3953 = vsel %vm3951, %v3952, %v3943
        %v3954 = vsel %vm3947, %v3950, %v3953
        %v3955 = vsel %vm3944, nan, %v3954
        %v3956 = vand.u32 2147483647, %v536
        %vm3957 = vcmp.le.f32.partialorder %v3956, 0.7853982
        %vm3958 = vcmp.lt.s32.totalorder %v536, 0
        %v3959 = vand.u32 %v536, 2139095040
        %v3960 = vshrl.u32 %v3959, 23
        %v3961 = vsub.s32 %v3960, 127
        %v3962 = vand.u32 2147483647, %v536
        %v3963 = vand.u32 %v3962, 8388607
        %v3964 = vor.u32 %v3963, 8388608
        %v3965 = vsub.s32 0, %v3964
        %v3966 = vadd.s32 %v3961, 1
        %vm3967 = vcmp.gt.s32.totalorder %v3966, 0
        %v3968 = vsel %vm3967, %v3966, 0
        %v3969 = vshrl.u32 %v3968, 5
        %v3970 = vand.u32 %v3968, 31
        %v3971 = vsub.s32 32, %v3970
        %v3972 = vshrl.u32 683565275, %v3971
        %v3973 = vshll.u32 683565275, %v3970
        %v3974 = vshrl.u32 2475754826, %v3971
        %v3975 = vor.u32 %v3973, %v3974
        %v3976 = vshll.u32 2475754826, %v3970
        %v3977 = vshrl.u32 2131351028, %v3971
        %v3978 = vor.u32 %v3976, %v3977
        %v3979 = vshll.u32 2131351028, %v3970
        %v3980 = vshrl.u32 2102212464, %v3971
        %v3981 = vor.u32 %v3979, %v3980
        %v3982 = vshll.u32 2102212464, %v3970
        %v3983 = vshrl.u32 920167782, %v3971
        %v3984 = vor.u32 %v3982, %v3983
        %v3985 = vshll.u32 920167782, %v3970
        %v3986 = vshrl.u32 1326507024, %v3971
        %v3987 = vor.u32 %v3985, %v3986
        %vm3988 = vcmp.lt.s32.totalorder %v3969, 1
        %vm3989 = vcmp.lt.s32.totalorder %v3969, 2
        %vm3990 = vcmp.lt.s32.totalorder %v3969, 3
        %vm3991 = vcmp.lt.s32.totalorder %v3969, 4
        %v3992 = vsel %vm3988, %v3972, %v3975
        %v3993 = vsel %vm3991, %v3981, 2102212464
        %v3994 = vsel %vm3990, %v3978, %v3993
        %v3995 = vsel %vm3989, %v3992, %v3994
        %v3996 = vsel %vm3988, %v3975, %v3978
        %v3997 = vsel %vm3991, %v3984, 920167782
        %v3998 = vsel %vm3990, %v3981, %v3997
        %v3999 = vsel %vm3989, %v3996, %v3998
        %v4000 = vsel %vm3988, %v3978, %v3981
        %v4001 = vsel %vm3991, %v3987, 1326507024
        %v4002 = vsel %vm3990, %v3984, %v4001
        %v4003 = vsel %vm3989, %v4000, %v4002
        %v4004 = vshll.u32 %v3964, 8
        %v4005 = vand.u32 %v4004, 65535
        %v4006 = vshrl.u32 %v4004, 16
        %v4007 = vand.u32 %v4003, 65535
        %v4008 = vshrl.u32 %v4003, 16
        %v4009 = vmul.u32 %v4005, %v4007
        %v4010 = vmul.u32 %v4005, %v4008
        %v4011 = vmul.u32 %v4006, %v4007
        %v4012 = vmul.u32 %v4006, %v4008
        %v4013 = vshll.u32 %v4010, 16
        %v4014 = vshrl.u32 %v4010, 16
        %v4015 = vshll.u32 %v4011, 16
        %v4016 = vshrl.u32 %v4011, 16
        %vm4017 = vc.u32 %v4009, %v4013
        %v4018 = vsel %vm4017, 1, 0
        %v4019 = vadd.s32 %v4009, %v4013
        %v4020 = vadd.s32 %v4012, %v4018
        %vm4021 = vc.u32 %v4019, %v4015
        %v4022 = vsel %vm4021, 1, 0
        %v4023 = vadd.s32 %v4019, %v4015
        %v4024 = vadd.s32 %v4020, %v4022
        %v4025 = vadd.s32 %v4024, %v4014
        %v4026 = vadd.s32 %v4025, %v4016
        %v4027 = vand.u32 %v4004, 65535
        %v4028 = vshrl.u32 %v4004, 16
        %v4029 = vand.u32 %v3999, 65535
        %v4030 = vshrl.u32 %v3999, 16
        %v4031 = vmul.u32 %v4027, %v4029
        %v4032 = vmul.u32 %v4027, %v4030
        %v4033 = vmul.u32 %v4028, %v4029
        %v4034 = vmul.u32 %v4028, %v4030
        %v4035 = vshll.u32 %v4032, 16
        %v4036 = vshrl.u32 %v4032, 16
        %v4037 = vshll.u32 %v4033, 16
        %v4038 = vshrl.u32 %v4033, 16
        %vm4039 = vc.u32 %v4031, %v4035
        %v4040 = vsel %vm4039, 1, 0
        %v4041 = vadd.s32 %v4031, %v4035
        %v4042 = vadd.s32 %v4034, %v4040
        %vm4043 = vc.u32 %v4041, %v4037
        %v4044 = vsel %vm4043, 1, 0
        %v4045 = vadd.s32 %v4041, %v4037
        %v4046 = vadd.s32 %v4042, %v4044
        %v4047 = vadd.s32 %v4046, %v4036
        %v4048 = vadd.s32 %v4047, %v4038
        %v4049 = vmul.u32 %v4004, %v3995
        %v4050 = vadd.s32 %v4026, %v4045
        %vm4051 = vc.u32 %v4026, %v4045
        %v4052 = vadd.s32 %v4048, 1
        %v4053 = vsel %vm4051, %v4052, %v4048
        %v4054 = vadd.s32 %v4049, %v4053
        %v4055 = vadd.s32 %v4054, 536870912
        %v4056 = vshrl.u32 %v4055, 30
        %v4057 = vshll.u32 %v4056, 30
        %v4058 = vsub.s32 %v4054, %v4057
        %vm4059 = vcmp.lt.s32.totalorder %v4058, 0
        %v4060 = vsub.s32 0, %v4058
        %v4061 = vsel %vm4059, %v4060, %v4058
        %v4062 = vclz %v4061
        %v4063 = vsub.s32 %v4062, 2
        %vm4064 = vcmp.gt.s32.totalorder 0, %v4063
        %v4065 = vsel %vm4064, 0, %v4063
        %v4066 = vsub.s32 32, %v4065
        %v4067 = vshll.u32 %v4058, %v4065
        %v4068 = vshrl.u32 %v4050, %v4066
        %v4069 = vor.u32 %v4067, %v4068
        %v4070 = vsub.s32 4294967266, %v4065
        %v4071 = vadd.s32 %v4070, 127
        %v4072 = vshll.u32 %v4071, 23
        %v4073 = vor.u32 4788187, %v4072
        %v4074 = vand.u32 2147483647, %v4073
        %v4076 = vcvt.s32.f32 %v4069
        %v4077 = vmul.f32 %v4076, %v4074
        %v4078 = vxor.u32 %v4077, 2147483648
        %v4079 = vsel %vm3958, %v4078, %v4077
        %v4080 = vsub.s32 4, %v4056
        %v4081 = vsel %vm3958, %v4080, %v4056
        %v4082 = vsel %vm3957, %v536, %v4079
        %v4083 = vsel %vm3957, 0, %v4081
        %v4084 = vmul.f32 %v4082, %v4082
        %v4085 = vmul.f32 %v4084, -0.001358992
        %v4086 = vadd.f32 %v4085, 0.041655596
        %v4087 = vmul.f32 %v4084, %v4086
        %v4088 = vadd.f32 %v4087, -0.4999988
        %v4089 = vmul.f32 %v4084, %v4088
        %v4090 = vadd.f32 1.0, %v4089
        %v4091 = vmul.f32 %v4082, %v4082
        %v4092 = vmul.f32 %v4091, -0.00019511016
        %v4093 = vadd.f32 %v4092, 0.008332121
        %v4094 = vmul.f32 %v4091, %v4093
        %v4095 = vadd.f32 %v4094, -0.16666654
        %v4096 = vmul.f32 %v4091, %v4095
        %v4097 = vadd.f32 %v4096, 1.0
        %v4098 = vmul.f32 %v4097, %v4082
        %vm4099 = vweird.f32 %v536
        %v4100 = vadd.s32 %v4083, 3
        %v4101 = vand.u32 %v4100, 3
        %vm4102 = vcmp.lt.s32.totalorder %v4101, 2
        %vm4103 = vcmp.eq.s32.totalorder %v4101, 0
        %v4104 = vxor.u32 %v4098, 2147483648
        %v4105 = vsel %vm4103, %v4090, %v4104
        %vm4106 = vcmp.eq.s32.totalorder %v4101, 2
        %v4107 = vxor.u32 %v4090, 2147483648
        %v4108 = vsel %vm4106, %v4107, %v4098
        %v4109 = vsel %vm4102, %v4105, %v4108
        %v4110 = vsel %vm4099, nan, %v4109
        %v4111 = vand.u32 2147483647, %v537
        %vm4112 = vcmp.le.f32.partialorder %v4111, 0.7853982
        %vm4113 = vcmp.lt.s32.totalorder %v537, 0
        %v4114 = vand.u32 %v537, 2139095040
        %v4115 = vshrl.u32 %v4114, 23
        %v4116 = vsub.s32 %v4115, 127
        %v4117 = vand.u32 2147483647, %v537
        %v4118 = vand.u32 %v4117, 8388607
        %v4119 = vor.u32 %v4118, 8388608
        %v4120 = vsub.s32 0, %v4119
        %v4121 = vadd.s32 %v4116, 1
        %vm4122 = vcmp.gt.s32.totalorder %v4121, 0
        %v4123 = vsel %vm4122, %v4121, 0
        %v4124 = vshrl.u32 %v4123, 5
        %v4125 = vand.u32 %v4123, 31
        %v4126 = vsub.s32 32, %v4125
        %v4127 = vshrl.u32 683565275, %v4126
        %v4128 = vshll.u32 683565275, %v4125
        %v4129 = vshrl.u32 2475754826, %v4126
        %v4130 = vor.u32 %v4128, %v4129
        %v4131 = vshll.u32 2475754826, %v4125
        %v4132 = vshrl.u32 2131351028, %v4126
        %v4133 = vor.u32 %v4131, %v4132
        %v4134 = vshll.u32 2131351028, %v4125
        %v4135 = vshrl.u32 2102212464, %v4126
        %v4136 = vor.u32 %v4134, %v4135
        %v4137 = vshll.u32 2102212464, %v4125
        %v4138 = vshrl.u32 920167782, %v4126
        %v4139 = vor.u32 %v4137, %v4138
        %v4140 = vshll.u32 920167782, %v4125
        %v4141 = vshrl.u32 1326507024, %v4126
        %v4142 = vor.u32 %v4140, %v4141
        %vm4143 = vcmp.lt.s32.totalorder %v4124, 1
        %vm4144 = vcmp.lt.s32.totalorder %v4124, 2
        %vm4145 = vcmp.lt.s32.totalorder %v4124, 3
        %vm4146 = vcmp.lt.s32.totalorder %v4124, 4
        %v4147 = vsel %vm4143, %v4127, %v4130
        %v4148 = vsel %vm4146, %v4136, 2102212464
        %v4149 = vsel %vm4145, %v4133, %v4148
        %v4150 = vsel %vm4144, %v4147, %v4149
        %v4151 = vsel %vm4143, %v4130, %v4133
        %v4152 = vsel %vm4146, %v4139, 920167782
        %v4153 = vsel %vm4145, %v4136, %v4152
        %v4154 = vsel %vm4144, %v4151, %v4153
        %v4155 = vsel %vm4143, %v4133, %v4136
        %v4156 = vsel %vm4146, %v4142, 1326507024
        %v4157 = vsel %vm4145, %v4139, %v4156
        %v4158 = vsel %vm4144, %v4155, %v4157
        %v4159 = vshll.u32 %v4119, 8
        %v4160 = vand.u32 %v4159, 65535
        %v4161 = vshrl.u32 %v4159, 16
        %v4162 = vand.u32 %v4158, 65535
        %v4163 = vshrl.u32 %v4158, 16
        %v4164 = vmul.u32 %v4160, %v4162
        %v4165 = vmul.u32 %v4160, %v4163
        %v4166 = vmul.u32 %v4161, %v4162
        %v4167 = vmul.u32 %v4161, %v4163
        %v4168 = vshll.u32 %v4165, 16
        %v4169 = vshrl.u32 %v4165, 16
        %v4170 = vshll.u32 %v4166, 16
        %v4171 = vshrl.u32 %v4166, 16
        %vm4172 = vc.u32 %v4164, %v4168
        %v4173 = vsel %vm4172, 1, 0
        %v4174 = vadd.s32 %v4164, %v4168
        %v4175 = vadd.s32 %v4167, %v4173
        %vm4176 = vc.u32 %v4174, %v4170
        %v4177 = vsel %vm4176, 1, 0
        %v4178 = vadd.s32 %v4174, %v4170
        %v4179 = vadd.s32 %v4175, %v4177
        %v4180 = vadd.s32 %v4179, %v4169
        %v4181 = vadd.s32 %v4180, %v4171
        %v4182 = vand.u32 %v4159, 65535
        %v4183 = vshrl.u32 %v4159, 16
        %v4184 = vand.u32 %v4154, 65535
        %v4185 = vshrl.u32 %v4154, 16
        %v4186 = vmul.u32 %v4182, %v4184
        %v4187 = vmul.u32 %v4182, %v4185
        %v4188 = vmul.u32 %v4183, %v4184
        %v4189 = vmul.u32 %v4183, %v4185
        %v4190 = vshll.u32 %v4187, 16
        %v4191 = vshrl.u32 %v4187, 16
        %v4192 = vshll.u32 %v4188, 16
        %v4193 = vshrl.u32 %v4188, 16
        %vm4194 = vc.u32 %v4186, %v4190
        %v4195 = vsel %vm4194, 1, 0
        %v4196 = vadd.s32 %v4186, %v4190
        %v4197 = vadd.s32 %v4189, %v4195
        %vm4198 = vc.u32 %v4196, %v4192
        %v4199 = vsel %vm4198, 1, 0
        %v4200 = vadd.s32 %v4196, %v4192
        %v4201 = vadd.s32 %v4197, %v4199
        %v4202 = vadd.s32 %v4201, %v4191
        %v4203 = vadd.s32 %v4202, %v4193
        %v4204 = vmul.u32 %v4159, %v4150
        %v4205 = vadd.s32 %v4181, %v4200
        %vm4206 = vc.u32 %v4181, %v4200
        %v4207 = vadd.s32 %v4203, 1
        %v4208 = vsel %vm4206, %v4207, %v4203
        %v4209 = vadd.s32 %v4204, %v4208
        %v4210 = vadd.s32 %v4209, 536870912
        %v4211 = vshrl.u32 %v4210, 30
        %v4212 = vshll.u32 %v4211, 30
        %v4213 = vsub.s32 %v4209, %v4212
        %vm4214 = vcmp.lt.s32.totalorder %v4213, 0
        %v4215 = vsub.s32 0, %v4213
        %v4216 = vsel %vm4214, %v4215, %v4213
        %v4217 = vclz %v4216
        %v4218 = vsub.s32 %v4217, 2
        %vm4219 = vcmp.gt.s32.totalorder 0, %v4218
        %v4220 = vsel %vm4219, 0, %v4218
        %v4221 = vsub.s32 32, %v4220
        %v4222 = vshll.u32 %v4213, %v4220
        %v4223 = vshrl.u32 %v4205, %v4221
        %v4224 = vor.u32 %v4222, %v4223
        %v4225 = vsub.s32 4294967266, %v4220
        %v4226 = vadd.s32 %v4225, 127
        %v4227 = vshll.u32 %v4226, 23
        %v4228 = vor.u32 4788187, %v4227
        %v4229 = vand.u32 2147483647, %v4228
        %v4231 = vcvt.s32.f32 %v4224
        %v4232 = vmul.f32 %v4231, %v4229
        %v4233 = vxor.u32 %v4232, 2147483648
        %v4234 = vsel %vm4113, %v4233, %v4232
        %v4235 = vsub.s32 4, %v4211
        %v4236 = vsel %vm4113, %v4235, %v4211
        %v4237 = vsel %vm4112, %v537, %v4234
        %v4238 = vsel %vm4112, 0, %v4236
        %v4239 = vmul.f32 %v4237, %v4237
        %v4240 = vmul.f32 %v4239, -0.001358992
        %v4241 = vadd.f32 %v4240, 0.041655596
        %v4242 = vmul.f32 %v4239, %v4241
        %v4243 = vadd.f32 %v4242, -0.4999988
        %v4244 = vmul.f32 %v4239, %v4243
        %v4245 = vadd.f32 1.0, %v4244
        %v4246 = vmul.f32 %v4237, %v4237
        %v4247 = vmul.f32 %v4246, -0.00019511016
        %v4248 = vadd.f32 %v4247, 0.008332121
        %v4249 = vmul.f32 %v4246, %v4248
        %v4250 = vadd.f32 %v4249, -0.16666654
        %v4251 = vmul.f32 %v4246, %v4250
        %v4252 = vadd.f32 %v4251, 1.0
        %v4253 = vmul.f32 %v4252, %v4237
        %vm4254 = vweird.f32 %v537
        %v4255 = vadd.s32 %v4238, 3
        %v4256 = vand.u32 %v4255, 3
        %vm4257 = vcmp.lt.s32.totalorder %v4256, 2
        %vm4258 = vcmp.eq.s32.totalorder %v4256, 0
        %v4259 = vxor.u32 %v4253, 2147483648
        %v4260 = vsel %vm4258, %v4245, %v4259
        %vm4261 = vcmp.eq.s32.totalorder %v4256, 2
        %v4262 = vxor.u32 %v4245, 2147483648
        %v4263 = vsel %vm4261, %v4262, %v4253
        %v4264 = vsel %vm4257, %v4260, %v4263
        %v4265 = vsel %vm4254, nan, %v4264
        %v4266 = vand.u32 2147483647, %v538
        %vm4267 = vcmp.le.f32.partialorder %v4266, 0.7853982
        %vm4268 = vcmp.lt.s32.totalorder %v538, 0
        %v4269 = vand.u32 %v538, 2139095040
        %v4270 = vshrl.u32 %v4269, 23
        %v4271 = vsub.s32 %v4270, 127
        %v4272 = vand.u32 2147483647, %v538
        %v4273 = vand.u32 %v4272, 8388607
        %v4274 = vor.u32 %v4273, 8388608
        %v4275 = vsub.s32 0, %v4274
        %v4276 = vadd.s32 %v4271, 1
        %vm4277 = vcmp.gt.s32.totalorder %v4276, 0
        %v4278 = vsel %vm4277, %v4276, 0
        %v4279 = vshrl.u32 %v4278, 5
        %v4280 = vand.u32 %v4278, 31
        %v4281 = vsub.s32 32, %v4280
        %v4282 = vshrl.u32 683565275, %v4281
        %v4283 = vshll.u32 683565275, %v4280
        %v4284 = vshrl.u32 2475754826, %v4281
        %v4285 = vor.u32 %v4283, %v4284
        %v4286 = vshll.u32 2475754826, %v4280
        %v4287 = vshrl.u32 2131351028, %v4281
        %v4288 = vor.u32 %v4286, %v4287
        %v4289 = vshll.u32 2131351028, %v4280
        %v4290 = vshrl.u32 2102212464, %v4281
        %v4291 = vor.u32 %v4289, %v4290
        %v4292 = vshll.u32 2102212464, %v4280
        %v4293 = vshrl.u32 920167782, %v4281
        %v4294 = vor.u32 %v4292, %v4293
        %v4295 = vshll.u32 920167782, %v4280
        %v4296 = vshrl.u32 1326507024, %v4281
        %v4297 = vor.u32 %v4295, %v4296
        %vm4298 = vcmp.lt.s32.totalorder %v4279, 1
        %vm4299 = vcmp.lt.s32.totalorder %v4279, 2
        %vm4300 = vcmp.lt.s32.totalorder %v4279, 3
        %vm4301 = vcmp.lt.s32.totalorder %v4279, 4
        %v4302 = vsel %vm4298, %v4282, %v4285
        %v4303 = vsel %vm4301, %v4291, 2102212464
        %v4304 = vsel %vm4300, %v4288, %v4303
        %v4305 = vsel %vm4299, %v4302, %v4304
        %v4306 = vsel %vm4298, %v4285, %v4288
        %v4307 = vsel %vm4301, %v4294, 920167782
        %v4308 = vsel %vm4300, %v4291, %v4307
        %v4309 = vsel %vm4299, %v4306, %v4308
        %v4310 = vsel %vm4298, %v4288, %v4291
        %v4311 = vsel %vm4301, %v4297, 1326507024
        %v4312 = vsel %vm4300, %v4294, %v4311
        %v4313 = vsel %vm4299, %v4310, %v4312
        %v4314 = vshll.u32 %v4274, 8
        %v4315 = vand.u32 %v4314, 65535
        %v4316 = vshrl.u32 %v4314, 16
        %v4317 = vand.u32 %v4313, 65535
        %v4318 = vshrl.u32 %v4313, 16
        %v4319 = vmul.u32 %v4315, %v4317
        %v4320 = vmul.u32 %v4315, %v4318
        %v4321 = vmul.u32 %v4316, %v4317
        %v4322 = vmul.u32 %v4316, %v4318
        %v4323 = vshll.u32 %v4320, 16
        %v4324 = vshrl.u32 %v4320, 16
        %v4325 = vshll.u32 %v4321, 16
        %v4326 = vshrl.u32 %v4321, 16
        %vm4327 = vc.u32 %v4319, %v4323
        %v4328 = vsel %vm4327, 1, 0
        %v4329 = vadd.s32 %v4319, %v4323
        %v4330 = vadd.s32 %v4322, %v4328
        %vm4331 = vc.u32 %v4329, %v4325
        %v4332 = vsel %vm4331, 1, 0
        %v4333 = vadd.s32 %v4329, %v4325
        %v4334 = vadd.s32 %v4330, %v4332
        %v4335 = vadd.s32 %v4334, %v4324
        %v4336 = vadd.s32 %v4335, %v4326
        %v4337 = vand.u32 %v4314, 65535
        %v4338 = vshrl.u32 %v4314, 16
        %v4339 = vand.u32 %v4309, 65535
        %v4340 = vshrl.u32 %v4309, 16
        %v4341 = vmul.u32 %v4337, %v4339
        %v4342 = vmul.u32 %v4337, %v4340
        %v4343 = vmul.u32 %v4338, %v4339
        %v4344 = vmul.u32 %v4338, %v4340
        %v4345 = vshll.u32 %v4342, 16
        %v4346 = vshrl.u32 %v4342, 16
        %v4347 = vshll.u32 %v4343, 16
        %v4348 = vshrl.u32 %v4343, 16
        %vm4349 = vc.u32 %v4341, %v4345
        %v4350 = vsel %vm4349, 1, 0
        %v4351 = vadd.s32 %v4341, %v4345
        %v4352 = vadd.s32 %v4344, %v4350
        %vm4353 = vc.u32 %v4351, %v4347
        %v4354 = vsel %vm4353, 1, 0
        %v4355 = vadd.s32 %v4351, %v4347
        %v4356 = vadd.s32 %v4352, %v4354
        %v4357 = vadd.s32 %v4356, %v4346
        %v4358 = vadd.s32 %v4357, %v4348
        %v4359 = vmul.u32 %v4314, %v4305
        %v4360 = vadd.s32 %v4336, %v4355
        %vm4361 = vc.u32 %v4336, %v4355
        %v4362 = vadd.s32 %v4358, 1
        %v4363 = vsel %vm4361, %v4362, %v4358
        %v4364 = vadd.s32 %v4359, %v4363
        %v4365 = vadd.s32 %v4364, 536870912
        %v4366 = vshrl.u32 %v4365, 30
        %v4367 = vshll.u32 %v4366, 30
        %v4368 = vsub.s32 %v4364, %v4367
        %vm4369 = vcmp.lt.s32.totalorder %v4368, 0
        %v4370 = vsub.s32 0, %v4368
        %v4371 = vsel %vm4369, %v4370, %v4368
        %v4372 = vclz %v4371
        %v4373 = vsub.s32 %v4372, 2
        %vm4374 = vcmp.gt.s32.totalorder 0, %v4373
        %v4375 = vsel %vm4374, 0, %v4373
        %v4376 = vsub.s32 32, %v4375
        %v4377 = vshll.u32 %v4368, %v4375
        %v4378 = vshrl.u32 %v4360, %v4376
        %v4379 = vor.u32 %v4377, %v4378
        %v4380 = vsub.s32 4294967266, %v4375
        %v4381 = vadd.s32 %v4380, 127
        %v4382 = vshll.u32 %v4381, 23
        %v4383 = vor.u32 4788187, %v4382
        %v4384 = vand.u32 2147483647, %v4383
        %v4386 = vcvt.s32.f32 %v4379
        %v4387 = vmul.f32 %v4386, %v4384
        %v4388 = vxor.u32 %v4387, 2147483648
        %v4389 = vsel %vm4268, %v4388, %v4387
        %v4390 = vsub.s32 4, %v4366
        %v4391 = vsel %vm4268, %v4390, %v4366
        %v4392 = vsel %vm4267, %v538, %v4389
        %v4393 = vsel %vm4267, 0, %v4391
        %v4394 = vmul.f32 %v4392, %v4392
        %v4395 = vmul.f32 %v4394, -0.001358992
        %v4396 = vadd.f32 %v4395, 0.041655596
        %v4397 = vmul.f32 %v4394, %v4396
        %v4398 = vadd.f32 %v4397, -0.4999988
        %v4399 = vmul.f32 %v4394, %v4398
        %v4400 = vadd.f32 1.0, %v4399
        %v4401 = vmul.f32 %v4392, %v4392
        %v4402 = vmul.f32 %v4401, -0.00019511016
        %v4403 = vadd.f32 %v4402, 0.008332121
        %v4404 = vmul.f32 %v4401, %v4403
        %v4405 = vadd.f32 %v4404, -0.16666654
        %v4406 = vmul.f32 %v4401, %v4405
        %v4407 = vadd.f32 %v4406, 1.0
        %v4408 = vmul.f32 %v4407, %v4392
        %vm4409 = vweird.f32 %v538
        %v4410 = vadd.s32 %v4393, 3
        %v4411 = vand.u32 %v4410, 3
        %vm4412 = vcmp.lt.s32.totalorder %v4411, 2
        %vm4413 = vcmp.eq.s32.totalorder %v4411, 0
        %v4414 = vxor.u32 %v4408, 2147483648
        %v4415 = vsel %vm4413, %v4400, %v4414
        %vm4416 = vcmp.eq.s32.totalorder %v4411, 2
        %v4417 = vxor.u32 %v4400, 2147483648
        %v4418 = vsel %vm4416, %v4417, %v4408
        %v4419 = vsel %vm4412, %v4415, %v4418
        %v4420 = vsel %vm4409, nan, %v4419
        %v4421 = vand.u32 2147483647, %v539
        %vm4422 = vcmp.le.f32.partialorder %v4421, 0.7853982
        %vm4423 = vcmp.lt.s32.totalorder %v539, 0
        %v4424 = vand.u32 %v539, 2139095040
        %v4425 = vshrl.u32 %v4424, 23
        %v4426 = vsub.s32 %v4425, 127
        %v4427 = vand.u32 2147483647, %v539
        %v4428 = vand.u32 %v4427, 8388607
        %v4429 = vor.u32 %v4428, 8388608
        %v4430 = vsub.s32 0, %v4429
        %v4431 = vadd.s32 %v4426, 1
        %vm4432 = vcmp.gt.s32.totalorder %v4431, 0
        %v4433 = vsel %vm4432, %v4431, 0
        %v4434 = vshrl.u32 %v4433, 5
        %v4435 = vand.u32 %v4433, 31
        %v4436 = vsub.s32 32, %v4435
        %v4437 = vshrl.u32 683565275, %v4436
        %v4438 = vshll.u32 683565275, %v4435
        %v4439 = vshrl.u32 2475754826, %v4436
        %v4440 = vor.u32 %v4438, %v4439
        %v4441 = vshll.u32 2475754826, %v4435
        %v4442 = vshrl.u32 2131351028, %v4436
        %v4443 = vor.u32 %v4441, %v4442
        %v4444 = vshll.u32 2131351028, %v4435
        %v4445 = vshrl.u32 2102212464, %v4436
        %v4446 = vor.u32 %v4444, %v4445
        %v4447 = vshll.u32 2102212464, %v4435
        %v4448 = vshrl.u32 920167782, %v4436
        %v4449 = vor.u32 %v4447, %v4448
        %v4450 = vshll.u32 920167782, %v4435
        %v4451 = vshrl.u32 1326507024, %v4436
        %v4452 = vor.u32 %v4450, %v4451
        %vm4453 = vcmp.lt.s32.totalorder %v4434, 1
        %vm4454 = vcmp.lt.s32.totalorder %v4434, 2
        %vm4455 = vcmp.lt.s32.totalorder %v4434, 3
        %vm4456 = vcmp.lt.s32.totalorder %v4434, 4
        %v4457 = vsel %vm4453, %v4437, %v4440
        %v4458 = vsel %vm4456, %v4446, 2102212464
        %v4459 = vsel %vm4455, %v4443, %v4458
        %v4460 = vsel %vm4454, %v4457, %v4459
        %v4461 = vsel %vm4453, %v4440, %v4443
        %v4462 = vsel %vm4456, %v4449, 920167782
        %v4463 = vsel %vm4455, %v4446, %v4462
        %v4464 = vsel %vm4454, %v4461, %v4463
        %v4465 = vsel %vm4453, %v4443, %v4446
        %v4466 = vsel %vm4456, %v4452, 1326507024
        %v4467 = vsel %vm4455, %v4449, %v4466
        %v4468 = vsel %vm4454, %v4465, %v4467
        %v4469 = vshll.u32 %v4429, 8
        %v4470 = vand.u32 %v4469, 65535
        %v4471 = vshrl.u32 %v4469, 16
        %v4472 = vand.u32 %v4468, 65535
        %v4473 = vshrl.u32 %v4468, 16
        %v4474 = vmul.u32 %v4470, %v4472
        %v4475 = vmul.u32 %v4470, %v4473
        %v4476 = vmul.u32 %v4471, %v4472
        %v4477 = vmul.u32 %v4471, %v4473
        %v4478 = vshll.u32 %v4475, 16
        %v4479 = vshrl.u32 %v4475, 16
        %v4480 = vshll.u32 %v4476, 16
        %v4481 = vshrl.u32 %v4476, 16
        %vm4482 = vc.u32 %v4474, %v4478
        %v4483 = vsel %vm4482, 1, 0
        %v4484 = vadd.s32 %v4474, %v4478
        %v4485 = vadd.s32 %v4477, %v4483
        %vm4486 = vc.u32 %v4484, %v4480
        %v4487 = vsel %vm4486, 1, 0
        %v4488 = vadd.s32 %v4484, %v4480
        %v4489 = vadd.s32 %v4485, %v4487
        %v4490 = vadd.s32 %v4489, %v4479
        %v4491 = vadd.s32 %v4490, %v4481
        %v4492 = vand.u32 %v4469, 65535
        %v4493 = vshrl.u32 %v4469, 16
        %v4494 = vand.u32 %v4464, 65535
        %v4495 = vshrl.u32 %v4464, 16
        %v4496 = vmul.u32 %v4492, %v4494
        %v4497 = vmul.u32 %v4492, %v4495
        %v4498 = vmul.u32 %v4493, %v4494
        %v4499 = vmul.u32 %v4493, %v4495
        %v4500 = vshll.u32 %v4497, 16
        %v4501 = vshrl.u32 %v4497, 16
        %v4502 = vshll.u32 %v4498, 16
        %v4503 = vshrl.u32 %v4498, 16
        %vm4504 = vc.u32 %v4496, %v4500
        %v4505 = vsel %vm4504, 1, 0
        %v4506 = vadd.s32 %v4496, %v4500
        %v4507 = vadd.s32 %v4499, %v4505
        %vm4508 = vc.u32 %v4506, %v4502
        %v4509 = vsel %vm4508, 1, 0
        %v4510 = vadd.s32 %v4506, %v4502
        %v4511 = vadd.s32 %v4507, %v4509
        %v4512 = vadd.s32 %v4511, %v4501
        %v4513 = vadd.s32 %v4512, %v4503
        %v4514 = vmul.u32 %v4469, %v4460
        %v4515 = vadd.s32 %v4491, %v4510
        %vm4516 = vc.u32 %v4491, %v4510
        %v4517 = vadd.s32 %v4513, 1
        %v4518 = vsel %vm4516, %v4517, %v4513
        %v4519 = vadd.s32 %v4514, %v4518
        %v4520 = vadd.s32 %v4519, 536870912
        %v4521 = vshrl.u32 %v4520, 30
        %v4522 = vshll.u32 %v4521, 30
        %v4523 = vsub.s32 %v4519, %v4522
        %vm4524 = vcmp.lt.s32.totalorder %v4523, 0
        %v4525 = vsub.s32 0, %v4523
        %v4526 = vsel %vm4524, %v4525, %v4523
        %v4527 = vclz %v4526
        %v4528 = vsub.s32 %v4527, 2
        %vm4529 = vcmp.gt.s32.totalorder 0, %v4528
        %v4530 = vsel %vm4529, 0, %v4528
        %v4531 = vsub.s32 32, %v4530
        %v4532 = vshll.u32 %v4523, %v4530
        %v4533 = vshrl.u32 %v4515, %v4531
        %v4534 = vor.u32 %v4532, %v4533
        %v4535 = vsub.s32 4294967266, %v4530
        %v4536 = vadd.s32 %v4535, 127
        %v4537 = vshll.u32 %v4536, 23
        %v4538 = vor.u32 4788187, %v4537
        %v4539 = vand.u32 2147483647, %v4538
        %v4541 = vcvt.s32.f32 %v4534
        %v4542 = vmul.f32 %v4541, %v4539
        %v4543 = vxor.u32 %v4542, 2147483648
        %v4544 = vsel %vm4423, %v4543, %v4542
        %v4545 = vsub.s32 4, %v4521
        %v4546 = vsel %vm4423, %v4545, %v4521
        %v4547 = vsel %vm4422, %v539, %v4544
        %v4548 = vsel %vm4422, 0, %v4546
        %v4549 = vmul.f32 %v4547, %v4547
        %v4550 = vmul.f32 %v4549, -0.001358992
        %v4551 = vadd.f32 %v4550, 0.041655596
        %v4552 = vmul.f32 %v4549, %v4551
        %v4553 = vadd.f32 %v4552, -0.4999988
        %v4554 = vmul.f32 %v4549, %v4553
        %v4555 = vadd.f32 1.0, %v4554
        %v4556 = vmul.f32 %v4547, %v4547
        %v4557 = vmul.f32 %v4556, -0.00019511016
        %v4558 = vadd.f32 %v4557, 0.008332121
        %v4559 = vmul.f32 %v4556, %v4558
        %v4560 = vadd.f32 %v4559, -0.16666654
        %v4561 = vmul.f32 %v4556, %v4560
        %v4562 = vadd.f32 %v4561, 1.0
        %v4563 = vmul.f32 %v4562, %v4547
        %vm4564 = vweird.f32 %v539
        %v4565 = vadd.s32 %v4548, 3
        %v4566 = vand.u32 %v4565, 3
        %vm4567 = vcmp.lt.s32.totalorder %v4566, 2
        %vm4568 = vcmp.eq.s32.totalorder %v4566, 0
        %v4569 = vxor.u32 %v4563, 2147483648
        %v4570 = vsel %vm4568, %v4555, %v4569
        %vm4571 = vcmp.eq.s32.totalorder %v4566, 2
        %v4572 = vxor.u32 %v4555, 2147483648
        %v4573 = vsel %vm4571, %v4572, %v4563
        %v4574 = vsel %vm4567, %v4570, %v4573
        %v4575 = vsel %vm4564, nan, %v4574
        %v4576 = vand.u32 2147483647, %v540
        %vm4577 = vcmp.le.f32.partialorder %v4576, 0.7853982
        %vm4578 = vcmp.lt.s32.totalorder %v540, 0
        %v4579 = vand.u32 %v540, 2139095040
        %v4580 = vshrl.u32 %v4579, 23
        %v4581 = vsub.s32 %v4580, 127
        %v4582 = vand.u32 2147483647, %v540
        %v4583 = vand.u32 %v4582, 8388607
        %v4584 = vor.u32 %v4583, 8388608
        %v4585 = vsub.s32 0, %v4584
        %v4586 = vadd.s32 %v4581, 1
        %vm4587 = vcmp.gt.s32.totalorder %v4586, 0
        %v4588 = vsel %vm4587, %v4586, 0
        %v4589 = vshrl.u32 %v4588, 5
        %v4590 = vand.u32 %v4588, 31
        %v4591 = vsub.s32 32, %v4590
        %v4592 = vshrl.u32 683565275, %v4591
        %v4593 = vshll.u32 683565275, %v4590
        %v4594 = vshrl.u32 2475754826, %v4591
        %v4595 = vor.u32 %v4593, %v4594
        %v4596 = vshll.u32 2475754826, %v4590
        %v4597 = vshrl.u32 2131351028, %v4591
        %v4598 = vor.u32 %v4596, %v4597
        %v4599 = vshll.u32 2131351028, %v4590
        %v4600 = vshrl.u32 2102212464, %v4591
        %v4601 = vor.u32 %v4599, %v4600
        %v4602 = vshll.u32 2102212464, %v4590
        %v4603 = vshrl.u32 920167782, %v4591
        %v4604 = vor.u32 %v4602, %v4603
        %v4605 = vshll.u32 920167782, %v4590
        %v4606 = vshrl.u32 1326507024, %v4591
        %v4607 = vor.u32 %v4605, %v4606
        %vm4608 = vcmp.lt.s32.totalorder %v4589, 1
        %vm4609 = vcmp.lt.s32.totalorder %v4589, 2
        %vm4610 = vcmp.lt.s32.totalorder %v4589, 3
        %vm4611 = vcmp.lt.s32.totalorder %v4589, 4
        %v4612 = vsel %vm4608, %v4592, %v4595
        %v4613 = vsel %vm4611, %v4601, 2102212464
        %v4614 = vsel %vm4610, %v4598, %v4613
        %v4615 = vsel %vm4609, %v4612, %v4614
        %v4616 = vsel %vm4608, %v4595, %v4598
        %v4617 = vsel %vm4611, %v4604, 920167782
        %v4618 = vsel %vm4610, %v4601, %v4617
        %v4619 = vsel %vm4609, %v4616, %v4618
        %v4620 = vsel %vm4608, %v4598, %v4601
        %v4621 = vsel %vm4611, %v4607, 1326507024
        %v4622 = vsel %vm4610, %v4604, %v4621
        %v4623 = vsel %vm4609, %v4620, %v4622
        %v4624 = vshll.u32 %v4584, 8
        %v4625 = vand.u32 %v4624, 65535
        %v4626 = vshrl.u32 %v4624, 16
        %v4627 = vand.u32 %v4623, 65535
        %v4628 = vshrl.u32 %v4623, 16
        %v4629 = vmul.u32 %v4625, %v4627
        %v4630 = vmul.u32 %v4625, %v4628
        %v4631 = vmul.u32 %v4626, %v4627
        %v4632 = vmul.u32 %v4626, %v4628
        %v4633 = vshll.u32 %v4630, 16
        %v4634 = vshrl.u32 %v4630, 16
        %v4635 = vshll.u32 %v4631, 16
        %v4636 = vshrl.u32 %v4631, 16
        %vm4637 = vc.u32 %v4629, %v4633
        %v4638 = vsel %vm4637, 1, 0
        %v4639 = vadd.s32 %v4629, %v4633
        %v4640 = vadd.s32 %v4632, %v4638
        %vm4641 = vc.u32 %v4639, %v4635
        %v4642 = vsel %vm4641, 1, 0
        %v4643 = vadd.s32 %v4639, %v4635
        %v4644 = vadd.s32 %v4640, %v4642
        %v4645 = vadd.s32 %v4644, %v4634
        %v4646 = vadd.s32 %v4645, %v4636
        %v4647 = vand.u32 %v4624, 65535
        %v4648 = vshrl.u32 %v4624, 16
        %v4649 = vand.u32 %v4619, 65535
        %v4650 = vshrl.u32 %v4619, 16
        %v4651 = vmul.u32 %v4647, %v4649
        %v4652 = vmul.u32 %v4647, %v4650
        %v4653 = vmul.u32 %v4648, %v4649
        %v4654 = vmul.u32 %v4648, %v4650
        %v4655 = vshll.u32 %v4652, 16
        %v4656 = vshrl.u32 %v4652, 16
        %v4657 = vshll.u32 %v4653, 16
        %v4658 = vshrl.u32 %v4653, 16
        %vm4659 = vc.u32 %v4651, %v4655
        %v4660 = vsel %vm4659, 1, 0
        %v4661 = vadd.s32 %v4651, %v4655
        %v4662 = vadd.s32 %v4654, %v4660
        %vm4663 = vc.u32 %v4661, %v4657
        %v4664 = vsel %vm4663, 1, 0
        %v4665 = vadd.s32 %v4661, %v4657
        %v4666 = vadd.s32 %v4662, %v4664
        %v4667 = vadd.s32 %v4666, %v4656
        %v4668 = vadd.s32 %v4667, %v4658
        %v4669 = vmul.u32 %v4624, %v4615
        %v4670 = vadd.s32 %v4646, %v4665
        %vm4671 = vc.u32 %v4646, %v4665
        %v4672 = vadd.s32 %v4668, 1
        %v4673 = vsel %vm4671, %v4672, %v4668
        %v4674 = vadd.s32 %v4669, %v4673
        %v4675 = vadd.s32 %v4674, 536870912
        %v4676 = vshrl.u32 %v4675, 30
        %v4677 = vshll.u32 %v4676, 30
        %v4678 = vsub.s32 %v4674, %v4677
        %vm4679 = vcmp.lt.s32.totalorder %v4678, 0
        %v4680 = vsub.s32 0, %v4678
        %v4681 = vsel %vm4679, %v4680, %v4678
        %v4682 = vclz %v4681
        %v4683 = vsub.s32 %v4682, 2
        %vm4684 = vcmp.gt.s32.totalorder 0, %v4683
        %v4685 = vsel %vm4684, 0, %v4683
        %v4686 = vsub.s32 32, %v4685
        %v4687 = vshll.u32 %v4678, %v4685
        %v4688 = vshrl.u32 %v4670, %v4686
        %v4689 = vor.u32 %v4687, %v4688
        %v4690 = vsub.s32 4294967266, %v4685
        %v4691 = vadd.s32 %v4690, 127
        %v4692 = vshll.u32 %v4691, 23
        %v4693 = vor.u32 4788187, %v4692
        %v4694 = vand.u32 2147483647, %v4693
        %v4696 = vcvt.s32.f32 %v4689
        %v4697 = vmul.f32 %v4696, %v4694
        %v4698 = vxor.u32 %v4697, 2147483648
        %v4699 = vsel %vm4578, %v4698, %v4697
        %v4700 = vsub.s32 4, %v4676
        %v4701 = vsel %vm4578, %v4700, %v4676
        %v4702 = vsel %vm4577, %v540, %v4699
        %v4703 = vsel %vm4577, 0, %v4701
        %v4704 = vmul.f32 %v4702, %v4702
        %v4705 = vmul.f32 %v4704, -0.001358992
        %v4706 = vadd.f32 %v4705, 0.041655596
        %v4707 = vmul.f32 %v4704, %v4706
        %v4708 = vadd.f32 %v4707, -0.4999988
        %v4709 = vmul.f32 %v4704, %v4708
        %v4710 = vadd.f32 1.0, %v4709
        %v4711 = vmul.f32 %v4702, %v4702
        %v4712 = vmul.f32 %v4711, -0.00019511016
        %v4713 = vadd.f32 %v4712, 0.008332121
        %v4714 = vmul.f32 %v4711, %v4713
        %v4715 = vadd.f32 %v4714, -0.16666654
        %v4716 = vmul.f32 %v4711, %v4715
        %v4717 = vadd.f32 %v4716, 1.0
        %v4718 = vmul.f32 %v4717, %v4702
        %vm4719 = vweird.f32 %v540
        %v4720 = vadd.s32 %v4703, 3
        %v4721 = vand.u32 %v4720, 3
        %vm4722 = vcmp.lt.s32.totalorder %v4721, 2
        %vm4723 = vcmp.eq.s32.totalorder %v4721, 0
        %v4724 = vxor.u32 %v4718, 2147483648
        %v4725 = vsel %vm4723, %v4710, %v4724
        %vm4726 = vcmp.eq.s32.totalorder %v4721, 2
        %v4727 = vxor.u32 %v4710, 2147483648
        %v4728 = vsel %vm4726, %v4727, %v4718
        %v4729 = vsel %vm4722, %v4725, %v4728
        %v4730 = vsel %vm4719, nan, %v4729
        %v4731 = vand.u32 2147483647, %v541
        %vm4732 = vcmp.le.f32.partialorder %v4731, 0.7853982
        %vm4733 = vcmp.lt.s32.totalorder %v541, 0
        %v4734 = vand.u32 %v541, 2139095040
        %v4735 = vshrl.u32 %v4734, 23
        %v4736 = vsub.s32 %v4735, 127
        %v4737 = vand.u32 2147483647, %v541
        %v4738 = vand.u32 %v4737, 8388607
        %v4739 = vor.u32 %v4738, 8388608
        %v4740 = vsub.s32 0, %v4739
        %v4741 = vadd.s32 %v4736, 1
        %vm4742 = vcmp.gt.s32.totalorder %v4741, 0
        %v4743 = vsel %vm4742, %v4741, 0
        %v4744 = vshrl.u32 %v4743, 5
        %v4745 = vand.u32 %v4743, 31
        %v4746 = vsub.s32 32, %v4745
        %v4747 = vshrl.u32 683565275, %v4746
        %v4748 = vshll.u32 683565275, %v4745
        %v4749 = vshrl.u32 2475754826, %v4746
        %v4750 = vor.u32 %v4748, %v4749
        %v4751 = vshll.u32 2475754826, %v4745
        %v4752 = vshrl.u32 2131351028, %v4746
        %v4753 = vor.u32 %v4751, %v4752
        %v4754 = vshll.u32 2131351028, %v4745
        %v4755 = vshrl.u32 2102212464, %v4746
        %v4756 = vor.u32 %v4754, %v4755
        %v4757 = vshll.u32 2102212464, %v4745
        %v4758 = vshrl.u32 920167782, %v4746
        %v4759 = vor.u32 %v4757, %v4758
        %v4760 = vshll.u32 920167782, %v4745
        %v4761 = vshrl.u32 1326507024, %v4746
        %v4762 = vor.u32 %v4760, %v4761
        %vm4763 = vcmp.lt.s32.totalorder %v4744, 1
        %vm4764 = vcmp.lt.s32.totalorder %v4744, 2
        %vm4765 = vcmp.lt.s32.totalorder %v4744, 3
        %vm4766 = vcmp.lt.s32.totalorder %v4744, 4
        %v4767 = vsel %vm4763, %v4747, %v4750
        %v4768 = vsel %vm4766, %v4756, 2102212464
        %v4769 = vsel %vm4765, %v4753, %v4768
        %v4770 = vsel %vm4764, %v4767, %v4769
        %v4771 = vsel %vm4763, %v4750, %v4753
        %v4772 = vsel %vm4766, %v4759, 920167782
        %v4773 = vsel %vm4765, %v4756, %v4772
        %v4774 = vsel %vm4764, %v4771, %v4773
        %v4775 = vsel %vm4763, %v4753, %v4756
        %v4776 = vsel %vm4766, %v4762, 1326507024
        %v4777 = vsel %vm4765, %v4759, %v4776
        %v4778 = vsel %vm4764, %v4775, %v4777
        %v4779 = vshll.u32 %v4739, 8
        %v4780 = vand.u32 %v4779, 65535
        %v4781 = vshrl.u32 %v4779, 16
        %v4782 = vand.u32 %v4778, 65535
        %v4783 = vshrl.u32 %v4778, 16
        %v4784 = vmul.u32 %v4780, %v4782
        %v4785 = vmul.u32 %v4780, %v4783
        %v4786 = vmul.u32 %v4781, %v4782
        %v4787 = vmul.u32 %v4781, %v4783
        %v4788 = vshll.u32 %v4785, 16
        %v4789 = vshrl.u32 %v4785, 16
        %v4790 = vshll.u32 %v4786, 16
        %v4791 = vshrl.u32 %v4786, 16
        %vm4792 = vc.u32 %v4784, %v4788
        %v4793 = vsel %vm4792, 1, 0
        %v4794 = vadd.s32 %v4784, %v4788
        %v4795 = vadd.s32 %v4787, %v4793
        %vm4796 = vc.u32 %v4794, %v4790
        %v4797 = vsel %vm4796, 1, 0
        %v4798 = vadd.s32 %v4794, %v4790
        %v4799 = vadd.s32 %v4795, %v4797
        %v4800 = vadd.s32 %v4799, %v4789
        %v4801 = vadd.s32 %v4800, %v4791
        %v4802 = vand.u32 %v4779, 65535
        %v4803 = vshrl.u32 %v4779, 16
        %v4804 = vand.u32 %v4774, 65535
        %v4805 = vshrl.u32 %v4774, 16
        %v4806 = vmul.u32 %v4802, %v4804
        %v4807 = vmul.u32 %v4802, %v4805
        %v4808 = vmul.u32 %v4803, %v4804
        %v4809 = vmul.u32 %v4803, %v4805
        %v4810 = vshll.u32 %v4807, 16
        %v4811 = vshrl.u32 %v4807, 16
        %v4812 = vshll.u32 %v4808, 16
        %v4813 = vshrl.u32 %v4808, 16
        %vm4814 = vc.u32 %v4806, %v4810
        %v4815 = vsel %vm4814, 1, 0
        %v4816 = vadd.s32 %v4806, %v4810
        %v4817 = vadd.s32 %v4809, %v4815
        %vm4818 = vc.u32 %v4816, %v4812
        %v4819 = vsel %vm4818, 1, 0
        %v4820 = vadd.s32 %v4816, %v4812
        %v4821 = vadd.s32 %v4817, %v4819
        %v4822 = vadd.s32 %v4821, %v4811
        %v4823 = vadd.s32 %v4822, %v4813
        %v4824 = vmul.u32 %v4779, %v4770
        %v4825 = vadd.s32 %v4801, %v4820
        %vm4826 = vc.u32 %v4801, %v4820
        %v4827 = vadd.s32 %v4823, 1
        %v4828 = vsel %vm4826, %v4827, %v4823
        %v4829 = vadd.s32 %v4824, %v4828
        %v4830 = vadd.s32 %v4829, 536870912
        %v4831 = vshrl.u32 %v4830, 30
        %v4832 = vshll.u32 %v4831, 30
        %v4833 = vsub.s32 %v4829, %v4832
        %vm4834 = vcmp.lt.s32.totalorder %v4833, 0
        %v4835 = vsub.s32 0, %v4833
        %v4836 = vsel %vm4834, %v4835, %v4833
        %v4837 = vclz %v4836
        %v4838 = vsub.s32 %v4837, 2
        %vm4839 = vcmp.gt.s32.totalorder 0, %v4838
        %v4840 = vsel %vm4839, 0, %v4838
        %v4841 = vsub.s32 32, %v4840
        %v4842 = vshll.u32 %v4833, %v4840
        %v4843 = vshrl.u32 %v4825, %v4841
        %v4844 = vor.u32 %v4842, %v4843
        %v4845 = vsub.s32 4294967266, %v4840
        %v4846 = vadd.s32 %v4845, 127
        %v4847 = vshll.u32 %v4846, 23
        %v4848 = vor.u32 4788187, %v4847
        %v4849 = vand.u32 2147483647, %v4848
        %v4851 = vcvt.s32.f32 %v4844
        %v4852 = vmul.f32 %v4851, %v4849
        %v4853 = vxor.u32 %v4852, 2147483648
        %v4854 = vsel %vm4733, %v4853, %v4852
        %v4855 = vsub.s32 4, %v4831
        %v4856 = vsel %vm4733, %v4855, %v4831
        %v4857 = vsel %vm4732, %v541, %v4854
        %v4858 = vsel %vm4732, 0, %v4856
        %v4859 = vmul.f32 %v4857, %v4857
        %v4860 = vmul.f32 %v4859, -0.001358992
        %v4861 = vadd.f32 %v4860, 0.041655596
        %v4862 = vmul.f32 %v4859, %v4861
        %v4863 = vadd.f32 %v4862, -0.4999988
        %v4864 = vmul.f32 %v4859, %v4863
        %v4865 = vadd.f32 1.0, %v4864
        %v4866 = vmul.f32 %v4857, %v4857
        %v4867 = vmul.f32 %v4866, -0.00019511016
        %v4868 = vadd.f32 %v4867, 0.008332121
        %v4869 = vmul.f32 %v4866, %v4868
        %v4870 = vadd.f32 %v4869, -0.16666654
        %v4871 = vmul.f32 %v4866, %v4870
        %v4872 = vadd.f32 %v4871, 1.0
        %v4873 = vmul.f32 %v4872, %v4857
        %vm4874 = vweird.f32 %v541
        %v4875 = vadd.s32 %v4858, 3
        %v4876 = vand.u32 %v4875, 3
        %vm4877 = vcmp.lt.s32.totalorder %v4876, 2
        %vm4878 = vcmp.eq.s32.totalorder %v4876, 0
        %v4879 = vxor.u32 %v4873, 2147483648
        %v4880 = vsel %vm4878, %v4865, %v4879
        %vm4881 = vcmp.eq.s32.totalorder %v4876, 2
        %v4882 = vxor.u32 %v4865, 2147483648
        %v4883 = vsel %vm4881, %v4882, %v4873
        %v4884 = vsel %vm4877, %v4880, %v4883
        %v4885 = vsel %vm4874, nan, %v4884
        %v4886 = vand.u32 2147483647, %v542
        %vm4887 = vcmp.le.f32.partialorder %v4886, 0.7853982
        %vm4888 = vcmp.lt.s32.totalorder %v542, 0
        %v4889 = vand.u32 %v542, 2139095040
        %v4890 = vshrl.u32 %v4889, 23
        %v4891 = vsub.s32 %v4890, 127
        %v4892 = vand.u32 2147483647, %v542
        %v4893 = vand.u32 %v4892, 8388607
        %v4894 = vor.u32 %v4893, 8388608
        %v4895 = vsub.s32 0, %v4894
        %v4896 = vadd.s32 %v4891, 1
        %vm4897 = vcmp.gt.s32.totalorder %v4896, 0
        %v4898 = vsel %vm4897, %v4896, 0
        %v4899 = vshrl.u32 %v4898, 5
        %v4900 = vand.u32 %v4898, 31
        %v4901 = vsub.s32 32, %v4900
        %v4902 = vshrl.u32 683565275, %v4901
        %v4903 = vshll.u32 683565275, %v4900
        %v4904 = vshrl.u32 2475754826, %v4901
        %v4905 = vor.u32 %v4903, %v4904
        %v4906 = vshll.u32 2475754826, %v4900
        %v4907 = vshrl.u32 2131351028, %v4901
        %v4908 = vor.u32 %v4906, %v4907
        %v4909 = vshll.u32 2131351028, %v4900
        %v4910 = vshrl.u32 2102212464, %v4901
        %v4911 = vor.u32 %v4909, %v4910
        %v4912 = vshll.u32 2102212464, %v4900
        %v4913 = vshrl.u32 920167782, %v4901
        %v4914 = vor.u32 %v4912, %v4913
        %v4915 = vshll.u32 920167782, %v4900
        %v4916 = vshrl.u32 1326507024, %v4901
        %v4917 = vor.u32 %v4915, %v4916
        %vm4918 = vcmp.lt.s32.totalorder %v4899, 1
        %vm4919 = vcmp.lt.s32.totalorder %v4899, 2
        %vm4920 = vcmp.lt.s32.totalorder %v4899, 3
        %vm4921 = vcmp.lt.s32.totalorder %v4899, 4
        %v4922 = vsel %vm4918, %v4902, %v4905
        %v4923 = vsel %vm4921, %v4911, 2102212464
        %v4924 = vsel %vm4920, %v4908, %v4923
        %v4925 = vsel %vm4919, %v4922, %v4924
        %v4926 = vsel %vm4918, %v4905, %v4908
        %v4927 = vsel %vm4921, %v4914, 920167782
        %v4928 = vsel %vm4920, %v4911, %v4927
        %v4929 = vsel %vm4919, %v4926, %v4928
        %v4930 = vsel %vm4918, %v4908, %v4911
        %v4931 = vsel %vm4921, %v4917, 1326507024
        %v4932 = vsel %vm4920, %v4914, %v4931
        %v4933 = vsel %vm4919, %v4930, %v4932
        %v4934 = vshll.u32 %v4894, 8
        %v4935 = vand.u32 %v4934, 65535
        %v4936 = vshrl.u32 %v4934, 16
        %v4937 = vand.u32 %v4933, 65535
        %v4938 = vshrl.u32 %v4933, 16
        %v4939 = vmul.u32 %v4935, %v4937
        %v4940 = vmul.u32 %v4935, %v4938
        %v4941 = vmul.u32 %v4936, %v4937
        %v4942 = vmul.u32 %v4936, %v4938
        %v4943 = vshll.u32 %v4940, 16
        %v4944 = vshrl.u32 %v4940, 16
        %v4945 = vshll.u32 %v4941, 16
        %v4946 = vshrl.u32 %v4941, 16
        %vm4947 = vc.u32 %v4939, %v4943
        %v4948 = vsel %vm4947, 1, 0
        %v4949 = vadd.s32 %v4939, %v4943
        %v4950 = vadd.s32 %v4942, %v4948
        %vm4951 = vc.u32 %v4949, %v4945
        %v4952 = vsel %vm4951, 1, 0
        %v4953 = vadd.s32 %v4949, %v4945
        %v4954 = vadd.s32 %v4950, %v4952
        %v4955 = vadd.s32 %v4954, %v4944
        %v4956 = vadd.s32 %v4955, %v4946
        %v4957 = vand.u32 %v4934, 65535
        %v4958 = vshrl.u32 %v4934, 16
        %v4959 = vand.u32 %v4929, 65535
        %v4960 = vshrl.u32 %v4929, 16
        %v4961 = vmul.u32 %v4957, %v4959
        %v4962 = vmul.u32 %v4957, %v4960
        %v4963 = vmul.u32 %v4958, %v4959
        %v4964 = vmul.u32 %v4958, %v4960
        %v4965 = vshll.u32 %v4962, 16
        %v4966 = vshrl.u32 %v4962, 16
        %v4967 = vshll.u32 %v4963, 16
        %v4968 = vshrl.u32 %v4963, 16
        %vm4969 = vc.u32 %v4961, %v4965
        %v4970 = vsel %vm4969, 1, 0
        %v4971 = vadd.s32 %v4961, %v4965
        %v4972 = vadd.s32 %v4964, %v4970
        %vm4973 = vc.u32 %v4971, %v4967
        %v4974 = vsel %vm4973, 1, 0
        %v4975 = vadd.s32 %v4971, %v4967
        %v4976 = vadd.s32 %v4972, %v4974
        %v4977 = vadd.s32 %v4976, %v4966
        %v4978 = vadd.s32 %v4977, %v4968
        %v4979 = vmul.u32 %v4934, %v4925
        %v4980 = vadd.s32 %v4956, %v4975
        %vm4981 = vc.u32 %v4956, %v4975
        %v4982 = vadd.s32 %v4978, 1
        %v4983 = vsel %vm4981, %v4982, %v4978
        %v4984 = vadd.s32 %v4979, %v4983
        %v4985 = vadd.s32 %v4984, 536870912
        %v4986 = vshrl.u32 %v4985, 30
        %v4987 = vshll.u32 %v4986, 30
        %v4988 = vsub.s32 %v4984, %v4987
        %vm4989 = vcmp.lt.s32.totalorder %v4988, 0
        %v4990 = vsub.s32 0, %v4988
        %v4991 = vsel %vm4989, %v4990, %v4988
        %v4992 = vclz %v4991
        %v4993 = vsub.s32 %v4992, 2
        %vm4994 = vcmp.gt.s32.totalorder 0, %v4993
        %v4995 = vsel %vm4994, 0, %v4993
        %v4996 = vsub.s32 32, %v4995
        %v4997 = vshll.u32 %v4988, %v4995
        %v4998 = vshrl.u32 %v4980, %v4996
        %v4999 = vor.u32 %v4997, %v4998
        %v5000 = vsub.s32 4294967266, %v4995
        %v5001 = vadd.s32 %v5000, 127
        %v5002 = vshll.u32 %v5001, 23
        %v5003 = vor.u32 4788187, %v5002
        %v5004 = vand.u32 2147483647, %v5003
        %v5006 = vcvt.s32.f32 %v4999
        %v5007 = vmul.f32 %v5006, %v5004
        %v5008 = vxor.u32 %v5007, 2147483648
        %v5009 = vsel %vm4888, %v5008, %v5007
        %v5010 = vsub.s32 4, %v4986
        %v5011 = vsel %vm4888, %v5010, %v4986
        %v5012 = vsel %vm4887, %v542, %v5009
        %v5013 = vsel %vm4887, 0, %v5011
        %v5014 = vmul.f32 %v5012, %v5012
        %v5015 = vmul.f32 %v5014, -0.001358992
        %v5016 = vadd.f32 %v5015, 0.041655596
        %v5017 = vmul.f32 %v5014, %v5016
        %v5018 = vadd.f32 %v5017, -0.4999988
        %v5019 = vmul.f32 %v5014, %v5018
        %v5020 = vadd.f32 1.0, %v5019
        %v5021 = vmul.f32 %v5012, %v5012
        %v5022 = vmul.f32 %v5021, -0.00019511016
        %v5023 = vadd.f32 %v5022, 0.008332121
        %v5024 = vmul.f32 %v5021, %v5023
        %v5025 = vadd.f32 %v5024, -0.16666654
        %v5026 = vmul.f32 %v5021, %v5025
        %v5027 = vadd.f32 %v5026, 1.0
        %v5028 = vmul.f32 %v5027, %v5012
        %vm5029 = vweird.f32 %v542
        %v5030 = vadd.s32 %v5013, 3
        %v5031 = vand.u32 %v5030, 3
        %vm5032 = vcmp.lt.s32.totalorder %v5031, 2
        %vm5033 = vcmp.eq.s32.totalorder %v5031, 0
        %v5034 = vxor.u32 %v5028, 2147483648
        %v5035 = vsel %vm5033, %v5020, %v5034
        %vm5036 = vcmp.eq.s32.totalorder %v5031, 2
        %v5037 = vxor.u32 %v5020, 2147483648
        %v5038 = vsel %vm5036, %v5037, %v5028
        %v5039 = vsel %vm5032, %v5035, %v5038
        %v5040 = vsel %vm5029, nan, %v5039
        %v5041 = vand.u32 2147483647, %v543
        %vm5042 = vcmp.le.f32.partialorder %v5041, 0.7853982
        %vm5043 = vcmp.lt.s32.totalorder %v543, 0
        %v5044 = vand.u32 %v543, 2139095040
        %v5045 = vshrl.u32 %v5044, 23
        %v5046 = vsub.s32 %v5045, 127
        %v5047 = vand.u32 2147483647, %v543
        %v5048 = vand.u32 %v5047, 8388607
        %v5049 = vor.u32 %v5048, 8388608
        %v5050 = vsub.s32 0, %v5049
        %v5051 = vadd.s32 %v5046, 1
        %vm5052 = vcmp.gt.s32.totalorder %v5051, 0
        %v5053 = vsel %vm5052, %v5051, 0
        %v5054 = vshrl.u32 %v5053, 5
        %v5055 = vand.u32 %v5053, 31
        %v5056 = vsub.s32 32, %v5055
        %v5057 = vshrl.u32 683565275, %v5056
        %v5058 = vshll.u32 683565275, %v5055
        %v5059 = vshrl.u32 2475754826, %v5056
        %v5060 = vor.u32 %v5058, %v5059
        %v5061 = vshll.u32 2475754826, %v5055
        %v5062 = vshrl.u32 2131351028, %v5056
        %v5063 = vor.u32 %v5061, %v5062
        %v5064 = vshll.u32 2131351028, %v5055
        %v5065 = vshrl.u32 2102212464, %v5056
        %v5066 = vor.u32 %v5064, %v5065
        %v5067 = vshll.u32 2102212464, %v5055
        %v5068 = vshrl.u32 920167782, %v5056
        %v5069 = vor.u32 %v5067, %v5068
        %v5070 = vshll.u32 920167782, %v5055
        %v5071 = vshrl.u32 1326507024, %v5056
        %v5072 = vor.u32 %v5070, %v5071
        %vm5073 = vcmp.lt.s32.totalorder %v5054, 1
        %vm5074 = vcmp.lt.s32.totalorder %v5054, 2
        %vm5075 = vcmp.lt.s32.totalorder %v5054, 3
        %vm5076 = vcmp.lt.s32.totalorder %v5054, 4
        %v5077 = vsel %vm5073, %v5057, %v5060
        %v5078 = vsel %vm5076, %v5066, 2102212464
        %v5079 = vsel %vm5075, %v5063, %v5078
        %v5080 = vsel %vm5074, %v5077, %v5079
        %v5081 = vsel %vm5073, %v5060, %v5063
        %v5082 = vsel %vm5076, %v5069, 920167782
        %v5083 = vsel %vm5075, %v5066, %v5082
        %v5084 = vsel %vm5074, %v5081, %v5083
        %v5085 = vsel %vm5073, %v5063, %v5066
        %v5086 = vsel %vm5076, %v5072, 1326507024
        %v5087 = vsel %vm5075, %v5069, %v5086
        %v5088 = vsel %vm5074, %v5085, %v5087
        %v5089 = vshll.u32 %v5049, 8
        %v5090 = vand.u32 %v5089, 65535
        %v5091 = vshrl.u32 %v5089, 16
        %v5092 = vand.u32 %v5088, 65535
        %v5093 = vshrl.u32 %v5088, 16
        %v5094 = vmul.u32 %v5090, %v5092
        %v5095 = vmul.u32 %v5090, %v5093
        %v5096 = vmul.u32 %v5091, %v5092
        %v5097 = vmul.u32 %v5091, %v5093
        %v5098 = vshll.u32 %v5095, 16
        %v5099 = vshrl.u32 %v5095, 16
        %v5100 = vshll.u32 %v5096, 16
        %v5101 = vshrl.u32 %v5096, 16
        %vm5102 = vc.u32 %v5094, %v5098
        %v5103 = vsel %vm5102, 1, 0
        %v5104 = vadd.s32 %v5094, %v5098
        %v5105 = vadd.s32 %v5097, %v5103
        %vm5106 = vc.u32 %v5104, %v5100
        %v5107 = vsel %vm5106, 1, 0
        %v5108 = vadd.s32 %v5104, %v5100
        %v5109 = vadd.s32 %v5105, %v5107
        %v5110 = vadd.s32 %v5109, %v5099
        %v5111 = vadd.s32 %v5110, %v5101
        %v5112 = vand.u32 %v5089, 65535
        %v5113 = vshrl.u32 %v5089, 16
        %v5114 = vand.u32 %v5084, 65535
        %v5115 = vshrl.u32 %v5084, 16
        %v5116 = vmul.u32 %v5112, %v5114
        %v5117 = vmul.u32 %v5112, %v5115
        %v5118 = vmul.u32 %v5113, %v5114
        %v5119 = vmul.u32 %v5113, %v5115
        %v5120 = vshll.u32 %v5117, 16
        %v5121 = vshrl.u32 %v5117, 16
        %v5122 = vshll.u32 %v5118, 16
        %v5123 = vshrl.u32 %v5118, 16
        %vm5124 = vc.u32 %v5116, %v5120
        %v5125 = vsel %vm5124, 1, 0
        %v5126 = vadd.s32 %v5116, %v5120
        %v5127 = vadd.s32 %v5119, %v5125
        %vm5128 = vc.u32 %v5126, %v5122
        %v5129 = vsel %vm5128, 1, 0
        %v5130 = vadd.s32 %v5126, %v5122
        %v5131 = vadd.s32 %v5127, %v5129
        %v5132 = vadd.s32 %v5131, %v5121
        %v5133 = vadd.s32 %v5132, %v5123
        %v5134 = vmul.u32 %v5089, %v5080
        %v5135 = vadd.s32 %v5111, %v5130
        %vm5136 = vc.u32 %v5111, %v5130
        %v5137 = vadd.s32 %v5133, 1
        %v5138 = vsel %vm5136, %v5137, %v5133
        %v5139 = vadd.s32 %v5134, %v5138
        %v5140 = vadd.s32 %v5139, 536870912
        %v5141 = vshrl.u32 %v5140, 30
        %v5142 = vshll.u32 %v5141, 30
        %v5143 = vsub.s32 %v5139, %v5142
        %vm5144 = vcmp.lt.s32.totalorder %v5143, 0
        %v5145 = vsub.s32 0, %v5143
        %v5146 = vsel %vm5144, %v5145, %v5143
        %v5147 = vclz %v5146
        %v5148 = vsub.s32 %v5147, 2
        %vm5149 = vcmp.gt.s32.totalorder 0, %v5148
        %v5150 = vsel %vm5149, 0, %v5148
        %v5151 = vsub.s32 32, %v5150
        %v5152 = vshll.u32 %v5143, %v5150
        %v5153 = vshrl.u32 %v5135, %v5151
        %v5154 = vor.u32 %v5152, %v5153
        %v5155 = vsub.s32 4294967266, %v5150
        %v5156 = vadd.s32 %v5155, 127
        %v5157 = vshll.u32 %v5156, 23
        %v5158 = vor.u32 4788187, %v5157
        %v5159 = vand.u32 2147483647, %v5158
        %v5161 = vcvt.s32.f32 %v5154
        %v5162 = vmul.f32 %v5161, %v5159
        %v5163 = vxor.u32 %v5162, 2147483648
        %v5164 = vsel %vm5043, %v5163, %v5162
        %v5165 = vsub.s32 4, %v5141
        %v5166 = vsel %vm5043, %v5165, %v5141
        %v5167 = vsel %vm5042, %v543, %v5164
        %v5168 = vsel %vm5042, 0, %v5166
        %v5169 = vmul.f32 %v5167, %v5167
        %v5170 = vmul.f32 %v5169, -0.001358992
        %v5171 = vadd.f32 %v5170, 0.041655596
        %v5172 = vmul.f32 %v5169, %v5171
        %v5173 = vadd.f32 %v5172, -0.4999988
        %v5174 = vmul.f32 %v5169, %v5173
        %v5175 = vadd.f32 1.0, %v5174
        %v5176 = vmul.f32 %v5167, %v5167
        %v5177 = vmul.f32 %v5176, -0.00019511016
        %v5178 = vadd.f32 %v5177, 0.008332121
        %v5179 = vmul.f32 %v5176, %v5178
        %v5180 = vadd.f32 %v5179, -0.16666654
        %v5181 = vmul.f32 %v5176, %v5180
        %v5182 = vadd.f32 %v5181, 1.0
        %v5183 = vmul.f32 %v5182, %v5167
        %vm5184 = vweird.f32 %v543
        %v5185 = vadd.s32 %v5168, 3
        %v5186 = vand.u32 %v5185, 3
        %vm5187 = vcmp.lt.s32.totalorder %v5186, 2
        %vm5188 = vcmp.eq.s32.totalorder %v5186, 0
        %v5189 = vxor.u32 %v5183, 2147483648
        %v5190 = vsel %vm5188, %v5175, %v5189
        %vm5191 = vcmp.eq.s32.totalorder %v5186, 2
        %v5192 = vxor.u32 %v5175, 2147483648
        %v5193 = vsel %vm5191, %v5192, %v5183
        %v5194 = vsel %vm5187, %v5190, %v5193
        %v5195 = vsel %vm5184, nan, %v5194
        %v5196 = vand.u32 2147483647, %v544
        %vm5197 = vcmp.le.f32.partialorder %v5196, 0.7853982
        %vm5198 = vcmp.lt.s32.totalorder %v544, 0
        %v5199 = vand.u32 %v544, 2139095040
        %v5200 = vshrl.u32 %v5199, 23
        %v5201 = vsub.s32 %v5200, 127
        %v5202 = vand.u32 2147483647, %v544
        %v5203 = vand.u32 %v5202, 8388607
        %v5204 = vor.u32 %v5203, 8388608
        %v5205 = vsub.s32 0, %v5204
        %v5206 = vadd.s32 %v5201, 1
        %vm5207 = vcmp.gt.s32.totalorder %v5206, 0
        %v5208 = vsel %vm5207, %v5206, 0
        %v5209 = vshrl.u32 %v5208, 5
        %v5210 = vand.u32 %v5208, 31
        %v5211 = vsub.s32 32, %v5210
        %v5212 = vshrl.u32 683565275, %v5211
        %v5213 = vshll.u32 683565275, %v5210
        %v5214 = vshrl.u32 2475754826, %v5211
        %v5215 = vor.u32 %v5213, %v5214
        %v5216 = vshll.u32 2475754826, %v5210
        %v5217 = vshrl.u32 2131351028, %v5211
        %v5218 = vor.u32 %v5216, %v5217
        %v5219 = vshll.u32 2131351028, %v5210
        %v5220 = vshrl.u32 2102212464, %v5211
        %v5221 = vor.u32 %v5219, %v5220
        %v5222 = vshll.u32 2102212464, %v5210
        %v5223 = vshrl.u32 920167782, %v5211
        %v5224 = vor.u32 %v5222, %v5223
        %v5225 = vshll.u32 920167782, %v5210
        %v5226 = vshrl.u32 1326507024, %v5211
        %v5227 = vor.u32 %v5225, %v5226
        %vm5228 = vcmp.lt.s32.totalorder %v5209, 1
        %vm5229 = vcmp.lt.s32.totalorder %v5209, 2
        %vm5230 = vcmp.lt.s32.totalorder %v5209, 3
        %vm5231 = vcmp.lt.s32.totalorder %v5209, 4
        %v5232 = vsel %vm5228, %v5212, %v5215
        %v5233 = vsel %vm5231, %v5221, 2102212464
        %v5234 = vsel %vm5230, %v5218, %v5233
        %v5235 = vsel %vm5229, %v5232, %v5234
        %v5236 = vsel %vm5228, %v5215, %v5218
        %v5237 = vsel %vm5231, %v5224, 920167782
        %v5238 = vsel %vm5230, %v5221, %v5237
        %v5239 = vsel %vm5229, %v5236, %v5238
        %v5240 = vsel %vm5228, %v5218, %v5221
        %v5241 = vsel %vm5231, %v5227, 1326507024
        %v5242 = vsel %vm5230, %v5224, %v5241
        %v5243 = vsel %vm5229, %v5240, %v5242
        %v5244 = vshll.u32 %v5204, 8
        %v5245 = vand.u32 %v5244, 65535
        %v5246 = vshrl.u32 %v5244, 16
        %v5247 = vand.u32 %v5243, 65535
        %v5248 = vshrl.u32 %v5243, 16
        %v5249 = vmul.u32 %v5245, %v5247
        %v5250 = vmul.u32 %v5245, %v5248
        %v5251 = vmul.u32 %v5246, %v5247
        %v5252 = vmul.u32 %v5246, %v5248
        %v5253 = vshll.u32 %v5250, 16
        %v5254 = vshrl.u32 %v5250, 16
        %v5255 = vshll.u32 %v5251, 16
        %v5256 = vshrl.u32 %v5251, 16
        %vm5257 = vc.u32 %v5249, %v5253
        %v5258 = vsel %vm5257, 1, 0
        %v5259 = vadd.s32 %v5249, %v5253
        %v5260 = vadd.s32 %v5252, %v5258
        %vm5261 = vc.u32 %v5259, %v5255
        %v5262 = vsel %vm5261, 1, 0
        %v5263 = vadd.s32 %v5259, %v5255
        %v5264 = vadd.s32 %v5260, %v5262
        %v5265 = vadd.s32 %v5264, %v5254
        %v5266 = vadd.s32 %v5265, %v5256
        %v5267 = vand.u32 %v5244, 65535
        %v5268 = vshrl.u32 %v5244, 16
        %v5269 = vand.u32 %v5239, 65535
        %v5270 = vshrl.u32 %v5239, 16
        %v5271 = vmul.u32 %v5267, %v5269
        %v5272 = vmul.u32 %v5267, %v5270
        %v5273 = vmul.u32 %v5268, %v5269
        %v5274 = vmul.u32 %v5268, %v5270
        %v5275 = vshll.u32 %v5272, 16
        %v5276 = vshrl.u32 %v5272, 16
        %v5277 = vshll.u32 %v5273, 16
        %v5278 = vshrl.u32 %v5273, 16
        %vm5279 = vc.u32 %v5271, %v5275
        %v5280 = vsel %vm5279, 1, 0
        %v5281 = vadd.s32 %v5271, %v5275
        %v5282 = vadd.s32 %v5274, %v5280
        %vm5283 = vc.u32 %v5281, %v5277
        %v5284 = vsel %vm5283, 1, 0
        %v5285 = vadd.s32 %v5281, %v5277
        %v5286 = vadd.s32 %v5282, %v5284
        %v5287 = vadd.s32 %v5286, %v5276
        %v5288 = vadd.s32 %v5287, %v5278
        %v5289 = vmul.u32 %v5244, %v5235
        %v5290 = vadd.s32 %v5266, %v5285
        %vm5291 = vc.u32 %v5266, %v5285
        %v5292 = vadd.s32 %v5288, 1
        %v5293 = vsel %vm5291, %v5292, %v5288
        %v5294 = vadd.s32 %v5289, %v5293
        %v5295 = vadd.s32 %v5294, 536870912
        %v5296 = vshrl.u32 %v5295, 30
        %v5297 = vshll.u32 %v5296, 30
        %v5298 = vsub.s32 %v5294, %v5297
        %vm5299 = vcmp.lt.s32.totalorder %v5298, 0
        %v5300 = vsub.s32 0, %v5298
        %v5301 = vsel %vm5299, %v5300, %v5298
        %v5302 = vclz %v5301
        %v5303 = vsub.s32 %v5302, 2
        %vm5304 = vcmp.gt.s32.totalorder 0, %v5303
        %v5305 = vsel %vm5304, 0, %v5303
        %v5306 = vsub.s32 32, %v5305
        %v5307 = vshll.u32 %v5298, %v5305
        %v5308 = vshrl.u32 %v5290, %v5306
        %v5309 = vor.u32 %v5307, %v5308
        %v5310 = vsub.s32 4294967266, %v5305
        %v5311 = vadd.s32 %v5310, 127
        %v5312 = vshll.u32 %v5311, 23
        %v5313 = vor.u32 4788187, %v5312
        %v5314 = vand.u32 2147483647, %v5313
        %v5316 = vcvt.s32.f32 %v5309
        %v5317 = vmul.f32 %v5316, %v5314
        %v5318 = vxor.u32 %v5317, 2147483648
        %v5319 = vsel %vm5198, %v5318, %v5317
        %v5320 = vsub.s32 4, %v5296
        %v5321 = vsel %vm5198, %v5320, %v5296
        %v5322 = vsel %vm5197, %v544, %v5319
        %v5323 = vsel %vm5197, 0, %v5321
        %v5324 = vmul.f32 %v5322, %v5322
        %v5325 = vmul.f32 %v5324, -0.001358992
        %v5326 = vadd.f32 %v5325, 0.041655596
        %v5327 = vmul.f32 %v5324, %v5326
        %v5328 = vadd.f32 %v5327, -0.4999988
        %v5329 = vmul.f32 %v5324, %v5328
        %v5330 = vadd.f32 1.0, %v5329
        %v5331 = vmul.f32 %v5322, %v5322
        %v5332 = vmul.f32 %v5331, -0.00019511016
        %v5333 = vadd.f32 %v5332, 0.008332121
        %v5334 = vmul.f32 %v5331, %v5333
        %v5335 = vadd.f32 %v5334, -0.16666654
        %v5336 = vmul.f32 %v5331, %v5335
        %v5337 = vadd.f32 %v5336, 1.0
        %v5338 = vmul.f32 %v5337, %v5322
        %vm5339 = vweird.f32 %v544
        %v5340 = vadd.s32 %v5323, 3
        %v5341 = vand.u32 %v5340, 3
        %vm5342 = vcmp.lt.s32.totalorder %v5341, 2
        %vm5343 = vcmp.eq.s32.totalorder %v5341, 0
        %v5344 = vxor.u32 %v5338, 2147483648
        %v5345 = vsel %vm5343, %v5330, %v5344
        %vm5346 = vcmp.eq.s32.totalorder %v5341, 2
        %v5347 = vxor.u32 %v5330, 2147483648
        %v5348 = vsel %vm5346, %v5347, %v5338
        %v5349 = vsel %vm5342, %v5345, %v5348
        %v5350 = vsel %vm5339, nan, %v5349
        %v5351 = vand.u32 2147483647, %v545
        %vm5352 = vcmp.le.f32.partialorder %v5351, 0.7853982
        %vm5353 = vcmp.lt.s32.totalorder %v545, 0
        %v5354 = vand.u32 %v545, 2139095040
        %v5355 = vshrl.u32 %v5354, 23
        %v5356 = vsub.s32 %v5355, 127
        %v5357 = vand.u32 2147483647, %v545
        %v5358 = vand.u32 %v5357, 8388607
        %v5359 = vor.u32 %v5358, 8388608
        %v5360 = vsub.s32 0, %v5359
        %v5361 = vadd.s32 %v5356, 1
        %vm5362 = vcmp.gt.s32.totalorder %v5361, 0
        %v5363 = vsel %vm5362, %v5361, 0
        %v5364 = vshrl.u32 %v5363, 5
        %v5365 = vand.u32 %v5363, 31
        %v5366 = vsub.s32 32, %v5365
        %v5367 = vshrl.u32 683565275, %v5366
        %v5368 = vshll.u32 683565275, %v5365
        %v5369 = vshrl.u32 2475754826, %v5366
        %v5370 = vor.u32 %v5368, %v5369
        %v5371 = vshll.u32 2475754826, %v5365
        %v5372 = vshrl.u32 2131351028, %v5366
        %v5373 = vor.u32 %v5371, %v5372
        %v5374 = vshll.u32 2131351028, %v5365
        %v5375 = vshrl.u32 2102212464, %v5366
        %v5376 = vor.u32 %v5374, %v5375
        %v5377 = vshll.u32 2102212464, %v5365
        %v5378 = vshrl.u32 920167782, %v5366
        %v5379 = vor.u32 %v5377, %v5378
        %v5380 = vshll.u32 920167782, %v5365
        %v5381 = vshrl.u32 1326507024, %v5366
        %v5382 = vor.u32 %v5380, %v5381
        %vm5383 = vcmp.lt.s32.totalorder %v5364, 1
        %vm5384 = vcmp.lt.s32.totalorder %v5364, 2
        %vm5385 = vcmp.lt.s32.totalorder %v5364, 3
        %vm5386 = vcmp.lt.s32.totalorder %v5364, 4
        %v5387 = vsel %vm5383, %v5367, %v5370
        %v5388 = vsel %vm5386, %v5376, 2102212464
        %v5389 = vsel %vm5385, %v5373, %v5388
        %v5390 = vsel %vm5384, %v5387, %v5389
        %v5391 = vsel %vm5383, %v5370, %v5373
        %v5392 = vsel %vm5386, %v5379, 920167782
        %v5393 = vsel %vm5385, %v5376, %v5392
        %v5394 = vsel %vm5384, %v5391, %v5393
        %v5395 = vsel %vm5383, %v5373, %v5376
        %v5396 = vsel %vm5386, %v5382, 1326507024
        %v5397 = vsel %vm5385, %v5379, %v5396
        %v5398 = vsel %vm5384, %v5395, %v5397
        %v5399 = vshll.u32 %v5359, 8
        %v5400 = vand.u32 %v5399, 65535
        %v5401 = vshrl.u32 %v5399, 16
        %v5402 = vand.u32 %v5398, 65535
        %v5403 = vshrl.u32 %v5398, 16
        %v5404 = vmul.u32 %v5400, %v5402
        %v5405 = vmul.u32 %v5400, %v5403
        %v5406 = vmul.u32 %v5401, %v5402
        %v5407 = vmul.u32 %v5401, %v5403
        %v5408 = vshll.u32 %v5405, 16
        %v5409 = vshrl.u32 %v5405, 16
        %v5410 = vshll.u32 %v5406, 16
        %v5411 = vshrl.u32 %v5406, 16
        %vm5412 = vc.u32 %v5404, %v5408
        %v5413 = vsel %vm5412, 1, 0
        %v5414 = vadd.s32 %v5404, %v5408
        %v5415 = vadd.s32 %v5407, %v5413
        %vm5416 = vc.u32 %v5414, %v5410
        %v5417 = vsel %vm5416, 1, 0
        %v5418 = vadd.s32 %v5414, %v5410
        %v5419 = vadd.s32 %v5415, %v5417
        %v5420 = vadd.s32 %v5419, %v5409
        %v5421 = vadd.s32 %v5420, %v5411
        %v5422 = vand.u32 %v5399, 65535
        %v5423 = vshrl.u32 %v5399, 16
        %v5424 = vand.u32 %v5394, 65535
        %v5425 = vshrl.u32 %v5394, 16
        %v5426 = vmul.u32 %v5422, %v5424
        %v5427 = vmul.u32 %v5422, %v5425
        %v5428 = vmul.u32 %v5423, %v5424
        %v5429 = vmul.u32 %v5423, %v5425
        %v5430 = vshll.u32 %v5427, 16
        %v5431 = vshrl.u32 %v5427, 16
        %v5432 = vshll.u32 %v5428, 16
        %v5433 = vshrl.u32 %v5428, 16
        %vm5434 = vc.u32 %v5426, %v5430
        %v5435 = vsel %vm5434, 1, 0
        %v5436 = vadd.s32 %v5426, %v5430
        %v5437 = vadd.s32 %v5429, %v5435
        %vm5438 = vc.u32 %v5436, %v5432
        %v5439 = vsel %vm5438, 1, 0
        %v5440 = vadd.s32 %v5436, %v5432
        %v5441 = vadd.s32 %v5437, %v5439
        %v5442 = vadd.s32 %v5441, %v5431
        %v5443 = vadd.s32 %v5442, %v5433
        %v5444 = vmul.u32 %v5399, %v5390
        %v5445 = vadd.s32 %v5421, %v5440
        %vm5446 = vc.u32 %v5421, %v5440
        %v5447 = vadd.s32 %v5443, 1
        %v5448 = vsel %vm5446, %v5447, %v5443
        %v5449 = vadd.s32 %v5444, %v5448
        %v5450 = vadd.s32 %v5449, 536870912
        %v5451 = vshrl.u32 %v5450, 30
        %v5452 = vshll.u32 %v5451, 30
        %v5453 = vsub.s32 %v5449, %v5452
        %vm5454 = vcmp.lt.s32.totalorder %v5453, 0
        %v5455 = vsub.s32 0, %v5453
        %v5456 = vsel %vm5454, %v5455, %v5453
        %v5457 = vclz %v5456
        %v5458 = vsub.s32 %v5457, 2
        %vm5459 = vcmp.gt.s32.totalorder 0, %v5458
        %v5460 = vsel %vm5459, 0, %v5458
        %v5461 = vsub.s32 32, %v5460
        %v5462 = vshll.u32 %v5453, %v5460
        %v5463 = vshrl.u32 %v5445, %v5461
        %v5464 = vor.u32 %v5462, %v5463
        %v5465 = vsub.s32 4294967266, %v5460
        %v5466 = vadd.s32 %v5465, 127
        %v5467 = vshll.u32 %v5466, 23
        %v5468 = vor.u32 4788187, %v5467
        %v5469 = vand.u32 2147483647, %v5468
        %v5471 = vcvt.s32.f32 %v5464
        %v5472 = vmul.f32 %v5471, %v5469
        %v5473 = vxor.u32 %v5472, 2147483648
        %v5474 = vsel %vm5353, %v5473, %v5472
        %v5475 = vsub.s32 4, %v5451
        %v5476 = vsel %vm5353, %v5475, %v5451
        %v5477 = vsel %vm5352, %v545, %v5474
        %v5478 = vsel %vm5352, 0, %v5476
        %v5479 = vmul.f32 %v5477, %v5477
        %v5480 = vmul.f32 %v5479, -0.001358992
        %v5481 = vadd.f32 %v5480, 0.041655596
        %v5482 = vmul.f32 %v5479, %v5481
        %v5483 = vadd.f32 %v5482, -0.4999988
        %v5484 = vmul.f32 %v5479, %v5483
        %v5485 = vadd.f32 1.0, %v5484
        %v5486 = vmul.f32 %v5477, %v5477
        %v5487 = vmul.f32 %v5486, -0.00019511016
        %v5488 = vadd.f32 %v5487, 0.008332121
        %v5489 = vmul.f32 %v5486, %v5488
        %v5490 = vadd.f32 %v5489, -0.16666654
        %v5491 = vmul.f32 %v5486, %v5490
        %v5492 = vadd.f32 %v5491, 1.0
        %v5493 = vmul.f32 %v5492, %v5477
        %vm5494 = vweird.f32 %v545
        %v5495 = vadd.s32 %v5478, 3
        %v5496 = vand.u32 %v5495, 3
        %vm5497 = vcmp.lt.s32.totalorder %v5496, 2
        %vm5498 = vcmp.eq.s32.totalorder %v5496, 0
        %v5499 = vxor.u32 %v5493, 2147483648
        %v5500 = vsel %vm5498, %v5485, %v5499
        %vm5501 = vcmp.eq.s32.totalorder %v5496, 2
        %v5502 = vxor.u32 %v5485, 2147483648
        %v5503 = vsel %vm5501, %v5502, %v5493
        %v5504 = vsel %vm5497, %v5500, %v5503
        %v5505 = vsel %vm5494, nan, %v5504
        %v5506 = vld [vmem:[%s4] sm:$0xff]
        %v5507 = vld [vmem:[%s4 + $0x8] sm:$0xff]
        %v5508 = vld [vmem:[%s4 + $0x10] sm:$0xff]
        %v5509 = vld [vmem:[%s4 + $0x18] sm:$0xff]
        %v5510 = vld [vmem:[%s5] sm:$0xff]
        %v5511 = vld [vmem:[%s5 + $0x8] sm:$0xff]
        %v5512 = vld [vmem:[%s5 + $0x10] sm:$0xff]
        %v5513 = vld [vmem:[%s5 + $0x18] sm:$0xff]
        %5515 = vset.pattern.permute.xlu0 0
        %5516 = vperm.xlu0 %5515, %v5510
        %v5517 = vpop.permute.xlu0 %5516
        %5520 = vset.pattern.permute.xlu0 0
        %5521 = vperm.xlu0 %5520, %v5511
        %v5522 = vpop.permute.xlu0 %5521
        %5525 = vset.pattern.permute.xlu0 0
        %5526 = vperm.xlu0 %5525, %v5512
        %v5527 = vpop.permute.xlu0 %5526
        %5530 = vset.pattern.permute.xlu0 0
        %5531 = vperm.xlu0 %5530, %v5513
        %v5532 = vpop.permute.xlu0 %5531
        %vm5534 = vcmask 261120
        %v5536 = vsel %vm5534, %v5506, 0
        %v5539 = vsel %vm5534, %v5507, 0
        %v5542 = vsel %vm5534, %v5508, 0
        %v5545 = vsel %vm5534, %v5509, 0
        %5547 = vmatpush.msra.mxu0 0.0
        %5548 = vmatpush.msra.mxu0 0.0
        %5549 = vmatpush.msra.mxu0 0.0
        %5550 = vmatpush.msra.mxu0 0.0
        %5551 = vmatpush.msra.mxu0 0.0
        %5552 = vmatpush.msra.mxu0 0.0
        %5553 = vmatpush.msra.mxu0 0.0
        %5554 = vmatpush.msra.mxu0 0.0
        %5555 = vmatpush.msra.mxu0 0.0
        %5556 = vmatpush.msra.mxu0 0.0
        %5557 = vmatpush.msra.mxu0 0.0
        %5558 = vmatpush.msra.mxu0 0.0
        %5559 = vmatpush.msra.mxu0 %v4420
        %5560 = vmatpush.msra.mxu0 %v3180
        %5561 = vmatpush.msra.mxu0 %v1940
        %5562 = vmatpush.msra.mxu0 %v700
        %5563 = vmatmul.f32.gmra.mxu0 %v5536
        %v5564 = vpop.f32.mrf.mxu0
        %v5565 = vadd.f32 %v5517, %v5564
        %5566 = vmatmul.f32.gmra.mxu0 %v5539
        %v5567 = vpop.f32.mrf.mxu0
        %v5568 = vadd.f32 %v5522, %v5567
        %5569 = vmatmul.f32.gmra.mxu0 %v5542
        %v5570 = vpop.f32.mrf.mxu0
        %v5571 = vadd.f32 %v5527, %v5570
        %5572 = vmatmul.f32.gmra.mxu0 %v5545
        %v5573 = vpop.f32.mrf.mxu0
        %v5574 = vadd.f32 %v5532, %v5573
        %5575 = vdwg.mxu0
        %5576 = vmatpush.msra.mxu0 0.0
        %5577 = vmatpush.msra.mxu0 0.0
        %5578 = vmatpush.msra.mxu0 0.0
        %5579 = vmatpush.msra.mxu0 0.0
        %5580 = vmatpush.msra.mxu0 0.0
        %5581 = vmatpush.msra.mxu0 0.0
        %5582 = vmatpush.msra.mxu0 0.0
        %5583 = vmatpush.msra.mxu0 0.0
        %5584 = vmatpush.msra.mxu0 0.0
        %5585 = vmatpush.msra.mxu0 0.0
        %5586 = vmatpush.msra.mxu0 0.0
        %5587 = vmatpush.msra.mxu0 0.0
        %5588 = vmatpush.msra.mxu0 %v4575
        %5589 = vmatpush.msra.mxu0 %v3335
        %5590 = vmatpush.msra.mxu0 %v2095
        %5591 = vmatpush.msra.mxu0 %v855
        %5592 = vmatmul.f32.gmra.mxu0 %v5536
        %v5593 = vpop.f32.mrf.mxu0
        %v5594 = vadd.f32 %v5517, %v5593
        %5595 = vmatmul.f32.gmra.mxu0 %v5539
        %v5596 = vpop.f32.mrf.mxu0
        %v5597 = vadd.f32 %v5522, %v5596
        %5598 = vmatmul.f32.gmra.mxu0 %v5542
        %v5599 = vpop.f32.mrf.mxu0
        %v5600 = vadd.f32 %v5527, %v5599
        %5601 = vmatmul.f32.gmra.mxu0 %v5545
        %v5602 = vpop.f32.mrf.mxu0
        %v5603 = vadd.f32 %v5532, %v5602
        %5604 = vdwg.mxu0
        %5605 = vmatpush.msra.mxu0 0.0
        %5606 = vmatpush.msra.mxu0 0.0
        %5607 = vmatpush.msra.mxu0 0.0
        %5608 = vmatpush.msra.mxu0 0.0
        %5609 = vmatpush.msra.mxu0 0.0
        %5610 = vmatpush.msra.mxu0 0.0
        %5611 = vmatpush.msra.mxu0 0.0
        %5612 = vmatpush.msra.mxu0 0.0
        %5613 = vmatpush.msra.mxu0 0.0
        %5614 = vmatpush.msra.mxu0 0.0
        %5615 = vmatpush.msra.mxu0 0.0
        %5616 = vmatpush.msra.mxu0 0.0
        %5617 = vmatpush.msra.mxu0 %v4730
        %5618 = vmatpush.msra.mxu0 %v3490
        %5619 = vmatpush.msra.mxu0 %v2250
        %5620 = vmatpush.msra.mxu0 %v1010
        %5621 = vmatmul.f32.gmra.mxu0 %v5536
        %v5622 = vpop.f32.mrf.mxu0
        %v5623 = vadd.f32 %v5517, %v5622
        %5624 = vmatmul.f32.gmra.mxu0 %v5539
        %v5625 = vpop.f32.mrf.mxu0
        %v5626 = vadd.f32 %v5522, %v5625
        %5627 = vmatmul.f32.gmra.mxu0 %v5542
        %v5628 = vpop.f32.mrf.mxu0
        %v5629 = vadd.f32 %v5527, %v5628
        %5630 = vmatmul.f32.gmra.mxu0 %v5545
        %v5631 = vpop.f32.mrf.mxu0
        %v5632 = vadd.f32 %v5532, %v5631
        %5633 = vdwg.mxu0
        %5634 = vmatpush.msra.mxu0 0.0
        %5635 = vmatpush.msra.mxu0 0.0
        %5636 = vmatpush.msra.mxu0 0.0
        %5637 = vmatpush.msra.mxu0 0.0
        %5638 = vmatpush.msra.mxu0 0.0
        %5639 = vmatpush.msra.mxu0 0.0
        %5640 = vmatpush.msra.mxu0 0.0
        %5641 = vmatpush.msra.mxu0 0.0
        %5642 = vmatpush.msra.mxu0 0.0
        %5643 = vmatpush.msra.mxu0 0.0
        %5644 = vmatpush.msra.mxu0 0.0
        %5645 = vmatpush.msra.mxu0 0.0
        %5646 = vmatpush.msra.mxu0 %v4885
        %5647 = vmatpush.msra.mxu0 %v3645
        %5648 = vmatpush.msra.mxu0 %v2405
        %5649 = vmatpush.msra.mxu0 %v1165
        %5650 = vmatmul.f32.gmra.mxu0 %v5536
        %v5651 = vpop.f32.mrf.mxu0
        %v5652 = vadd.f32 %v5517, %v5651
        %5653 = vmatmul.f32.gmra.mxu0 %v5539
        %v5654 = vpop.f32.mrf.mxu0
        %v5655 = vadd.f32 %v5522, %v5654
        %5656 = vmatmul.f32.gmra.mxu0 %v5542
        %v5657 = vpop.f32.mrf.mxu0
        %v5658 = vadd.f32 %v5527, %v5657
        %5659 = vmatmul.f32.gmra.mxu0 %v5545
        %v5660 = vpop.f32.mrf.mxu0
        %v5661 = vadd.f32 %v5532, %v5660
        %5662 = vdwg.mxu0
        %5663 = vmatpush.msra.mxu0 0.0
        %5664 = vmatpush.msra.mxu0 0.0
        %5665 = vmatpush.msra.mxu0 0.0
        %5666 = vmatpush.msra.mxu0 0.0
        %5667 = vmatpush.msra.mxu0 0.0
        %5668 = vmatpush.msra.mxu0 0.0
        %5669 = vmatpush.msra.mxu0 0.0
        %5670 = vmatpush.msra.mxu0 0.0
        %5671 = vmatpush.msra.mxu0 0.0
        %5672 = vmatpush.msra.mxu0 0.0
        %5673 = vmatpush.msra.mxu0 0.0
        %5674 = vmatpush.msra.mxu0 0.0
        %5675 = vmatpush.msra.mxu0 %v5040
        %5676 = vmatpush.msra.mxu0 %v3800
        %5677 = vmatpush.msra.mxu0 %v2560
        %5678 = vmatpush.msra.mxu0 %v1320
        %5679 = vmatmul.f32.gmra.mxu0 %v5536
        %v5680 = vpop.f32.mrf.mxu0
        %v5681 = vadd.f32 %v5517, %v5680
        %5682 = vmatmul.f32.gmra.mxu0 %v5539
        %v5683 = vpop.f32.mrf.mxu0
        %v5684 = vadd.f32 %v5522, %v5683
        %5685 = vmatmul.f32.gmra.mxu0 %v5542
        %v5686 = vpop.f32.mrf.mxu0
        %v5687 = vadd.f32 %v5527, %v5686
        %5688 = vmatmul.f32.gmra.mxu0 %v5545
        %v5689 = vpop.f32.mrf.mxu0
        %v5690 = vadd.f32 %v5532, %v5689
        %5691 = vdwg.mxu0
        %5692 = vmatpush.msra.mxu0 0.0
        %5693 = vmatpush.msra.mxu0 0.0
        %5694 = vmatpush.msra.mxu0 0.0
        %5695 = vmatpush.msra.mxu0 0.0
        %5696 = vmatpush.msra.mxu0 0.0
        %5697 = vmatpush.msra.mxu0 0.0
        %5698 = vmatpush.msra.mxu0 0.0
        %5699 = vmatpush.msra.mxu0 0.0
        %5700 = vmatpush.msra.mxu0 0.0
        %5701 = vmatpush.msra.mxu0 0.0
        %5702 = vmatpush.msra.mxu0 0.0
        %5703 = vmatpush.msra.mxu0 0.0
        %5704 = vmatpush.msra.mxu0 %v5195
        %5705 = vmatpush.msra.mxu0 %v3955
        %5706 = vmatpush.msra.mxu0 %v2715
        %5707 = vmatpush.msra.mxu0 %v1475
        %5708 = vmatmul.f32.gmra.mxu0 %v5536
        %v5709 = vpop.f32.mrf.mxu0
        %v5710 = vadd.f32 %v5517, %v5709
        %5711 = vmatmul.f32.gmra.mxu0 %v5539
        %v5712 = vpop.f32.mrf.mxu0
        %v5713 = vadd.f32 %v5522, %v5712
        %5714 = vmatmul.f32.gmra.mxu0 %v5542
        %v5715 = vpop.f32.mrf.mxu0
        %v5716 = vadd.f32 %v5527, %v5715
        %5717 = vmatmul.f32.gmra.mxu0 %v5545
        %v5718 = vpop.f32.mrf.mxu0
        %v5719 = vadd.f32 %v5532, %v5718
        %5720 = vdwg.mxu0
        %5721 = vmatpush.msra.mxu0 0.0
        %5722 = vmatpush.msra.mxu0 0.0
        %5723 = vmatpush.msra.mxu0 0.0
        %5724 = vmatpush.msra.mxu0 0.0
        %5725 = vmatpush.msra.mxu0 0.0
        %5726 = vmatpush.msra.mxu0 0.0
        %5727 = vmatpush.msra.mxu0 0.0
        %5728 = vmatpush.msra.mxu0 0.0
        %5729 = vmatpush.msra.mxu0 0.0
        %5730 = vmatpush.msra.mxu0 0.0
        %5731 = vmatpush.msra.mxu0 0.0
        %5732 = vmatpush.msra.mxu0 0.0
        %5733 = vmatpush.msra.mxu0 %v5350
        %5734 = vmatpush.msra.mxu0 %v4110
        %5735 = vmatpush.msra.mxu0 %v2870
        %5736 = vmatpush.msra.mxu0 %v1630
        %5737 = vmatmul.f32.gmra.mxu0 %v5536
        %v5738 = vpop.f32.mrf.mxu0
        %v5739 = vadd.f32 %v5517, %v5738
        %5740 = vmatmul.f32.gmra.mxu0 %v5539
        %v5741 = vpop.f32.mrf.mxu0
        %v5742 = vadd.f32 %v5522, %v5741
        %5743 = vmatmul.f32.gmra.mxu0 %v5542
        %v5744 = vpop.f32.mrf.mxu0
        %v5745 = vadd.f32 %v5527, %v5744
        %5746 = vmatmul.f32.gmra.mxu0 %v5545
        %v5747 = vpop.f32.mrf.mxu0
        %v5748 = vadd.f32 %v5532, %v5747
        %5749 = vdwg.mxu0
        %5750 = vmatpush.msra.mxu0 0.0
        %5751 = vmatpush.msra.mxu0 0.0
        %5752 = vmatpush.msra.mxu0 0.0
        %5753 = vmatpush.msra.mxu0 0.0
        %5754 = vmatpush.msra.mxu0 0.0
        %5755 = vmatpush.msra.mxu0 0.0
        %5756 = vmatpush.msra.mxu0 0.0
        %5757 = vmatpush.msra.mxu0 0.0
        %5758 = vmatpush.msra.mxu0 0.0
        %5759 = vmatpush.msra.mxu0 0.0
        %5760 = vmatpush.msra.mxu0 0.0
        %5761 = vmatpush.msra.mxu0 0.0
        %5762 = vmatpush.msra.mxu0 %v5505
        %5763 = vmatpush.msra.mxu0 %v4265
        %5764 = vmatpush.msra.mxu0 %v3025
        %5765 = vmatpush.msra.mxu0 %v1785
        %5766 = vmatmul.f32.gmra.mxu0 %v5536
        %v5767 = vpop.f32.mrf.mxu0
        %v5768 = vadd.f32 %v5517, %v5767
        %5769 = vmatmul.f32.gmra.mxu0 %v5539
        %v5770 = vpop.f32.mrf.mxu0
        %v5771 = vadd.f32 %v5522, %v5770
        %5772 = vmatmul.f32.gmra.mxu0 %v5542
        %v5773 = vpop.f32.mrf.mxu0
        %v5774 = vadd.f32 %v5527, %v5773
        %5775 = vmatmul.f32.gmra.mxu0 %v5545
        %v5776 = vpop.f32.mrf.mxu0
        %v5777 = vadd.f32 %v5532, %v5776
        %5778 = vdwg.mxu0
        %v5779 = vand.u32 2147483647, %v5565
        %vm5780 = vcmp.le.f32.partialorder %v5779, 0.7853982
        %vm5781 = vcmp.lt.s32.totalorder %v5565, 0
        %v5782 = vand.u32 %v5565, 2139095040
        %v5783 = vshrl.u32 %v5782, 23
        %v5784 = vsub.s32 %v5783, 127
        %v5785 = vand.u32 2147483647, %v5565
        %v5786 = vand.u32 %v5785, 8388607
        %v5787 = vor.u32 %v5786, 8388608
        %v5788 = vsub.s32 0, %v5787
        %v5789 = vadd.s32 %v5784, 1
        %vm5790 = vcmp.gt.s32.totalorder %v5789, 0
        %v5791 = vsel %vm5790, %v5789, 0
        %v5792 = vshrl.u32 %v5791, 5
        %v5793 = vand.u32 %v5791, 31
        %v5794 = vsub.s32 32, %v5793
        %v5795 = vshrl.u32 683565275, %v5794
        %v5796 = vshll.u32 683565275, %v5793
        %v5797 = vshrl.u32 2475754826, %v5794
        %v5798 = vor.u32 %v5796, %v5797
        %v5799 = vshll.u32 2475754826, %v5793
        %v5800 = vshrl.u32 2131351028, %v5794
        %v5801 = vor.u32 %v5799, %v5800
        %v5802 = vshll.u32 2131351028, %v5793
        %v5803 = vshrl.u32 2102212464, %v5794
        %v5804 = vor.u32 %v5802, %v5803
        %v5805 = vshll.u32 2102212464, %v5793
        %v5806 = vshrl.u32 920167782, %v5794
        %v5807 = vor.u32 %v5805, %v5806
        %v5808 = vshll.u32 920167782, %v5793
        %v5809 = vshrl.u32 1326507024, %v5794
        %v5810 = vor.u32 %v5808, %v5809
        %vm5811 = vcmp.lt.s32.totalorder %v5792, 1
        %vm5812 = vcmp.lt.s32.totalorder %v5792, 2
        %vm5813 = vcmp.lt.s32.totalorder %v5792, 3
        %vm5814 = vcmp.lt.s32.totalorder %v5792, 4
        %v5815 = vsel %vm5811, %v5795, %v5798
        %v5816 = vsel %vm5814, %v5804, 2102212464
        %v5817 = vsel %vm5813, %v5801, %v5816
        %v5818 = vsel %vm5812, %v5815, %v5817
        %v5819 = vsel %vm5811, %v5798, %v5801
        %v5820 = vsel %vm5814, %v5807, 920167782
        %v5821 = vsel %vm5813, %v5804, %v5820
        %v5822 = vsel %vm5812, %v5819, %v5821
        %v5823 = vsel %vm5811, %v5801, %v5804
        %v5824 = vsel %vm5814, %v5810, 1326507024
        %v5825 = vsel %vm5813, %v5807, %v5824
        %v5826 = vsel %vm5812, %v5823, %v5825
        %v5827 = vshll.u32 %v5787, 8
        %v5828 = vand.u32 %v5827, 65535
        %v5829 = vshrl.u32 %v5827, 16
        %v5830 = vand.u32 %v5826, 65535
        %v5831 = vshrl.u32 %v5826, 16
        %v5832 = vmul.u32 %v5828, %v5830
        %v5833 = vmul.u32 %v5828, %v5831
        %v5834 = vmul.u32 %v5829, %v5830
        %v5835 = vmul.u32 %v5829, %v5831
        %v5836 = vshll.u32 %v5833, 16
        %v5837 = vshrl.u32 %v5833, 16
        %v5838 = vshll.u32 %v5834, 16
        %v5839 = vshrl.u32 %v5834, 16
        %vm5840 = vc.u32 %v5832, %v5836
        %v5841 = vsel %vm5840, 1, 0
        %v5842 = vadd.s32 %v5832, %v5836
        %v5843 = vadd.s32 %v5835, %v5841
        %vm5844 = vc.u32 %v5842, %v5838
        %v5845 = vsel %vm5844, 1, 0
        %v5846 = vadd.s32 %v5842, %v5838
        %v5847 = vadd.s32 %v5843, %v5845
        %v5848 = vadd.s32 %v5847, %v5837
        %v5849 = vadd.s32 %v5848, %v5839
        %v5850 = vand.u32 %v5827, 65535
        %v5851 = vshrl.u32 %v5827, 16
        %v5852 = vand.u32 %v5822, 65535
        %v5853 = vshrl.u32 %v5822, 16
        %v5854 = vmul.u32 %v5850, %v5852
        %v5855 = vmul.u32 %v5850, %v5853
        %v5856 = vmul.u32 %v5851, %v5852
        %v5857 = vmul.u32 %v5851, %v5853
        %v5858 = vshll.u32 %v5855, 16
        %v5859 = vshrl.u32 %v5855, 16
        %v5860 = vshll.u32 %v5856, 16
        %v5861 = vshrl.u32 %v5856, 16
        %vm5862 = vc.u32 %v5854, %v5858
        %v5863 = vsel %vm5862, 1, 0
        %v5864 = vadd.s32 %v5854, %v5858
        %v5865 = vadd.s32 %v5857, %v5863
        %vm5866 = vc.u32 %v5864, %v5860
        %v5867 = vsel %vm5866, 1, 0
        %v5868 = vadd.s32 %v5864, %v5860
        %v5869 = vadd.s32 %v5865, %v5867
        %v5870 = vadd.s32 %v5869, %v5859
        %v5871 = vadd.s32 %v5870, %v5861
        %v5872 = vmul.u32 %v5827, %v5818
        %v5873 = vadd.s32 %v5849, %v5868
        %vm5874 = vc.u32 %v5849, %v5868
        %v5875 = vadd.s32 %v5871, 1
        %v5876 = vsel %vm5874, %v5875, %v5871
        %v5877 = vadd.s32 %v5872, %v5876
        %v5878 = vadd.s32 %v5877, 536870912
        %v5879 = vshrl.u32 %v5878, 30
        %v5880 = vshll.u32 %v5879, 30
        %v5881 = vsub.s32 %v5877, %v5880
        %vm5882 = vcmp.lt.s32.totalorder %v5881, 0
        %v5883 = vsub.s32 0, %v5881
        %v5884 = vsel %vm5882, %v5883, %v5881
        %v5885 = vclz %v5884
        %v5886 = vsub.s32 %v5885, 2
        %vm5887 = vcmp.gt.s32.totalorder 0, %v5886
        %v5888 = vsel %vm5887, 0, %v5886
        %v5889 = vsub.s32 32, %v5888
        %v5890 = vshll.u32 %v5881, %v5888
        %v5891 = vshrl.u32 %v5873, %v5889
        %v5892 = vor.u32 %v5890, %v5891
        %v5893 = vsub.s32 4294967266, %v5888
        %v5894 = vadd.s32 %v5893, 127
        %v5895 = vshll.u32 %v5894, 23
        %v5896 = vor.u32 4788187, %v5895
        %v5897 = vand.u32 2147483647, %v5896
        %v5899 = vcvt.s32.f32 %v5892
        %v5900 = vmul.f32 %v5899, %v5897
        %v5901 = vxor.u32 %v5900, 2147483648
        %v5902 = vsel %vm5781, %v5901, %v5900
        %v5903 = vsub.s32 4, %v5879
        %v5904 = vsel %vm5781, %v5903, %v5879
        %v5905 = vsel %vm5780, %v5565, %v5902
        %v5906 = vsel %vm5780, 0, %v5904
        %v5907 = vmul.f32 %v5905, %v5905
        %v5908 = vmul.f32 %v5907, -0.001358992
        %v5909 = vadd.f32 %v5908, 0.041655596
        %v5910 = vmul.f32 %v5907, %v5909
        %v5911 = vadd.f32 %v5910, -0.4999988
        %v5912 = vmul.f32 %v5907, %v5911
        %v5913 = vadd.f32 1.0, %v5912
        %v5914 = vmul.f32 %v5905, %v5905
        %v5915 = vmul.f32 %v5914, -0.00019511016
        %v5916 = vadd.f32 %v5915, 0.008332121
        %v5917 = vmul.f32 %v5914, %v5916
        %v5918 = vadd.f32 %v5917, -0.16666654
        %v5919 = vmul.f32 %v5914, %v5918
        %v5920 = vadd.f32 %v5919, 1.0
        %v5921 = vmul.f32 %v5920, %v5905
        %vm5922 = vweird.f32 %v5565
        %v5923 = vadd.s32 %v5906, 3
        %v5924 = vand.u32 %v5923, 3
        %vm5925 = vcmp.lt.s32.totalorder %v5924, 2
        %vm5926 = vcmp.eq.s32.totalorder %v5924, 0
        %v5927 = vxor.u32 %v5921, 2147483648
        %v5928 = vsel %vm5926, %v5913, %v5927
        %vm5929 = vcmp.eq.s32.totalorder %v5924, 2
        %v5930 = vxor.u32 %v5913, 2147483648
        %v5931 = vsel %vm5929, %v5930, %v5921
        %v5932 = vsel %vm5925, %v5928, %v5931
        %v5933 = vsel %vm5922, nan, %v5932
        %v5934 = vand.u32 2147483647, %v5594
        %vm5935 = vcmp.le.f32.partialorder %v5934, 0.7853982
        %vm5936 = vcmp.lt.s32.totalorder %v5594, 0
        %v5937 = vand.u32 %v5594, 2139095040
        %v5938 = vshrl.u32 %v5937, 23
        %v5939 = vsub.s32 %v5938, 127
        %v5940 = vand.u32 2147483647, %v5594
        %v5941 = vand.u32 %v5940, 8388607
        %v5942 = vor.u32 %v5941, 8388608
        %v5943 = vsub.s32 0, %v5942
        %v5944 = vadd.s32 %v5939, 1
        %vm5945 = vcmp.gt.s32.totalorder %v5944, 0
        %v5946 = vsel %vm5945, %v5944, 0
        %v5947 = vshrl.u32 %v5946, 5
        %v5948 = vand.u32 %v5946, 31
        %v5949 = vsub.s32 32, %v5948
        %v5950 = vshrl.u32 683565275, %v5949
        %v5951 = vshll.u32 683565275, %v5948
        %v5952 = vshrl.u32 2475754826, %v5949
        %v5953 = vor.u32 %v5951, %v5952
        %v5954 = vshll.u32 2475754826, %v5948
        %v5955 = vshrl.u32 2131351028, %v5949
        %v5956 = vor.u32 %v5954, %v5955
        %v5957 = vshll.u32 2131351028, %v5948
        %v5958 = vshrl.u32 2102212464, %v5949
        %v5959 = vor.u32 %v5957, %v5958
        %v5960 = vshll.u32 2102212464, %v5948
        %v5961 = vshrl.u32 920167782, %v5949
        %v5962 = vor.u32 %v5960, %v5961
        %v5963 = vshll.u32 920167782, %v5948
        %v5964 = vshrl.u32 1326507024, %v5949
        %v5965 = vor.u32 %v5963, %v5964
        %vm5966 = vcmp.lt.s32.totalorder %v5947, 1
        %vm5967 = vcmp.lt.s32.totalorder %v5947, 2
        %vm5968 = vcmp.lt.s32.totalorder %v5947, 3
        %vm5969 = vcmp.lt.s32.totalorder %v5947, 4
        %v5970 = vsel %vm5966, %v5950, %v5953
        %v5971 = vsel %vm5969, %v5959, 2102212464
        %v5972 = vsel %vm5968, %v5956, %v5971
        %v5973 = vsel %vm5967, %v5970, %v5972
        %v5974 = vsel %vm5966, %v5953, %v5956
        %v5975 = vsel %vm5969, %v5962, 920167782
        %v5976 = vsel %vm5968, %v5959, %v5975
        %v5977 = vsel %vm5967, %v5974, %v5976
        %v5978 = vsel %vm5966, %v5956, %v5959
        %v5979 = vsel %vm5969, %v5965, 1326507024
        %v5980 = vsel %vm5968, %v5962, %v5979
        %v5981 = vsel %vm5967, %v5978, %v5980
        %v5982 = vshll.u32 %v5942, 8
        %v5983 = vand.u32 %v5982, 65535
        %v5984 = vshrl.u32 %v5982, 16
        %v5985 = vand.u32 %v5981, 65535
        %v5986 = vshrl.u32 %v5981, 16
        %v5987 = vmul.u32 %v5983, %v5985
        %v5988 = vmul.u32 %v5983, %v5986
        %v5989 = vmul.u32 %v5984, %v5985
        %v5990 = vmul.u32 %v5984, %v5986
        %v5991 = vshll.u32 %v5988, 16
        %v5992 = vshrl.u32 %v5988, 16
        %v5993 = vshll.u32 %v5989, 16
        %v5994 = vshrl.u32 %v5989, 16
        %vm5995 = vc.u32 %v5987, %v5991
        %v5996 = vsel %vm5995, 1, 0
        %v5997 = vadd.s32 %v5987, %v5991
        %v5998 = vadd.s32 %v5990, %v5996
        %vm5999 = vc.u32 %v5997, %v5993
        %v6000 = vsel %vm5999, 1, 0
        %v6001 = vadd.s32 %v5997, %v5993
        %v6002 = vadd.s32 %v5998, %v6000
        %v6003 = vadd.s32 %v6002, %v5992
        %v6004 = vadd.s32 %v6003, %v5994
        %v6005 = vand.u32 %v5982, 65535
        %v6006 = vshrl.u32 %v5982, 16
        %v6007 = vand.u32 %v5977, 65535
        %v6008 = vshrl.u32 %v5977, 16
        %v6009 = vmul.u32 %v6005, %v6007
        %v6010 = vmul.u32 %v6005, %v6008
        %v6011 = vmul.u32 %v6006, %v6007
        %v6012 = vmul.u32 %v6006, %v6008
        %v6013 = vshll.u32 %v6010, 16
        %v6014 = vshrl.u32 %v6010, 16
        %v6015 = vshll.u32 %v6011, 16
        %v6016 = vshrl.u32 %v6011, 16
        %vm6017 = vc.u32 %v6009, %v6013
        %v6018 = vsel %vm6017, 1, 0
        %v6019 = vadd.s32 %v6009, %v6013
        %v6020 = vadd.s32 %v6012, %v6018
        %vm6021 = vc.u32 %v6019, %v6015
        %v6022 = vsel %vm6021, 1, 0
        %v6023 = vadd.s32 %v6019, %v6015
        %v6024 = vadd.s32 %v6020, %v6022
        %v6025 = vadd.s32 %v6024, %v6014
        %v6026 = vadd.s32 %v6025, %v6016
        %v6027 = vmul.u32 %v5982, %v5973
        %v6028 = vadd.s32 %v6004, %v6023
        %vm6029 = vc.u32 %v6004, %v6023
        %v6030 = vadd.s32 %v6026, 1
        %v6031 = vsel %vm6029, %v6030, %v6026
        %v6032 = vadd.s32 %v6027, %v6031
        %v6033 = vadd.s32 %v6032, 536870912
        %v6034 = vshrl.u32 %v6033, 30
        %v6035 = vshll.u32 %v6034, 30
        %v6036 = vsub.s32 %v6032, %v6035
        %vm6037 = vcmp.lt.s32.totalorder %v6036, 0
        %v6038 = vsub.s32 0, %v6036
        %v6039 = vsel %vm6037, %v6038, %v6036
        %v6040 = vclz %v6039
        %v6041 = vsub.s32 %v6040, 2
        %vm6042 = vcmp.gt.s32.totalorder 0, %v6041
        %v6043 = vsel %vm6042, 0, %v6041
        %v6044 = vsub.s32 32, %v6043
        %v6045 = vshll.u32 %v6036, %v6043
        %v6046 = vshrl.u32 %v6028, %v6044
        %v6047 = vor.u32 %v6045, %v6046
        %v6048 = vsub.s32 4294967266, %v6043
        %v6049 = vadd.s32 %v6048, 127
        %v6050 = vshll.u32 %v6049, 23
        %v6051 = vor.u32 4788187, %v6050
        %v6052 = vand.u32 2147483647, %v6051
        %v6054 = vcvt.s32.f32 %v6047
        %v6055 = vmul.f32 %v6054, %v6052
        %v6056 = vxor.u32 %v6055, 2147483648
        %v6057 = vsel %vm5936, %v6056, %v6055
        %v6058 = vsub.s32 4, %v6034
        %v6059 = vsel %vm5936, %v6058, %v6034
        %v6060 = vsel %vm5935, %v5594, %v6057
        %v6061 = vsel %vm5935, 0, %v6059
        %v6062 = vmul.f32 %v6060, %v6060
        %v6063 = vmul.f32 %v6062, -0.001358992
        %v6064 = vadd.f32 %v6063, 0.041655596
        %v6065 = vmul.f32 %v6062, %v6064
        %v6066 = vadd.f32 %v6065, -0.4999988
        %v6067 = vmul.f32 %v6062, %v6066
        %v6068 = vadd.f32 1.0, %v6067
        %v6069 = vmul.f32 %v6060, %v6060
        %v6070 = vmul.f32 %v6069, -0.00019511016
        %v6071 = vadd.f32 %v6070, 0.008332121
        %v6072 = vmul.f32 %v6069, %v6071
        %v6073 = vadd.f32 %v6072, -0.16666654
        %v6074 = vmul.f32 %v6069, %v6073
        %v6075 = vadd.f32 %v6074, 1.0
        %v6076 = vmul.f32 %v6075, %v6060
        %vm6077 = vweird.f32 %v5594
        %v6078 = vadd.s32 %v6061, 3
        %v6079 = vand.u32 %v6078, 3
        %vm6080 = vcmp.lt.s32.totalorder %v6079, 2
        %vm6081 = vcmp.eq.s32.totalorder %v6079, 0
        %v6082 = vxor.u32 %v6076, 2147483648
        %v6083 = vsel %vm6081, %v6068, %v6082
        %vm6084 = vcmp.eq.s32.totalorder %v6079, 2
        %v6085 = vxor.u32 %v6068, 2147483648
        %v6086 = vsel %vm6084, %v6085, %v6076
        %v6087 = vsel %vm6080, %v6083, %v6086
        %v6088 = vsel %vm6077, nan, %v6087
        %v6089 = vand.u32 2147483647, %v5623
        %vm6090 = vcmp.le.f32.partialorder %v6089, 0.7853982
        %vm6091 = vcmp.lt.s32.totalorder %v5623, 0
        %v6092 = vand.u32 %v5623, 2139095040
        %v6093 = vshrl.u32 %v6092, 23
        %v6094 = vsub.s32 %v6093, 127
        %v6095 = vand.u32 2147483647, %v5623
        %v6096 = vand.u32 %v6095, 8388607
        %v6097 = vor.u32 %v6096, 8388608
        %v6098 = vsub.s32 0, %v6097
        %v6099 = vadd.s32 %v6094, 1
        %vm6100 = vcmp.gt.s32.totalorder %v6099, 0
        %v6101 = vsel %vm6100, %v6099, 0
        %v6102 = vshrl.u32 %v6101, 5
        %v6103 = vand.u32 %v6101, 31
        %v6104 = vsub.s32 32, %v6103
        %v6105 = vshrl.u32 683565275, %v6104
        %v6106 = vshll.u32 683565275, %v6103
        %v6107 = vshrl.u32 2475754826, %v6104
        %v6108 = vor.u32 %v6106, %v6107
        %v6109 = vshll.u32 2475754826, %v6103
        %v6110 = vshrl.u32 2131351028, %v6104
        %v6111 = vor.u32 %v6109, %v6110
        %v6112 = vshll.u32 2131351028, %v6103
        %v6113 = vshrl.u32 2102212464, %v6104
        %v6114 = vor.u32 %v6112, %v6113
        %v6115 = vshll.u32 2102212464, %v6103
        %v6116 = vshrl.u32 920167782, %v6104
        %v6117 = vor.u32 %v6115, %v6116
        %v6118 = vshll.u32 920167782, %v6103
        %v6119 = vshrl.u32 1326507024, %v6104
        %v6120 = vor.u32 %v6118, %v6119
        %vm6121 = vcmp.lt.s32.totalorder %v6102, 1
        %vm6122 = vcmp.lt.s32.totalorder %v6102, 2
        %vm6123 = vcmp.lt.s32.totalorder %v6102, 3
        %vm6124 = vcmp.lt.s32.totalorder %v6102, 4
        %v6125 = vsel %vm6121, %v6105, %v6108
        %v6126 = vsel %vm6124, %v6114, 2102212464
        %v6127 = vsel %vm6123, %v6111, %v6126
        %v6128 = vsel %vm6122, %v6125, %v6127
        %v6129 = vsel %vm6121, %v6108, %v6111
        %v6130 = vsel %vm6124, %v6117, 920167782
        %v6131 = vsel %vm6123, %v6114, %v6130
        %v6132 = vsel %vm6122, %v6129, %v6131
        %v6133 = vsel %vm6121, %v6111, %v6114
        %v6134 = vsel %vm6124, %v6120, 1326507024
        %v6135 = vsel %vm6123, %v6117, %v6134
        %v6136 = vsel %vm6122, %v6133, %v6135
        %v6137 = vshll.u32 %v6097, 8
        %v6138 = vand.u32 %v6137, 65535
        %v6139 = vshrl.u32 %v6137, 16
        %v6140 = vand.u32 %v6136, 65535
        %v6141 = vshrl.u32 %v6136, 16
        %v6142 = vmul.u32 %v6138, %v6140
        %v6143 = vmul.u32 %v6138, %v6141
        %v6144 = vmul.u32 %v6139, %v6140
        %v6145 = vmul.u32 %v6139, %v6141
        %v6146 = vshll.u32 %v6143, 16
        %v6147 = vshrl.u32 %v6143, 16
        %v6148 = vshll.u32 %v6144, 16
        %v6149 = vshrl.u32 %v6144, 16
        %vm6150 = vc.u32 %v6142, %v6146
        %v6151 = vsel %vm6150, 1, 0
        %v6152 = vadd.s32 %v6142, %v6146
        %v6153 = vadd.s32 %v6145, %v6151
        %vm6154 = vc.u32 %v6152, %v6148
        %v6155 = vsel %vm6154, 1, 0
        %v6156 = vadd.s32 %v6152, %v6148
        %v6157 = vadd.s32 %v6153, %v6155
        %v6158 = vadd.s32 %v6157, %v6147
        %v6159 = vadd.s32 %v6158, %v6149
        %v6160 = vand.u32 %v6137, 65535
        %v6161 = vshrl.u32 %v6137, 16
        %v6162 = vand.u32 %v6132, 65535
        %v6163 = vshrl.u32 %v6132, 16
        %v6164 = vmul.u32 %v6160, %v6162
        %v6165 = vmul.u32 %v6160, %v6163
        %v6166 = vmul.u32 %v6161, %v6162
        %v6167 = vmul.u32 %v6161, %v6163
        %v6168 = vshll.u32 %v6165, 16
        %v6169 = vshrl.u32 %v6165, 16
        %v6170 = vshll.u32 %v6166, 16
        %v6171 = vshrl.u32 %v6166, 16
        %vm6172 = vc.u32 %v6164, %v6168
        %v6173 = vsel %vm6172, 1, 0
        %v6174 = vadd.s32 %v6164, %v6168
        %v6175 = vadd.s32 %v6167, %v6173
        %vm6176 = vc.u32 %v6174, %v6170
        %v6177 = vsel %vm6176, 1, 0
        %v6178 = vadd.s32 %v6174, %v6170
        %v6179 = vadd.s32 %v6175, %v6177
        %v6180 = vadd.s32 %v6179, %v6169
        %v6181 = vadd.s32 %v6180, %v6171
        %v6182 = vmul.u32 %v6137, %v6128
        %v6183 = vadd.s32 %v6159, %v6178
        %vm6184 = vc.u32 %v6159, %v6178
        %v6185 = vadd.s32 %v6181, 1
        %v6186 = vsel %vm6184, %v6185, %v6181
        %v6187 = vadd.s32 %v6182, %v6186
        %v6188 = vadd.s32 %v6187, 536870912
        %v6189 = vshrl.u32 %v6188, 30
        %v6190 = vshll.u32 %v6189, 30
        %v6191 = vsub.s32 %v6187, %v6190
        %vm6192 = vcmp.lt.s32.totalorder %v6191, 0
        %v6193 = vsub.s32 0, %v6191
        %v6194 = vsel %vm6192, %v6193, %v6191
        %v6195 = vclz %v6194
        %v6196 = vsub.s32 %v6195, 2
        %vm6197 = vcmp.gt.s32.totalorder 0, %v6196
        %v6198 = vsel %vm6197, 0, %v6196
        %v6199 = vsub.s32 32, %v6198
        %v6200 = vshll.u32 %v6191, %v6198
        %v6201 = vshrl.u32 %v6183, %v6199
        %v6202 = vor.u32 %v6200, %v6201
        %v6203 = vsub.s32 4294967266, %v6198
        %v6204 = vadd.s32 %v6203, 127
        %v6205 = vshll.u32 %v6204, 23
        %v6206 = vor.u32 4788187, %v6205
        %v6207 = vand.u32 2147483647, %v6206
        %v6209 = vcvt.s32.f32 %v6202
        %v6210 = vmul.f32 %v6209, %v6207
        %v6211 = vxor.u32 %v6210, 2147483648
        %v6212 = vsel %vm6091, %v6211, %v6210
        %v6213 = vsub.s32 4, %v6189
        %v6214 = vsel %vm6091, %v6213, %v6189
        %v6215 = vsel %vm6090, %v5623, %v6212
        %v6216 = vsel %vm6090, 0, %v6214
        %v6217 = vmul.f32 %v6215, %v6215
        %v6218 = vmul.f32 %v6217, -0.001358992
        %v6219 = vadd.f32 %v6218, 0.041655596
        %v6220 = vmul.f32 %v6217, %v6219
        %v6221 = vadd.f32 %v6220, -0.4999988
        %v6222 = vmul.f32 %v6217, %v6221
        %v6223 = vadd.f32 1.0, %v6222
        %v6224 = vmul.f32 %v6215, %v6215
        %v6225 = vmul.f32 %v6224, -0.00019511016
        %v6226 = vadd.f32 %v6225, 0.008332121
        %v6227 = vmul.f32 %v6224, %v6226
        %v6228 = vadd.f32 %v6227, -0.16666654
        %v6229 = vmul.f32 %v6224, %v6228
        %v6230 = vadd.f32 %v6229, 1.0
        %v6231 = vmul.f32 %v6230, %v6215
        %vm6232 = vweird.f32 %v5623
        %v6233 = vadd.s32 %v6216, 3
        %v6234 = vand.u32 %v6233, 3
        %vm6235 = vcmp.lt.s32.totalorder %v6234, 2
        %vm6236 = vcmp.eq.s32.totalorder %v6234, 0
        %v6237 = vxor.u32 %v6231, 2147483648
        %v6238 = vsel %vm6236, %v6223, %v6237
        %vm6239 = vcmp.eq.s32.totalorder %v6234, 2
        %v6240 = vxor.u32 %v6223, 2147483648
        %v6241 = vsel %vm6239, %v6240, %v6231
        %v6242 = vsel %vm6235, %v6238, %v6241
        %v6243 = vsel %vm6232, nan, %v6242
        %v6244 = vand.u32 2147483647, %v5652
        %vm6245 = vcmp.le.f32.partialorder %v6244, 0.7853982
        %vm6246 = vcmp.lt.s32.totalorder %v5652, 0
        %v6247 = vand.u32 %v5652, 2139095040
        %v6248 = vshrl.u32 %v6247, 23
        %v6249 = vsub.s32 %v6248, 127
        %v6250 = vand.u32 2147483647, %v5652
        %v6251 = vand.u32 %v6250, 8388607
        %v6252 = vor.u32 %v6251, 8388608
        %v6253 = vsub.s32 0, %v6252
        %v6254 = vadd.s32 %v6249, 1
        %vm6255 = vcmp.gt.s32.totalorder %v6254, 0
        %v6256 = vsel %vm6255, %v6254, 0
        %v6257 = vshrl.u32 %v6256, 5
        %v6258 = vand.u32 %v6256, 31
        %v6259 = vsub.s32 32, %v6258
        %v6260 = vshrl.u32 683565275, %v6259
        %v6261 = vshll.u32 683565275, %v6258
        %v6262 = vshrl.u32 2475754826, %v6259
        %v6263 = vor.u32 %v6261, %v6262
        %v6264 = vshll.u32 2475754826, %v6258
        %v6265 = vshrl.u32 2131351028, %v6259
        %v6266 = vor.u32 %v6264, %v6265
        %v6267 = vshll.u32 2131351028, %v6258
        %v6268 = vshrl.u32 2102212464, %v6259
        %v6269 = vor.u32 %v6267, %v6268
        %v6270 = vshll.u32 2102212464, %v6258
        %v6271 = vshrl.u32 920167782, %v6259
        %v6272 = vor.u32 %v6270, %v6271
        %v6273 = vshll.u32 920167782, %v6258
        %v6274 = vshrl.u32 1326507024, %v6259
        %v6275 = vor.u32 %v6273, %v6274
        %vm6276 = vcmp.lt.s32.totalorder %v6257, 1
        %vm6277 = vcmp.lt.s32.totalorder %v6257, 2
        %vm6278 = vcmp.lt.s32.totalorder %v6257, 3
        %vm6279 = vcmp.lt.s32.totalorder %v6257, 4
        %v6280 = vsel %vm6276, %v6260, %v6263
        %v6281 = vsel %vm6279, %v6269, 2102212464
        %v6282 = vsel %vm6278, %v6266, %v6281
        %v6283 = vsel %vm6277, %v6280, %v6282
        %v6284 = vsel %vm6276, %v6263, %v6266
        %v6285 = vsel %vm6279, %v6272, 920167782
        %v6286 = vsel %vm6278, %v6269, %v6285
        %v6287 = vsel %vm6277, %v6284, %v6286
        %v6288 = vsel %vm6276, %v6266, %v6269
        %v6289 = vsel %vm6279, %v6275, 1326507024
        %v6290 = vsel %vm6278, %v6272, %v6289
        %v6291 = vsel %vm6277, %v6288, %v6290
        %v6292 = vshll.u32 %v6252, 8
        %v6293 = vand.u32 %v6292, 65535
        %v6294 = vshrl.u32 %v6292, 16
        %v6295 = vand.u32 %v6291, 65535
        %v6296 = vshrl.u32 %v6291, 16
        %v6297 = vmul.u32 %v6293, %v6295
        %v6298 = vmul.u32 %v6293, %v6296
        %v6299 = vmul.u32 %v6294, %v6295
        %v6300 = vmul.u32 %v6294, %v6296
        %v6301 = vshll.u32 %v6298, 16
        %v6302 = vshrl.u32 %v6298, 16
        %v6303 = vshll.u32 %v6299, 16
        %v6304 = vshrl.u32 %v6299, 16
        %vm6305 = vc.u32 %v6297, %v6301
        %v6306 = vsel %vm6305, 1, 0
        %v6307 = vadd.s32 %v6297, %v6301
        %v6308 = vadd.s32 %v6300, %v6306
        %vm6309 = vc.u32 %v6307, %v6303
        %v6310 = vsel %vm6309, 1, 0
        %v6311 = vadd.s32 %v6307, %v6303
        %v6312 = vadd.s32 %v6308, %v6310
        %v6313 = vadd.s32 %v6312, %v6302
        %v6314 = vadd.s32 %v6313, %v6304
        %v6315 = vand.u32 %v6292, 65535
        %v6316 = vshrl.u32 %v6292, 16
        %v6317 = vand.u32 %v6287, 65535
        %v6318 = vshrl.u32 %v6287, 16
        %v6319 = vmul.u32 %v6315, %v6317
        %v6320 = vmul.u32 %v6315, %v6318
        %v6321 = vmul.u32 %v6316, %v6317
        %v6322 = vmul.u32 %v6316, %v6318
        %v6323 = vshll.u32 %v6320, 16
        %v6324 = vshrl.u32 %v6320, 16
        %v6325 = vshll.u32 %v6321, 16
        %v6326 = vshrl.u32 %v6321, 16
        %vm6327 = vc.u32 %v6319, %v6323
        %v6328 = vsel %vm6327, 1, 0
        %v6329 = vadd.s32 %v6319, %v6323
        %v6330 = vadd.s32 %v6322, %v6328
        %vm6331 = vc.u32 %v6329, %v6325
        %v6332 = vsel %vm6331, 1, 0
        %v6333 = vadd.s32 %v6329, %v6325
        %v6334 = vadd.s32 %v6330, %v6332
        %v6335 = vadd.s32 %v6334, %v6324
        %v6336 = vadd.s32 %v6335, %v6326
        %v6337 = vmul.u32 %v6292, %v6283
        %v6338 = vadd.s32 %v6314, %v6333
        %vm6339 = vc.u32 %v6314, %v6333
        %v6340 = vadd.s32 %v6336, 1
        %v6341 = vsel %vm6339, %v6340, %v6336
        %v6342 = vadd.s32 %v6337, %v6341
        %v6343 = vadd.s32 %v6342, 536870912
        %v6344 = vshrl.u32 %v6343, 30
        %v6345 = vshll.u32 %v6344, 30
        %v6346 = vsub.s32 %v6342, %v6345
        %vm6347 = vcmp.lt.s32.totalorder %v6346, 0
        %v6348 = vsub.s32 0, %v6346
        %v6349 = vsel %vm6347, %v6348, %v6346
        %v6350 = vclz %v6349
        %v6351 = vsub.s32 %v6350, 2
        %vm6352 = vcmp.gt.s32.totalorder 0, %v6351
        %v6353 = vsel %vm6352, 0, %v6351
        %v6354 = vsub.s32 32, %v6353
        %v6355 = vshll.u32 %v6346, %v6353
        %v6356 = vshrl.u32 %v6338, %v6354
        %v6357 = vor.u32 %v6355, %v6356
        %v6358 = vsub.s32 4294967266, %v6353
        %v6359 = vadd.s32 %v6358, 127
        %v6360 = vshll.u32 %v6359, 23
        %v6361 = vor.u32 4788187, %v6360
        %v6362 = vand.u32 2147483647, %v6361
        %v6364 = vcvt.s32.f32 %v6357
        %v6365 = vmul.f32 %v6364, %v6362
        %v6366 = vxor.u32 %v6365, 2147483648
        %v6367 = vsel %vm6246, %v6366, %v6365
        %v6368 = vsub.s32 4, %v6344
        %v6369 = vsel %vm6246, %v6368, %v6344
        %v6370 = vsel %vm6245, %v5652, %v6367
        %v6371 = vsel %vm6245, 0, %v6369
        %v6372 = vmul.f32 %v6370, %v6370
        %v6373 = vmul.f32 %v6372, -0.001358992
        %v6374 = vadd.f32 %v6373, 0.041655596
        %v6375 = vmul.f32 %v6372, %v6374
        %v6376 = vadd.f32 %v6375, -0.4999988
        %v6377 = vmul.f32 %v6372, %v6376
        %v6378 = vadd.f32 1.0, %v6377
        %v6379 = vmul.f32 %v6370, %v6370
        %v6380 = vmul.f32 %v6379, -0.00019511016
        %v6381 = vadd.f32 %v6380, 0.008332121
        %v6382 = vmul.f32 %v6379, %v6381
        %v6383 = vadd.f32 %v6382, -0.16666654
        %v6384 = vmul.f32 %v6379, %v6383
        %v6385 = vadd.f32 %v6384, 1.0
        %v6386 = vmul.f32 %v6385, %v6370
        %vm6387 = vweird.f32 %v5652
        %v6388 = vadd.s32 %v6371, 3
        %v6389 = vand.u32 %v6388, 3
        %vm6390 = vcmp.lt.s32.totalorder %v6389, 2
        %vm6391 = vcmp.eq.s32.totalorder %v6389, 0
        %v6392 = vxor.u32 %v6386, 2147483648
        %v6393 = vsel %vm6391, %v6378, %v6392
        %vm6394 = vcmp.eq.s32.totalorder %v6389, 2
        %v6395 = vxor.u32 %v6378, 2147483648
        %v6396 = vsel %vm6394, %v6395, %v6386
        %v6397 = vsel %vm6390, %v6393, %v6396
        %v6398 = vsel %vm6387, nan, %v6397
        %v6399 = vand.u32 2147483647, %v5681
        %vm6400 = vcmp.le.f32.partialorder %v6399, 0.7853982
        %vm6401 = vcmp.lt.s32.totalorder %v5681, 0
        %v6402 = vand.u32 %v5681, 2139095040
        %v6403 = vshrl.u32 %v6402, 23
        %v6404 = vsub.s32 %v6403, 127
        %v6405 = vand.u32 2147483647, %v5681
        %v6406 = vand.u32 %v6405, 8388607
        %v6407 = vor.u32 %v6406, 8388608
        %v6408 = vsub.s32 0, %v6407
        %v6409 = vadd.s32 %v6404, 1
        %vm6410 = vcmp.gt.s32.totalorder %v6409, 0
        %v6411 = vsel %vm6410, %v6409, 0
        %v6412 = vshrl.u32 %v6411, 5
        %v6413 = vand.u32 %v6411, 31
        %v6414 = vsub.s32 32, %v6413
        %v6415 = vshrl.u32 683565275, %v6414
        %v6416 = vshll.u32 683565275, %v6413
        %v6417 = vshrl.u32 2475754826, %v6414
        %v6418 = vor.u32 %v6416, %v6417
        %v6419 = vshll.u32 2475754826, %v6413
        %v6420 = vshrl.u32 2131351028, %v6414
        %v6421 = vor.u32 %v6419, %v6420
        %v6422 = vshll.u32 2131351028, %v6413
        %v6423 = vshrl.u32 2102212464, %v6414
        %v6424 = vor.u32 %v6422, %v6423
        %v6425 = vshll.u32 2102212464, %v6413
        %v6426 = vshrl.u32 920167782, %v6414
        %v6427 = vor.u32 %v6425, %v6426
        %v6428 = vshll.u32 920167782, %v6413
        %v6429 = vshrl.u32 1326507024, %v6414
        %v6430 = vor.u32 %v6428, %v6429
        %vm6431 = vcmp.lt.s32.totalorder %v6412, 1
        %vm6432 = vcmp.lt.s32.totalorder %v6412, 2
        %vm6433 = vcmp.lt.s32.totalorder %v6412, 3
        %vm6434 = vcmp.lt.s32.totalorder %v6412, 4
        %v6435 = vsel %vm6431, %v6415, %v6418
        %v6436 = vsel %vm6434, %v6424, 2102212464
        %v6437 = vsel %vm6433, %v6421, %v6436
        %v6438 = vsel %vm6432, %v6435, %v6437
        %v6439 = vsel %vm6431, %v6418, %v6421
        %v6440 = vsel %vm6434, %v6427, 920167782
        %v6441 = vsel %vm6433, %v6424, %v6440
        %v6442 = vsel %vm6432, %v6439, %v6441
        %v6443 = vsel %vm6431, %v6421, %v6424
        %v6444 = vsel %vm6434, %v6430, 1326507024
        %v6445 = vsel %vm6433, %v6427, %v6444
        %v6446 = vsel %vm6432, %v6443, %v6445
        %v6447 = vshll.u32 %v6407, 8
        %v6448 = vand.u32 %v6447, 65535
        %v6449 = vshrl.u32 %v6447, 16
        %v6450 = vand.u32 %v6446, 65535
        %v6451 = vshrl.u32 %v6446, 16
        %v6452 = vmul.u32 %v6448, %v6450
        %v6453 = vmul.u32 %v6448, %v6451
        %v6454 = vmul.u32 %v6449, %v6450
        %v6455 = vmul.u32 %v6449, %v6451
        %v6456 = vshll.u32 %v6453, 16
        %v6457 = vshrl.u32 %v6453, 16
        %v6458 = vshll.u32 %v6454, 16
        %v6459 = vshrl.u32 %v6454, 16
        %vm6460 = vc.u32 %v6452, %v6456
        %v6461 = vsel %vm6460, 1, 0
        %v6462 = vadd.s32 %v6452, %v6456
        %v6463 = vadd.s32 %v6455, %v6461
        %vm6464 = vc.u32 %v6462, %v6458
        %v6465 = vsel %vm6464, 1, 0
        %v6466 = vadd.s32 %v6462, %v6458
        %v6467 = vadd.s32 %v6463, %v6465
        %v6468 = vadd.s32 %v6467, %v6457
        %v6469 = vadd.s32 %v6468, %v6459
        %v6470 = vand.u32 %v6447, 65535
        %v6471 = vshrl.u32 %v6447, 16
        %v6472 = vand.u32 %v6442, 65535
        %v6473 = vshrl.u32 %v6442, 16
        %v6474 = vmul.u32 %v6470, %v6472
        %v6475 = vmul.u32 %v6470, %v6473
        %v6476 = vmul.u32 %v6471, %v6472
        %v6477 = vmul.u32 %v6471, %v6473
        %v6478 = vshll.u32 %v6475, 16
        %v6479 = vshrl.u32 %v6475, 16
        %v6480 = vshll.u32 %v6476, 16
        %v6481 = vshrl.u32 %v6476, 16
        %vm6482 = vc.u32 %v6474, %v6478
        %v6483 = vsel %vm6482, 1, 0
        %v6484 = vadd.s32 %v6474, %v6478
        %v6485 = vadd.s32 %v6477, %v6483
        %vm6486 = vc.u32 %v6484, %v6480
        %v6487 = vsel %vm6486, 1, 0
        %v6488 = vadd.s32 %v6484, %v6480
        %v6489 = vadd.s32 %v6485, %v6487
        %v6490 = vadd.s32 %v6489, %v6479
        %v6491 = vadd.s32 %v6490, %v6481
        %v6492 = vmul.u32 %v6447, %v6438
        %v6493 = vadd.s32 %v6469, %v6488
        %vm6494 = vc.u32 %v6469, %v6488
        %v6495 = vadd.s32 %v6491, 1
        %v6496 = vsel %vm6494, %v6495, %v6491
        %v6497 = vadd.s32 %v6492, %v6496
        %v6498 = vadd.s32 %v6497, 536870912
        %v6499 = vshrl.u32 %v6498, 30
        %v6500 = vshll.u32 %v6499, 30
        %v6501 = vsub.s32 %v6497, %v6500
        %vm6502 = vcmp.lt.s32.totalorder %v6501, 0
        %v6503 = vsub.s32 0, %v6501
        %v6504 = vsel %vm6502, %v6503, %v6501
        %v6505 = vclz %v6504
        %v6506 = vsub.s32 %v6505, 2
        %vm6507 = vcmp.gt.s32.totalorder 0, %v6506
        %v6508 = vsel %vm6507, 0, %v6506
        %v6509 = vsub.s32 32, %v6508
        %v6510 = vshll.u32 %v6501, %v6508
        %v6511 = vshrl.u32 %v6493, %v6509
        %v6512 = vor.u32 %v6510, %v6511
        %v6513 = vsub.s32 4294967266, %v6508
        %v6514 = vadd.s32 %v6513, 127
        %v6515 = vshll.u32 %v6514, 23
        %v6516 = vor.u32 4788187, %v6515
        %v6517 = vand.u32 2147483647, %v6516
        %v6519 = vcvt.s32.f32 %v6512
        %v6520 = vmul.f32 %v6519, %v6517
        %v6521 = vxor.u32 %v6520, 2147483648
        %v6522 = vsel %vm6401, %v6521, %v6520
        %v6523 = vsub.s32 4, %v6499
        %v6524 = vsel %vm6401, %v6523, %v6499
        %v6525 = vsel %vm6400, %v5681, %v6522
        %v6526 = vsel %vm6400, 0, %v6524
        %v6527 = vmul.f32 %v6525, %v6525
        %v6528 = vmul.f32 %v6527, -0.001358992
        %v6529 = vadd.f32 %v6528, 0.041655596
        %v6530 = vmul.f32 %v6527, %v6529
        %v6531 = vadd.f32 %v6530, -0.4999988
        %v6532 = vmul.f32 %v6527, %v6531
        %v6533 = vadd.f32 1.0, %v6532
        %v6534 = vmul.f32 %v6525, %v6525
        %v6535 = vmul.f32 %v6534, -0.00019511016
        %v6536 = vadd.f32 %v6535, 0.008332121
        %v6537 = vmul.f32 %v6534, %v6536
        %v6538 = vadd.f32 %v6537, -0.16666654
        %v6539 = vmul.f32 %v6534, %v6538
        %v6540 = vadd.f32 %v6539, 1.0
        %v6541 = vmul.f32 %v6540, %v6525
        %vm6542 = vweird.f32 %v5681
        %v6543 = vadd.s32 %v6526, 3
        %v6544 = vand.u32 %v6543, 3
        %vm6545 = vcmp.lt.s32.totalorder %v6544, 2
        %vm6546 = vcmp.eq.s32.totalorder %v6544, 0
        %v6547 = vxor.u32 %v6541, 2147483648
        %v6548 = vsel %vm6546, %v6533, %v6547
        %vm6549 = vcmp.eq.s32.totalorder %v6544, 2
        %v6550 = vxor.u32 %v6533, 2147483648
        %v6551 = vsel %vm6549, %v6550, %v6541
        %v6552 = vsel %vm6545, %v6548, %v6551
        %v6553 = vsel %vm6542, nan, %v6552
        %v6554 = vand.u32 2147483647, %v5710
        %vm6555 = vcmp.le.f32.partialorder %v6554, 0.7853982
        %vm6556 = vcmp.lt.s32.totalorder %v5710, 0
        %v6557 = vand.u32 %v5710, 2139095040
        %v6558 = vshrl.u32 %v6557, 23
        %v6559 = vsub.s32 %v6558, 127
        %v6560 = vand.u32 2147483647, %v5710
        %v6561 = vand.u32 %v6560, 8388607
        %v6562 = vor.u32 %v6561, 8388608
        %v6563 = vsub.s32 0, %v6562
        %v6564 = vadd.s32 %v6559, 1
        %vm6565 = vcmp.gt.s32.totalorder %v6564, 0
        %v6566 = vsel %vm6565, %v6564, 0
        %v6567 = vshrl.u32 %v6566, 5
        %v6568 = vand.u32 %v6566, 31
        %v6569 = vsub.s32 32, %v6568
        %v6570 = vshrl.u32 683565275, %v6569
        %v6571 = vshll.u32 683565275, %v6568
        %v6572 = vshrl.u32 2475754826, %v6569
        %v6573 = vor.u32 %v6571, %v6572
        %v6574 = vshll.u32 2475754826, %v6568
        %v6575 = vshrl.u32 2131351028, %v6569
        %v6576 = vor.u32 %v6574, %v6575
        %v6577 = vshll.u32 2131351028, %v6568
        %v6578 = vshrl.u32 2102212464, %v6569
        %v6579 = vor.u32 %v6577, %v6578
        %v6580 = vshll.u32 2102212464, %v6568
        %v6581 = vshrl.u32 920167782, %v6569
        %v6582 = vor.u32 %v6580, %v6581
        %v6583 = vshll.u32 920167782, %v6568
        %v6584 = vshrl.u32 1326507024, %v6569
        %v6585 = vor.u32 %v6583, %v6584
        %vm6586 = vcmp.lt.s32.totalorder %v6567, 1
        %vm6587 = vcmp.lt.s32.totalorder %v6567, 2
        %vm6588 = vcmp.lt.s32.totalorder %v6567, 3
        %vm6589 = vcmp.lt.s32.totalorder %v6567, 4
        %v6590 = vsel %vm6586, %v6570, %v6573
        %v6591 = vsel %vm6589, %v6579, 2102212464
        %v6592 = vsel %vm6588, %v6576, %v6591
        %v6593 = vsel %vm6587, %v6590, %v6592
        %v6594 = vsel %vm6586, %v6573, %v6576
        %v6595 = vsel %vm6589, %v6582, 920167782
        %v6596 = vsel %vm6588, %v6579, %v6595
        %v6597 = vsel %vm6587, %v6594, %v6596
        %v6598 = vsel %vm6586, %v6576, %v6579
        %v6599 = vsel %vm6589, %v6585, 1326507024
        %v6600 = vsel %vm6588, %v6582, %v6599
        %v6601 = vsel %vm6587, %v6598, %v6600
        %v6602 = vshll.u32 %v6562, 8
        %v6603 = vand.u32 %v6602, 65535
        %v6604 = vshrl.u32 %v6602, 16
        %v6605 = vand.u32 %v6601, 65535
        %v6606 = vshrl.u32 %v6601, 16
        %v6607 = vmul.u32 %v6603, %v6605
        %v6608 = vmul.u32 %v6603, %v6606
        %v6609 = vmul.u32 %v6604, %v6605
        %v6610 = vmul.u32 %v6604, %v6606
        %v6611 = vshll.u32 %v6608, 16
        %v6612 = vshrl.u32 %v6608, 16
        %v6613 = vshll.u32 %v6609, 16
        %v6614 = vshrl.u32 %v6609, 16
        %vm6615 = vc.u32 %v6607, %v6611
        %v6616 = vsel %vm6615, 1, 0
        %v6617 = vadd.s32 %v6607, %v6611
        %v6618 = vadd.s32 %v6610, %v6616
        %vm6619 = vc.u32 %v6617, %v6613
        %v6620 = vsel %vm6619, 1, 0
        %v6621 = vadd.s32 %v6617, %v6613
        %v6622 = vadd.s32 %v6618, %v6620
        %v6623 = vadd.s32 %v6622, %v6612
        %v6624 = vadd.s32 %v6623, %v6614
        %v6625 = vand.u32 %v6602, 65535
        %v6626 = vshrl.u32 %v6602, 16
        %v6627 = vand.u32 %v6597, 65535
        %v6628 = vshrl.u32 %v6597, 16
        %v6629 = vmul.u32 %v6625, %v6627
        %v6630 = vmul.u32 %v6625, %v6628
        %v6631 = vmul.u32 %v6626, %v6627
        %v6632 = vmul.u32 %v6626, %v6628
        %v6633 = vshll.u32 %v6630, 16
        %v6634 = vshrl.u32 %v6630, 16
        %v6635 = vshll.u32 %v6631, 16
        %v6636 = vshrl.u32 %v6631, 16
        %vm6637 = vc.u32 %v6629, %v6633
        %v6638 = vsel %vm6637, 1, 0
        %v6639 = vadd.s32 %v6629, %v6633
        %v6640 = vadd.s32 %v6632, %v6638
        %vm6641 = vc.u32 %v6639, %v6635
        %v6642 = vsel %vm6641, 1, 0
        %v6643 = vadd.s32 %v6639, %v6635
        %v6644 = vadd.s32 %v6640, %v6642
        %v6645 = vadd.s32 %v6644, %v6634
        %v6646 = vadd.s32 %v6645, %v6636
        %v6647 = vmul.u32 %v6602, %v6593
        %v6648 = vadd.s32 %v6624, %v6643
        %vm6649 = vc.u32 %v6624, %v6643
        %v6650 = vadd.s32 %v6646, 1
        %v6651 = vsel %vm6649, %v6650, %v6646
        %v6652 = vadd.s32 %v6647, %v6651
        %v6653 = vadd.s32 %v6652, 536870912
        %v6654 = vshrl.u32 %v6653, 30
        %v6655 = vshll.u32 %v6654, 30
        %v6656 = vsub.s32 %v6652, %v6655
        %vm6657 = vcmp.lt.s32.totalorder %v6656, 0
        %v6658 = vsub.s32 0, %v6656
        %v6659 = vsel %vm6657, %v6658, %v6656
        %v6660 = vclz %v6659
        %v6661 = vsub.s32 %v6660, 2
        %vm6662 = vcmp.gt.s32.totalorder 0, %v6661
        %v6663 = vsel %vm6662, 0, %v6661
        %v6664 = vsub.s32 32, %v6663
        %v6665 = vshll.u32 %v6656, %v6663
        %v6666 = vshrl.u32 %v6648, %v6664
        %v6667 = vor.u32 %v6665, %v6666
        %v6668 = vsub.s32 4294967266, %v6663
        %v6669 = vadd.s32 %v6668, 127
        %v6670 = vshll.u32 %v6669, 23
        %v6671 = vor.u32 4788187, %v6670
        %v6672 = vand.u32 2147483647, %v6671
        %v6674 = vcvt.s32.f32 %v6667
        %v6675 = vmul.f32 %v6674, %v6672
        %v6676 = vxor.u32 %v6675, 2147483648
        %v6677 = vsel %vm6556, %v6676, %v6675
        %v6678 = vsub.s32 4, %v6654
        %v6679 = vsel %vm6556, %v6678, %v6654
        %v6680 = vsel %vm6555, %v5710, %v6677
        %v6681 = vsel %vm6555, 0, %v6679
        %v6682 = vmul.f32 %v6680, %v6680
        %v6683 = vmul.f32 %v6682, -0.001358992
        %v6684 = vadd.f32 %v6683, 0.041655596
        %v6685 = vmul.f32 %v6682, %v6684
        %v6686 = vadd.f32 %v6685, -0.4999988
        %v6687 = vmul.f32 %v6682, %v6686
        %v6688 = vadd.f32 1.0, %v6687
        %v6689 = vmul.f32 %v6680, %v6680
        %v6690 = vmul.f32 %v6689, -0.00019511016
        %v6691 = vadd.f32 %v6690, 0.008332121
        %v6692 = vmul.f32 %v6689, %v6691
        %v6693 = vadd.f32 %v6692, -0.16666654
        %v6694 = vmul.f32 %v6689, %v6693
        %v6695 = vadd.f32 %v6694, 1.0
        %v6696 = vmul.f32 %v6695, %v6680
        %vm6697 = vweird.f32 %v5710
        %v6698 = vadd.s32 %v6681, 3
        %v6699 = vand.u32 %v6698, 3
        %vm6700 = vcmp.lt.s32.totalorder %v6699, 2
        %vm6701 = vcmp.eq.s32.totalorder %v6699, 0
        %v6702 = vxor.u32 %v6696, 2147483648
        %v6703 = vsel %vm6701, %v6688, %v6702
        %vm6704 = vcmp.eq.s32.totalorder %v6699, 2
        %v6705 = vxor.u32 %v6688, 2147483648
        %v6706 = vsel %vm6704, %v6705, %v6696
        %v6707 = vsel %vm6700, %v6703, %v6706
        %v6708 = vsel %vm6697, nan, %v6707
        %v6709 = vand.u32 2147483647, %v5739
        %vm6710 = vcmp.le.f32.partialorder %v6709, 0.7853982
        %vm6711 = vcmp.lt.s32.totalorder %v5739, 0
        %v6712 = vand.u32 %v5739, 2139095040
        %v6713 = vshrl.u32 %v6712, 23
        %v6714 = vsub.s32 %v6713, 127
        %v6715 = vand.u32 2147483647, %v5739
        %v6716 = vand.u32 %v6715, 8388607
        %v6717 = vor.u32 %v6716, 8388608
        %v6718 = vsub.s32 0, %v6717
        %v6719 = vadd.s32 %v6714, 1
        %vm6720 = vcmp.gt.s32.totalorder %v6719, 0
        %v6721 = vsel %vm6720, %v6719, 0
        %v6722 = vshrl.u32 %v6721, 5
        %v6723 = vand.u32 %v6721, 31
        %v6724 = vsub.s32 32, %v6723
        %v6725 = vshrl.u32 683565275, %v6724
        %v6726 = vshll.u32 683565275, %v6723
        %v6727 = vshrl.u32 2475754826, %v6724
        %v6728 = vor.u32 %v6726, %v6727
        %v6729 = vshll.u32 2475754826, %v6723
        %v6730 = vshrl.u32 2131351028, %v6724
        %v6731 = vor.u32 %v6729, %v6730
        %v6732 = vshll.u32 2131351028, %v6723
        %v6733 = vshrl.u32 2102212464, %v6724
        %v6734 = vor.u32 %v6732, %v6733
        %v6735 = vshll.u32 2102212464, %v6723
        %v6736 = vshrl.u32 920167782, %v6724
        %v6737 = vor.u32 %v6735, %v6736
        %v6738 = vshll.u32 920167782, %v6723
        %v6739 = vshrl.u32 1326507024, %v6724
        %v6740 = vor.u32 %v6738, %v6739
        %vm6741 = vcmp.lt.s32.totalorder %v6722, 1
        %vm6742 = vcmp.lt.s32.totalorder %v6722, 2
        %vm6743 = vcmp.lt.s32.totalorder %v6722, 3
        %vm6744 = vcmp.lt.s32.totalorder %v6722, 4
        %v6745 = vsel %vm6741, %v6725, %v6728
        %v6746 = vsel %vm6744, %v6734, 2102212464
        %v6747 = vsel %vm6743, %v6731, %v6746
        %v6748 = vsel %vm6742, %v6745, %v6747
        %v6749 = vsel %vm6741, %v6728, %v6731
        %v6750 = vsel %vm6744, %v6737, 920167782
        %v6751 = vsel %vm6743, %v6734, %v6750
        %v6752 = vsel %vm6742, %v6749, %v6751
        %v6753 = vsel %vm6741, %v6731, %v6734
        %v6754 = vsel %vm6744, %v6740, 1326507024
        %v6755 = vsel %vm6743, %v6737, %v6754
        %v6756 = vsel %vm6742, %v6753, %v6755
        %v6757 = vshll.u32 %v6717, 8
        %v6758 = vand.u32 %v6757, 65535
        %v6759 = vshrl.u32 %v6757, 16
        %v6760 = vand.u32 %v6756, 65535
        %v6761 = vshrl.u32 %v6756, 16
        %v6762 = vmul.u32 %v6758, %v6760
        %v6763 = vmul.u32 %v6758, %v6761
        %v6764 = vmul.u32 %v6759, %v6760
        %v6765 = vmul.u32 %v6759, %v6761
        %v6766 = vshll.u32 %v6763, 16
        %v6767 = vshrl.u32 %v6763, 16
        %v6768 = vshll.u32 %v6764, 16
        %v6769 = vshrl.u32 %v6764, 16
        %vm6770 = vc.u32 %v6762, %v6766
        %v6771 = vsel %vm6770, 1, 0
        %v6772 = vadd.s32 %v6762, %v6766
        %v6773 = vadd.s32 %v6765, %v6771
        %vm6774 = vc.u32 %v6772, %v6768
        %v6775 = vsel %vm6774, 1, 0
        %v6776 = vadd.s32 %v6772, %v6768
        %v6777 = vadd.s32 %v6773, %v6775
        %v6778 = vadd.s32 %v6777, %v6767
        %v6779 = vadd.s32 %v6778, %v6769
        %v6780 = vand.u32 %v6757, 65535
        %v6781 = vshrl.u32 %v6757, 16
        %v6782 = vand.u32 %v6752, 65535
        %v6783 = vshrl.u32 %v6752, 16
        %v6784 = vmul.u32 %v6780, %v6782
        %v6785 = vmul.u32 %v6780, %v6783
        %v6786 = vmul.u32 %v6781, %v6782
        %v6787 = vmul.u32 %v6781, %v6783
        %v6788 = vshll.u32 %v6785, 16
        %v6789 = vshrl.u32 %v6785, 16
        %v6790 = vshll.u32 %v6786, 16
        %v6791 = vshrl.u32 %v6786, 16
        %vm6792 = vc.u32 %v6784, %v6788
        %v6793 = vsel %vm6792, 1, 0
        %v6794 = vadd.s32 %v6784, %v6788
        %v6795 = vadd.s32 %v6787, %v6793
        %vm6796 = vc.u32 %v6794, %v6790
        %v6797 = vsel %vm6796, 1, 0
        %v6798 = vadd.s32 %v6794, %v6790
        %v6799 = vadd.s32 %v6795, %v6797
        %v6800 = vadd.s32 %v6799, %v6789
        %v6801 = vadd.s32 %v6800, %v6791
        %v6802 = vmul.u32 %v6757, %v6748
        %v6803 = vadd.s32 %v6779, %v6798
        %vm6804 = vc.u32 %v6779, %v6798
        %v6805 = vadd.s32 %v6801, 1
        %v6806 = vsel %vm6804, %v6805, %v6801
        %v6807 = vadd.s32 %v6802, %v6806
        %v6808 = vadd.s32 %v6807, 536870912
        %v6809 = vshrl.u32 %v6808, 30
        %v6810 = vshll.u32 %v6809, 30
        %v6811 = vsub.s32 %v6807, %v6810
        %vm6812 = vcmp.lt.s32.totalorder %v6811, 0
        %v6813 = vsub.s32 0, %v6811
        %v6814 = vsel %vm6812, %v6813, %v6811
        %v6815 = vclz %v6814
        %v6816 = vsub.s32 %v6815, 2
        %vm6817 = vcmp.gt.s32.totalorder 0, %v6816
        %v6818 = vsel %vm6817, 0, %v6816
        %v6819 = vsub.s32 32, %v6818
        %v6820 = vshll.u32 %v6811, %v6818
        %v6821 = vshrl.u32 %v6803, %v6819
        %v6822 = vor.u32 %v6820, %v6821
        %v6823 = vsub.s32 4294967266, %v6818
        %v6824 = vadd.s32 %v6823, 127
        %v6825 = vshll.u32 %v6824, 23
        %v6826 = vor.u32 4788187, %v6825
        %v6827 = vand.u32 2147483647, %v6826
        %v6829 = vcvt.s32.f32 %v6822
        %v6830 = vmul.f32 %v6829, %v6827
        %v6831 = vxor.u32 %v6830, 2147483648
        %v6832 = vsel %vm6711, %v6831, %v6830
        %v6833 = vsub.s32 4, %v6809
        %v6834 = vsel %vm6711, %v6833, %v6809
        %v6835 = vsel %vm6710, %v5739, %v6832
        %v6836 = vsel %vm6710, 0, %v6834
        %v6837 = vmul.f32 %v6835, %v6835
        %v6838 = vmul.f32 %v6837, -0.001358992
        %v6839 = vadd.f32 %v6838, 0.041655596
        %v6840 = vmul.f32 %v6837, %v6839
        %v6841 = vadd.f32 %v6840, -0.4999988
        %v6842 = vmul.f32 %v6837, %v6841
        %v6843 = vadd.f32 1.0, %v6842
        %v6844 = vmul.f32 %v6835, %v6835
        %v6845 = vmul.f32 %v6844, -0.00019511016
        %v6846 = vadd.f32 %v6845, 0.008332121
        %v6847 = vmul.f32 %v6844, %v6846
        %v6848 = vadd.f32 %v6847, -0.16666654
        %v6849 = vmul.f32 %v6844, %v6848
        %v6850 = vadd.f32 %v6849, 1.0
        %v6851 = vmul.f32 %v6850, %v6835
        %vm6852 = vweird.f32 %v5739
        %v6853 = vadd.s32 %v6836, 3
        %v6854 = vand.u32 %v6853, 3
        %vm6855 = vcmp.lt.s32.totalorder %v6854, 2
        %vm6856 = vcmp.eq.s32.totalorder %v6854, 0
        %v6857 = vxor.u32 %v6851, 2147483648
        %v6858 = vsel %vm6856, %v6843, %v6857
        %vm6859 = vcmp.eq.s32.totalorder %v6854, 2
        %v6860 = vxor.u32 %v6843, 2147483648
        %v6861 = vsel %vm6859, %v6860, %v6851
        %v6862 = vsel %vm6855, %v6858, %v6861
        %v6863 = vsel %vm6852, nan, %v6862
        %v6864 = vand.u32 2147483647, %v5768
        %vm6865 = vcmp.le.f32.partialorder %v6864, 0.7853982
        %vm6866 = vcmp.lt.s32.totalorder %v5768, 0
        %v6867 = vand.u32 %v5768, 2139095040
        %v6868 = vshrl.u32 %v6867, 23
        %v6869 = vsub.s32 %v6868, 127
        %v6870 = vand.u32 2147483647, %v5768
        %v6871 = vand.u32 %v6870, 8388607
        %v6872 = vor.u32 %v6871, 8388608
        %v6873 = vsub.s32 0, %v6872
        %v6874 = vadd.s32 %v6869, 1
        %vm6875 = vcmp.gt.s32.totalorder %v6874, 0
        %v6876 = vsel %vm6875, %v6874, 0
        %v6877 = vshrl.u32 %v6876, 5
        %v6878 = vand.u32 %v6876, 31
        %v6879 = vsub.s32 32, %v6878
        %v6880 = vshrl.u32 683565275, %v6879
        %v6881 = vshll.u32 683565275, %v6878
        %v6882 = vshrl.u32 2475754826, %v6879
        %v6883 = vor.u32 %v6881, %v6882
        %v6884 = vshll.u32 2475754826, %v6878
        %v6885 = vshrl.u32 2131351028, %v6879
        %v6886 = vor.u32 %v6884, %v6885
        %v6887 = vshll.u32 2131351028, %v6878
        %v6888 = vshrl.u32 2102212464, %v6879
        %v6889 = vor.u32 %v6887, %v6888
        %v6890 = vshll.u32 2102212464, %v6878
        %v6891 = vshrl.u32 920167782, %v6879
        %v6892 = vor.u32 %v6890, %v6891
        %v6893 = vshll.u32 920167782, %v6878
        %v6894 = vshrl.u32 1326507024, %v6879
        %v6895 = vor.u32 %v6893, %v6894
        %vm6896 = vcmp.lt.s32.totalorder %v6877, 1
        %vm6897 = vcmp.lt.s32.totalorder %v6877, 2
        %vm6898 = vcmp.lt.s32.totalorder %v6877, 3
        %vm6899 = vcmp.lt.s32.totalorder %v6877, 4
        %v6900 = vsel %vm6896, %v6880, %v6883
        %v6901 = vsel %vm6899, %v6889, 2102212464
        %v6902 = vsel %vm6898, %v6886, %v6901
        %v6903 = vsel %vm6897, %v6900, %v6902
        %v6904 = vsel %vm6896, %v6883, %v6886
        %v6905 = vsel %vm6899, %v6892, 920167782
        %v6906 = vsel %vm6898, %v6889, %v6905
        %v6907 = vsel %vm6897, %v6904, %v6906
        %v6908 = vsel %vm6896, %v6886, %v6889
        %v6909 = vsel %vm6899, %v6895, 1326507024
        %v6910 = vsel %vm6898, %v6892, %v6909
        %v6911 = vsel %vm6897, %v6908, %v6910
        %v6912 = vshll.u32 %v6872, 8
        %v6913 = vand.u32 %v6912, 65535
        %v6914 = vshrl.u32 %v6912, 16
        %v6915 = vand.u32 %v6911, 65535
        %v6916 = vshrl.u32 %v6911, 16
        %v6917 = vmul.u32 %v6913, %v6915
        %v6918 = vmul.u32 %v6913, %v6916
        %v6919 = vmul.u32 %v6914, %v6915
        %v6920 = vmul.u32 %v6914, %v6916
        %v6921 = vshll.u32 %v6918, 16
        %v6922 = vshrl.u32 %v6918, 16
        %v6923 = vshll.u32 %v6919, 16
        %v6924 = vshrl.u32 %v6919, 16
        %vm6925 = vc.u32 %v6917, %v6921
        %v6926 = vsel %vm6925, 1, 0
        %v6927 = vadd.s32 %v6917, %v6921
        %v6928 = vadd.s32 %v6920, %v6926
        %vm6929 = vc.u32 %v6927, %v6923
        %v6930 = vsel %vm6929, 1, 0
        %v6931 = vadd.s32 %v6927, %v6923
        %v6932 = vadd.s32 %v6928, %v6930
        %v6933 = vadd.s32 %v6932, %v6922
        %v6934 = vadd.s32 %v6933, %v6924
        %v6935 = vand.u32 %v6912, 65535
        %v6936 = vshrl.u32 %v6912, 16
        %v6937 = vand.u32 %v6907, 65535
        %v6938 = vshrl.u32 %v6907, 16
        %v6939 = vmul.u32 %v6935, %v6937
        %v6940 = vmul.u32 %v6935, %v6938
        %v6941 = vmul.u32 %v6936, %v6937
        %v6942 = vmul.u32 %v6936, %v6938
        %v6943 = vshll.u32 %v6940, 16
        %v6944 = vshrl.u32 %v6940, 16
        %v6945 = vshll.u32 %v6941, 16
        %v6946 = vshrl.u32 %v6941, 16
        %vm6947 = vc.u32 %v6939, %v6943
        %v6948 = vsel %vm6947, 1, 0
        %v6949 = vadd.s32 %v6939, %v6943
        %v6950 = vadd.s32 %v6942, %v6948
        %vm6951 = vc.u32 %v6949, %v6945
        %v6952 = vsel %vm6951, 1, 0
        %v6953 = vadd.s32 %v6949, %v6945
        %v6954 = vadd.s32 %v6950, %v6952
        %v6955 = vadd.s32 %v6954, %v6944
        %v6956 = vadd.s32 %v6955, %v6946
        %v6957 = vmul.u32 %v6912, %v6903
        %v6958 = vadd.s32 %v6934, %v6953
        %vm6959 = vc.u32 %v6934, %v6953
        %v6960 = vadd.s32 %v6956, 1
        %v6961 = vsel %vm6959, %v6960, %v6956
        %v6962 = vadd.s32 %v6957, %v6961
        %v6963 = vadd.s32 %v6962, 536870912
        %v6964 = vshrl.u32 %v6963, 30
        %v6965 = vshll.u32 %v6964, 30
        %v6966 = vsub.s32 %v6962, %v6965
        %vm6967 = vcmp.lt.s32.totalorder %v6966, 0
        %v6968 = vsub.s32 0, %v6966
        %v6969 = vsel %vm6967, %v6968, %v6966
        %v6970 = vclz %v6969
        %v6971 = vsub.s32 %v6970, 2
        %vm6972 = vcmp.gt.s32.totalorder 0, %v6971
        %v6973 = vsel %vm6972, 0, %v6971
        %v6974 = vsub.s32 32, %v6973
        %v6975 = vshll.u32 %v6966, %v6973
        %v6976 = vshrl.u32 %v6958, %v6974
        %v6977 = vor.u32 %v6975, %v6976
        %v6978 = vsub.s32 4294967266, %v6973
        %v6979 = vadd.s32 %v6978, 127
        %v6980 = vshll.u32 %v6979, 23
        %v6981 = vor.u32 4788187, %v6980
        %v6982 = vand.u32 2147483647, %v6981
        %v6984 = vcvt.s32.f32 %v6977
        %v6985 = vmul.f32 %v6984, %v6982
        %v6986 = vxor.u32 %v6985, 2147483648
        %v6987 = vsel %vm6866, %v6986, %v6985
        %v6988 = vsub.s32 4, %v6964
        %v6989 = vsel %vm6866, %v6988, %v6964
        %v6990 = vsel %vm6865, %v5768, %v6987
        %v6991 = vsel %vm6865, 0, %v6989
        %v6992 = vmul.f32 %v6990, %v6990
        %v6993 = vmul.f32 %v6992, -0.001358992
        %v6994 = vadd.f32 %v6993, 0.041655596
        %v6995 = vmul.f32 %v6992, %v6994
        %v6996 = vadd.f32 %v6995, -0.4999988
        %v6997 = vmul.f32 %v6992, %v6996
        %v6998 = vadd.f32 1.0, %v6997
        %v6999 = vmul.f32 %v6990, %v6990
        %v7000 = vmul.f32 %v6999, -0.00019511016
        %v7001 = vadd.f32 %v7000, 0.008332121
        %v7002 = vmul.f32 %v6999, %v7001
        %v7003 = vadd.f32 %v7002, -0.16666654
        %v7004 = vmul.f32 %v6999, %v7003
        %v7005 = vadd.f32 %v7004, 1.0
        %v7006 = vmul.f32 %v7005, %v6990
        %vm7007 = vweird.f32 %v5768
        %v7008 = vadd.s32 %v6991, 3
        %v7009 = vand.u32 %v7008, 3
        %vm7010 = vcmp.lt.s32.totalorder %v7009, 2
        %vm7011 = vcmp.eq.s32.totalorder %v7009, 0
        %v7012 = vxor.u32 %v7006, 2147483648
        %v7013 = vsel %vm7011, %v6998, %v7012
        %vm7014 = vcmp.eq.s32.totalorder %v7009, 2
        %v7015 = vxor.u32 %v6998, 2147483648
        %v7016 = vsel %vm7014, %v7015, %v7006
        %v7017 = vsel %vm7010, %v7013, %v7016
        %v7018 = vsel %vm7007, nan, %v7017
        %v7019 = vand.u32 2147483647, %v5568
        %vm7020 = vcmp.le.f32.partialorder %v7019, 0.7853982
        %vm7021 = vcmp.lt.s32.totalorder %v5568, 0
        %v7022 = vand.u32 %v5568, 2139095040
        %v7023 = vshrl.u32 %v7022, 23
        %v7024 = vsub.s32 %v7023, 127
        %v7025 = vand.u32 2147483647, %v5568
        %v7026 = vand.u32 %v7025, 8388607
        %v7027 = vor.u32 %v7026, 8388608
        %v7028 = vsub.s32 0, %v7027
        %v7029 = vadd.s32 %v7024, 1
        %vm7030 = vcmp.gt.s32.totalorder %v7029, 0
        %v7031 = vsel %vm7030, %v7029, 0
        %v7032 = vshrl.u32 %v7031, 5
        %v7033 = vand.u32 %v7031, 31
        %v7034 = vsub.s32 32, %v7033
        %v7035 = vshrl.u32 683565275, %v7034
        %v7036 = vshll.u32 683565275, %v7033
        %v7037 = vshrl.u32 2475754826, %v7034
        %v7038 = vor.u32 %v7036, %v7037
        %v7039 = vshll.u32 2475754826, %v7033
        %v7040 = vshrl.u32 2131351028, %v7034
        %v7041 = vor.u32 %v7039, %v7040
        %v7042 = vshll.u32 2131351028, %v7033
        %v7043 = vshrl.u32 2102212464, %v7034
        %v7044 = vor.u32 %v7042, %v7043
        %v7045 = vshll.u32 2102212464, %v7033
        %v7046 = vshrl.u32 920167782, %v7034
        %v7047 = vor.u32 %v7045, %v7046
        %v7048 = vshll.u32 920167782, %v7033
        %v7049 = vshrl.u32 1326507024, %v7034
        %v7050 = vor.u32 %v7048, %v7049
        %vm7051 = vcmp.lt.s32.totalorder %v7032, 1
        %vm7052 = vcmp.lt.s32.totalorder %v7032, 2
        %vm7053 = vcmp.lt.s32.totalorder %v7032, 3
        %vm7054 = vcmp.lt.s32.totalorder %v7032, 4
        %v7055 = vsel %vm7051, %v7035, %v7038
        %v7056 = vsel %vm7054, %v7044, 2102212464
        %v7057 = vsel %vm7053, %v7041, %v7056
        %v7058 = vsel %vm7052, %v7055, %v7057
        %v7059 = vsel %vm7051, %v7038, %v7041
        %v7060 = vsel %vm7054, %v7047, 920167782
        %v7061 = vsel %vm7053, %v7044, %v7060
        %v7062 = vsel %vm7052, %v7059, %v7061
        %v7063 = vsel %vm7051, %v7041, %v7044
        %v7064 = vsel %vm7054, %v7050, 1326507024
        %v7065 = vsel %vm7053, %v7047, %v7064
        %v7066 = vsel %vm7052, %v7063, %v7065
        %v7067 = vshll.u32 %v7027, 8
        %v7068 = vand.u32 %v7067, 65535
        %v7069 = vshrl.u32 %v7067, 16
        %v7070 = vand.u32 %v7066, 65535
        %v7071 = vshrl.u32 %v7066, 16
        %v7072 = vmul.u32 %v7068, %v7070
        %v7073 = vmul.u32 %v7068, %v7071
        %v7074 = vmul.u32 %v7069, %v7070
        %v7075 = vmul.u32 %v7069, %v7071
        %v7076 = vshll.u32 %v7073, 16
        %v7077 = vshrl.u32 %v7073, 16
        %v7078 = vshll.u32 %v7074, 16
        %v7079 = vshrl.u32 %v7074, 16
        %vm7080 = vc.u32 %v7072, %v7076
        %v7081 = vsel %vm7080, 1, 0
        %v7082 = vadd.s32 %v7072, %v7076
        %v7083 = vadd.s32 %v7075, %v7081
        %vm7084 = vc.u32 %v7082, %v7078
        %v7085 = vsel %vm7084, 1, 0
        %v7086 = vadd.s32 %v7082, %v7078
        %v7087 = vadd.s32 %v7083, %v7085
        %v7088 = vadd.s32 %v7087, %v7077
        %v7089 = vadd.s32 %v7088, %v7079
        %v7090 = vand.u32 %v7067, 65535
        %v7091 = vshrl.u32 %v7067, 16
        %v7092 = vand.u32 %v7062, 65535
        %v7093 = vshrl.u32 %v7062, 16
        %v7094 = vmul.u32 %v7090, %v7092
        %v7095 = vmul.u32 %v7090, %v7093
        %v7096 = vmul.u32 %v7091, %v7092
        %v7097 = vmul.u32 %v7091, %v7093
        %v7098 = vshll.u32 %v7095, 16
        %v7099 = vshrl.u32 %v7095, 16
        %v7100 = vshll.u32 %v7096, 16
        %v7101 = vshrl.u32 %v7096, 16
        %vm7102 = vc.u32 %v7094, %v7098
        %v7103 = vsel %vm7102, 1, 0
        %v7104 = vadd.s32 %v7094, %v7098
        %v7105 = vadd.s32 %v7097, %v7103
        %vm7106 = vc.u32 %v7104, %v7100
        %v7107 = vsel %vm7106, 1, 0
        %v7108 = vadd.s32 %v7104, %v7100
        %v7109 = vadd.s32 %v7105, %v7107
        %v7110 = vadd.s32 %v7109, %v7099
        %v7111 = vadd.s32 %v7110, %v7101
        %v7112 = vmul.u32 %v7067, %v7058
        %v7113 = vadd.s32 %v7089, %v7108
        %vm7114 = vc.u32 %v7089, %v7108
        %v7115 = vadd.s32 %v7111, 1
        %v7116 = vsel %vm7114, %v7115, %v7111
        %v7117 = vadd.s32 %v7112, %v7116
        %v7118 = vadd.s32 %v7117, 536870912
        %v7119 = vshrl.u32 %v7118, 30
        %v7120 = vshll.u32 %v7119, 30
        %v7121 = vsub.s32 %v7117, %v7120
        %vm7122 = vcmp.lt.s32.totalorder %v7121, 0
        %v7123 = vsub.s32 0, %v7121
        %v7124 = vsel %vm7122, %v7123, %v7121
        %v7125 = vclz %v7124
        %v7126 = vsub.s32 %v7125, 2
        %vm7127 = vcmp.gt.s32.totalorder 0, %v7126
        %v7128 = vsel %vm7127, 0, %v7126
        %v7129 = vsub.s32 32, %v7128
        %v7130 = vshll.u32 %v7121, %v7128
        %v7131 = vshrl.u32 %v7113, %v7129
        %v7132 = vor.u32 %v7130, %v7131
        %v7133 = vsub.s32 4294967266, %v7128
        %v7134 = vadd.s32 %v7133, 127
        %v7135 = vshll.u32 %v7134, 23
        %v7136 = vor.u32 4788187, %v7135
        %v7137 = vand.u32 2147483647, %v7136
        %v7139 = vcvt.s32.f32 %v7132
        %v7140 = vmul.f32 %v7139, %v7137
        %v7141 = vxor.u32 %v7140, 2147483648
        %v7142 = vsel %vm7021, %v7141, %v7140
        %v7143 = vsub.s32 4, %v7119
        %v7144 = vsel %vm7021, %v7143, %v7119
        %v7145 = vsel %vm7020, %v5568, %v7142
        %v7146 = vsel %vm7020, 0, %v7144
        %v7147 = vmul.f32 %v7145, %v7145
        %v7148 = vmul.f32 %v7147, -0.001358992
        %v7149 = vadd.f32 %v7148, 0.041655596
        %v7150 = vmul.f32 %v7147, %v7149
        %v7151 = vadd.f32 %v7150, -0.4999988
        %v7152 = vmul.f32 %v7147, %v7151
        %v7153 = vadd.f32 1.0, %v7152
        %v7154 = vmul.f32 %v7145, %v7145
        %v7155 = vmul.f32 %v7154, -0.00019511016
        %v7156 = vadd.f32 %v7155, 0.008332121
        %v7157 = vmul.f32 %v7154, %v7156
        %v7158 = vadd.f32 %v7157, -0.16666654
        %v7159 = vmul.f32 %v7154, %v7158
        %v7160 = vadd.f32 %v7159, 1.0
        %v7161 = vmul.f32 %v7160, %v7145
        %vm7162 = vweird.f32 %v5568
        %v7163 = vadd.s32 %v7146, 3
        %v7164 = vand.u32 %v7163, 3
        %vm7165 = vcmp.lt.s32.totalorder %v7164, 2
        %vm7166 = vcmp.eq.s32.totalorder %v7164, 0
        %v7167 = vxor.u32 %v7161, 2147483648
        %v7168 = vsel %vm7166, %v7153, %v7167
        %vm7169 = vcmp.eq.s32.totalorder %v7164, 2
        %v7170 = vxor.u32 %v7153, 2147483648
        %v7171 = vsel %vm7169, %v7170, %v7161
        %v7172 = vsel %vm7165, %v7168, %v7171
        %v7173 = vsel %vm7162, nan, %v7172
        %v7174 = vand.u32 2147483647, %v5597
        %vm7175 = vcmp.le.f32.partialorder %v7174, 0.7853982
        %vm7176 = vcmp.lt.s32.totalorder %v5597, 0
        %v7177 = vand.u32 %v5597, 2139095040
        %v7178 = vshrl.u32 %v7177, 23
        %v7179 = vsub.s32 %v7178, 127
        %v7180 = vand.u32 2147483647, %v5597
        %v7181 = vand.u32 %v7180, 8388607
        %v7182 = vor.u32 %v7181, 8388608
        %v7183 = vsub.s32 0, %v7182
        %v7184 = vadd.s32 %v7179, 1
        %vm7185 = vcmp.gt.s32.totalorder %v7184, 0
        %v7186 = vsel %vm7185, %v7184, 0
        %v7187 = vshrl.u32 %v7186, 5
        %v7188 = vand.u32 %v7186, 31
        %v7189 = vsub.s32 32, %v7188
        %v7190 = vshrl.u32 683565275, %v7189
        %v7191 = vshll.u32 683565275, %v7188
        %v7192 = vshrl.u32 2475754826, %v7189
        %v7193 = vor.u32 %v7191, %v7192
        %v7194 = vshll.u32 2475754826, %v7188
        %v7195 = vshrl.u32 2131351028, %v7189
        %v7196 = vor.u32 %v7194, %v7195
        %v7197 = vshll.u32 2131351028, %v7188
        %v7198 = vshrl.u32 2102212464, %v7189
        %v7199 = vor.u32 %v7197, %v7198
        %v7200 = vshll.u32 2102212464, %v7188
        %v7201 = vshrl.u32 920167782, %v7189
        %v7202 = vor.u32 %v7200, %v7201
        %v7203 = vshll.u32 920167782, %v7188
        %v7204 = vshrl.u32 1326507024, %v7189
        %v7205 = vor.u32 %v7203, %v7204
        %vm7206 = vcmp.lt.s32.totalorder %v7187, 1
        %vm7207 = vcmp.lt.s32.totalorder %v7187, 2
        %vm7208 = vcmp.lt.s32.totalorder %v7187, 3
        %vm7209 = vcmp.lt.s32.totalorder %v7187, 4
        %v7210 = vsel %vm7206, %v7190, %v7193
        %v7211 = vsel %vm7209, %v7199, 2102212464
        %v7212 = vsel %vm7208, %v7196, %v7211
        %v7213 = vsel %vm7207, %v7210, %v7212
        %v7214 = vsel %vm7206, %v7193, %v7196
        %v7215 = vsel %vm7209, %v7202, 920167782
        %v7216 = vsel %vm7208, %v7199, %v7215
        %v7217 = vsel %vm7207, %v7214, %v7216
        %v7218 = vsel %vm7206, %v7196, %v7199
        %v7219 = vsel %vm7209, %v7205, 1326507024
        %v7220 = vsel %vm7208, %v7202, %v7219
        %v7221 = vsel %vm7207, %v7218, %v7220
        %v7222 = vshll.u32 %v7182, 8
        %v7223 = vand.u32 %v7222, 65535
        %v7224 = vshrl.u32 %v7222, 16
        %v7225 = vand.u32 %v7221, 65535
        %v7226 = vshrl.u32 %v7221, 16
        %v7227 = vmul.u32 %v7223, %v7225
        %v7228 = vmul.u32 %v7223, %v7226
        %v7229 = vmul.u32 %v7224, %v7225
        %v7230 = vmul.u32 %v7224, %v7226
        %v7231 = vshll.u32 %v7228, 16
        %v7232 = vshrl.u32 %v7228, 16
        %v7233 = vshll.u32 %v7229, 16
        %v7234 = vshrl.u32 %v7229, 16
        %vm7235 = vc.u32 %v7227, %v7231
        %v7236 = vsel %vm7235, 1, 0
        %v7237 = vadd.s32 %v7227, %v7231
        %v7238 = vadd.s32 %v7230, %v7236
        %vm7239 = vc.u32 %v7237, %v7233
        %v7240 = vsel %vm7239, 1, 0
        %v7241 = vadd.s32 %v7237, %v7233
        %v7242 = vadd.s32 %v7238, %v7240
        %v7243 = vadd.s32 %v7242, %v7232
        %v7244 = vadd.s32 %v7243, %v7234
        %v7245 = vand.u32 %v7222, 65535
        %v7246 = vshrl.u32 %v7222, 16
        %v7247 = vand.u32 %v7217, 65535
        %v7248 = vshrl.u32 %v7217, 16
        %v7249 = vmul.u32 %v7245, %v7247
        %v7250 = vmul.u32 %v7245, %v7248
        %v7251 = vmul.u32 %v7246, %v7247
        %v7252 = vmul.u32 %v7246, %v7248
        %v7253 = vshll.u32 %v7250, 16
        %v7254 = vshrl.u32 %v7250, 16
        %v7255 = vshll.u32 %v7251, 16
        %v7256 = vshrl.u32 %v7251, 16
        %vm7257 = vc.u32 %v7249, %v7253
        %v7258 = vsel %vm7257, 1, 0
        %v7259 = vadd.s32 %v7249, %v7253
        %v7260 = vadd.s32 %v7252, %v7258
        %vm7261 = vc.u32 %v7259, %v7255
        %v7262 = vsel %vm7261, 1, 0
        %v7263 = vadd.s32 %v7259, %v7255
        %v7264 = vadd.s32 %v7260, %v7262
        %v7265 = vadd.s32 %v7264, %v7254
        %v7266 = vadd.s32 %v7265, %v7256
        %v7267 = vmul.u32 %v7222, %v7213
        %v7268 = vadd.s32 %v7244, %v7263
        %vm7269 = vc.u32 %v7244, %v7263
        %v7270 = vadd.s32 %v7266, 1
        %v7271 = vsel %vm7269, %v7270, %v7266
        %v7272 = vadd.s32 %v7267, %v7271
        %v7273 = vadd.s32 %v7272, 536870912
        %v7274 = vshrl.u32 %v7273, 30
        %v7275 = vshll.u32 %v7274, 30
        %v7276 = vsub.s32 %v7272, %v7275
        %vm7277 = vcmp.lt.s32.totalorder %v7276, 0
        %v7278 = vsub.s32 0, %v7276
        %v7279 = vsel %vm7277, %v7278, %v7276
        %v7280 = vclz %v7279
        %v7281 = vsub.s32 %v7280, 2
        %vm7282 = vcmp.gt.s32.totalorder 0, %v7281
        %v7283 = vsel %vm7282, 0, %v7281
        %v7284 = vsub.s32 32, %v7283
        %v7285 = vshll.u32 %v7276, %v7283
        %v7286 = vshrl.u32 %v7268, %v7284
        %v7287 = vor.u32 %v7285, %v7286
        %v7288 = vsub.s32 4294967266, %v7283
        %v7289 = vadd.s32 %v7288, 127
        %v7290 = vshll.u32 %v7289, 23
        %v7291 = vor.u32 4788187, %v7290
        %v7292 = vand.u32 2147483647, %v7291
        %v7294 = vcvt.s32.f32 %v7287
        %v7295 = vmul.f32 %v7294, %v7292
        %v7296 = vxor.u32 %v7295, 2147483648
        %v7297 = vsel %vm7176, %v7296, %v7295
        %v7298 = vsub.s32 4, %v7274
        %v7299 = vsel %vm7176, %v7298, %v7274
        %v7300 = vsel %vm7175, %v5597, %v7297
        %v7301 = vsel %vm7175, 0, %v7299
        %v7302 = vmul.f32 %v7300, %v7300
        %v7303 = vmul.f32 %v7302, -0.001358992
        %v7304 = vadd.f32 %v7303, 0.041655596
        %v7305 = vmul.f32 %v7302, %v7304
        %v7306 = vadd.f32 %v7305, -0.4999988
        %v7307 = vmul.f32 %v7302, %v7306
        %v7308 = vadd.f32 1.0, %v7307
        %v7309 = vmul.f32 %v7300, %v7300
        %v7310 = vmul.f32 %v7309, -0.00019511016
        %v7311 = vadd.f32 %v7310, 0.008332121
        %v7312 = vmul.f32 %v7309, %v7311
        %v7313 = vadd.f32 %v7312, -0.16666654
        %v7314 = vmul.f32 %v7309, %v7313
        %v7315 = vadd.f32 %v7314, 1.0
        %v7316 = vmul.f32 %v7315, %v7300
        %vm7317 = vweird.f32 %v5597
        %v7318 = vadd.s32 %v7301, 3
        %v7319 = vand.u32 %v7318, 3
        %vm7320 = vcmp.lt.s32.totalorder %v7319, 2
        %vm7321 = vcmp.eq.s32.totalorder %v7319, 0
        %v7322 = vxor.u32 %v7316, 2147483648
        %v7323 = vsel %vm7321, %v7308, %v7322
        %vm7324 = vcmp.eq.s32.totalorder %v7319, 2
        %v7325 = vxor.u32 %v7308, 2147483648
        %v7326 = vsel %vm7324, %v7325, %v7316
        %v7327 = vsel %vm7320, %v7323, %v7326
        %v7328 = vsel %vm7317, nan, %v7327
        %v7329 = vand.u32 2147483647, %v5626
        %vm7330 = vcmp.le.f32.partialorder %v7329, 0.7853982
        %vm7331 = vcmp.lt.s32.totalorder %v5626, 0
        %v7332 = vand.u32 %v5626, 2139095040
        %v7333 = vshrl.u32 %v7332, 23
        %v7334 = vsub.s32 %v7333, 127
        %v7335 = vand.u32 2147483647, %v5626
        %v7336 = vand.u32 %v7335, 8388607
        %v7337 = vor.u32 %v7336, 8388608
        %v7338 = vsub.s32 0, %v7337
        %v7339 = vadd.s32 %v7334, 1
        %vm7340 = vcmp.gt.s32.totalorder %v7339, 0
        %v7341 = vsel %vm7340, %v7339, 0
        %v7342 = vshrl.u32 %v7341, 5
        %v7343 = vand.u32 %v7341, 31
        %v7344 = vsub.s32 32, %v7343
        %v7345 = vshrl.u32 683565275, %v7344
        %v7346 = vshll.u32 683565275, %v7343
        %v7347 = vshrl.u32 2475754826, %v7344
        %v7348 = vor.u32 %v7346, %v7347
        %v7349 = vshll.u32 2475754826, %v7343
        %v7350 = vshrl.u32 2131351028, %v7344
        %v7351 = vor.u32 %v7349, %v7350
        %v7352 = vshll.u32 2131351028, %v7343
        %v7353 = vshrl.u32 2102212464, %v7344
        %v7354 = vor.u32 %v7352, %v7353
        %v7355 = vshll.u32 2102212464, %v7343
        %v7356 = vshrl.u32 920167782, %v7344
        %v7357 = vor.u32 %v7355, %v7356
        %v7358 = vshll.u32 920167782, %v7343
        %v7359 = vshrl.u32 1326507024, %v7344
        %v7360 = vor.u32 %v7358, %v7359
        %vm7361 = vcmp.lt.s32.totalorder %v7342, 1
        %vm7362 = vcmp.lt.s32.totalorder %v7342, 2
        %vm7363 = vcmp.lt.s32.totalorder %v7342, 3
        %vm7364 = vcmp.lt.s32.totalorder %v7342, 4
        %v7365 = vsel %vm7361, %v7345, %v7348
        %v7366 = vsel %vm7364, %v7354, 2102212464
        %v7367 = vsel %vm7363, %v7351, %v7366
        %v7368 = vsel %vm7362, %v7365, %v7367
        %v7369 = vsel %vm7361, %v7348, %v7351
        %v7370 = vsel %vm7364, %v7357, 920167782
        %v7371 = vsel %vm7363, %v7354, %v7370
        %v7372 = vsel %vm7362, %v7369, %v7371
        %v7373 = vsel %vm7361, %v7351, %v7354
        %v7374 = vsel %vm7364, %v7360, 1326507024
        %v7375 = vsel %vm7363, %v7357, %v7374
        %v7376 = vsel %vm7362, %v7373, %v7375
        %v7377 = vshll.u32 %v7337, 8
        %v7378 = vand.u32 %v7377, 65535
        %v7379 = vshrl.u32 %v7377, 16
        %v7380 = vand.u32 %v7376, 65535
        %v7381 = vshrl.u32 %v7376, 16
        %v7382 = vmul.u32 %v7378, %v7380
        %v7383 = vmul.u32 %v7378, %v7381
        %v7384 = vmul.u32 %v7379, %v7380
        %v7385 = vmul.u32 %v7379, %v7381
        %v7386 = vshll.u32 %v7383, 16
        %v7387 = vshrl.u32 %v7383, 16
        %v7388 = vshll.u32 %v7384, 16
        %v7389 = vshrl.u32 %v7384, 16
        %vm7390 = vc.u32 %v7382, %v7386
        %v7391 = vsel %vm7390, 1, 0
        %v7392 = vadd.s32 %v7382, %v7386
        %v7393 = vadd.s32 %v7385, %v7391
        %vm7394 = vc.u32 %v7392, %v7388
        %v7395 = vsel %vm7394, 1, 0
        %v7396 = vadd.s32 %v7392, %v7388
        %v7397 = vadd.s32 %v7393, %v7395
        %v7398 = vadd.s32 %v7397, %v7387
        %v7399 = vadd.s32 %v7398, %v7389
        %v7400 = vand.u32 %v7377, 65535
        %v7401 = vshrl.u32 %v7377, 16
        %v7402 = vand.u32 %v7372, 65535
        %v7403 = vshrl.u32 %v7372, 16
        %v7404 = vmul.u32 %v7400, %v7402
        %v7405 = vmul.u32 %v7400, %v7403
        %v7406 = vmul.u32 %v7401, %v7402
        %v7407 = vmul.u32 %v7401, %v7403
        %v7408 = vshll.u32 %v7405, 16
        %v7409 = vshrl.u32 %v7405, 16
        %v7410 = vshll.u32 %v7406, 16
        %v7411 = vshrl.u32 %v7406, 16
        %vm7412 = vc.u32 %v7404, %v7408
        %v7413 = vsel %vm7412, 1, 0
        %v7414 = vadd.s32 %v7404, %v7408
        %v7415 = vadd.s32 %v7407, %v7413
        %vm7416 = vc.u32 %v7414, %v7410
        %v7417 = vsel %vm7416, 1, 0
        %v7418 = vadd.s32 %v7414, %v7410
        %v7419 = vadd.s32 %v7415, %v7417
        %v7420 = vadd.s32 %v7419, %v7409
        %v7421 = vadd.s32 %v7420, %v7411
        %v7422 = vmul.u32 %v7377, %v7368
        %v7423 = vadd.s32 %v7399, %v7418
        %vm7424 = vc.u32 %v7399, %v7418
        %v7425 = vadd.s32 %v7421, 1
        %v7426 = vsel %vm7424, %v7425, %v7421
        %v7427 = vadd.s32 %v7422, %v7426
        %v7428 = vadd.s32 %v7427, 536870912
        %v7429 = vshrl.u32 %v7428, 30
        %v7430 = vshll.u32 %v7429, 30
        %v7431 = vsub.s32 %v7427, %v7430
        %vm7432 = vcmp.lt.s32.totalorder %v7431, 0
        %v7433 = vsub.s32 0, %v7431
        %v7434 = vsel %vm7432, %v7433, %v7431
        %v7435 = vclz %v7434
        %v7436 = vsub.s32 %v7435, 2
        %vm7437 = vcmp.gt.s32.totalorder 0, %v7436
        %v7438 = vsel %vm7437, 0, %v7436
        %v7439 = vsub.s32 32, %v7438
        %v7440 = vshll.u32 %v7431, %v7438
        %v7441 = vshrl.u32 %v7423, %v7439
        %v7442 = vor.u32 %v7440, %v7441
        %v7443 = vsub.s32 4294967266, %v7438
        %v7444 = vadd.s32 %v7443, 127
        %v7445 = vshll.u32 %v7444, 23
        %v7446 = vor.u32 4788187, %v7445
        %v7447 = vand.u32 2147483647, %v7446
        %v7449 = vcvt.s32.f32 %v7442
        %v7450 = vmul.f32 %v7449, %v7447
        %v7451 = vxor.u32 %v7450, 2147483648
        %v7452 = vsel %vm7331, %v7451, %v7450
        %v7453 = vsub.s32 4, %v7429
        %v7454 = vsel %vm7331, %v7453, %v7429
        %v7455 = vsel %vm7330, %v5626, %v7452
        %v7456 = vsel %vm7330, 0, %v7454
        %v7457 = vmul.f32 %v7455, %v7455
        %v7458 = vmul.f32 %v7457, -0.001358992
        %v7459 = vadd.f32 %v7458, 0.041655596
        %v7460 = vmul.f32 %v7457, %v7459
        %v7461 = vadd.f32 %v7460, -0.4999988
        %v7462 = vmul.f32 %v7457, %v7461
        %v7463 = vadd.f32 1.0, %v7462
        %v7464 = vmul.f32 %v7455, %v7455
        %v7465 = vmul.f32 %v7464, -0.00019511016
        %v7466 = vadd.f32 %v7465, 0.008332121
        %v7467 = vmul.f32 %v7464, %v7466
        %v7468 = vadd.f32 %v7467, -0.16666654
        %v7469 = vmul.f32 %v7464, %v7468
        %v7470 = vadd.f32 %v7469, 1.0
        %v7471 = vmul.f32 %v7470, %v7455
        %vm7472 = vweird.f32 %v5626
        %v7473 = vadd.s32 %v7456, 3
        %v7474 = vand.u32 %v7473, 3
        %vm7475 = vcmp.lt.s32.totalorder %v7474, 2
        %vm7476 = vcmp.eq.s32.totalorder %v7474, 0
        %v7477 = vxor.u32 %v7471, 2147483648
        %v7478 = vsel %vm7476, %v7463, %v7477
        %vm7479 = vcmp.eq.s32.totalorder %v7474, 2
        %v7480 = vxor.u32 %v7463, 2147483648
        %v7481 = vsel %vm7479, %v7480, %v7471
        %v7482 = vsel %vm7475, %v7478, %v7481
        %v7483 = vsel %vm7472, nan, %v7482
        %v7484 = vand.u32 2147483647, %v5655
        %vm7485 = vcmp.le.f32.partialorder %v7484, 0.7853982
        %vm7486 = vcmp.lt.s32.totalorder %v5655, 0
        %v7487 = vand.u32 %v5655, 2139095040
        %v7488 = vshrl.u32 %v7487, 23
        %v7489 = vsub.s32 %v7488, 127
        %v7490 = vand.u32 2147483647, %v5655
        %v7491 = vand.u32 %v7490, 8388607
        %v7492 = vor.u32 %v7491, 8388608
        %v7493 = vsub.s32 0, %v7492
        %v7494 = vadd.s32 %v7489, 1
        %vm7495 = vcmp.gt.s32.totalorder %v7494, 0
        %v7496 = vsel %vm7495, %v7494, 0
        %v7497 = vshrl.u32 %v7496, 5
        %v7498 = vand.u32 %v7496, 31
        %v7499 = vsub.s32 32, %v7498
        %v7500 = vshrl.u32 683565275, %v7499
        %v7501 = vshll.u32 683565275, %v7498
        %v7502 = vshrl.u32 2475754826, %v7499
        %v7503 = vor.u32 %v7501, %v7502
        %v7504 = vshll.u32 2475754826, %v7498
        %v7505 = vshrl.u32 2131351028, %v7499
        %v7506 = vor.u32 %v7504, %v7505
        %v7507 = vshll.u32 2131351028, %v7498
        %v7508 = vshrl.u32 2102212464, %v7499
        %v7509 = vor.u32 %v7507, %v7508
        %v7510 = vshll.u32 2102212464, %v7498
        %v7511 = vshrl.u32 920167782, %v7499
        %v7512 = vor.u32 %v7510, %v7511
        %v7513 = vshll.u32 920167782, %v7498
        %v7514 = vshrl.u32 1326507024, %v7499
        %v7515 = vor.u32 %v7513, %v7514
        %vm7516 = vcmp.lt.s32.totalorder %v7497, 1
        %vm7517 = vcmp.lt.s32.totalorder %v7497, 2
        %vm7518 = vcmp.lt.s32.totalorder %v7497, 3
        %vm7519 = vcmp.lt.s32.totalorder %v7497, 4
        %v7520 = vsel %vm7516, %v7500, %v7503
        %v7521 = vsel %vm7519, %v7509, 2102212464
        %v7522 = vsel %vm7518, %v7506, %v7521
        %v7523 = vsel %vm7517, %v7520, %v7522
        %v7524 = vsel %vm7516, %v7503, %v7506
        %v7525 = vsel %vm7519, %v7512, 920167782
        %v7526 = vsel %vm7518, %v7509, %v7525
        %v7527 = vsel %vm7517, %v7524, %v7526
        %v7528 = vsel %vm7516, %v7506, %v7509
        %v7529 = vsel %vm7519, %v7515, 1326507024
        %v7530 = vsel %vm7518, %v7512, %v7529
        %v7531 = vsel %vm7517, %v7528, %v7530
        %v7532 = vshll.u32 %v7492, 8
        %v7533 = vand.u32 %v7532, 65535
        %v7534 = vshrl.u32 %v7532, 16
        %v7535 = vand.u32 %v7531, 65535
        %v7536 = vshrl.u32 %v7531, 16
        %v7537 = vmul.u32 %v7533, %v7535
        %v7538 = vmul.u32 %v7533, %v7536
        %v7539 = vmul.u32 %v7534, %v7535
        %v7540 = vmul.u32 %v7534, %v7536
        %v7541 = vshll.u32 %v7538, 16
        %v7542 = vshrl.u32 %v7538, 16
        %v7543 = vshll.u32 %v7539, 16
        %v7544 = vshrl.u32 %v7539, 16
        %vm7545 = vc.u32 %v7537, %v7541
        %v7546 = vsel %vm7545, 1, 0
        %v7547 = vadd.s32 %v7537, %v7541
        %v7548 = vadd.s32 %v7540, %v7546
        %vm7549 = vc.u32 %v7547, %v7543
        %v7550 = vsel %vm7549, 1, 0
        %v7551 = vadd.s32 %v7547, %v7543
        %v7552 = vadd.s32 %v7548, %v7550
        %v7553 = vadd.s32 %v7552, %v7542
        %v7554 = vadd.s32 %v7553, %v7544
        %v7555 = vand.u32 %v7532, 65535
        %v7556 = vshrl.u32 %v7532, 16
        %v7557 = vand.u32 %v7527, 65535
        %v7558 = vshrl.u32 %v7527, 16
        %v7559 = vmul.u32 %v7555, %v7557
        %v7560 = vmul.u32 %v7555, %v7558
        %v7561 = vmul.u32 %v7556, %v7557
        %v7562 = vmul.u32 %v7556, %v7558
        %v7563 = vshll.u32 %v7560, 16
        %v7564 = vshrl.u32 %v7560, 16
        %v7565 = vshll.u32 %v7561, 16
        %v7566 = vshrl.u32 %v7561, 16
        %vm7567 = vc.u32 %v7559, %v7563
        %v7568 = vsel %vm7567, 1, 0
        %v7569 = vadd.s32 %v7559, %v7563
        %v7570 = vadd.s32 %v7562, %v7568
        %vm7571 = vc.u32 %v7569, %v7565
        %v7572 = vsel %vm7571, 1, 0
        %v7573 = vadd.s32 %v7569, %v7565
        %v7574 = vadd.s32 %v7570, %v7572
        %v7575 = vadd.s32 %v7574, %v7564
        %v7576 = vadd.s32 %v7575, %v7566
        %v7577 = vmul.u32 %v7532, %v7523
        %v7578 = vadd.s32 %v7554, %v7573
        %vm7579 = vc.u32 %v7554, %v7573
        %v7580 = vadd.s32 %v7576, 1
        %v7581 = vsel %vm7579, %v7580, %v7576
        %v7582 = vadd.s32 %v7577, %v7581
        %v7583 = vadd.s32 %v7582, 536870912
        %v7584 = vshrl.u32 %v7583, 30
        %v7585 = vshll.u32 %v7584, 30
        %v7586 = vsub.s32 %v7582, %v7585
        %vm7587 = vcmp.lt.s32.totalorder %v7586, 0
        %v7588 = vsub.s32 0, %v7586
        %v7589 = vsel %vm7587, %v7588, %v7586
        %v7590 = vclz %v7589
        %v7591 = vsub.s32 %v7590, 2
        %vm7592 = vcmp.gt.s32.totalorder 0, %v7591
        %v7593 = vsel %vm7592, 0, %v7591
        %v7594 = vsub.s32 32, %v7593
        %v7595 = vshll.u32 %v7586, %v7593
        %v7596 = vshrl.u32 %v7578, %v7594
        %v7597 = vor.u32 %v7595, %v7596
        %v7598 = vsub.s32 4294967266, %v7593
        %v7599 = vadd.s32 %v7598, 127
        %v7600 = vshll.u32 %v7599, 23
        %v7601 = vor.u32 4788187, %v7600
        %v7602 = vand.u32 2147483647, %v7601
        %v7604 = vcvt.s32.f32 %v7597
        %v7605 = vmul.f32 %v7604, %v7602
        %v7606 = vxor.u32 %v7605, 2147483648
        %v7607 = vsel %vm7486, %v7606, %v7605
        %v7608 = vsub.s32 4, %v7584
        %v7609 = vsel %vm7486, %v7608, %v7584
        %v7610 = vsel %vm7485, %v5655, %v7607
        %v7611 = vsel %vm7485, 0, %v7609
        %v7612 = vmul.f32 %v7610, %v7610
        %v7613 = vmul.f32 %v7612, -0.001358992
        %v7614 = vadd.f32 %v7613, 0.041655596
        %v7615 = vmul.f32 %v7612, %v7614
        %v7616 = vadd.f32 %v7615, -0.4999988
        %v7617 = vmul.f32 %v7612, %v7616
        %v7618 = vadd.f32 1.0, %v7617
        %v7619 = vmul.f32 %v7610, %v7610
        %v7620 = vmul.f32 %v7619, -0.00019511016
        %v7621 = vadd.f32 %v7620, 0.008332121
        %v7622 = vmul.f32 %v7619, %v7621
        %v7623 = vadd.f32 %v7622, -0.16666654
        %v7624 = vmul.f32 %v7619, %v7623
        %v7625 = vadd.f32 %v7624, 1.0
        %v7626 = vmul.f32 %v7625, %v7610
        %vm7627 = vweird.f32 %v5655
        %v7628 = vadd.s32 %v7611, 3
        %v7629 = vand.u32 %v7628, 3
        %vm7630 = vcmp.lt.s32.totalorder %v7629, 2
        %vm7631 = vcmp.eq.s32.totalorder %v7629, 0
        %v7632 = vxor.u32 %v7626, 2147483648
        %v7633 = vsel %vm7631, %v7618, %v7632
        %vm7634 = vcmp.eq.s32.totalorder %v7629, 2
        %v7635 = vxor.u32 %v7618, 2147483648
        %v7636 = vsel %vm7634, %v7635, %v7626
        %v7637 = vsel %vm7630, %v7633, %v7636
        %v7638 = vsel %vm7627, nan, %v7637
        %v7639 = vand.u32 2147483647, %v5684
        %vm7640 = vcmp.le.f32.partialorder %v7639, 0.7853982
        %vm7641 = vcmp.lt.s32.totalorder %v5684, 0
        %v7642 = vand.u32 %v5684, 2139095040
        %v7643 = vshrl.u32 %v7642, 23
        %v7644 = vsub.s32 %v7643, 127
        %v7645 = vand.u32 2147483647, %v5684
        %v7646 = vand.u32 %v7645, 8388607
        %v7647 = vor.u32 %v7646, 8388608
        %v7648 = vsub.s32 0, %v7647
        %v7649 = vadd.s32 %v7644, 1
        %vm7650 = vcmp.gt.s32.totalorder %v7649, 0
        %v7651 = vsel %vm7650, %v7649, 0
        %v7652 = vshrl.u32 %v7651, 5
        %v7653 = vand.u32 %v7651, 31
        %v7654 = vsub.s32 32, %v7653
        %v7655 = vshrl.u32 683565275, %v7654
        %v7656 = vshll.u32 683565275, %v7653
        %v7657 = vshrl.u32 2475754826, %v7654
        %v7658 = vor.u32 %v7656, %v7657
        %v7659 = vshll.u32 2475754826, %v7653
        %v7660 = vshrl.u32 2131351028, %v7654
        %v7661 = vor.u32 %v7659, %v7660
        %v7662 = vshll.u32 2131351028, %v7653
        %v7663 = vshrl.u32 2102212464, %v7654
        %v7664 = vor.u32 %v7662, %v7663
        %v7665 = vshll.u32 2102212464, %v7653
        %v7666 = vshrl.u32 920167782, %v7654
        %v7667 = vor.u32 %v7665, %v7666
        %v7668 = vshll.u32 920167782, %v7653
        %v7669 = vshrl.u32 1326507024, %v7654
        %v7670 = vor.u32 %v7668, %v7669
        %vm7671 = vcmp.lt.s32.totalorder %v7652, 1
        %vm7672 = vcmp.lt.s32.totalorder %v7652, 2
        %vm7673 = vcmp.lt.s32.totalorder %v7652, 3
        %vm7674 = vcmp.lt.s32.totalorder %v7652, 4
        %v7675 = vsel %vm7671, %v7655, %v7658
        %v7676 = vsel %vm7674, %v7664, 2102212464
        %v7677 = vsel %vm7673, %v7661, %v7676
        %v7678 = vsel %vm7672, %v7675, %v7677
        %v7679 = vsel %vm7671, %v7658, %v7661
        %v7680 = vsel %vm7674, %v7667, 920167782
        %v7681 = vsel %vm7673, %v7664, %v7680
        %v7682 = vsel %vm7672, %v7679, %v7681
        %v7683 = vsel %vm7671, %v7661, %v7664
        %v7684 = vsel %vm7674, %v7670, 1326507024
        %v7685 = vsel %vm7673, %v7667, %v7684
        %v7686 = vsel %vm7672, %v7683, %v7685
        %v7687 = vshll.u32 %v7647, 8
        %v7688 = vand.u32 %v7687, 65535
        %v7689 = vshrl.u32 %v7687, 16
        %v7690 = vand.u32 %v7686, 65535
        %v7691 = vshrl.u32 %v7686, 16
        %v7692 = vmul.u32 %v7688, %v7690
        %v7693 = vmul.u32 %v7688, %v7691
        %v7694 = vmul.u32 %v7689, %v7690
        %v7695 = vmul.u32 %v7689, %v7691
        %v7696 = vshll.u32 %v7693, 16
        %v7697 = vshrl.u32 %v7693, 16
        %v7698 = vshll.u32 %v7694, 16
        %v7699 = vshrl.u32 %v7694, 16
        %vm7700 = vc.u32 %v7692, %v7696
        %v7701 = vsel %vm7700, 1, 0
        %v7702 = vadd.s32 %v7692, %v7696
        %v7703 = vadd.s32 %v7695, %v7701
        %vm7704 = vc.u32 %v7702, %v7698
        %v7705 = vsel %vm7704, 1, 0
        %v7706 = vadd.s32 %v7702, %v7698
        %v7707 = vadd.s32 %v7703, %v7705
        %v7708 = vadd.s32 %v7707, %v7697
        %v7709 = vadd.s32 %v7708, %v7699
        %v7710 = vand.u32 %v7687, 65535
        %v7711 = vshrl.u32 %v7687, 16
        %v7712 = vand.u32 %v7682, 65535
        %v7713 = vshrl.u32 %v7682, 16
        %v7714 = vmul.u32 %v7710, %v7712
        %v7715 = vmul.u32 %v7710, %v7713
        %v7716 = vmul.u32 %v7711, %v7712
        %v7717 = vmul.u32 %v7711, %v7713
        %v7718 = vshll.u32 %v7715, 16
        %v7719 = vshrl.u32 %v7715, 16
        %v7720 = vshll.u32 %v7716, 16
        %v7721 = vshrl.u32 %v7716, 16
        %vm7722 = vc.u32 %v7714, %v7718
        %v7723 = vsel %vm7722, 1, 0
        %v7724 = vadd.s32 %v7714, %v7718
        %v7725 = vadd.s32 %v7717, %v7723
        %vm7726 = vc.u32 %v7724, %v7720
        %v7727 = vsel %vm7726, 1, 0
        %v7728 = vadd.s32 %v7724, %v7720
        %v7729 = vadd.s32 %v7725, %v7727
        %v7730 = vadd.s32 %v7729, %v7719
        %v7731 = vadd.s32 %v7730, %v7721
        %v7732 = vmul.u32 %v7687, %v7678
        %v7733 = vadd.s32 %v7709, %v7728
        %vm7734 = vc.u32 %v7709, %v7728
        %v7735 = vadd.s32 %v7731, 1
        %v7736 = vsel %vm7734, %v7735, %v7731
        %v7737 = vadd.s32 %v7732, %v7736
        %v7738 = vadd.s32 %v7737, 536870912
        %v7739 = vshrl.u32 %v7738, 30
        %v7740 = vshll.u32 %v7739, 30
        %v7741 = vsub.s32 %v7737, %v7740
        %vm7742 = vcmp.lt.s32.totalorder %v7741, 0
        %v7743 = vsub.s32 0, %v7741
        %v7744 = vsel %vm7742, %v7743, %v7741
        %v7745 = vclz %v7744
        %v7746 = vsub.s32 %v7745, 2
        %vm7747 = vcmp.gt.s32.totalorder 0, %v7746
        %v7748 = vsel %vm7747, 0, %v7746
        %v7749 = vsub.s32 32, %v7748
        %v7750 = vshll.u32 %v7741, %v7748
        %v7751 = vshrl.u32 %v7733, %v7749
        %v7752 = vor.u32 %v7750, %v7751
        %v7753 = vsub.s32 4294967266, %v7748
        %v7754 = vadd.s32 %v7753, 127
        %v7755 = vshll.u32 %v7754, 23
        %v7756 = vor.u32 4788187, %v7755
        %v7757 = vand.u32 2147483647, %v7756
        %v7759 = vcvt.s32.f32 %v7752
        %v7760 = vmul.f32 %v7759, %v7757
        %v7761 = vxor.u32 %v7760, 2147483648
        %v7762 = vsel %vm7641, %v7761, %v7760
        %v7763 = vsub.s32 4, %v7739
        %v7764 = vsel %vm7641, %v7763, %v7739
        %v7765 = vsel %vm7640, %v5684, %v7762
        %v7766 = vsel %vm7640, 0, %v7764
        %v7767 = vmul.f32 %v7765, %v7765
        %v7768 = vmul.f32 %v7767, -0.001358992
        %v7769 = vadd.f32 %v7768, 0.041655596
        %v7770 = vmul.f32 %v7767, %v7769
        %v7771 = vadd.f32 %v7770, -0.4999988
        %v7772 = vmul.f32 %v7767, %v7771
        %v7773 = vadd.f32 1.0, %v7772
        %v7774 = vmul.f32 %v7765, %v7765
        %v7775 = vmul.f32 %v7774, -0.00019511016
        %v7776 = vadd.f32 %v7775, 0.008332121
        %v7777 = vmul.f32 %v7774, %v7776
        %v7778 = vadd.f32 %v7777, -0.16666654
        %v7779 = vmul.f32 %v7774, %v7778
        %v7780 = vadd.f32 %v7779, 1.0
        %v7781 = vmul.f32 %v7780, %v7765
        %vm7782 = vweird.f32 %v5684
        %v7783 = vadd.s32 %v7766, 3
        %v7784 = vand.u32 %v7783, 3
        %vm7785 = vcmp.lt.s32.totalorder %v7784, 2
        %vm7786 = vcmp.eq.s32.totalorder %v7784, 0
        %v7787 = vxor.u32 %v7781, 2147483648
        %v7788 = vsel %vm7786, %v7773, %v7787
        %vm7789 = vcmp.eq.s32.totalorder %v7784, 2
        %v7790 = vxor.u32 %v7773, 2147483648
        %v7791 = vsel %vm7789, %v7790, %v7781
        %v7792 = vsel %vm7785, %v7788, %v7791
        %v7793 = vsel %vm7782, nan, %v7792
        %v7794 = vand.u32 2147483647, %v5713
        %vm7795 = vcmp.le.f32.partialorder %v7794, 0.7853982
        %vm7796 = vcmp.lt.s32.totalorder %v5713, 0
        %v7797 = vand.u32 %v5713, 2139095040
        %v7798 = vshrl.u32 %v7797, 23
        %v7799 = vsub.s32 %v7798, 127
        %v7800 = vand.u32 2147483647, %v5713
        %v7801 = vand.u32 %v7800, 8388607
        %v7802 = vor.u32 %v7801, 8388608
        %v7803 = vsub.s32 0, %v7802
        %v7804 = vadd.s32 %v7799, 1
        %vm7805 = vcmp.gt.s32.totalorder %v7804, 0
        %v7806 = vsel %vm7805, %v7804, 0
        %v7807 = vshrl.u32 %v7806, 5
        %v7808 = vand.u32 %v7806, 31
        %v7809 = vsub.s32 32, %v7808
        %v7810 = vshrl.u32 683565275, %v7809
        %v7811 = vshll.u32 683565275, %v7808
        %v7812 = vshrl.u32 2475754826, %v7809
        %v7813 = vor.u32 %v7811, %v7812
        %v7814 = vshll.u32 2475754826, %v7808
        %v7815 = vshrl.u32 2131351028, %v7809
        %v7816 = vor.u32 %v7814, %v7815
        %v7817 = vshll.u32 2131351028, %v7808
        %v7818 = vshrl.u32 2102212464, %v7809
        %v7819 = vor.u32 %v7817, %v7818
        %v7820 = vshll.u32 2102212464, %v7808
        %v7821 = vshrl.u32 920167782, %v7809
        %v7822 = vor.u32 %v7820, %v7821
        %v7823 = vshll.u32 920167782, %v7808
        %v7824 = vshrl.u32 1326507024, %v7809
        %v7825 = vor.u32 %v7823, %v7824
        %vm7826 = vcmp.lt.s32.totalorder %v7807, 1
        %vm7827 = vcmp.lt.s32.totalorder %v7807, 2
        %vm7828 = vcmp.lt.s32.totalorder %v7807, 3
        %vm7829 = vcmp.lt.s32.totalorder %v7807, 4
        %v7830 = vsel %vm7826, %v7810, %v7813
        %v7831 = vsel %vm7829, %v7819, 2102212464
        %v7832 = vsel %vm7828, %v7816, %v7831
        %v7833 = vsel %vm7827, %v7830, %v7832
        %v7834 = vsel %vm7826, %v7813, %v7816
        %v7835 = vsel %vm7829, %v7822, 920167782
        %v7836 = vsel %vm7828, %v7819, %v7835
        %v7837 = vsel %vm7827, %v7834, %v7836
        %v7838 = vsel %vm7826, %v7816, %v7819
        %v7839 = vsel %vm7829, %v7825, 1326507024
        %v7840 = vsel %vm7828, %v7822, %v7839
        %v7841 = vsel %vm7827, %v7838, %v7840
        %v7842 = vshll.u32 %v7802, 8
        %v7843 = vand.u32 %v7842, 65535
        %v7844 = vshrl.u32 %v7842, 16
        %v7845 = vand.u32 %v7841, 65535
        %v7846 = vshrl.u32 %v7841, 16
        %v7847 = vmul.u32 %v7843, %v7845
        %v7848 = vmul.u32 %v7843, %v7846
        %v7849 = vmul.u32 %v7844, %v7845
        %v7850 = vmul.u32 %v7844, %v7846
        %v7851 = vshll.u32 %v7848, 16
        %v7852 = vshrl.u32 %v7848, 16
        %v7853 = vshll.u32 %v7849, 16
        %v7854 = vshrl.u32 %v7849, 16
        %vm7855 = vc.u32 %v7847, %v7851
        %v7856 = vsel %vm7855, 1, 0
        %v7857 = vadd.s32 %v7847, %v7851
        %v7858 = vadd.s32 %v7850, %v7856
        %vm7859 = vc.u32 %v7857, %v7853
        %v7860 = vsel %vm7859, 1, 0
        %v7861 = vadd.s32 %v7857, %v7853
        %v7862 = vadd.s32 %v7858, %v7860
        %v7863 = vadd.s32 %v7862, %v7852
        %v7864 = vadd.s32 %v7863, %v7854
        %v7865 = vand.u32 %v7842, 65535
        %v7866 = vshrl.u32 %v7842, 16
        %v7867 = vand.u32 %v7837, 65535
        %v7868 = vshrl.u32 %v7837, 16
        %v7869 = vmul.u32 %v7865, %v7867
        %v7870 = vmul.u32 %v7865, %v7868
        %v7871 = vmul.u32 %v7866, %v7867
        %v7872 = vmul.u32 %v7866, %v7868
        %v7873 = vshll.u32 %v7870, 16
        %v7874 = vshrl.u32 %v7870, 16
        %v7875 = vshll.u32 %v7871, 16
        %v7876 = vshrl.u32 %v7871, 16
        %vm7877 = vc.u32 %v7869, %v7873
        %v7878 = vsel %vm7877, 1, 0
        %v7879 = vadd.s32 %v7869, %v7873
        %v7880 = vadd.s32 %v7872, %v7878
        %vm7881 = vc.u32 %v7879, %v7875
        %v7882 = vsel %vm7881, 1, 0
        %v7883 = vadd.s32 %v7879, %v7875
        %v7884 = vadd.s32 %v7880, %v7882
        %v7885 = vadd.s32 %v7884, %v7874
        %v7886 = vadd.s32 %v7885, %v7876
        %v7887 = vmul.u32 %v7842, %v7833
        %v7888 = vadd.s32 %v7864, %v7883
        %vm7889 = vc.u32 %v7864, %v7883
        %v7890 = vadd.s32 %v7886, 1
        %v7891 = vsel %vm7889, %v7890, %v7886
        %v7892 = vadd.s32 %v7887, %v7891
        %v7893 = vadd.s32 %v7892, 536870912
        %v7894 = vshrl.u32 %v7893, 30
        %v7895 = vshll.u32 %v7894, 30
        %v7896 = vsub.s32 %v7892, %v7895
        %vm7897 = vcmp.lt.s32.totalorder %v7896, 0
        %v7898 = vsub.s32 0, %v7896
        %v7899 = vsel %vm7897, %v7898, %v7896
        %v7900 = vclz %v7899
        %v7901 = vsub.s32 %v7900, 2
        %vm7902 = vcmp.gt.s32.totalorder 0, %v7901
        %v7903 = vsel %vm7902, 0, %v7901
        %v7904 = vsub.s32 32, %v7903
        %v7905 = vshll.u32 %v7896, %v7903
        %v7906 = vshrl.u32 %v7888, %v7904
        %v7907 = vor.u32 %v7905, %v7906
        %v7908 = vsub.s32 4294967266, %v7903
        %v7909 = vadd.s32 %v7908, 127
        %v7910 = vshll.u32 %v7909, 23
        %v7911 = vor.u32 4788187, %v7910
        %v7912 = vand.u32 2147483647, %v7911
        %v7914 = vcvt.s32.f32 %v7907
        %v7915 = vmul.f32 %v7914, %v7912
        %v7916 = vxor.u32 %v7915, 2147483648
        %v7917 = vsel %vm7796, %v7916, %v7915
        %v7918 = vsub.s32 4, %v7894
        %v7919 = vsel %vm7796, %v7918, %v7894
        %v7920 = vsel %vm7795, %v5713, %v7917
        %v7921 = vsel %vm7795, 0, %v7919
        %v7922 = vmul.f32 %v7920, %v7920
        %v7923 = vmul.f32 %v7922, -0.001358992
        %v7924 = vadd.f32 %v7923, 0.041655596
        %v7925 = vmul.f32 %v7922, %v7924
        %v7926 = vadd.f32 %v7925, -0.4999988
        %v7927 = vmul.f32 %v7922, %v7926
        %v7928 = vadd.f32 1.0, %v7927
        %v7929 = vmul.f32 %v7920, %v7920
        %v7930 = vmul.f32 %v7929, -0.00019511016
        %v7931 = vadd.f32 %v7930, 0.008332121
        %v7932 = vmul.f32 %v7929, %v7931
        %v7933 = vadd.f32 %v7932, -0.16666654
        %v7934 = vmul.f32 %v7929, %v7933
        %v7935 = vadd.f32 %v7934, 1.0
        %v7936 = vmul.f32 %v7935, %v7920
        %vm7937 = vweird.f32 %v5713
        %v7938 = vadd.s32 %v7921, 3
        %v7939 = vand.u32 %v7938, 3
        %vm7940 = vcmp.lt.s32.totalorder %v7939, 2
        %vm7941 = vcmp.eq.s32.totalorder %v7939, 0
        %v7942 = vxor.u32 %v7936, 2147483648
        %v7943 = vsel %vm7941, %v7928, %v7942
        %vm7944 = vcmp.eq.s32.totalorder %v7939, 2
        %v7945 = vxor.u32 %v7928, 2147483648
        %v7946 = vsel %vm7944, %v7945, %v7936
        %v7947 = vsel %vm7940, %v7943, %v7946
        %v7948 = vsel %vm7937, nan, %v7947
        %v7949 = vand.u32 2147483647, %v5742
        %vm7950 = vcmp.le.f32.partialorder %v7949, 0.7853982
        %vm7951 = vcmp.lt.s32.totalorder %v5742, 0
        %v7952 = vand.u32 %v5742, 2139095040
        %v7953 = vshrl.u32 %v7952, 23
        %v7954 = vsub.s32 %v7953, 127
        %v7955 = vand.u32 2147483647, %v5742
        %v7956 = vand.u32 %v7955, 8388607
        %v7957 = vor.u32 %v7956, 8388608
        %v7958 = vsub.s32 0, %v7957
        %v7959 = vadd.s32 %v7954, 1
        %vm7960 = vcmp.gt.s32.totalorder %v7959, 0
        %v7961 = vsel %vm7960, %v7959, 0
        %v7962 = vshrl.u32 %v7961, 5
        %v7963 = vand.u32 %v7961, 31
        %v7964 = vsub.s32 32, %v7963
        %v7965 = vshrl.u32 683565275, %v7964
        %v7966 = vshll.u32 683565275, %v7963
        %v7967 = vshrl.u32 2475754826, %v7964
        %v7968 = vor.u32 %v7966, %v7967
        %v7969 = vshll.u32 2475754826, %v7963
        %v7970 = vshrl.u32 2131351028, %v7964
        %v7971 = vor.u32 %v7969, %v7970
        %v7972 = vshll.u32 2131351028, %v7963
        %v7973 = vshrl.u32 2102212464, %v7964
        %v7974 = vor.u32 %v7972, %v7973
        %v7975 = vshll.u32 2102212464, %v7963
        %v7976 = vshrl.u32 920167782, %v7964
        %v7977 = vor.u32 %v7975, %v7976
        %v7978 = vshll.u32 920167782, %v7963
        %v7979 = vshrl.u32 1326507024, %v7964
        %v7980 = vor.u32 %v7978, %v7979
        %vm7981 = vcmp.lt.s32.totalorder %v7962, 1
        %vm7982 = vcmp.lt.s32.totalorder %v7962, 2
        %vm7983 = vcmp.lt.s32.totalorder %v7962, 3
        %vm7984 = vcmp.lt.s32.totalorder %v7962, 4
        %v7985 = vsel %vm7981, %v7965, %v7968
        %v7986 = vsel %vm7984, %v7974, 2102212464
        %v7987 = vsel %vm7983, %v7971, %v7986
        %v7988 = vsel %vm7982, %v7985, %v7987
        %v7989 = vsel %vm7981, %v7968, %v7971
        %v7990 = vsel %vm7984, %v7977, 920167782
        %v7991 = vsel %vm7983, %v7974, %v7990
        %v7992 = vsel %vm7982, %v7989, %v7991
        %v7993 = vsel %vm7981, %v7971, %v7974
        %v7994 = vsel %vm7984, %v7980, 1326507024
        %v7995 = vsel %vm7983, %v7977, %v7994
        %v7996 = vsel %vm7982, %v7993, %v7995
        %v7997 = vshll.u32 %v7957, 8
        %v7998 = vand.u32 %v7997, 65535
        %v7999 = vshrl.u32 %v7997, 16
        %v8000 = vand.u32 %v7996, 65535
        %v8001 = vshrl.u32 %v7996, 16
        %v8002 = vmul.u32 %v7998, %v8000
        %v8003 = vmul.u32 %v7998, %v8001
        %v8004 = vmul.u32 %v7999, %v8000
        %v8005 = vmul.u32 %v7999, %v8001
        %v8006 = vshll.u32 %v8003, 16
        %v8007 = vshrl.u32 %v8003, 16
        %v8008 = vshll.u32 %v8004, 16
        %v8009 = vshrl.u32 %v8004, 16
        %vm8010 = vc.u32 %v8002, %v8006
        %v8011 = vsel %vm8010, 1, 0
        %v8012 = vadd.s32 %v8002, %v8006
        %v8013 = vadd.s32 %v8005, %v8011
        %vm8014 = vc.u32 %v8012, %v8008
        %v8015 = vsel %vm8014, 1, 0
        %v8016 = vadd.s32 %v8012, %v8008
        %v8017 = vadd.s32 %v8013, %v8015
        %v8018 = vadd.s32 %v8017, %v8007
        %v8019 = vadd.s32 %v8018, %v8009
        %v8020 = vand.u32 %v7997, 65535
        %v8021 = vshrl.u32 %v7997, 16
        %v8022 = vand.u32 %v7992, 65535
        %v8023 = vshrl.u32 %v7992, 16
        %v8024 = vmul.u32 %v8020, %v8022
        %v8025 = vmul.u32 %v8020, %v8023
        %v8026 = vmul.u32 %v8021, %v8022
        %v8027 = vmul.u32 %v8021, %v8023
        %v8028 = vshll.u32 %v8025, 16
        %v8029 = vshrl.u32 %v8025, 16
        %v8030 = vshll.u32 %v8026, 16
        %v8031 = vshrl.u32 %v8026, 16
        %vm8032 = vc.u32 %v8024, %v8028
        %v8033 = vsel %vm8032, 1, 0
        %v8034 = vadd.s32 %v8024, %v8028
        %v8035 = vadd.s32 %v8027, %v8033
        %vm8036 = vc.u32 %v8034, %v8030
        %v8037 = vsel %vm8036, 1, 0
        %v8038 = vadd.s32 %v8034, %v8030
        %v8039 = vadd.s32 %v8035, %v8037
        %v8040 = vadd.s32 %v8039, %v8029
        %v8041 = vadd.s32 %v8040, %v8031
        %v8042 = vmul.u32 %v7997, %v7988
        %v8043 = vadd.s32 %v8019, %v8038
        %vm8044 = vc.u32 %v8019, %v8038
        %v8045 = vadd.s32 %v8041, 1
        %v8046 = vsel %vm8044, %v8045, %v8041
        %v8047 = vadd.s32 %v8042, %v8046
        %v8048 = vadd.s32 %v8047, 536870912
        %v8049 = vshrl.u32 %v8048, 30
        %v8050 = vshll.u32 %v8049, 30
        %v8051 = vsub.s32 %v8047, %v8050
        %vm8052 = vcmp.lt.s32.totalorder %v8051, 0
        %v8053 = vsub.s32 0, %v8051
        %v8054 = vsel %vm8052, %v8053, %v8051
        %v8055 = vclz %v8054
        %v8056 = vsub.s32 %v8055, 2
        %vm8057 = vcmp.gt.s32.totalorder 0, %v8056
        %v8058 = vsel %vm8057, 0, %v8056
        %v8059 = vsub.s32 32, %v8058
        %v8060 = vshll.u32 %v8051, %v8058
        %v8061 = vshrl.u32 %v8043, %v8059
        %v8062 = vor.u32 %v8060, %v8061
        %v8063 = vsub.s32 4294967266, %v8058
        %v8064 = vadd.s32 %v8063, 127
        %v8065 = vshll.u32 %v8064, 23
        %v8066 = vor.u32 4788187, %v8065
        %v8067 = vand.u32 2147483647, %v8066
        %v8069 = vcvt.s32.f32 %v8062
        %v8070 = vmul.f32 %v8069, %v8067
        %v8071 = vxor.u32 %v8070, 2147483648
        %v8072 = vsel %vm7951, %v8071, %v8070
        %v8073 = vsub.s32 4, %v8049
        %v8074 = vsel %vm7951, %v8073, %v8049
        %v8075 = vsel %vm7950, %v5742, %v8072
        %v8076 = vsel %vm7950, 0, %v8074
        %v8077 = vmul.f32 %v8075, %v8075
        %v8078 = vmul.f32 %v8077, -0.001358992
        %v8079 = vadd.f32 %v8078, 0.041655596
        %v8080 = vmul.f32 %v8077, %v8079
        %v8081 = vadd.f32 %v8080, -0.4999988
        %v8082 = vmul.f32 %v8077, %v8081
        %v8083 = vadd.f32 1.0, %v8082
        %v8084 = vmul.f32 %v8075, %v8075
        %v8085 = vmul.f32 %v8084, -0.00019511016
        %v8086 = vadd.f32 %v8085, 0.008332121
        %v8087 = vmul.f32 %v8084, %v8086
        %v8088 = vadd.f32 %v8087, -0.16666654
        %v8089 = vmul.f32 %v8084, %v8088
        %v8090 = vadd.f32 %v8089, 1.0
        %v8091 = vmul.f32 %v8090, %v8075
        %vm8092 = vweird.f32 %v5742
        %v8093 = vadd.s32 %v8076, 3
        %v8094 = vand.u32 %v8093, 3
        %vm8095 = vcmp.lt.s32.totalorder %v8094, 2
        %vm8096 = vcmp.eq.s32.totalorder %v8094, 0
        %v8097 = vxor.u32 %v8091, 2147483648
        %v8098 = vsel %vm8096, %v8083, %v8097
        %vm8099 = vcmp.eq.s32.totalorder %v8094, 2
        %v8100 = vxor.u32 %v8083, 2147483648
        %v8101 = vsel %vm8099, %v8100, %v8091
        %v8102 = vsel %vm8095, %v8098, %v8101
        %v8103 = vsel %vm8092, nan, %v8102
        %v8104 = vand.u32 2147483647, %v5771
        %vm8105 = vcmp.le.f32.partialorder %v8104, 0.7853982
        %vm8106 = vcmp.lt.s32.totalorder %v5771, 0
        %v8107 = vand.u32 %v5771, 2139095040
        %v8108 = vshrl.u32 %v8107, 23
        %v8109 = vsub.s32 %v8108, 127
        %v8110 = vand.u32 2147483647, %v5771
        %v8111 = vand.u32 %v8110, 8388607
        %v8112 = vor.u32 %v8111, 8388608
        %v8113 = vsub.s32 0, %v8112
        %v8114 = vadd.s32 %v8109, 1
        %vm8115 = vcmp.gt.s32.totalorder %v8114, 0
        %v8116 = vsel %vm8115, %v8114, 0
        %v8117 = vshrl.u32 %v8116, 5
        %v8118 = vand.u32 %v8116, 31
        %v8119 = vsub.s32 32, %v8118
        %v8120 = vshrl.u32 683565275, %v8119
        %v8121 = vshll.u32 683565275, %v8118
        %v8122 = vshrl.u32 2475754826, %v8119
        %v8123 = vor.u32 %v8121, %v8122
        %v8124 = vshll.u32 2475754826, %v8118
        %v8125 = vshrl.u32 2131351028, %v8119
        %v8126 = vor.u32 %v8124, %v8125
        %v8127 = vshll.u32 2131351028, %v8118
        %v8128 = vshrl.u32 2102212464, %v8119
        %v8129 = vor.u32 %v8127, %v8128
        %v8130 = vshll.u32 2102212464, %v8118
        %v8131 = vshrl.u32 920167782, %v8119
        %v8132 = vor.u32 %v8130, %v8131
        %v8133 = vshll.u32 920167782, %v8118
        %v8134 = vshrl.u32 1326507024, %v8119
        %v8135 = vor.u32 %v8133, %v8134
        %vm8136 = vcmp.lt.s32.totalorder %v8117, 1
        %vm8137 = vcmp.lt.s32.totalorder %v8117, 2
        %vm8138 = vcmp.lt.s32.totalorder %v8117, 3
        %vm8139 = vcmp.lt.s32.totalorder %v8117, 4
        %v8140 = vsel %vm8136, %v8120, %v8123
        %v8141 = vsel %vm8139, %v8129, 2102212464
        %v8142 = vsel %vm8138, %v8126, %v8141
        %v8143 = vsel %vm8137, %v8140, %v8142
        %v8144 = vsel %vm8136, %v8123, %v8126
        %v8145 = vsel %vm8139, %v8132, 920167782
        %v8146 = vsel %vm8138, %v8129, %v8145
        %v8147 = vsel %vm8137, %v8144, %v8146
        %v8148 = vsel %vm8136, %v8126, %v8129
        %v8149 = vsel %vm8139, %v8135, 1326507024
        %v8150 = vsel %vm8138, %v8132, %v8149
        %v8151 = vsel %vm8137, %v8148, %v8150
        %v8152 = vshll.u32 %v8112, 8
        %v8153 = vand.u32 %v8152, 65535
        %v8154 = vshrl.u32 %v8152, 16
        %v8155 = vand.u32 %v8151, 65535
        %v8156 = vshrl.u32 %v8151, 16
        %v8157 = vmul.u32 %v8153, %v8155
        %v8158 = vmul.u32 %v8153, %v8156
        %v8159 = vmul.u32 %v8154, %v8155
        %v8160 = vmul.u32 %v8154, %v8156
        %v8161 = vshll.u32 %v8158, 16
        %v8162 = vshrl.u32 %v8158, 16
        %v8163 = vshll.u32 %v8159, 16
        %v8164 = vshrl.u32 %v8159, 16
        %vm8165 = vc.u32 %v8157, %v8161
        %v8166 = vsel %vm8165, 1, 0
        %v8167 = vadd.s32 %v8157, %v8161
        %v8168 = vadd.s32 %v8160, %v8166
        %vm8169 = vc.u32 %v8167, %v8163
        %v8170 = vsel %vm8169, 1, 0
        %v8171 = vadd.s32 %v8167, %v8163
        %v8172 = vadd.s32 %v8168, %v8170
        %v8173 = vadd.s32 %v8172, %v8162
        %v8174 = vadd.s32 %v8173, %v8164
        %v8175 = vand.u32 %v8152, 65535
        %v8176 = vshrl.u32 %v8152, 16
        %v8177 = vand.u32 %v8147, 65535
        %v8178 = vshrl.u32 %v8147, 16
        %v8179 = vmul.u32 %v8175, %v8177
        %v8180 = vmul.u32 %v8175, %v8178
        %v8181 = vmul.u32 %v8176, %v8177
        %v8182 = vmul.u32 %v8176, %v8178
        %v8183 = vshll.u32 %v8180, 16
        %v8184 = vshrl.u32 %v8180, 16
        %v8185 = vshll.u32 %v8181, 16
        %v8186 = vshrl.u32 %v8181, 16
        %vm8187 = vc.u32 %v8179, %v8183
        %v8188 = vsel %vm8187, 1, 0
        %v8189 = vadd.s32 %v8179, %v8183
        %v8190 = vadd.s32 %v8182, %v8188
        %vm8191 = vc.u32 %v8189, %v8185
        %v8192 = vsel %vm8191, 1, 0
        %v8193 = vadd.s32 %v8189, %v8185
        %v8194 = vadd.s32 %v8190, %v8192
        %v8195 = vadd.s32 %v8194, %v8184
        %v8196 = vadd.s32 %v8195, %v8186
        %v8197 = vmul.u32 %v8152, %v8143
        %v8198 = vadd.s32 %v8174, %v8193
        %vm8199 = vc.u32 %v8174, %v8193
        %v8200 = vadd.s32 %v8196, 1
        %v8201 = vsel %vm8199, %v8200, %v8196
        %v8202 = vadd.s32 %v8197, %v8201
        %v8203 = vadd.s32 %v8202, 536870912
        %v8204 = vshrl.u32 %v8203, 30
        %v8205 = vshll.u32 %v8204, 30
        %v8206 = vsub.s32 %v8202, %v8205
        %vm8207 = vcmp.lt.s32.totalorder %v8206, 0
        %v8208 = vsub.s32 0, %v8206
        %v8209 = vsel %vm8207, %v8208, %v8206
        %v8210 = vclz %v8209
        %v8211 = vsub.s32 %v8210, 2
        %vm8212 = vcmp.gt.s32.totalorder 0, %v8211
        %v8213 = vsel %vm8212, 0, %v8211
        %v8214 = vsub.s32 32, %v8213
        %v8215 = vshll.u32 %v8206, %v8213
        %v8216 = vshrl.u32 %v8198, %v8214
        %v8217 = vor.u32 %v8215, %v8216
        %v8218 = vsub.s32 4294967266, %v8213
        %v8219 = vadd.s32 %v8218, 127
        %v8220 = vshll.u32 %v8219, 23
        %v8221 = vor.u32 4788187, %v8220
        %v8222 = vand.u32 2147483647, %v8221
        %v8224 = vcvt.s32.f32 %v8217
        %v8225 = vmul.f32 %v8224, %v8222
        %v8226 = vxor.u32 %v8225, 2147483648
        %v8227 = vsel %vm8106, %v8226, %v8225
        %v8228 = vsub.s32 4, %v8204
        %v8229 = vsel %vm8106, %v8228, %v8204
        %v8230 = vsel %vm8105, %v5771, %v8227
        %v8231 = vsel %vm8105, 0, %v8229
        %v8232 = vmul.f32 %v8230, %v8230
        %v8233 = vmul.f32 %v8232, -0.001358992
        %v8234 = vadd.f32 %v8233, 0.041655596
        %v8235 = vmul.f32 %v8232, %v8234
        %v8236 = vadd.f32 %v8235, -0.4999988
        %v8237 = vmul.f32 %v8232, %v8236
        %v8238 = vadd.f32 1.0, %v8237
        %v8239 = vmul.f32 %v8230, %v8230
        %v8240 = vmul.f32 %v8239, -0.00019511016
        %v8241 = vadd.f32 %v8240, 0.008332121
        %v8242 = vmul.f32 %v8239, %v8241
        %v8243 = vadd.f32 %v8242, -0.16666654
        %v8244 = vmul.f32 %v8239, %v8243
        %v8245 = vadd.f32 %v8244, 1.0
        %v8246 = vmul.f32 %v8245, %v8230
        %vm8247 = vweird.f32 %v5771
        %v8248 = vadd.s32 %v8231, 3
        %v8249 = vand.u32 %v8248, 3
        %vm8250 = vcmp.lt.s32.totalorder %v8249, 2
        %vm8251 = vcmp.eq.s32.totalorder %v8249, 0
        %v8252 = vxor.u32 %v8246, 2147483648
        %v8253 = vsel %vm8251, %v8238, %v8252
        %vm8254 = vcmp.eq.s32.totalorder %v8249, 2
        %v8255 = vxor.u32 %v8238, 2147483648
        %v8256 = vsel %vm8254, %v8255, %v8246
        %v8257 = vsel %vm8250, %v8253, %v8256
        %v8258 = vsel %vm8247, nan, %v8257
        %v8259 = vand.u32 2147483647, %v5571
        %vm8260 = vcmp.le.f32.partialorder %v8259, 0.7853982
        %vm8261 = vcmp.lt.s32.totalorder %v5571, 0
        %v8262 = vand.u32 %v5571, 2139095040
        %v8263 = vshrl.u32 %v8262, 23
        %v8264 = vsub.s32 %v8263, 127
        %v8265 = vand.u32 2147483647, %v5571
        %v8266 = vand.u32 %v8265, 8388607
        %v8267 = vor.u32 %v8266, 8388608
        %v8268 = vsub.s32 0, %v8267
        %v8269 = vadd.s32 %v8264, 1
        %vm8270 = vcmp.gt.s32.totalorder %v8269, 0
        %v8271 = vsel %vm8270, %v8269, 0
        %v8272 = vshrl.u32 %v8271, 5
        %v8273 = vand.u32 %v8271, 31
        %v8274 = vsub.s32 32, %v8273
        %v8275 = vshrl.u32 683565275, %v8274
        %v8276 = vshll.u32 683565275, %v8273
        %v8277 = vshrl.u32 2475754826, %v8274
        %v8278 = vor.u32 %v8276, %v8277
        %v8279 = vshll.u32 2475754826, %v8273
        %v8280 = vshrl.u32 2131351028, %v8274
        %v8281 = vor.u32 %v8279, %v8280
        %v8282 = vshll.u32 2131351028, %v8273
        %v8283 = vshrl.u32 2102212464, %v8274
        %v8284 = vor.u32 %v8282, %v8283
        %v8285 = vshll.u32 2102212464, %v8273
        %v8286 = vshrl.u32 920167782, %v8274
        %v8287 = vor.u32 %v8285, %v8286
        %v8288 = vshll.u32 920167782, %v8273
        %v8289 = vshrl.u32 1326507024, %v8274
        %v8290 = vor.u32 %v8288, %v8289
        %vm8291 = vcmp.lt.s32.totalorder %v8272, 1
        %vm8292 = vcmp.lt.s32.totalorder %v8272, 2
        %vm8293 = vcmp.lt.s32.totalorder %v8272, 3
        %vm8294 = vcmp.lt.s32.totalorder %v8272, 4
        %v8295 = vsel %vm8291, %v8275, %v8278
        %v8296 = vsel %vm8294, %v8284, 2102212464
        %v8297 = vsel %vm8293, %v8281, %v8296
        %v8298 = vsel %vm8292, %v8295, %v8297
        %v8299 = vsel %vm8291, %v8278, %v8281
        %v8300 = vsel %vm8294, %v8287, 920167782
        %v8301 = vsel %vm8293, %v8284, %v8300
        %v8302 = vsel %vm8292, %v8299, %v8301
        %v8303 = vsel %vm8291, %v8281, %v8284
        %v8304 = vsel %vm8294, %v8290, 1326507024
        %v8305 = vsel %vm8293, %v8287, %v8304
        %v8306 = vsel %vm8292, %v8303, %v8305
        %v8307 = vshll.u32 %v8267, 8
        %v8308 = vand.u32 %v8307, 65535
        %v8309 = vshrl.u32 %v8307, 16
        %v8310 = vand.u32 %v8306, 65535
        %v8311 = vshrl.u32 %v8306, 16
        %v8312 = vmul.u32 %v8308, %v8310
        %v8313 = vmul.u32 %v8308, %v8311
        %v8314 = vmul.u32 %v8309, %v8310
        %v8315 = vmul.u32 %v8309, %v8311
        %v8316 = vshll.u32 %v8313, 16
        %v8317 = vshrl.u32 %v8313, 16
        %v8318 = vshll.u32 %v8314, 16
        %v8319 = vshrl.u32 %v8314, 16
        %vm8320 = vc.u32 %v8312, %v8316
        %v8321 = vsel %vm8320, 1, 0
        %v8322 = vadd.s32 %v8312, %v8316
        %v8323 = vadd.s32 %v8315, %v8321
        %vm8324 = vc.u32 %v8322, %v8318
        %v8325 = vsel %vm8324, 1, 0
        %v8326 = vadd.s32 %v8322, %v8318
        %v8327 = vadd.s32 %v8323, %v8325
        %v8328 = vadd.s32 %v8327, %v8317
        %v8329 = vadd.s32 %v8328, %v8319
        %v8330 = vand.u32 %v8307, 65535
        %v8331 = vshrl.u32 %v8307, 16
        %v8332 = vand.u32 %v8302, 65535
        %v8333 = vshrl.u32 %v8302, 16
        %v8334 = vmul.u32 %v8330, %v8332
        %v8335 = vmul.u32 %v8330, %v8333
        %v8336 = vmul.u32 %v8331, %v8332
        %v8337 = vmul.u32 %v8331, %v8333
        %v8338 = vshll.u32 %v8335, 16
        %v8339 = vshrl.u32 %v8335, 16
        %v8340 = vshll.u32 %v8336, 16
        %v8341 = vshrl.u32 %v8336, 16
        %vm8342 = vc.u32 %v8334, %v8338
        %v8343 = vsel %vm8342, 1, 0
        %v8344 = vadd.s32 %v8334, %v8338
        %v8345 = vadd.s32 %v8337, %v8343
        %vm8346 = vc.u32 %v8344, %v8340
        %v8347 = vsel %vm8346, 1, 0
        %v8348 = vadd.s32 %v8344, %v8340
        %v8349 = vadd.s32 %v8345, %v8347
        %v8350 = vadd.s32 %v8349, %v8339
        %v8351 = vadd.s32 %v8350, %v8341
        %v8352 = vmul.u32 %v8307, %v8298
        %v8353 = vadd.s32 %v8329, %v8348
        %vm8354 = vc.u32 %v8329, %v8348
        %v8355 = vadd.s32 %v8351, 1
        %v8356 = vsel %vm8354, %v8355, %v8351
        %v8357 = vadd.s32 %v8352, %v8356
        %v8358 = vadd.s32 %v8357, 536870912
        %v8359 = vshrl.u32 %v8358, 30
        %v8360 = vshll.u32 %v8359, 30
        %v8361 = vsub.s32 %v8357, %v8360
        %vm8362 = vcmp.lt.s32.totalorder %v8361, 0
        %v8363 = vsub.s32 0, %v8361
        %v8364 = vsel %vm8362, %v8363, %v8361
        %v8365 = vclz %v8364
        %v8366 = vsub.s32 %v8365, 2
        %vm8367 = vcmp.gt.s32.totalorder 0, %v8366
        %v8368 = vsel %vm8367, 0, %v8366
        %v8369 = vsub.s32 32, %v8368
        %v8370 = vshll.u32 %v8361, %v8368
        %v8371 = vshrl.u32 %v8353, %v8369
        %v8372 = vor.u32 %v8370, %v8371
        %v8373 = vsub.s32 4294967266, %v8368
        %v8374 = vadd.s32 %v8373, 127
        %v8375 = vshll.u32 %v8374, 23
        %v8376 = vor.u32 4788187, %v8375
        %v8377 = vand.u32 2147483647, %v8376
        %v8379 = vcvt.s32.f32 %v8372
        %v8380 = vmul.f32 %v8379, %v8377
        %v8381 = vxor.u32 %v8380, 2147483648
        %v8382 = vsel %vm8261, %v8381, %v8380
        %v8383 = vsub.s32 4, %v8359
        %v8384 = vsel %vm8261, %v8383, %v8359
        %v8385 = vsel %vm8260, %v5571, %v8382
        %v8386 = vsel %vm8260, 0, %v8384
        %v8387 = vmul.f32 %v8385, %v8385
        %v8388 = vmul.f32 %v8387, -0.001358992
        %v8389 = vadd.f32 %v8388, 0.041655596
        %v8390 = vmul.f32 %v8387, %v8389
        %v8391 = vadd.f32 %v8390, -0.4999988
        %v8392 = vmul.f32 %v8387, %v8391
        %v8393 = vadd.f32 1.0, %v8392
        %v8394 = vmul.f32 %v8385, %v8385
        %v8395 = vmul.f32 %v8394, -0.00019511016
        %v8396 = vadd.f32 %v8395, 0.008332121
        %v8397 = vmul.f32 %v8394, %v8396
        %v8398 = vadd.f32 %v8397, -0.16666654
        %v8399 = vmul.f32 %v8394, %v8398
        %v8400 = vadd.f32 %v8399, 1.0
        %v8401 = vmul.f32 %v8400, %v8385
        %vm8402 = vweird.f32 %v5571
        %v8403 = vadd.s32 %v8386, 3
        %v8404 = vand.u32 %v8403, 3
        %vm8405 = vcmp.lt.s32.totalorder %v8404, 2
        %vm8406 = vcmp.eq.s32.totalorder %v8404, 0
        %v8407 = vxor.u32 %v8401, 2147483648
        %v8408 = vsel %vm8406, %v8393, %v8407
        %vm8409 = vcmp.eq.s32.totalorder %v8404, 2
        %v8410 = vxor.u32 %v8393, 2147483648
        %v8411 = vsel %vm8409, %v8410, %v8401
        %v8412 = vsel %vm8405, %v8408, %v8411
        %v8413 = vsel %vm8402, nan, %v8412
        %v8414 = vand.u32 2147483647, %v5600
        %vm8415 = vcmp.le.f32.partialorder %v8414, 0.7853982
        %vm8416 = vcmp.lt.s32.totalorder %v5600, 0
        %v8417 = vand.u32 %v5600, 2139095040
        %v8418 = vshrl.u32 %v8417, 23
        %v8419 = vsub.s32 %v8418, 127
        %v8420 = vand.u32 2147483647, %v5600
        %v8421 = vand.u32 %v8420, 8388607
        %v8422 = vor.u32 %v8421, 8388608
        %v8423 = vsub.s32 0, %v8422
        %v8424 = vadd.s32 %v8419, 1
        %vm8425 = vcmp.gt.s32.totalorder %v8424, 0
        %v8426 = vsel %vm8425, %v8424, 0
        %v8427 = vshrl.u32 %v8426, 5
        %v8428 = vand.u32 %v8426, 31
        %v8429 = vsub.s32 32, %v8428
        %v8430 = vshrl.u32 683565275, %v8429
        %v8431 = vshll.u32 683565275, %v8428
        %v8432 = vshrl.u32 2475754826, %v8429
        %v8433 = vor.u32 %v8431, %v8432
        %v8434 = vshll.u32 2475754826, %v8428
        %v8435 = vshrl.u32 2131351028, %v8429
        %v8436 = vor.u32 %v8434, %v8435
        %v8437 = vshll.u32 2131351028, %v8428
        %v8438 = vshrl.u32 2102212464, %v8429
        %v8439 = vor.u32 %v8437, %v8438
        %v8440 = vshll.u32 2102212464, %v8428
        %v8441 = vshrl.u32 920167782, %v8429
        %v8442 = vor.u32 %v8440, %v8441
        %v8443 = vshll.u32 920167782, %v8428
        %v8444 = vshrl.u32 1326507024, %v8429
        %v8445 = vor.u32 %v8443, %v8444
        %vm8446 = vcmp.lt.s32.totalorder %v8427, 1
        %vm8447 = vcmp.lt.s32.totalorder %v8427, 2
        %vm8448 = vcmp.lt.s32.totalorder %v8427, 3
        %vm8449 = vcmp.lt.s32.totalorder %v8427, 4
        %v8450 = vsel %vm8446, %v8430, %v8433
        %v8451 = vsel %vm8449, %v8439, 2102212464
        %v8452 = vsel %vm8448, %v8436, %v8451
        %v8453 = vsel %vm8447, %v8450, %v8452
        %v8454 = vsel %vm8446, %v8433, %v8436
        %v8455 = vsel %vm8449, %v8442, 920167782
        %v8456 = vsel %vm8448, %v8439, %v8455
        %v8457 = vsel %vm8447, %v8454, %v8456
        %v8458 = vsel %vm8446, %v8436, %v8439
        %v8459 = vsel %vm8449, %v8445, 1326507024
        %v8460 = vsel %vm8448, %v8442, %v8459
        %v8461 = vsel %vm8447, %v8458, %v8460
        %v8462 = vshll.u32 %v8422, 8
        %v8463 = vand.u32 %v8462, 65535
        %v8464 = vshrl.u32 %v8462, 16
        %v8465 = vand.u32 %v8461, 65535
        %v8466 = vshrl.u32 %v8461, 16
        %v8467 = vmul.u32 %v8463, %v8465
        %v8468 = vmul.u32 %v8463, %v8466
        %v8469 = vmul.u32 %v8464, %v8465
        %v8470 = vmul.u32 %v8464, %v8466
        %v8471 = vshll.u32 %v8468, 16
        %v8472 = vshrl.u32 %v8468, 16
        %v8473 = vshll.u32 %v8469, 16
        %v8474 = vshrl.u32 %v8469, 16
        %vm8475 = vc.u32 %v8467, %v8471
        %v8476 = vsel %vm8475, 1, 0
        %v8477 = vadd.s32 %v8467, %v8471
        %v8478 = vadd.s32 %v8470, %v8476
        %vm8479 = vc.u32 %v8477, %v8473
        %v8480 = vsel %vm8479, 1, 0
        %v8481 = vadd.s32 %v8477, %v8473
        %v8482 = vadd.s32 %v8478, %v8480
        %v8483 = vadd.s32 %v8482, %v8472
        %v8484 = vadd.s32 %v8483, %v8474
        %v8485 = vand.u32 %v8462, 65535
        %v8486 = vshrl.u32 %v8462, 16
        %v8487 = vand.u32 %v8457, 65535
        %v8488 = vshrl.u32 %v8457, 16
        %v8489 = vmul.u32 %v8485, %v8487
        %v8490 = vmul.u32 %v8485, %v8488
        %v8491 = vmul.u32 %v8486, %v8487
        %v8492 = vmul.u32 %v8486, %v8488
        %v8493 = vshll.u32 %v8490, 16
        %v8494 = vshrl.u32 %v8490, 16
        %v8495 = vshll.u32 %v8491, 16
        %v8496 = vshrl.u32 %v8491, 16
        %vm8497 = vc.u32 %v8489, %v8493
        %v8498 = vsel %vm8497, 1, 0
        %v8499 = vadd.s32 %v8489, %v8493
        %v8500 = vadd.s32 %v8492, %v8498
        %vm8501 = vc.u32 %v8499, %v8495
        %v8502 = vsel %vm8501, 1, 0
        %v8503 = vadd.s32 %v8499, %v8495
        %v8504 = vadd.s32 %v8500, %v8502
        %v8505 = vadd.s32 %v8504, %v8494
        %v8506 = vadd.s32 %v8505, %v8496
        %v8507 = vmul.u32 %v8462, %v8453
        %v8508 = vadd.s32 %v8484, %v8503
        %vm8509 = vc.u32 %v8484, %v8503
        %v8510 = vadd.s32 %v8506, 1
        %v8511 = vsel %vm8509, %v8510, %v8506
        %v8512 = vadd.s32 %v8507, %v8511
        %v8513 = vadd.s32 %v8512, 536870912
        %v8514 = vshrl.u32 %v8513, 30
        %v8515 = vshll.u32 %v8514, 30
        %v8516 = vsub.s32 %v8512, %v8515
        %vm8517 = vcmp.lt.s32.totalorder %v8516, 0
        %v8518 = vsub.s32 0, %v8516
        %v8519 = vsel %vm8517, %v8518, %v8516
        %v8520 = vclz %v8519
        %v8521 = vsub.s32 %v8520, 2
        %vm8522 = vcmp.gt.s32.totalorder 0, %v8521
        %v8523 = vsel %vm8522, 0, %v8521
        %v8524 = vsub.s32 32, %v8523
        %v8525 = vshll.u32 %v8516, %v8523
        %v8526 = vshrl.u32 %v8508, %v8524
        %v8527 = vor.u32 %v8525, %v8526
        %v8528 = vsub.s32 4294967266, %v8523
        %v8529 = vadd.s32 %v8528, 127
        %v8530 = vshll.u32 %v8529, 23
        %v8531 = vor.u32 4788187, %v8530
        %v8532 = vand.u32 2147483647, %v8531
        %v8534 = vcvt.s32.f32 %v8527
        %v8535 = vmul.f32 %v8534, %v8532
        %v8536 = vxor.u32 %v8535, 2147483648
        %v8537 = vsel %vm8416, %v8536, %v8535
        %v8538 = vsub.s32 4, %v8514
        %v8539 = vsel %vm8416, %v8538, %v8514
        %v8540 = vsel %vm8415, %v5600, %v8537
        %v8541 = vsel %vm8415, 0, %v8539
        %v8542 = vmul.f32 %v8540, %v8540
        %v8543 = vmul.f32 %v8542, -0.001358992
        %v8544 = vadd.f32 %v8543, 0.041655596
        %v8545 = vmul.f32 %v8542, %v8544
        %v8546 = vadd.f32 %v8545, -0.4999988
        %v8547 = vmul.f32 %v8542, %v8546
        %v8548 = vadd.f32 1.0, %v8547
        %v8549 = vmul.f32 %v8540, %v8540
        %v8550 = vmul.f32 %v8549, -0.00019511016
        %v8551 = vadd.f32 %v8550, 0.008332121
        %v8552 = vmul.f32 %v8549, %v8551
        %v8553 = vadd.f32 %v8552, -0.16666654
        %v8554 = vmul.f32 %v8549, %v8553
        %v8555 = vadd.f32 %v8554, 1.0
        %v8556 = vmul.f32 %v8555, %v8540
        %vm8557 = vweird.f32 %v5600
        %v8558 = vadd.s32 %v8541, 3
        %v8559 = vand.u32 %v8558, 3
        %vm8560 = vcmp.lt.s32.totalorder %v8559, 2
        %vm8561 = vcmp.eq.s32.totalorder %v8559, 0
        %v8562 = vxor.u32 %v8556, 2147483648
        %v8563 = vsel %vm8561, %v8548, %v8562
        %vm8564 = vcmp.eq.s32.totalorder %v8559, 2
        %v8565 = vxor.u32 %v8548, 2147483648
        %v8566 = vsel %vm8564, %v8565, %v8556
        %v8567 = vsel %vm8560, %v8563, %v8566
        %v8568 = vsel %vm8557, nan, %v8567
        %v8569 = vand.u32 2147483647, %v5629
        %vm8570 = vcmp.le.f32.partialorder %v8569, 0.7853982
        %vm8571 = vcmp.lt.s32.totalorder %v5629, 0
        %v8572 = vand.u32 %v5629, 2139095040
        %v8573 = vshrl.u32 %v8572, 23
        %v8574 = vsub.s32 %v8573, 127
        %v8575 = vand.u32 2147483647, %v5629
        %v8576 = vand.u32 %v8575, 8388607
        %v8577 = vor.u32 %v8576, 8388608
        %v8578 = vsub.s32 0, %v8577
        %v8579 = vadd.s32 %v8574, 1
        %vm8580 = vcmp.gt.s32.totalorder %v8579, 0
        %v8581 = vsel %vm8580, %v8579, 0
        %v8582 = vshrl.u32 %v8581, 5
        %v8583 = vand.u32 %v8581, 31
        %v8584 = vsub.s32 32, %v8583
        %v8585 = vshrl.u32 683565275, %v8584
        %v8586 = vshll.u32 683565275, %v8583
        %v8587 = vshrl.u32 2475754826, %v8584
        %v8588 = vor.u32 %v8586, %v8587
        %v8589 = vshll.u32 2475754826, %v8583
        %v8590 = vshrl.u32 2131351028, %v8584
        %v8591 = vor.u32 %v8589, %v8590
        %v8592 = vshll.u32 2131351028, %v8583
        %v8593 = vshrl.u32 2102212464, %v8584
        %v8594 = vor.u32 %v8592, %v8593
        %v8595 = vshll.u32 2102212464, %v8583
        %v8596 = vshrl.u32 920167782, %v8584
        %v8597 = vor.u32 %v8595, %v8596
        %v8598 = vshll.u32 920167782, %v8583
        %v8599 = vshrl.u32 1326507024, %v8584
        %v8600 = vor.u32 %v8598, %v8599
        %vm8601 = vcmp.lt.s32.totalorder %v8582, 1
        %vm8602 = vcmp.lt.s32.totalorder %v8582, 2
        %vm8603 = vcmp.lt.s32.totalorder %v8582, 3
        %vm8604 = vcmp.lt.s32.totalorder %v8582, 4
        %v8605 = vsel %vm8601, %v8585, %v8588
        %v8606 = vsel %vm8604, %v8594, 2102212464
        %v8607 = vsel %vm8603, %v8591, %v8606
        %v8608 = vsel %vm8602, %v8605, %v8607
        %v8609 = vsel %vm8601, %v8588, %v8591
        %v8610 = vsel %vm8604, %v8597, 920167782
        %v8611 = vsel %vm8603, %v8594, %v8610
        %v8612 = vsel %vm8602, %v8609, %v8611
        %v8613 = vsel %vm8601, %v8591, %v8594
        %v8614 = vsel %vm8604, %v8600, 1326507024
        %v8615 = vsel %vm8603, %v8597, %v8614
        %v8616 = vsel %vm8602, %v8613, %v8615
        %v8617 = vshll.u32 %v8577, 8
        %v8618 = vand.u32 %v8617, 65535
        %v8619 = vshrl.u32 %v8617, 16
        %v8620 = vand.u32 %v8616, 65535
        %v8621 = vshrl.u32 %v8616, 16
        %v8622 = vmul.u32 %v8618, %v8620
        %v8623 = vmul.u32 %v8618, %v8621
        %v8624 = vmul.u32 %v8619, %v8620
        %v8625 = vmul.u32 %v8619, %v8621
        %v8626 = vshll.u32 %v8623, 16
        %v8627 = vshrl.u32 %v8623, 16
        %v8628 = vshll.u32 %v8624, 16
        %v8629 = vshrl.u32 %v8624, 16
        %vm8630 = vc.u32 %v8622, %v8626
        %v8631 = vsel %vm8630, 1, 0
        %v8632 = vadd.s32 %v8622, %v8626
        %v8633 = vadd.s32 %v8625, %v8631
        %vm8634 = vc.u32 %v8632, %v8628
        %v8635 = vsel %vm8634, 1, 0
        %v8636 = vadd.s32 %v8632, %v8628
        %v8637 = vadd.s32 %v8633, %v8635
        %v8638 = vadd.s32 %v8637, %v8627
        %v8639 = vadd.s32 %v8638, %v8629
        %v8640 = vand.u32 %v8617, 65535
        %v8641 = vshrl.u32 %v8617, 16
        %v8642 = vand.u32 %v8612, 65535
        %v8643 = vshrl.u32 %v8612, 16
        %v8644 = vmul.u32 %v8640, %v8642
        %v8645 = vmul.u32 %v8640, %v8643
        %v8646 = vmul.u32 %v8641, %v8642
        %v8647 = vmul.u32 %v8641, %v8643
        %v8648 = vshll.u32 %v8645, 16
        %v8649 = vshrl.u32 %v8645, 16
        %v8650 = vshll.u32 %v8646, 16
        %v8651 = vshrl.u32 %v8646, 16
        %vm8652 = vc.u32 %v8644, %v8648
        %v8653 = vsel %vm8652, 1, 0
        %v8654 = vadd.s32 %v8644, %v8648
        %v8655 = vadd.s32 %v8647, %v8653
        %vm8656 = vc.u32 %v8654, %v8650
        %v8657 = vsel %vm8656, 1, 0
        %v8658 = vadd.s32 %v8654, %v8650
        %v8659 = vadd.s32 %v8655, %v8657
        %v8660 = vadd.s32 %v8659, %v8649
        %v8661 = vadd.s32 %v8660, %v8651
        %v8662 = vmul.u32 %v8617, %v8608
        %v8663 = vadd.s32 %v8639, %v8658
        %vm8664 = vc.u32 %v8639, %v8658
        %v8665 = vadd.s32 %v8661, 1
        %v8666 = vsel %vm8664, %v8665, %v8661
        %v8667 = vadd.s32 %v8662, %v8666
        %v8668 = vadd.s32 %v8667, 536870912
        %v8669 = vshrl.u32 %v8668, 30
        %v8670 = vshll.u32 %v8669, 30
        %v8671 = vsub.s32 %v8667, %v8670
        %vm8672 = vcmp.lt.s32.totalorder %v8671, 0
        %v8673 = vsub.s32 0, %v8671
        %v8674 = vsel %vm8672, %v8673, %v8671
        %v8675 = vclz %v8674
        %v8676 = vsub.s32 %v8675, 2
        %vm8677 = vcmp.gt.s32.totalorder 0, %v8676
        %v8678 = vsel %vm8677, 0, %v8676
        %v8679 = vsub.s32 32, %v8678
        %v8680 = vshll.u32 %v8671, %v8678
        %v8681 = vshrl.u32 %v8663, %v8679
        %v8682 = vor.u32 %v8680, %v8681
        %v8683 = vsub.s32 4294967266, %v8678
        %v8684 = vadd.s32 %v8683, 127
        %v8685 = vshll.u32 %v8684, 23
        %v8686 = vor.u32 4788187, %v8685
        %v8687 = vand.u32 2147483647, %v8686
        %v8689 = vcvt.s32.f32 %v8682
        %v8690 = vmul.f32 %v8689, %v8687
        %v8691 = vxor.u32 %v8690, 2147483648
        %v8692 = vsel %vm8571, %v8691, %v8690
        %v8693 = vsub.s32 4, %v8669
        %v8694 = vsel %vm8571, %v8693, %v8669
        %v8695 = vsel %vm8570, %v5629, %v8692
        %v8696 = vsel %vm8570, 0, %v8694
        %v8697 = vmul.f32 %v8695, %v8695
        %v8698 = vmul.f32 %v8697, -0.001358992
        %v8699 = vadd.f32 %v8698, 0.041655596
        %v8700 = vmul.f32 %v8697, %v8699
        %v8701 = vadd.f32 %v8700, -0.4999988
        %v8702 = vmul.f32 %v8697, %v8701
        %v8703 = vadd.f32 1.0, %v8702
        %v8704 = vmul.f32 %v8695, %v8695
        %v8705 = vmul.f32 %v8704, -0.00019511016
        %v8706 = vadd.f32 %v8705, 0.008332121
        %v8707 = vmul.f32 %v8704, %v8706
        %v8708 = vadd.f32 %v8707, -0.16666654
        %v8709 = vmul.f32 %v8704, %v8708
        %v8710 = vadd.f32 %v8709, 1.0
        %v8711 = vmul.f32 %v8710, %v8695
        %vm8712 = vweird.f32 %v5629
        %v8713 = vadd.s32 %v8696, 3
        %v8714 = vand.u32 %v8713, 3
        %vm8715 = vcmp.lt.s32.totalorder %v8714, 2
        %vm8716 = vcmp.eq.s32.totalorder %v8714, 0
        %v8717 = vxor.u32 %v8711, 2147483648
        %v8718 = vsel %vm8716, %v8703, %v8717
        %vm8719 = vcmp.eq.s32.totalorder %v8714, 2
        %v8720 = vxor.u32 %v8703, 2147483648
        %v8721 = vsel %vm8719, %v8720, %v8711
        %v8722 = vsel %vm8715, %v8718, %v8721
        %v8723 = vsel %vm8712, nan, %v8722
        %v8724 = vand.u32 2147483647, %v5658
        %vm8725 = vcmp.le.f32.partialorder %v8724, 0.7853982
        %vm8726 = vcmp.lt.s32.totalorder %v5658, 0
        %v8727 = vand.u32 %v5658, 2139095040
        %v8728 = vshrl.u32 %v8727, 23
        %v8729 = vsub.s32 %v8728, 127
        %v8730 = vand.u32 2147483647, %v5658
        %v8731 = vand.u32 %v8730, 8388607
        %v8732 = vor.u32 %v8731, 8388608
        %v8733 = vsub.s32 0, %v8732
        %v8734 = vadd.s32 %v8729, 1
        %vm8735 = vcmp.gt.s32.totalorder %v8734, 0
        %v8736 = vsel %vm8735, %v8734, 0
        %v8737 = vshrl.u32 %v8736, 5
        %v8738 = vand.u32 %v8736, 31
        %v8739 = vsub.s32 32, %v8738
        %v8740 = vshrl.u32 683565275, %v8739
        %v8741 = vshll.u32 683565275, %v8738
        %v8742 = vshrl.u32 2475754826, %v8739
        %v8743 = vor.u32 %v8741, %v8742
        %v8744 = vshll.u32 2475754826, %v8738
        %v8745 = vshrl.u32 2131351028, %v8739
        %v8746 = vor.u32 %v8744, %v8745
        %v8747 = vshll.u32 2131351028, %v8738
        %v8748 = vshrl.u32 2102212464, %v8739
        %v8749 = vor.u32 %v8747, %v8748
        %v8750 = vshll.u32 2102212464, %v8738
        %v8751 = vshrl.u32 920167782, %v8739
        %v8752 = vor.u32 %v8750, %v8751
        %v8753 = vshll.u32 920167782, %v8738
        %v8754 = vshrl.u32 1326507024, %v8739
        %v8755 = vor.u32 %v8753, %v8754
        %vm8756 = vcmp.lt.s32.totalorder %v8737, 1
        %vm8757 = vcmp.lt.s32.totalorder %v8737, 2
        %vm8758 = vcmp.lt.s32.totalorder %v8737, 3
        %vm8759 = vcmp.lt.s32.totalorder %v8737, 4
        %v8760 = vsel %vm8756, %v8740, %v8743
        %v8761 = vsel %vm8759, %v8749, 2102212464
        %v8762 = vsel %vm8758, %v8746, %v8761
        %v8763 = vsel %vm8757, %v8760, %v8762
        %v8764 = vsel %vm8756, %v8743, %v8746
        %v8765 = vsel %vm8759, %v8752, 920167782
        %v8766 = vsel %vm8758, %v8749, %v8765
        %v8767 = vsel %vm8757, %v8764, %v8766
        %v8768 = vsel %vm8756, %v8746, %v8749
        %v8769 = vsel %vm8759, %v8755, 1326507024
        %v8770 = vsel %vm8758, %v8752, %v8769
        %v8771 = vsel %vm8757, %v8768, %v8770
        %v8772 = vshll.u32 %v8732, 8
        %v8773 = vand.u32 %v8772, 65535
        %v8774 = vshrl.u32 %v8772, 16
        %v8775 = vand.u32 %v8771, 65535
        %v8776 = vshrl.u32 %v8771, 16
        %v8777 = vmul.u32 %v8773, %v8775
        %v8778 = vmul.u32 %v8773, %v8776
        %v8779 = vmul.u32 %v8774, %v8775
        %v8780 = vmul.u32 %v8774, %v8776
        %v8781 = vshll.u32 %v8778, 16
        %v8782 = vshrl.u32 %v8778, 16
        %v8783 = vshll.u32 %v8779, 16
        %v8784 = vshrl.u32 %v8779, 16
        %vm8785 = vc.u32 %v8777, %v8781
        %v8786 = vsel %vm8785, 1, 0
        %v8787 = vadd.s32 %v8777, %v8781
        %v8788 = vadd.s32 %v8780, %v8786
        %vm8789 = vc.u32 %v8787, %v8783
        %v8790 = vsel %vm8789, 1, 0
        %v8791 = vadd.s32 %v8787, %v8783
        %v8792 = vadd.s32 %v8788, %v8790
        %v8793 = vadd.s32 %v8792, %v8782
        %v8794 = vadd.s32 %v8793, %v8784
        %v8795 = vand.u32 %v8772, 65535
        %v8796 = vshrl.u32 %v8772, 16
        %v8797 = vand.u32 %v8767, 65535
        %v8798 = vshrl.u32 %v8767, 16
        %v8799 = vmul.u32 %v8795, %v8797
        %v8800 = vmul.u32 %v8795, %v8798
        %v8801 = vmul.u32 %v8796, %v8797
        %v8802 = vmul.u32 %v8796, %v8798
        %v8803 = vshll.u32 %v8800, 16
        %v8804 = vshrl.u32 %v8800, 16
        %v8805 = vshll.u32 %v8801, 16
        %v8806 = vshrl.u32 %v8801, 16
        %vm8807 = vc.u32 %v8799, %v8803
        %v8808 = vsel %vm8807, 1, 0
        %v8809 = vadd.s32 %v8799, %v8803
        %v8810 = vadd.s32 %v8802, %v8808
        %vm8811 = vc.u32 %v8809, %v8805
        %v8812 = vsel %vm8811, 1, 0
        %v8813 = vadd.s32 %v8809, %v8805
        %v8814 = vadd.s32 %v8810, %v8812
        %v8815 = vadd.s32 %v8814, %v8804
        %v8816 = vadd.s32 %v8815, %v8806
        %v8817 = vmul.u32 %v8772, %v8763
        %v8818 = vadd.s32 %v8794, %v8813
        %vm8819 = vc.u32 %v8794, %v8813
        %v8820 = vadd.s32 %v8816, 1
        %v8821 = vsel %vm8819, %v8820, %v8816
        %v8822 = vadd.s32 %v8817, %v8821
        %v8823 = vadd.s32 %v8822, 536870912
        %v8824 = vshrl.u32 %v8823, 30
        %v8825 = vshll.u32 %v8824, 30
        %v8826 = vsub.s32 %v8822, %v8825
        %vm8827 = vcmp.lt.s32.totalorder %v8826, 0
        %v8828 = vsub.s32 0, %v8826
        %v8829 = vsel %vm8827, %v8828, %v8826
        %v8830 = vclz %v8829
        %v8831 = vsub.s32 %v8830, 2
        %vm8832 = vcmp.gt.s32.totalorder 0, %v8831
        %v8833 = vsel %vm8832, 0, %v8831
        %v8834 = vsub.s32 32, %v8833
        %v8835 = vshll.u32 %v8826, %v8833
        %v8836 = vshrl.u32 %v8818, %v8834
        %v8837 = vor.u32 %v8835, %v8836
        %v8838 = vsub.s32 4294967266, %v8833
        %v8839 = vadd.s32 %v8838, 127
        %v8840 = vshll.u32 %v8839, 23
        %v8841 = vor.u32 4788187, %v8840
        %v8842 = vand.u32 2147483647, %v8841
        %v8844 = vcvt.s32.f32 %v8837
        %v8845 = vmul.f32 %v8844, %v8842
        %v8846 = vxor.u32 %v8845, 2147483648
        %v8847 = vsel %vm8726, %v8846, %v8845
        %v8848 = vsub.s32 4, %v8824
        %v8849 = vsel %vm8726, %v8848, %v8824
        %v8850 = vsel %vm8725, %v5658, %v8847
        %v8851 = vsel %vm8725, 0, %v8849
        %v8852 = vmul.f32 %v8850, %v8850
        %v8853 = vmul.f32 %v8852, -0.001358992
        %v8854 = vadd.f32 %v8853, 0.041655596
        %v8855 = vmul.f32 %v8852, %v8854
        %v8856 = vadd.f32 %v8855, -0.4999988
        %v8857 = vmul.f32 %v8852, %v8856
        %v8858 = vadd.f32 1.0, %v8857
        %v8859 = vmul.f32 %v8850, %v8850
        %v8860 = vmul.f32 %v8859, -0.00019511016
        %v8861 = vadd.f32 %v8860, 0.008332121
        %v8862 = vmul.f32 %v8859, %v8861
        %v8863 = vadd.f32 %v8862, -0.16666654
        %v8864 = vmul.f32 %v8859, %v8863
        %v8865 = vadd.f32 %v8864, 1.0
        %v8866 = vmul.f32 %v8865, %v8850
        %vm8867 = vweird.f32 %v5658
        %v8868 = vadd.s32 %v8851, 3
        %v8869 = vand.u32 %v8868, 3
        %vm8870 = vcmp.lt.s32.totalorder %v8869, 2
        %vm8871 = vcmp.eq.s32.totalorder %v8869, 0
        %v8872 = vxor.u32 %v8866, 2147483648
        %v8873 = vsel %vm8871, %v8858, %v8872
        %vm8874 = vcmp.eq.s32.totalorder %v8869, 2
        %v8875 = vxor.u32 %v8858, 2147483648
        %v8876 = vsel %vm8874, %v8875, %v8866
        %v8877 = vsel %vm8870, %v8873, %v8876
        %v8878 = vsel %vm8867, nan, %v8877
        %v8879 = vand.u32 2147483647, %v5687
        %vm8880 = vcmp.le.f32.partialorder %v8879, 0.7853982
        %vm8881 = vcmp.lt.s32.totalorder %v5687, 0
        %v8882 = vand.u32 %v5687, 2139095040
        %v8883 = vshrl.u32 %v8882, 23
        %v8884 = vsub.s32 %v8883, 127
        %v8885 = vand.u32 2147483647, %v5687
        %v8886 = vand.u32 %v8885, 8388607
        %v8887 = vor.u32 %v8886, 8388608
        %v8888 = vsub.s32 0, %v8887
        %v8889 = vadd.s32 %v8884, 1
        %vm8890 = vcmp.gt.s32.totalorder %v8889, 0
        %v8891 = vsel %vm8890, %v8889, 0
        %v8892 = vshrl.u32 %v8891, 5
        %v8893 = vand.u32 %v8891, 31
        %v8894 = vsub.s32 32, %v8893
        %v8895 = vshrl.u32 683565275, %v8894
        %v8896 = vshll.u32 683565275, %v8893
        %v8897 = vshrl.u32 2475754826, %v8894
        %v8898 = vor.u32 %v8896, %v8897
        %v8899 = vshll.u32 2475754826, %v8893
        %v8900 = vshrl.u32 2131351028, %v8894
        %v8901 = vor.u32 %v8899, %v8900
        %v8902 = vshll.u32 2131351028, %v8893
        %v8903 = vshrl.u32 2102212464, %v8894
        %v8904 = vor.u32 %v8902, %v8903
        %v8905 = vshll.u32 2102212464, %v8893
        %v8906 = vshrl.u32 920167782, %v8894
        %v8907 = vor.u32 %v8905, %v8906
        %v8908 = vshll.u32 920167782, %v8893
        %v8909 = vshrl.u32 1326507024, %v8894
        %v8910 = vor.u32 %v8908, %v8909
        %vm8911 = vcmp.lt.s32.totalorder %v8892, 1
        %vm8912 = vcmp.lt.s32.totalorder %v8892, 2
        %vm8913 = vcmp.lt.s32.totalorder %v8892, 3
        %vm8914 = vcmp.lt.s32.totalorder %v8892, 4
        %v8915 = vsel %vm8911, %v8895, %v8898
        %v8916 = vsel %vm8914, %v8904, 2102212464
        %v8917 = vsel %vm8913, %v8901, %v8916
        %v8918 = vsel %vm8912, %v8915, %v8917
        %v8919 = vsel %vm8911, %v8898, %v8901
        %v8920 = vsel %vm8914, %v8907, 920167782
        %v8921 = vsel %vm8913, %v8904, %v8920
        %v8922 = vsel %vm8912, %v8919, %v8921
        %v8923 = vsel %vm8911, %v8901, %v8904
        %v8924 = vsel %vm8914, %v8910, 1326507024
        %v8925 = vsel %vm8913, %v8907, %v8924
        %v8926 = vsel %vm8912, %v8923, %v8925
        %v8927 = vshll.u32 %v8887, 8
        %v8928 = vand.u32 %v8927, 65535
        %v8929 = vshrl.u32 %v8927, 16
        %v8930 = vand.u32 %v8926, 65535
        %v8931 = vshrl.u32 %v8926, 16
        %v8932 = vmul.u32 %v8928, %v8930
        %v8933 = vmul.u32 %v8928, %v8931
        %v8934 = vmul.u32 %v8929, %v8930
        %v8935 = vmul.u32 %v8929, %v8931
        %v8936 = vshll.u32 %v8933, 16
        %v8937 = vshrl.u32 %v8933, 16
        %v8938 = vshll.u32 %v8934, 16
        %v8939 = vshrl.u32 %v8934, 16
        %vm8940 = vc.u32 %v8932, %v8936
        %v8941 = vsel %vm8940, 1, 0
        %v8942 = vadd.s32 %v8932, %v8936
        %v8943 = vadd.s32 %v8935, %v8941
        %vm8944 = vc.u32 %v8942, %v8938
        %v8945 = vsel %vm8944, 1, 0
        %v8946 = vadd.s32 %v8942, %v8938
        %v8947 = vadd.s32 %v8943, %v8945
        %v8948 = vadd.s32 %v8947, %v8937
        %v8949 = vadd.s32 %v8948, %v8939
        %v8950 = vand.u32 %v8927, 65535
        %v8951 = vshrl.u32 %v8927, 16
        %v8952 = vand.u32 %v8922, 65535
        %v8953 = vshrl.u32 %v8922, 16
        %v8954 = vmul.u32 %v8950, %v8952
        %v8955 = vmul.u32 %v8950, %v8953
        %v8956 = vmul.u32 %v8951, %v8952
        %v8957 = vmul.u32 %v8951, %v8953
        %v8958 = vshll.u32 %v8955, 16
        %v8959 = vshrl.u32 %v8955, 16
        %v8960 = vshll.u32 %v8956, 16
        %v8961 = vshrl.u32 %v8956, 16
        %vm8962 = vc.u32 %v8954, %v8958
        %v8963 = vsel %vm8962, 1, 0
        %v8964 = vadd.s32 %v8954, %v8958
        %v8965 = vadd.s32 %v8957, %v8963
        %vm8966 = vc.u32 %v8964, %v8960
        %v8967 = vsel %vm8966, 1, 0
        %v8968 = vadd.s32 %v8964, %v8960
        %v8969 = vadd.s32 %v8965, %v8967
        %v8970 = vadd.s32 %v8969, %v8959
        %v8971 = vadd.s32 %v8970, %v8961
        %v8972 = vmul.u32 %v8927, %v8918
        %v8973 = vadd.s32 %v8949, %v8968
        %vm8974 = vc.u32 %v8949, %v8968
        %v8975 = vadd.s32 %v8971, 1
        %v8976 = vsel %vm8974, %v8975, %v8971
        %v8977 = vadd.s32 %v8972, %v8976
        %v8978 = vadd.s32 %v8977, 536870912
        %v8979 = vshrl.u32 %v8978, 30
        %v8980 = vshll.u32 %v8979, 30
        %v8981 = vsub.s32 %v8977, %v8980
        %vm8982 = vcmp.lt.s32.totalorder %v8981, 0
        %v8983 = vsub.s32 0, %v8981
        %v8984 = vsel %vm8982, %v8983, %v8981
        %v8985 = vclz %v8984
        %v8986 = vsub.s32 %v8985, 2
        %vm8987 = vcmp.gt.s32.totalorder 0, %v8986
        %v8988 = vsel %vm8987, 0, %v8986
        %v8989 = vsub.s32 32, %v8988
        %v8990 = vshll.u32 %v8981, %v8988
        %v8991 = vshrl.u32 %v8973, %v8989
        %v8992 = vor.u32 %v8990, %v8991
        %v8993 = vsub.s32 4294967266, %v8988
        %v8994 = vadd.s32 %v8993, 127
        %v8995 = vshll.u32 %v8994, 23
        %v8996 = vor.u32 4788187, %v8995
        %v8997 = vand.u32 2147483647, %v8996
        %v8999 = vcvt.s32.f32 %v8992
        %v9000 = vmul.f32 %v8999, %v8997
        %v9001 = vxor.u32 %v9000, 2147483648
        %v9002 = vsel %vm8881, %v9001, %v9000
        %v9003 = vsub.s32 4, %v8979
        %v9004 = vsel %vm8881, %v9003, %v8979
        %v9005 = vsel %vm8880, %v5687, %v9002
        %v9006 = vsel %vm8880, 0, %v9004
        %v9007 = vmul.f32 %v9005, %v9005
        %v9008 = vmul.f32 %v9007, -0.001358992
        %v9009 = vadd.f32 %v9008, 0.041655596
        %v9010 = vmul.f32 %v9007, %v9009
        %v9011 = vadd.f32 %v9010, -0.4999988
        %v9012 = vmul.f32 %v9007, %v9011
        %v9013 = vadd.f32 1.0, %v9012
        %v9014 = vmul.f32 %v9005, %v9005
        %v9015 = vmul.f32 %v9014, -0.00019511016
        %v9016 = vadd.f32 %v9015, 0.008332121
        %v9017 = vmul.f32 %v9014, %v9016
        %v9018 = vadd.f32 %v9017, -0.16666654
        %v9019 = vmul.f32 %v9014, %v9018
        %v9020 = vadd.f32 %v9019, 1.0
        %v9021 = vmul.f32 %v9020, %v9005
        %vm9022 = vweird.f32 %v5687
        %v9023 = vadd.s32 %v9006, 3
        %v9024 = vand.u32 %v9023, 3
        %vm9025 = vcmp.lt.s32.totalorder %v9024, 2
        %vm9026 = vcmp.eq.s32.totalorder %v9024, 0
        %v9027 = vxor.u32 %v9021, 2147483648
        %v9028 = vsel %vm9026, %v9013, %v9027
        %vm9029 = vcmp.eq.s32.totalorder %v9024, 2
        %v9030 = vxor.u32 %v9013, 2147483648
        %v9031 = vsel %vm9029, %v9030, %v9021
        %v9032 = vsel %vm9025, %v9028, %v9031
        %v9033 = vsel %vm9022, nan, %v9032
        %v9034 = vand.u32 2147483647, %v5716
        %vm9035 = vcmp.le.f32.partialorder %v9034, 0.7853982
        %vm9036 = vcmp.lt.s32.totalorder %v5716, 0
        %v9037 = vand.u32 %v5716, 2139095040
        %v9038 = vshrl.u32 %v9037, 23
        %v9039 = vsub.s32 %v9038, 127
        %v9040 = vand.u32 2147483647, %v5716
        %v9041 = vand.u32 %v9040, 8388607
        %v9042 = vor.u32 %v9041, 8388608
        %v9043 = vsub.s32 0, %v9042
        %v9044 = vadd.s32 %v9039, 1
        %vm9045 = vcmp.gt.s32.totalorder %v9044, 0
        %v9046 = vsel %vm9045, %v9044, 0
        %v9047 = vshrl.u32 %v9046, 5
        %v9048 = vand.u32 %v9046, 31
        %v9049 = vsub.s32 32, %v9048
        %v9050 = vshrl.u32 683565275, %v9049
        %v9051 = vshll.u32 683565275, %v9048
        %v9052 = vshrl.u32 2475754826, %v9049
        %v9053 = vor.u32 %v9051, %v9052
        %v9054 = vshll.u32 2475754826, %v9048
        %v9055 = vshrl.u32 2131351028, %v9049
        %v9056 = vor.u32 %v9054, %v9055
        %v9057 = vshll.u32 2131351028, %v9048
        %v9058 = vshrl.u32 2102212464, %v9049
        %v9059 = vor.u32 %v9057, %v9058
        %v9060 = vshll.u32 2102212464, %v9048
        %v9061 = vshrl.u32 920167782, %v9049
        %v9062 = vor.u32 %v9060, %v9061
        %v9063 = vshll.u32 920167782, %v9048
        %v9064 = vshrl.u32 1326507024, %v9049
        %v9065 = vor.u32 %v9063, %v9064
        %vm9066 = vcmp.lt.s32.totalorder %v9047, 1
        %vm9067 = vcmp.lt.s32.totalorder %v9047, 2
        %vm9068 = vcmp.lt.s32.totalorder %v9047, 3
        %vm9069 = vcmp.lt.s32.totalorder %v9047, 4
        %v9070 = vsel %vm9066, %v9050, %v9053
        %v9071 = vsel %vm9069, %v9059, 2102212464
        %v9072 = vsel %vm9068, %v9056, %v9071
        %v9073 = vsel %vm9067, %v9070, %v9072
        %v9074 = vsel %vm9066, %v9053, %v9056
        %v9075 = vsel %vm9069, %v9062, 920167782
        %v9076 = vsel %vm9068, %v9059, %v9075
        %v9077 = vsel %vm9067, %v9074, %v9076
        %v9078 = vsel %vm9066, %v9056, %v9059
        %v9079 = vsel %vm9069, %v9065, 1326507024
        %v9080 = vsel %vm9068, %v9062, %v9079
        %v9081 = vsel %vm9067, %v9078, %v9080
        %v9082 = vshll.u32 %v9042, 8
        %v9083 = vand.u32 %v9082, 65535
        %v9084 = vshrl.u32 %v9082, 16
        %v9085 = vand.u32 %v9081, 65535
        %v9086 = vshrl.u32 %v9081, 16
        %v9087 = vmul.u32 %v9083, %v9085
        %v9088 = vmul.u32 %v9083, %v9086
        %v9089 = vmul.u32 %v9084, %v9085
        %v9090 = vmul.u32 %v9084, %v9086
        %v9091 = vshll.u32 %v9088, 16
        %v9092 = vshrl.u32 %v9088, 16
        %v9093 = vshll.u32 %v9089, 16
        %v9094 = vshrl.u32 %v9089, 16
        %vm9095 = vc.u32 %v9087, %v9091
        %v9096 = vsel %vm9095, 1, 0
        %v9097 = vadd.s32 %v9087, %v9091
        %v9098 = vadd.s32 %v9090, %v9096
        %vm9099 = vc.u32 %v9097, %v9093
        %v9100 = vsel %vm9099, 1, 0
        %v9101 = vadd.s32 %v9097, %v9093
        %v9102 = vadd.s32 %v9098, %v9100
        %v9103 = vadd.s32 %v9102, %v9092
        %v9104 = vadd.s32 %v9103, %v9094
        %v9105 = vand.u32 %v9082, 65535
        %v9106 = vshrl.u32 %v9082, 16
        %v9107 = vand.u32 %v9077, 65535
        %v9108 = vshrl.u32 %v9077, 16
        %v9109 = vmul.u32 %v9105, %v9107
        %v9110 = vmul.u32 %v9105, %v9108
        %v9111 = vmul.u32 %v9106, %v9107
        %v9112 = vmul.u32 %v9106, %v9108
        %v9113 = vshll.u32 %v9110, 16
        %v9114 = vshrl.u32 %v9110, 16
        %v9115 = vshll.u32 %v9111, 16
        %v9116 = vshrl.u32 %v9111, 16
        %vm9117 = vc.u32 %v9109, %v9113
        %v9118 = vsel %vm9117, 1, 0
        %v9119 = vadd.s32 %v9109, %v9113
        %v9120 = vadd.s32 %v9112, %v9118
        %vm9121 = vc.u32 %v9119, %v9115
        %v9122 = vsel %vm9121, 1, 0
        %v9123 = vadd.s32 %v9119, %v9115
        %v9124 = vadd.s32 %v9120, %v9122
        %v9125 = vadd.s32 %v9124, %v9114
        %v9126 = vadd.s32 %v9125, %v9116
        %v9127 = vmul.u32 %v9082, %v9073
        %v9128 = vadd.s32 %v9104, %v9123
        %vm9129 = vc.u32 %v9104, %v9123
        %v9130 = vadd.s32 %v9126, 1
        %v9131 = vsel %vm9129, %v9130, %v9126
        %v9132 = vadd.s32 %v9127, %v9131
        %v9133 = vadd.s32 %v9132, 536870912
        %v9134 = vshrl.u32 %v9133, 30
        %v9135 = vshll.u32 %v9134, 30
        %v9136 = vsub.s32 %v9132, %v9135
        %vm9137 = vcmp.lt.s32.totalorder %v9136, 0
        %v9138 = vsub.s32 0, %v9136
        %v9139 = vsel %vm9137, %v9138, %v9136
        %v9140 = vclz %v9139
        %v9141 = vsub.s32 %v9140, 2
        %vm9142 = vcmp.gt.s32.totalorder 0, %v9141
        %v9143 = vsel %vm9142, 0, %v9141
        %v9144 = vsub.s32 32, %v9143
        %v9145 = vshll.u32 %v9136, %v9143
        %v9146 = vshrl.u32 %v9128, %v9144
        %v9147 = vor.u32 %v9145, %v9146
        %v9148 = vsub.s32 4294967266, %v9143
        %v9149 = vadd.s32 %v9148, 127
        %v9150 = vshll.u32 %v9149, 23
        %v9151 = vor.u32 4788187, %v9150
        %v9152 = vand.u32 2147483647, %v9151
        %v9154 = vcvt.s32.f32 %v9147
        %v9155 = vmul.f32 %v9154, %v9152
        %v9156 = vxor.u32 %v9155, 2147483648
        %v9157 = vsel %vm9036, %v9156, %v9155
        %v9158 = vsub.s32 4, %v9134
        %v9159 = vsel %vm9036, %v9158, %v9134
        %v9160 = vsel %vm9035, %v5716, %v9157
        %v9161 = vsel %vm9035, 0, %v9159
        %v9162 = vmul.f32 %v9160, %v9160
        %v9163 = vmul.f32 %v9162, -0.001358992
        %v9164 = vadd.f32 %v9163, 0.041655596
        %v9165 = vmul.f32 %v9162, %v9164
        %v9166 = vadd.f32 %v9165, -0.4999988
        %v9167 = vmul.f32 %v9162, %v9166
        %v9168 = vadd.f32 1.0, %v9167
        %v9169 = vmul.f32 %v9160, %v9160
        %v9170 = vmul.f32 %v9169, -0.00019511016
        %v9171 = vadd.f32 %v9170, 0.008332121
        %v9172 = vmul.f32 %v9169, %v9171
        %v9173 = vadd.f32 %v9172, -0.16666654
        %v9174 = vmul.f32 %v9169, %v9173
        %v9175 = vadd.f32 %v9174, 1.0
        %v9176 = vmul.f32 %v9175, %v9160
        %vm9177 = vweird.f32 %v5716
        %v9178 = vadd.s32 %v9161, 3
        %v9179 = vand.u32 %v9178, 3
        %vm9180 = vcmp.lt.s32.totalorder %v9179, 2
        %vm9181 = vcmp.eq.s32.totalorder %v9179, 0
        %v9182 = vxor.u32 %v9176, 2147483648
        %v9183 = vsel %vm9181, %v9168, %v9182
        %vm9184 = vcmp.eq.s32.totalorder %v9179, 2
        %v9185 = vxor.u32 %v9168, 2147483648
        %v9186 = vsel %vm9184, %v9185, %v9176
        %v9187 = vsel %vm9180, %v9183, %v9186
        %v9188 = vsel %vm9177, nan, %v9187
        %v9189 = vand.u32 2147483647, %v5745
        %vm9190 = vcmp.le.f32.partialorder %v9189, 0.7853982
        %vm9191 = vcmp.lt.s32.totalorder %v5745, 0
        %v9192 = vand.u32 %v5745, 2139095040
        %v9193 = vshrl.u32 %v9192, 23
        %v9194 = vsub.s32 %v9193, 127
        %v9195 = vand.u32 2147483647, %v5745
        %v9196 = vand.u32 %v9195, 8388607
        %v9197 = vor.u32 %v9196, 8388608
        %v9198 = vsub.s32 0, %v9197
        %v9199 = vadd.s32 %v9194, 1
        %vm9200 = vcmp.gt.s32.totalorder %v9199, 0
        %v9201 = vsel %vm9200, %v9199, 0
        %v9202 = vshrl.u32 %v9201, 5
        %v9203 = vand.u32 %v9201, 31
        %v9204 = vsub.s32 32, %v9203
        %v9205 = vshrl.u32 683565275, %v9204
        %v9206 = vshll.u32 683565275, %v9203
        %v9207 = vshrl.u32 2475754826, %v9204
        %v9208 = vor.u32 %v9206, %v9207
        %v9209 = vshll.u32 2475754826, %v9203
        %v9210 = vshrl.u32 2131351028, %v9204
        %v9211 = vor.u32 %v9209, %v9210
        %v9212 = vshll.u32 2131351028, %v9203
        %v9213 = vshrl.u32 2102212464, %v9204
        %v9214 = vor.u32 %v9212, %v9213
        %v9215 = vshll.u32 2102212464, %v9203
        %v9216 = vshrl.u32 920167782, %v9204
        %v9217 = vor.u32 %v9215, %v9216
        %v9218 = vshll.u32 920167782, %v9203
        %v9219 = vshrl.u32 1326507024, %v9204
        %v9220 = vor.u32 %v9218, %v9219
        %vm9221 = vcmp.lt.s32.totalorder %v9202, 1
        %vm9222 = vcmp.lt.s32.totalorder %v9202, 2
        %vm9223 = vcmp.lt.s32.totalorder %v9202, 3
        %vm9224 = vcmp.lt.s32.totalorder %v9202, 4
        %v9225 = vsel %vm9221, %v9205, %v9208
        %v9226 = vsel %vm9224, %v9214, 2102212464
        %v9227 = vsel %vm9223, %v9211, %v9226
        %v9228 = vsel %vm9222, %v9225, %v9227
        %v9229 = vsel %vm9221, %v9208, %v9211
        %v9230 = vsel %vm9224, %v9217, 920167782
        %v9231 = vsel %vm9223, %v9214, %v9230
        %v9232 = vsel %vm9222, %v9229, %v9231
        %v9233 = vsel %vm9221, %v9211, %v9214
        %v9234 = vsel %vm9224, %v9220, 1326507024
        %v9235 = vsel %vm9223, %v9217, %v9234
        %v9236 = vsel %vm9222, %v9233, %v9235
        %v9237 = vshll.u32 %v9197, 8
        %v9238 = vand.u32 %v9237, 65535
        %v9239 = vshrl.u32 %v9237, 16
        %v9240 = vand.u32 %v9236, 65535
        %v9241 = vshrl.u32 %v9236, 16
        %v9242 = vmul.u32 %v9238, %v9240
        %v9243 = vmul.u32 %v9238, %v9241
        %v9244 = vmul.u32 %v9239, %v9240
        %v9245 = vmul.u32 %v9239, %v9241
        %v9246 = vshll.u32 %v9243, 16
        %v9247 = vshrl.u32 %v9243, 16
        %v9248 = vshll.u32 %v9244, 16
        %v9249 = vshrl.u32 %v9244, 16
        %vm9250 = vc.u32 %v9242, %v9246
        %v9251 = vsel %vm9250, 1, 0
        %v9252 = vadd.s32 %v9242, %v9246
        %v9253 = vadd.s32 %v9245, %v9251
        %vm9254 = vc.u32 %v9252, %v9248
        %v9255 = vsel %vm9254, 1, 0
        %v9256 = vadd.s32 %v9252, %v9248
        %v9257 = vadd.s32 %v9253, %v9255
        %v9258 = vadd.s32 %v9257, %v9247
        %v9259 = vadd.s32 %v9258, %v9249
        %v9260 = vand.u32 %v9237, 65535
        %v9261 = vshrl.u32 %v9237, 16
        %v9262 = vand.u32 %v9232, 65535
        %v9263 = vshrl.u32 %v9232, 16
        %v9264 = vmul.u32 %v9260, %v9262
        %v9265 = vmul.u32 %v9260, %v9263
        %v9266 = vmul.u32 %v9261, %v9262
        %v9267 = vmul.u32 %v9261, %v9263
        %v9268 = vshll.u32 %v9265, 16
        %v9269 = vshrl.u32 %v9265, 16
        %v9270 = vshll.u32 %v9266, 16
        %v9271 = vshrl.u32 %v9266, 16
        %vm9272 = vc.u32 %v9264, %v9268
        %v9273 = vsel %vm9272, 1, 0
        %v9274 = vadd.s32 %v9264, %v9268
        %v9275 = vadd.s32 %v9267, %v9273
        %vm9276 = vc.u32 %v9274, %v9270
        %v9277 = vsel %vm9276, 1, 0
        %v9278 = vadd.s32 %v9274, %v9270
        %v9279 = vadd.s32 %v9275, %v9277
        %v9280 = vadd.s32 %v9279, %v9269
        %v9281 = vadd.s32 %v9280, %v9271
        %v9282 = vmul.u32 %v9237, %v9228
        %v9283 = vadd.s32 %v9259, %v9278
        %vm9284 = vc.u32 %v9259, %v9278
        %v9285 = vadd.s32 %v9281, 1
        %v9286 = vsel %vm9284, %v9285, %v9281
        %v9287 = vadd.s32 %v9282, %v9286
        %v9288 = vadd.s32 %v9287, 536870912
        %v9289 = vshrl.u32 %v9288, 30
        %v9290 = vshll.u32 %v9289, 30
        %v9291 = vsub.s32 %v9287, %v9290
        %vm9292 = vcmp.lt.s32.totalorder %v9291, 0
        %v9293 = vsub.s32 0, %v9291
        %v9294 = vsel %vm9292, %v9293, %v9291
        %v9295 = vclz %v9294
        %v9296 = vsub.s32 %v9295, 2
        %vm9297 = vcmp.gt.s32.totalorder 0, %v9296
        %v9298 = vsel %vm9297, 0, %v9296
        %v9299 = vsub.s32 32, %v9298
        %v9300 = vshll.u32 %v9291, %v9298
        %v9301 = vshrl.u32 %v9283, %v9299
        %v9302 = vor.u32 %v9300, %v9301
        %v9303 = vsub.s32 4294967266, %v9298
        %v9304 = vadd.s32 %v9303, 127
        %v9305 = vshll.u32 %v9304, 23
        %v9306 = vor.u32 4788187, %v9305
        %v9307 = vand.u32 2147483647, %v9306
        %v9309 = vcvt.s32.f32 %v9302
        %v9310 = vmul.f32 %v9309, %v9307
        %v9311 = vxor.u32 %v9310, 2147483648
        %v9312 = vsel %vm9191, %v9311, %v9310
        %v9313 = vsub.s32 4, %v9289
        %v9314 = vsel %vm9191, %v9313, %v9289
        %v9315 = vsel %vm9190, %v5745, %v9312
        %v9316 = vsel %vm9190, 0, %v9314
        %v9317 = vmul.f32 %v9315, %v9315
        %v9318 = vmul.f32 %v9317, -0.001358992
        %v9319 = vadd.f32 %v9318, 0.041655596
        %v9320 = vmul.f32 %v9317, %v9319
        %v9321 = vadd.f32 %v9320, -0.4999988
        %v9322 = vmul.f32 %v9317, %v9321
        %v9323 = vadd.f32 1.0, %v9322
        %v9324 = vmul.f32 %v9315, %v9315
        %v9325 = vmul.f32 %v9324, -0.00019511016
        %v9326 = vadd.f32 %v9325, 0.008332121
        %v9327 = vmul.f32 %v9324, %v9326
        %v9328 = vadd.f32 %v9327, -0.16666654
        %v9329 = vmul.f32 %v9324, %v9328
        %v9330 = vadd.f32 %v9329, 1.0
        %v9331 = vmul.f32 %v9330, %v9315
        %vm9332 = vweird.f32 %v5745
        %v9333 = vadd.s32 %v9316, 3
        %v9334 = vand.u32 %v9333, 3
        %vm9335 = vcmp.lt.s32.totalorder %v9334, 2
        %vm9336 = vcmp.eq.s32.totalorder %v9334, 0
        %v9337 = vxor.u32 %v9331, 2147483648
        %v9338 = vsel %vm9336, %v9323, %v9337
        %vm9339 = vcmp.eq.s32.totalorder %v9334, 2
        %v9340 = vxor.u32 %v9323, 2147483648
        %v9341 = vsel %vm9339, %v9340, %v9331
        %v9342 = vsel %vm9335, %v9338, %v9341
        %v9343 = vsel %vm9332, nan, %v9342
        %v9344 = vand.u32 2147483647, %v5774
        %vm9345 = vcmp.le.f32.partialorder %v9344, 0.7853982
        %vm9346 = vcmp.lt.s32.totalorder %v5774, 0
        %v9347 = vand.u32 %v5774, 2139095040
        %v9348 = vshrl.u32 %v9347, 23
        %v9349 = vsub.s32 %v9348, 127
        %v9350 = vand.u32 2147483647, %v5774
        %v9351 = vand.u32 %v9350, 8388607
        %v9352 = vor.u32 %v9351, 8388608
        %v9353 = vsub.s32 0, %v9352
        %v9354 = vadd.s32 %v9349, 1
        %vm9355 = vcmp.gt.s32.totalorder %v9354, 0
        %v9356 = vsel %vm9355, %v9354, 0
        %v9357 = vshrl.u32 %v9356, 5
        %v9358 = vand.u32 %v9356, 31
        %v9359 = vsub.s32 32, %v9358
        %v9360 = vshrl.u32 683565275, %v9359
        %v9361 = vshll.u32 683565275, %v9358
        %v9362 = vshrl.u32 2475754826, %v9359
        %v9363 = vor.u32 %v9361, %v9362
        %v9364 = vshll.u32 2475754826, %v9358
        %v9365 = vshrl.u32 2131351028, %v9359
        %v9366 = vor.u32 %v9364, %v9365
        %v9367 = vshll.u32 2131351028, %v9358
        %v9368 = vshrl.u32 2102212464, %v9359
        %v9369 = vor.u32 %v9367, %v9368
        %v9370 = vshll.u32 2102212464, %v9358
        %v9371 = vshrl.u32 920167782, %v9359
        %v9372 = vor.u32 %v9370, %v9371
        %v9373 = vshll.u32 920167782, %v9358
        %v9374 = vshrl.u32 1326507024, %v9359
        %v9375 = vor.u32 %v9373, %v9374
        %vm9376 = vcmp.lt.s32.totalorder %v9357, 1
        %vm9377 = vcmp.lt.s32.totalorder %v9357, 2
        %vm9378 = vcmp.lt.s32.totalorder %v9357, 3
        %vm9379 = vcmp.lt.s32.totalorder %v9357, 4
        %v9380 = vsel %vm9376, %v9360, %v9363
        %v9381 = vsel %vm9379, %v9369, 2102212464
        %v9382 = vsel %vm9378, %v9366, %v9381
        %v9383 = vsel %vm9377, %v9380, %v9382
        %v9384 = vsel %vm9376, %v9363, %v9366
        %v9385 = vsel %vm9379, %v9372, 920167782
        %v9386 = vsel %vm9378, %v9369, %v9385
        %v9387 = vsel %vm9377, %v9384, %v9386
        %v9388 = vsel %vm9376, %v9366, %v9369
        %v9389 = vsel %vm9379, %v9375, 1326507024
        %v9390 = vsel %vm9378, %v9372, %v9389
        %v9391 = vsel %vm9377, %v9388, %v9390
        %v9392 = vshll.u32 %v9352, 8
        %v9393 = vand.u32 %v9392, 65535
        %v9394 = vshrl.u32 %v9392, 16
        %v9395 = vand.u32 %v9391, 65535
        %v9396 = vshrl.u32 %v9391, 16
        %v9397 = vmul.u32 %v9393, %v9395
        %v9398 = vmul.u32 %v9393, %v9396
        %v9399 = vmul.u32 %v9394, %v9395
        %v9400 = vmul.u32 %v9394, %v9396
        %v9401 = vshll.u32 %v9398, 16
        %v9402 = vshrl.u32 %v9398, 16
        %v9403 = vshll.u32 %v9399, 16
        %v9404 = vshrl.u32 %v9399, 16
        %vm9405 = vc.u32 %v9397, %v9401
        %v9406 = vsel %vm9405, 1, 0
        %v9407 = vadd.s32 %v9397, %v9401
        %v9408 = vadd.s32 %v9400, %v9406
        %vm9409 = vc.u32 %v9407, %v9403
        %v9410 = vsel %vm9409, 1, 0
        %v9411 = vadd.s32 %v9407, %v9403
        %v9412 = vadd.s32 %v9408, %v9410
        %v9413 = vadd.s32 %v9412, %v9402
        %v9414 = vadd.s32 %v9413, %v9404
        %v9415 = vand.u32 %v9392, 65535
        %v9416 = vshrl.u32 %v9392, 16
        %v9417 = vand.u32 %v9387, 65535
        %v9418 = vshrl.u32 %v9387, 16
        %v9419 = vmul.u32 %v9415, %v9417
        %v9420 = vmul.u32 %v9415, %v9418
        %v9421 = vmul.u32 %v9416, %v9417
        %v9422 = vmul.u32 %v9416, %v9418
        %v9423 = vshll.u32 %v9420, 16
        %v9424 = vshrl.u32 %v9420, 16
        %v9425 = vshll.u32 %v9421, 16
        %v9426 = vshrl.u32 %v9421, 16
        %vm9427 = vc.u32 %v9419, %v9423
        %v9428 = vsel %vm9427, 1, 0
        %v9429 = vadd.s32 %v9419, %v9423
        %v9430 = vadd.s32 %v9422, %v9428
        %vm9431 = vc.u32 %v9429, %v9425
        %v9432 = vsel %vm9431, 1, 0
        %v9433 = vadd.s32 %v9429, %v9425
        %v9434 = vadd.s32 %v9430, %v9432
        %v9435 = vadd.s32 %v9434, %v9424
        %v9436 = vadd.s32 %v9435, %v9426
        %v9437 = vmul.u32 %v9392, %v9383
        %v9438 = vadd.s32 %v9414, %v9433
        %vm9439 = vc.u32 %v9414, %v9433
        %v9440 = vadd.s32 %v9436, 1
        %v9441 = vsel %vm9439, %v9440, %v9436
        %v9442 = vadd.s32 %v9437, %v9441
        %v9443 = vadd.s32 %v9442, 536870912
        %v9444 = vshrl.u32 %v9443, 30
        %v9445 = vshll.u32 %v9444, 30
        %v9446 = vsub.s32 %v9442, %v9445
        %vm9447 = vcmp.lt.s32.totalorder %v9446, 0
        %v9448 = vsub.s32 0, %v9446
        %v9449 = vsel %vm9447, %v9448, %v9446
        %v9450 = vclz %v9449
        %v9451 = vsub.s32 %v9450, 2
        %vm9452 = vcmp.gt.s32.totalorder 0, %v9451
        %v9453 = vsel %vm9452, 0, %v9451
        %v9454 = vsub.s32 32, %v9453
        %v9455 = vshll.u32 %v9446, %v9453
        %v9456 = vshrl.u32 %v9438, %v9454
        %v9457 = vor.u32 %v9455, %v9456
        %v9458 = vsub.s32 4294967266, %v9453
        %v9459 = vadd.s32 %v9458, 127
        %v9460 = vshll.u32 %v9459, 23
        %v9461 = vor.u32 4788187, %v9460
        %v9462 = vand.u32 2147483647, %v9461
        %v9464 = vcvt.s32.f32 %v9457
        %v9465 = vmul.f32 %v9464, %v9462
        %v9466 = vxor.u32 %v9465, 2147483648
        %v9467 = vsel %vm9346, %v9466, %v9465
        %v9468 = vsub.s32 4, %v9444
        %v9469 = vsel %vm9346, %v9468, %v9444
        %v9470 = vsel %vm9345, %v5774, %v9467
        %v9471 = vsel %vm9345, 0, %v9469
        %v9472 = vmul.f32 %v9470, %v9470
        %v9473 = vmul.f32 %v9472, -0.001358992
        %v9474 = vadd.f32 %v9473, 0.041655596
        %v9475 = vmul.f32 %v9472, %v9474
        %v9476 = vadd.f32 %v9475, -0.4999988
        %v9477 = vmul.f32 %v9472, %v9476
        %v9478 = vadd.f32 1.0, %v9477
        %v9479 = vmul.f32 %v9470, %v9470
        %v9480 = vmul.f32 %v9479, -0.00019511016
        %v9481 = vadd.f32 %v9480, 0.008332121
        %v9482 = vmul.f32 %v9479, %v9481
        %v9483 = vadd.f32 %v9482, -0.16666654
        %v9484 = vmul.f32 %v9479, %v9483
        %v9485 = vadd.f32 %v9484, 1.0
        %v9486 = vmul.f32 %v9485, %v9470
        %vm9487 = vweird.f32 %v5774
        %v9488 = vadd.s32 %v9471, 3
        %v9489 = vand.u32 %v9488, 3
        %vm9490 = vcmp.lt.s32.totalorder %v9489, 2
        %vm9491 = vcmp.eq.s32.totalorder %v9489, 0
        %v9492 = vxor.u32 %v9486, 2147483648
        %v9493 = vsel %vm9491, %v9478, %v9492
        %vm9494 = vcmp.eq.s32.totalorder %v9489, 2
        %v9495 = vxor.u32 %v9478, 2147483648
        %v9496 = vsel %vm9494, %v9495, %v9486
        %v9497 = vsel %vm9490, %v9493, %v9496
        %v9498 = vsel %vm9487, nan, %v9497
        %v9499 = vand.u32 2147483647, %v5574
        %vm9500 = vcmp.le.f32.partialorder %v9499, 0.7853982
        %vm9501 = vcmp.lt.s32.totalorder %v5574, 0
        %v9502 = vand.u32 %v5574, 2139095040
        %v9503 = vshrl.u32 %v9502, 23
        %v9504 = vsub.s32 %v9503, 127
        %v9505 = vand.u32 2147483647, %v5574
        %v9506 = vand.u32 %v9505, 8388607
        %v9507 = vor.u32 %v9506, 8388608
        %v9508 = vsub.s32 0, %v9507
        %v9509 = vadd.s32 %v9504, 1
        %vm9510 = vcmp.gt.s32.totalorder %v9509, 0
        %v9511 = vsel %vm9510, %v9509, 0
        %v9512 = vshrl.u32 %v9511, 5
        %v9513 = vand.u32 %v9511, 31
        %v9514 = vsub.s32 32, %v9513
        %v9515 = vshrl.u32 683565275, %v9514
        %v9516 = vshll.u32 683565275, %v9513
        %v9517 = vshrl.u32 2475754826, %v9514
        %v9518 = vor.u32 %v9516, %v9517
        %v9519 = vshll.u32 2475754826, %v9513
        %v9520 = vshrl.u32 2131351028, %v9514
        %v9521 = vor.u32 %v9519, %v9520
        %v9522 = vshll.u32 2131351028, %v9513
        %v9523 = vshrl.u32 2102212464, %v9514
        %v9524 = vor.u32 %v9522, %v9523
        %v9525 = vshll.u32 2102212464, %v9513
        %v9526 = vshrl.u32 920167782, %v9514
        %v9527 = vor.u32 %v9525, %v9526
        %v9528 = vshll.u32 920167782, %v9513
        %v9529 = vshrl.u32 1326507024, %v9514
        %v9530 = vor.u32 %v9528, %v9529
        %vm9531 = vcmp.lt.s32.totalorder %v9512, 1
        %vm9532 = vcmp.lt.s32.totalorder %v9512, 2
        %vm9533 = vcmp.lt.s32.totalorder %v9512, 3
        %vm9534 = vcmp.lt.s32.totalorder %v9512, 4
        %v9535 = vsel %vm9531, %v9515, %v9518
        %v9536 = vsel %vm9534, %v9524, 2102212464
        %v9537 = vsel %vm9533, %v9521, %v9536
        %v9538 = vsel %vm9532, %v9535, %v9537
        %v9539 = vsel %vm9531, %v9518, %v9521
        %v9540 = vsel %vm9534, %v9527, 920167782
        %v9541 = vsel %vm9533, %v9524, %v9540
        %v9542 = vsel %vm9532, %v9539, %v9541
        %v9543 = vsel %vm9531, %v9521, %v9524
        %v9544 = vsel %vm9534, %v9530, 1326507024
        %v9545 = vsel %vm9533, %v9527, %v9544
        %v9546 = vsel %vm9532, %v9543, %v9545
        %v9547 = vshll.u32 %v9507, 8
        %v9548 = vand.u32 %v9547, 65535
        %v9549 = vshrl.u32 %v9547, 16
        %v9550 = vand.u32 %v9546, 65535
        %v9551 = vshrl.u32 %v9546, 16
        %v9552 = vmul.u32 %v9548, %v9550
        %v9553 = vmul.u32 %v9548, %v9551
        %v9554 = vmul.u32 %v9549, %v9550
        %v9555 = vmul.u32 %v9549, %v9551
        %v9556 = vshll.u32 %v9553, 16
        %v9557 = vshrl.u32 %v9553, 16
        %v9558 = vshll.u32 %v9554, 16
        %v9559 = vshrl.u32 %v9554, 16
        %vm9560 = vc.u32 %v9552, %v9556
        %v9561 = vsel %vm9560, 1, 0
        %v9562 = vadd.s32 %v9552, %v9556
        %v9563 = vadd.s32 %v9555, %v9561
        %vm9564 = vc.u32 %v9562, %v9558
        %v9565 = vsel %vm9564, 1, 0
        %v9566 = vadd.s32 %v9562, %v9558
        %v9567 = vadd.s32 %v9563, %v9565
        %v9568 = vadd.s32 %v9567, %v9557
        %v9569 = vadd.s32 %v9568, %v9559
        %v9570 = vand.u32 %v9547, 65535
        %v9571 = vshrl.u32 %v9547, 16
        %v9572 = vand.u32 %v9542, 65535
        %v9573 = vshrl.u32 %v9542, 16
        %v9574 = vmul.u32 %v9570, %v9572
        %v9575 = vmul.u32 %v9570, %v9573
        %v9576 = vmul.u32 %v9571, %v9572
        %v9577 = vmul.u32 %v9571, %v9573
        %v9578 = vshll.u32 %v9575, 16
        %v9579 = vshrl.u32 %v9575, 16
        %v9580 = vshll.u32 %v9576, 16
        %v9581 = vshrl.u32 %v9576, 16
        %vm9582 = vc.u32 %v9574, %v9578
        %v9583 = vsel %vm9582, 1, 0
        %v9584 = vadd.s32 %v9574, %v9578
        %v9585 = vadd.s32 %v9577, %v9583
        %vm9586 = vc.u32 %v9584, %v9580
        %v9587 = vsel %vm9586, 1, 0
        %v9588 = vadd.s32 %v9584, %v9580
        %v9589 = vadd.s32 %v9585, %v9587
        %v9590 = vadd.s32 %v9589, %v9579
        %v9591 = vadd.s32 %v9590, %v9581
        %v9592 = vmul.u32 %v9547, %v9538
        %v9593 = vadd.s32 %v9569, %v9588
        %vm9594 = vc.u32 %v9569, %v9588
        %v9595 = vadd.s32 %v9591, 1
        %v9596 = vsel %vm9594, %v9595, %v9591
        %v9597 = vadd.s32 %v9592, %v9596
        %v9598 = vadd.s32 %v9597, 536870912
        %v9599 = vshrl.u32 %v9598, 30
        %v9600 = vshll.u32 %v9599, 30
        %v9601 = vsub.s32 %v9597, %v9600
        %vm9602 = vcmp.lt.s32.totalorder %v9601, 0
        %v9603 = vsub.s32 0, %v9601
        %v9604 = vsel %vm9602, %v9603, %v9601
        %v9605 = vclz %v9604
        %v9606 = vsub.s32 %v9605, 2
        %vm9607 = vcmp.gt.s32.totalorder 0, %v9606
        %v9608 = vsel %vm9607, 0, %v9606
        %v9609 = vsub.s32 32, %v9608
        %v9610 = vshll.u32 %v9601, %v9608
        %v9611 = vshrl.u32 %v9593, %v9609
        %v9612 = vor.u32 %v9610, %v9611
        %v9613 = vsub.s32 4294967266, %v9608
        %v9614 = vadd.s32 %v9613, 127
        %v9615 = vshll.u32 %v9614, 23
        %v9616 = vor.u32 4788187, %v9615
        %v9617 = vand.u32 2147483647, %v9616
        %v9619 = vcvt.s32.f32 %v9612
        %v9620 = vmul.f32 %v9619, %v9617
        %v9621 = vxor.u32 %v9620, 2147483648
        %v9622 = vsel %vm9501, %v9621, %v9620
        %v9623 = vsub.s32 4, %v9599
        %v9624 = vsel %vm9501, %v9623, %v9599
        %v9625 = vsel %vm9500, %v5574, %v9622
        %v9626 = vsel %vm9500, 0, %v9624
        %v9627 = vmul.f32 %v9625, %v9625
        %v9628 = vmul.f32 %v9627, -0.001358992
        %v9629 = vadd.f32 %v9628, 0.041655596
        %v9630 = vmul.f32 %v9627, %v9629
        %v9631 = vadd.f32 %v9630, -0.4999988
        %v9632 = vmul.f32 %v9627, %v9631
        %v9633 = vadd.f32 1.0, %v9632
        %v9634 = vmul.f32 %v9625, %v9625
        %v9635 = vmul.f32 %v9634, -0.00019511016
        %v9636 = vadd.f32 %v9635, 0.008332121
        %v9637 = vmul.f32 %v9634, %v9636
        %v9638 = vadd.f32 %v9637, -0.16666654
        %v9639 = vmul.f32 %v9634, %v9638
        %v9640 = vadd.f32 %v9639, 1.0
        %v9641 = vmul.f32 %v9640, %v9625
        %vm9642 = vweird.f32 %v5574
        %v9643 = vadd.s32 %v9626, 3
        %v9644 = vand.u32 %v9643, 3
        %vm9645 = vcmp.lt.s32.totalorder %v9644, 2
        %vm9646 = vcmp.eq.s32.totalorder %v9644, 0
        %v9647 = vxor.u32 %v9641, 2147483648
        %v9648 = vsel %vm9646, %v9633, %v9647
        %vm9649 = vcmp.eq.s32.totalorder %v9644, 2
        %v9650 = vxor.u32 %v9633, 2147483648
        %v9651 = vsel %vm9649, %v9650, %v9641
        %v9652 = vsel %vm9645, %v9648, %v9651
        %v9653 = vsel %vm9642, nan, %v9652
        %v9654 = vand.u32 2147483647, %v5603
        %vm9655 = vcmp.le.f32.partialorder %v9654, 0.7853982
        %vm9656 = vcmp.lt.s32.totalorder %v5603, 0
        %v9657 = vand.u32 %v5603, 2139095040
        %v9658 = vshrl.u32 %v9657, 23
        %v9659 = vsub.s32 %v9658, 127
        %v9660 = vand.u32 2147483647, %v5603
        %v9661 = vand.u32 %v9660, 8388607
        %v9662 = vor.u32 %v9661, 8388608
        %v9663 = vsub.s32 0, %v9662
        %v9664 = vadd.s32 %v9659, 1
        %vm9665 = vcmp.gt.s32.totalorder %v9664, 0
        %v9666 = vsel %vm9665, %v9664, 0
        %v9667 = vshrl.u32 %v9666, 5
        %v9668 = vand.u32 %v9666, 31
        %v9669 = vsub.s32 32, %v9668
        %v9670 = vshrl.u32 683565275, %v9669
        %v9671 = vshll.u32 683565275, %v9668
        %v9672 = vshrl.u32 2475754826, %v9669
        %v9673 = vor.u32 %v9671, %v9672
        %v9674 = vshll.u32 2475754826, %v9668
        %v9675 = vshrl.u32 2131351028, %v9669
        %v9676 = vor.u32 %v9674, %v9675
        %v9677 = vshll.u32 2131351028, %v9668
        %v9678 = vshrl.u32 2102212464, %v9669
        %v9679 = vor.u32 %v9677, %v9678
        %v9680 = vshll.u32 2102212464, %v9668
        %v9681 = vshrl.u32 920167782, %v9669
        %v9682 = vor.u32 %v9680, %v9681
        %v9683 = vshll.u32 920167782, %v9668
        %v9684 = vshrl.u32 1326507024, %v9669
        %v9685 = vor.u32 %v9683, %v9684
        %vm9686 = vcmp.lt.s32.totalorder %v9667, 1
        %vm9687 = vcmp.lt.s32.totalorder %v9667, 2
        %vm9688 = vcmp.lt.s32.totalorder %v9667, 3
        %vm9689 = vcmp.lt.s32.totalorder %v9667, 4
        %v9690 = vsel %vm9686, %v9670, %v9673
        %v9691 = vsel %vm9689, %v9679, 2102212464
        %v9692 = vsel %vm9688, %v9676, %v9691
        %v9693 = vsel %vm9687, %v9690, %v9692
        %v9694 = vsel %vm9686, %v9673, %v9676
        %v9695 = vsel %vm9689, %v9682, 920167782
        %v9696 = vsel %vm9688, %v9679, %v9695
        %v9697 = vsel %vm9687, %v9694, %v9696
        %v9698 = vsel %vm9686, %v9676, %v9679
        %v9699 = vsel %vm9689, %v9685, 1326507024
        %v9700 = vsel %vm9688, %v9682, %v9699
        %v9701 = vsel %vm9687, %v9698, %v9700
        %v9702 = vshll.u32 %v9662, 8
        %v9703 = vand.u32 %v9702, 65535
        %v9704 = vshrl.u32 %v9702, 16
        %v9705 = vand.u32 %v9701, 65535
        %v9706 = vshrl.u32 %v9701, 16
        %v9707 = vmul.u32 %v9703, %v9705
        %v9708 = vmul.u32 %v9703, %v9706
        %v9709 = vmul.u32 %v9704, %v9705
        %v9710 = vmul.u32 %v9704, %v9706
        %v9711 = vshll.u32 %v9708, 16
        %v9712 = vshrl.u32 %v9708, 16
        %v9713 = vshll.u32 %v9709, 16
        %v9714 = vshrl.u32 %v9709, 16
        %vm9715 = vc.u32 %v9707, %v9711
        %v9716 = vsel %vm9715, 1, 0
        %v9717 = vadd.s32 %v9707, %v9711
        %v9718 = vadd.s32 %v9710, %v9716
        %vm9719 = vc.u32 %v9717, %v9713
        %v9720 = vsel %vm9719, 1, 0
        %v9721 = vadd.s32 %v9717, %v9713
        %v9722 = vadd.s32 %v9718, %v9720
        %v9723 = vadd.s32 %v9722, %v9712
        %v9724 = vadd.s32 %v9723, %v9714
        %v9725 = vand.u32 %v9702, 65535
        %v9726 = vshrl.u32 %v9702, 16
        %v9727 = vand.u32 %v9697, 65535
        %v9728 = vshrl.u32 %v9697, 16
        %v9729 = vmul.u32 %v9725, %v9727
        %v9730 = vmul.u32 %v9725, %v9728
        %v9731 = vmul.u32 %v9726, %v9727
        %v9732 = vmul.u32 %v9726, %v9728
        %v9733 = vshll.u32 %v9730, 16
        %v9734 = vshrl.u32 %v9730, 16
        %v9735 = vshll.u32 %v9731, 16
        %v9736 = vshrl.u32 %v9731, 16
        %vm9737 = vc.u32 %v9729, %v9733
        %v9738 = vsel %vm9737, 1, 0
        %v9739 = vadd.s32 %v9729, %v9733
        %v9740 = vadd.s32 %v9732, %v9738
        %vm9741 = vc.u32 %v9739, %v9735
        %v9742 = vsel %vm9741, 1, 0
        %v9743 = vadd.s32 %v9739, %v9735
        %v9744 = vadd.s32 %v9740, %v9742
        %v9745 = vadd.s32 %v9744, %v9734
        %v9746 = vadd.s32 %v9745, %v9736
        %v9747 = vmul.u32 %v9702, %v9693
        %v9748 = vadd.s32 %v9724, %v9743
        %vm9749 = vc.u32 %v9724, %v9743
        %v9750 = vadd.s32 %v9746, 1
        %v9751 = vsel %vm9749, %v9750, %v9746
        %v9752 = vadd.s32 %v9747, %v9751
        %v9753 = vadd.s32 %v9752, 536870912
        %v9754 = vshrl.u32 %v9753, 30
        %v9755 = vshll.u32 %v9754, 30
        %v9756 = vsub.s32 %v9752, %v9755
        %vm9757 = vcmp.lt.s32.totalorder %v9756, 0
        %v9758 = vsub.s32 0, %v9756
        %v9759 = vsel %vm9757, %v9758, %v9756
        %v9760 = vclz %v9759
        %v9761 = vsub.s32 %v9760, 2
        %vm9762 = vcmp.gt.s32.totalorder 0, %v9761
        %v9763 = vsel %vm9762, 0, %v9761
        %v9764 = vsub.s32 32, %v9763
        %v9765 = vshll.u32 %v9756, %v9763
        %v9766 = vshrl.u32 %v9748, %v9764
        %v9767 = vor.u32 %v9765, %v9766
        %v9768 = vsub.s32 4294967266, %v9763
        %v9769 = vadd.s32 %v9768, 127
        %v9770 = vshll.u32 %v9769, 23
        %v9771 = vor.u32 4788187, %v9770
        %v9772 = vand.u32 2147483647, %v9771
        %v9774 = vcvt.s32.f32 %v9767
        %v9775 = vmul.f32 %v9774, %v9772
        %v9776 = vxor.u32 %v9775, 2147483648
        %v9777 = vsel %vm9656, %v9776, %v9775
        %v9778 = vsub.s32 4, %v9754
        %v9779 = vsel %vm9656, %v9778, %v9754
        %v9780 = vsel %vm9655, %v5603, %v9777
        %v9781 = vsel %vm9655, 0, %v9779
        %v9782 = vmul.f32 %v9780, %v9780
        %v9783 = vmul.f32 %v9782, -0.001358992
        %v9784 = vadd.f32 %v9783, 0.041655596
        %v9785 = vmul.f32 %v9782, %v9784
        %v9786 = vadd.f32 %v9785, -0.4999988
        %v9787 = vmul.f32 %v9782, %v9786
        %v9788 = vadd.f32 1.0, %v9787
        %v9789 = vmul.f32 %v9780, %v9780
        %v9790 = vmul.f32 %v9789, -0.00019511016
        %v9791 = vadd.f32 %v9790, 0.008332121
        %v9792 = vmul.f32 %v9789, %v9791
        %v9793 = vadd.f32 %v9792, -0.16666654
        %v9794 = vmul.f32 %v9789, %v9793
        %v9795 = vadd.f32 %v9794, 1.0
        %v9796 = vmul.f32 %v9795, %v9780
        %vm9797 = vweird.f32 %v5603
        %v9798 = vadd.s32 %v9781, 3
        %v9799 = vand.u32 %v9798, 3
        %vm9800 = vcmp.lt.s32.totalorder %v9799, 2
        %vm9801 = vcmp.eq.s32.totalorder %v9799, 0
        %v9802 = vxor.u32 %v9796, 2147483648
        %v9803 = vsel %vm9801, %v9788, %v9802
        %vm9804 = vcmp.eq.s32.totalorder %v9799, 2
        %v9805 = vxor.u32 %v9788, 2147483648
        %v9806 = vsel %vm9804, %v9805, %v9796
        %v9807 = vsel %vm9800, %v9803, %v9806
        %v9808 = vsel %vm9797, nan, %v9807
        %v9809 = vand.u32 2147483647, %v5632
        %vm9810 = vcmp.le.f32.partialorder %v9809, 0.7853982
        %vm9811 = vcmp.lt.s32.totalorder %v5632, 0
        %v9812 = vand.u32 %v5632, 2139095040
        %v9813 = vshrl.u32 %v9812, 23
        %v9814 = vsub.s32 %v9813, 127
        %v9815 = vand.u32 2147483647, %v5632
        %v9816 = vand.u32 %v9815, 8388607
        %v9817 = vor.u32 %v9816, 8388608
        %v9818 = vsub.s32 0, %v9817
        %v9819 = vadd.s32 %v9814, 1
        %vm9820 = vcmp.gt.s32.totalorder %v9819, 0
        %v9821 = vsel %vm9820, %v9819, 0
        %v9822 = vshrl.u32 %v9821, 5
        %v9823 = vand.u32 %v9821, 31
        %v9824 = vsub.s32 32, %v9823
        %v9825 = vshrl.u32 683565275, %v9824
        %v9826 = vshll.u32 683565275, %v9823
        %v9827 = vshrl.u32 2475754826, %v9824
        %v9828 = vor.u32 %v9826, %v9827
        %v9829 = vshll.u32 2475754826, %v9823
        %v9830 = vshrl.u32 2131351028, %v9824
        %v9831 = vor.u32 %v9829, %v9830
        %v9832 = vshll.u32 2131351028, %v9823
        %v9833 = vshrl.u32 2102212464, %v9824
        %v9834 = vor.u32 %v9832, %v9833
        %v9835 = vshll.u32 2102212464, %v9823
        %v9836 = vshrl.u32 920167782, %v9824
        %v9837 = vor.u32 %v9835, %v9836
        %v9838 = vshll.u32 920167782, %v9823
        %v9839 = vshrl.u32 1326507024, %v9824
        %v9840 = vor.u32 %v9838, %v9839
        %vm9841 = vcmp.lt.s32.totalorder %v9822, 1
        %vm9842 = vcmp.lt.s32.totalorder %v9822, 2
        %vm9843 = vcmp.lt.s32.totalorder %v9822, 3
        %vm9844 = vcmp.lt.s32.totalorder %v9822, 4
        %v9845 = vsel %vm9841, %v9825, %v9828
        %v9846 = vsel %vm9844, %v9834, 2102212464
        %v9847 = vsel %vm9843, %v9831, %v9846
        %v9848 = vsel %vm9842, %v9845, %v9847
        %v9849 = vsel %vm9841, %v9828, %v9831
        %v9850 = vsel %vm9844, %v9837, 920167782
        %v9851 = vsel %vm9843, %v9834, %v9850
        %v9852 = vsel %vm9842, %v9849, %v9851
        %v9853 = vsel %vm9841, %v9831, %v9834
        %v9854 = vsel %vm9844, %v9840, 1326507024
        %v9855 = vsel %vm9843, %v9837, %v9854
        %v9856 = vsel %vm9842, %v9853, %v9855
        %v9857 = vshll.u32 %v9817, 8
        %v9858 = vand.u32 %v9857, 65535
        %v9859 = vshrl.u32 %v9857, 16
        %v9860 = vand.u32 %v9856, 65535
        %v9861 = vshrl.u32 %v9856, 16
        %v9862 = vmul.u32 %v9858, %v9860
        %v9863 = vmul.u32 %v9858, %v9861
        %v9864 = vmul.u32 %v9859, %v9860
        %v9865 = vmul.u32 %v9859, %v9861
        %v9866 = vshll.u32 %v9863, 16
        %v9867 = vshrl.u32 %v9863, 16
        %v9868 = vshll.u32 %v9864, 16
        %v9869 = vshrl.u32 %v9864, 16
        %vm9870 = vc.u32 %v9862, %v9866
        %v9871 = vsel %vm9870, 1, 0
        %v9872 = vadd.s32 %v9862, %v9866
        %v9873 = vadd.s32 %v9865, %v9871
        %vm9874 = vc.u32 %v9872, %v9868
        %v9875 = vsel %vm9874, 1, 0
        %v9876 = vadd.s32 %v9872, %v9868
        %v9877 = vadd.s32 %v9873, %v9875
        %v9878 = vadd.s32 %v9877, %v9867
        %v9879 = vadd.s32 %v9878, %v9869
        %v9880 = vand.u32 %v9857, 65535
        %v9881 = vshrl.u32 %v9857, 16
        %v9882 = vand.u32 %v9852, 65535
        %v9883 = vshrl.u32 %v9852, 16
        %v9884 = vmul.u32 %v9880, %v9882
        %v9885 = vmul.u32 %v9880, %v9883
        %v9886 = vmul.u32 %v9881, %v9882
        %v9887 = vmul.u32 %v9881, %v9883
        %v9888 = vshll.u32 %v9885, 16
        %v9889 = vshrl.u32 %v9885, 16
        %v9890 = vshll.u32 %v9886, 16
        %v9891 = vshrl.u32 %v9886, 16
        %vm9892 = vc.u32 %v9884, %v9888
        %v9893 = vsel %vm9892, 1, 0
        %v9894 = vadd.s32 %v9884, %v9888
        %v9895 = vadd.s32 %v9887, %v9893
        %vm9896 = vc.u32 %v9894, %v9890
        %v9897 = vsel %vm9896, 1, 0
        %v9898 = vadd.s32 %v9894, %v9890
        %v9899 = vadd.s32 %v9895, %v9897
        %v9900 = vadd.s32 %v9899, %v9889
        %v9901 = vadd.s32 %v9900, %v9891
        %v9902 = vmul.u32 %v9857, %v9848
        %v9903 = vadd.s32 %v9879, %v9898
        %vm9904 = vc.u32 %v9879, %v9898
        %v9905 = vadd.s32 %v9901, 1
        %v9906 = vsel %vm9904, %v9905, %v9901
        %v9907 = vadd.s32 %v9902, %v9906
        %v9908 = vadd.s32 %v9907, 536870912
        %v9909 = vshrl.u32 %v9908, 30
        %v9910 = vshll.u32 %v9909, 30
        %v9911 = vsub.s32 %v9907, %v9910
        %vm9912 = vcmp.lt.s32.totalorder %v9911, 0
        %v9913 = vsub.s32 0, %v9911
        %v9914 = vsel %vm9912, %v9913, %v9911
        %v9915 = vclz %v9914
        %v9916 = vsub.s32 %v9915, 2
        %vm9917 = vcmp.gt.s32.totalorder 0, %v9916
        %v9918 = vsel %vm9917, 0, %v9916
        %v9919 = vsub.s32 32, %v9918
        %v9920 = vshll.u32 %v9911, %v9918
        %v9921 = vshrl.u32 %v9903, %v9919
        %v9922 = vor.u32 %v9920, %v9921
        %v9923 = vsub.s32 4294967266, %v9918
        %v9924 = vadd.s32 %v9923, 127
        %v9925 = vshll.u32 %v9924, 23
        %v9926 = vor.u32 4788187, %v9925
        %v9927 = vand.u32 2147483647, %v9926
        %v9929 = vcvt.s32.f32 %v9922
        %v9930 = vmul.f32 %v9929, %v9927
        %v9931 = vxor.u32 %v9930, 2147483648
        %v9932 = vsel %vm9811, %v9931, %v9930
        %v9933 = vsub.s32 4, %v9909
        %v9934 = vsel %vm9811, %v9933, %v9909
        %v9935 = vsel %vm9810, %v5632, %v9932
        %v9936 = vsel %vm9810, 0, %v9934
        %v9937 = vmul.f32 %v9935, %v9935
        %v9938 = vmul.f32 %v9937, -0.001358992
        %v9939 = vadd.f32 %v9938, 0.041655596
        %v9940 = vmul.f32 %v9937, %v9939
        %v9941 = vadd.f32 %v9940, -0.4999988
        %v9942 = vmul.f32 %v9937, %v9941
        %v9943 = vadd.f32 1.0, %v9942
        %v9944 = vmul.f32 %v9935, %v9935
        %v9945 = vmul.f32 %v9944, -0.00019511016
        %v9946 = vadd.f32 %v9945, 0.008332121
        %v9947 = vmul.f32 %v9944, %v9946
        %v9948 = vadd.f32 %v9947, -0.16666654
        %v9949 = vmul.f32 %v9944, %v9948
        %v9950 = vadd.f32 %v9949, 1.0
        %v9951 = vmul.f32 %v9950, %v9935
        %vm9952 = vweird.f32 %v5632
        %v9953 = vadd.s32 %v9936, 3
        %v9954 = vand.u32 %v9953, 3
        %vm9955 = vcmp.lt.s32.totalorder %v9954, 2
        %vm9956 = vcmp.eq.s32.totalorder %v9954, 0
        %v9957 = vxor.u32 %v9951, 2147483648
        %v9958 = vsel %vm9956, %v9943, %v9957
        %vm9959 = vcmp.eq.s32.totalorder %v9954, 2
        %v9960 = vxor.u32 %v9943, 2147483648
        %v9961 = vsel %vm9959, %v9960, %v9951
        %v9962 = vsel %vm9955, %v9958, %v9961
        %v9963 = vsel %vm9952, nan, %v9962
        %v9964 = vand.u32 2147483647, %v5661
        %vm9965 = vcmp.le.f32.partialorder %v9964, 0.7853982
        %vm9966 = vcmp.lt.s32.totalorder %v5661, 0
        %v9967 = vand.u32 %v5661, 2139095040
        %v9968 = vshrl.u32 %v9967, 23
        %v9969 = vsub.s32 %v9968, 127
        %v9970 = vand.u32 2147483647, %v5661
        %v9971 = vand.u32 %v9970, 8388607
        %v9972 = vor.u32 %v9971, 8388608
        %v9973 = vsub.s32 0, %v9972
        %v9974 = vadd.s32 %v9969, 1
        %vm9975 = vcmp.gt.s32.totalorder %v9974, 0
        %v9976 = vsel %vm9975, %v9974, 0
        %v9977 = vshrl.u32 %v9976, 5
        %v9978 = vand.u32 %v9976, 31
        %v9979 = vsub.s32 32, %v9978
        %v9980 = vshrl.u32 683565275, %v9979
        %v9981 = vshll.u32 683565275, %v9978
        %v9982 = vshrl.u32 2475754826, %v9979
        %v9983 = vor.u32 %v9981, %v9982
        %v9984 = vshll.u32 2475754826, %v9978
        %v9985 = vshrl.u32 2131351028, %v9979
        %v9986 = vor.u32 %v9984, %v9985
        %v9987 = vshll.u32 2131351028, %v9978
        %v9988 = vshrl.u32 2102212464, %v9979
        %v9989 = vor.u32 %v9987, %v9988
        %v9990 = vshll.u32 2102212464, %v9978
        %v9991 = vshrl.u32 920167782, %v9979
        %v9992 = vor.u32 %v9990, %v9991
        %v9993 = vshll.u32 920167782, %v9978
        %v9994 = vshrl.u32 1326507024, %v9979
        %v9995 = vor.u32 %v9993, %v9994
        %vm9996 = vcmp.lt.s32.totalorder %v9977, 1
        %vm9997 = vcmp.lt.s32.totalorder %v9977, 2
        %vm9998 = vcmp.lt.s32.totalorder %v9977, 3
        %vm9999 = vcmp.lt.s32.totalorder %v9977, 4
        %v10000 = vsel %vm9996, %v9980, %v9983
        %v10001 = vsel %vm9999, %v9989, 2102212464
        %v10002 = vsel %vm9998, %v9986, %v10001
        %v10003 = vsel %vm9997, %v10000, %v10002
        %v10004 = vsel %vm9996, %v9983, %v9986
        %v10005 = vsel %vm9999, %v9992, 920167782
        %v10006 = vsel %vm9998, %v9989, %v10005
        %v10007 = vsel %vm9997, %v10004, %v10006
        %v10008 = vsel %vm9996, %v9986, %v9989
        %v10009 = vsel %vm9999, %v9995, 1326507024
        %v10010 = vsel %vm9998, %v9992, %v10009
        %v10011 = vsel %vm9997, %v10008, %v10010
        %v10012 = vshll.u32 %v9972, 8
        %v10013 = vand.u32 %v10012, 65535
        %v10014 = vshrl.u32 %v10012, 16
        %v10015 = vand.u32 %v10011, 65535
        %v10016 = vshrl.u32 %v10011, 16
        %v10017 = vmul.u32 %v10013, %v10015
        %v10018 = vmul.u32 %v10013, %v10016
        %v10019 = vmul.u32 %v10014, %v10015
        %v10020 = vmul.u32 %v10014, %v10016
        %v10021 = vshll.u32 %v10018, 16
        %v10022 = vshrl.u32 %v10018, 16
        %v10023 = vshll.u32 %v10019, 16
        %v10024 = vshrl.u32 %v10019, 16
        %vm10025 = vc.u32 %v10017, %v10021
        %v10026 = vsel %vm10025, 1, 0
        %v10027 = vadd.s32 %v10017, %v10021
        %v10028 = vadd.s32 %v10020, %v10026
        %vm10029 = vc.u32 %v10027, %v10023
        %v10030 = vsel %vm10029, 1, 0
        %v10031 = vadd.s32 %v10027, %v10023
        %v10032 = vadd.s32 %v10028, %v10030
        %v10033 = vadd.s32 %v10032, %v10022
        %v10034 = vadd.s32 %v10033, %v10024
        %v10035 = vand.u32 %v10012, 65535
        %v10036 = vshrl.u32 %v10012, 16
        %v10037 = vand.u32 %v10007, 65535
        %v10038 = vshrl.u32 %v10007, 16
        %v10039 = vmul.u32 %v10035, %v10037
        %v10040 = vmul.u32 %v10035, %v10038
        %v10041 = vmul.u32 %v10036, %v10037
        %v10042 = vmul.u32 %v10036, %v10038
        %v10043 = vshll.u32 %v10040, 16
        %v10044 = vshrl.u32 %v10040, 16
        %v10045 = vshll.u32 %v10041, 16
        %v10046 = vshrl.u32 %v10041, 16
        %vm10047 = vc.u32 %v10039, %v10043
        %v10048 = vsel %vm10047, 1, 0
        %v10049 = vadd.s32 %v10039, %v10043
        %v10050 = vadd.s32 %v10042, %v10048
        %vm10051 = vc.u32 %v10049, %v10045
        %v10052 = vsel %vm10051, 1, 0
        %v10053 = vadd.s32 %v10049, %v10045
        %v10054 = vadd.s32 %v10050, %v10052
        %v10055 = vadd.s32 %v10054, %v10044
        %v10056 = vadd.s32 %v10055, %v10046
        %v10057 = vmul.u32 %v10012, %v10003
        %v10058 = vadd.s32 %v10034, %v10053
        %vm10059 = vc.u32 %v10034, %v10053
        %v10060 = vadd.s32 %v10056, 1
        %v10061 = vsel %vm10059, %v10060, %v10056
        %v10062 = vadd.s32 %v10057, %v10061
        %v10063 = vadd.s32 %v10062, 536870912
        %v10064 = vshrl.u32 %v10063, 30
        %v10065 = vshll.u32 %v10064, 30
        %v10066 = vsub.s32 %v10062, %v10065
        %vm10067 = vcmp.lt.s32.totalorder %v10066, 0
        %v10068 = vsub.s32 0, %v10066
        %v10069 = vsel %vm10067, %v10068, %v10066
        %v10070 = vclz %v10069
        %v10071 = vsub.s32 %v10070, 2
        %vm10072 = vcmp.gt.s32.totalorder 0, %v10071
        %v10073 = vsel %vm10072, 0, %v10071
        %v10074 = vsub.s32 32, %v10073
        %v10075 = vshll.u32 %v10066, %v10073
        %v10076 = vshrl.u32 %v10058, %v10074
        %v10077 = vor.u32 %v10075, %v10076
        %v10078 = vsub.s32 4294967266, %v10073
        %v10079 = vadd.s32 %v10078, 127
        %v10080 = vshll.u32 %v10079, 23
        %v10081 = vor.u32 4788187, %v10080
        %v10082 = vand.u32 2147483647, %v10081
        %v10084 = vcvt.s32.f32 %v10077
        %v10085 = vmul.f32 %v10084, %v10082
        %v10086 = vxor.u32 %v10085, 2147483648
        %v10087 = vsel %vm9966, %v10086, %v10085
        %v10088 = vsub.s32 4, %v10064
        %v10089 = vsel %vm9966, %v10088, %v10064
        %v10090 = vsel %vm9965, %v5661, %v10087
        %v10091 = vsel %vm9965, 0, %v10089
        %v10092 = vmul.f32 %v10090, %v10090
        %v10093 = vmul.f32 %v10092, -0.001358992
        %v10094 = vadd.f32 %v10093, 0.041655596
        %v10095 = vmul.f32 %v10092, %v10094
        %v10096 = vadd.f32 %v10095, -0.4999988
        %v10097 = vmul.f32 %v10092, %v10096
        %v10098 = vadd.f32 1.0, %v10097
        %v10099 = vmul.f32 %v10090, %v10090
        %v10100 = vmul.f32 %v10099, -0.00019511016
        %v10101 = vadd.f32 %v10100, 0.008332121
        %v10102 = vmul.f32 %v10099, %v10101
        %v10103 = vadd.f32 %v10102, -0.16666654
        %v10104 = vmul.f32 %v10099, %v10103
        %v10105 = vadd.f32 %v10104, 1.0
        %v10106 = vmul.f32 %v10105, %v10090
        %vm10107 = vweird.f32 %v5661
        %v10108 = vadd.s32 %v10091, 3
        %v10109 = vand.u32 %v10108, 3
        %vm10110 = vcmp.lt.s32.totalorder %v10109, 2
        %vm10111 = vcmp.eq.s32.totalorder %v10109, 0
        %v10112 = vxor.u32 %v10106, 2147483648
        %v10113 = vsel %vm10111, %v10098, %v10112
        %vm10114 = vcmp.eq.s32.totalorder %v10109, 2
        %v10115 = vxor.u32 %v10098, 2147483648
        %v10116 = vsel %vm10114, %v10115, %v10106
        %v10117 = vsel %vm10110, %v10113, %v10116
        %v10118 = vsel %vm10107, nan, %v10117
        %v10119 = vand.u32 2147483647, %v5690
        %vm10120 = vcmp.le.f32.partialorder %v10119, 0.7853982
        %vm10121 = vcmp.lt.s32.totalorder %v5690, 0
        %v10122 = vand.u32 %v5690, 2139095040
        %v10123 = vshrl.u32 %v10122, 23
        %v10124 = vsub.s32 %v10123, 127
        %v10125 = vand.u32 2147483647, %v5690
        %v10126 = vand.u32 %v10125, 8388607
        %v10127 = vor.u32 %v10126, 8388608
        %v10128 = vsub.s32 0, %v10127
        %v10129 = vadd.s32 %v10124, 1
        %vm10130 = vcmp.gt.s32.totalorder %v10129, 0
        %v10131 = vsel %vm10130, %v10129, 0
        %v10132 = vshrl.u32 %v10131, 5
        %v10133 = vand.u32 %v10131, 31
        %v10134 = vsub.s32 32, %v10133
        %v10135 = vshrl.u32 683565275, %v10134
        %v10136 = vshll.u32 683565275, %v10133
        %v10137 = vshrl.u32 2475754826, %v10134
        %v10138 = vor.u32 %v10136, %v10137
        %v10139 = vshll.u32 2475754826, %v10133
        %v10140 = vshrl.u32 2131351028, %v10134
        %v10141 = vor.u32 %v10139, %v10140
        %v10142 = vshll.u32 2131351028, %v10133
        %v10143 = vshrl.u32 2102212464, %v10134
        %v10144 = vor.u32 %v10142, %v10143
        %v10145 = vshll.u32 2102212464, %v10133
        %v10146 = vshrl.u32 920167782, %v10134
        %v10147 = vor.u32 %v10145, %v10146
        %v10148 = vshll.u32 920167782, %v10133
        %v10149 = vshrl.u32 1326507024, %v10134
        %v10150 = vor.u32 %v10148, %v10149
        %vm10151 = vcmp.lt.s32.totalorder %v10132, 1
        %vm10152 = vcmp.lt.s32.totalorder %v10132, 2
        %vm10153 = vcmp.lt.s32.totalorder %v10132, 3
        %vm10154 = vcmp.lt.s32.totalorder %v10132, 4
        %v10155 = vsel %vm10151, %v10135, %v10138
        %v10156 = vsel %vm10154, %v10144, 2102212464
        %v10157 = vsel %vm10153, %v10141, %v10156
        %v10158 = vsel %vm10152, %v10155, %v10157
        %v10159 = vsel %vm10151, %v10138, %v10141
        %v10160 = vsel %vm10154, %v10147, 920167782
        %v10161 = vsel %vm10153, %v10144, %v10160
        %v10162 = vsel %vm10152, %v10159, %v10161
        %v10163 = vsel %vm10151, %v10141, %v10144
        %v10164 = vsel %vm10154, %v10150, 1326507024
        %v10165 = vsel %vm10153, %v10147, %v10164
        %v10166 = vsel %vm10152, %v10163, %v10165
        %v10167 = vshll.u32 %v10127, 8
        %v10168 = vand.u32 %v10167, 65535
        %v10169 = vshrl.u32 %v10167, 16
        %v10170 = vand.u32 %v10166, 65535
        %v10171 = vshrl.u32 %v10166, 16
        %v10172 = vmul.u32 %v10168, %v10170
        %v10173 = vmul.u32 %v10168, %v10171
        %v10174 = vmul.u32 %v10169, %v10170
        %v10175 = vmul.u32 %v10169, %v10171
        %v10176 = vshll.u32 %v10173, 16
        %v10177 = vshrl.u32 %v10173, 16
        %v10178 = vshll.u32 %v10174, 16
        %v10179 = vshrl.u32 %v10174, 16
        %vm10180 = vc.u32 %v10172, %v10176
        %v10181 = vsel %vm10180, 1, 0
        %v10182 = vadd.s32 %v10172, %v10176
        %v10183 = vadd.s32 %v10175, %v10181
        %vm10184 = vc.u32 %v10182, %v10178
        %v10185 = vsel %vm10184, 1, 0
        %v10186 = vadd.s32 %v10182, %v10178
        %v10187 = vadd.s32 %v10183, %v10185
        %v10188 = vadd.s32 %v10187, %v10177
        %v10189 = vadd.s32 %v10188, %v10179
        %v10190 = vand.u32 %v10167, 65535
        %v10191 = vshrl.u32 %v10167, 16
        %v10192 = vand.u32 %v10162, 65535
        %v10193 = vshrl.u32 %v10162, 16
        %v10194 = vmul.u32 %v10190, %v10192
        %v10195 = vmul.u32 %v10190, %v10193
        %v10196 = vmul.u32 %v10191, %v10192
        %v10197 = vmul.u32 %v10191, %v10193
        %v10198 = vshll.u32 %v10195, 16
        %v10199 = vshrl.u32 %v10195, 16
        %v10200 = vshll.u32 %v10196, 16
        %v10201 = vshrl.u32 %v10196, 16
        %vm10202 = vc.u32 %v10194, %v10198
        %v10203 = vsel %vm10202, 1, 0
        %v10204 = vadd.s32 %v10194, %v10198
        %v10205 = vadd.s32 %v10197, %v10203
        %vm10206 = vc.u32 %v10204, %v10200
        %v10207 = vsel %vm10206, 1, 0
        %v10208 = vadd.s32 %v10204, %v10200
        %v10209 = vadd.s32 %v10205, %v10207
        %v10210 = vadd.s32 %v10209, %v10199
        %v10211 = vadd.s32 %v10210, %v10201
        %v10212 = vmul.u32 %v10167, %v10158
        %v10213 = vadd.s32 %v10189, %v10208
        %vm10214 = vc.u32 %v10189, %v10208
        %v10215 = vadd.s32 %v10211, 1
        %v10216 = vsel %vm10214, %v10215, %v10211
        %v10217 = vadd.s32 %v10212, %v10216
        %v10218 = vadd.s32 %v10217, 536870912
        %v10219 = vshrl.u32 %v10218, 30
        %v10220 = vshll.u32 %v10219, 30
        %v10221 = vsub.s32 %v10217, %v10220
        %vm10222 = vcmp.lt.s32.totalorder %v10221, 0
        %v10223 = vsub.s32 0, %v10221
        %v10224 = vsel %vm10222, %v10223, %v10221
        %v10225 = vclz %v10224
        %v10226 = vsub.s32 %v10225, 2
        %vm10227 = vcmp.gt.s32.totalorder 0, %v10226
        %v10228 = vsel %vm10227, 0, %v10226
        %v10229 = vsub.s32 32, %v10228
        %v10230 = vshll.u32 %v10221, %v10228
        %v10231 = vshrl.u32 %v10213, %v10229
        %v10232 = vor.u32 %v10230, %v10231
        %v10233 = vsub.s32 4294967266, %v10228
        %v10234 = vadd.s32 %v10233, 127
        %v10235 = vshll.u32 %v10234, 23
        %v10236 = vor.u32 4788187, %v10235
        %v10237 = vand.u32 2147483647, %v10236
        %v10239 = vcvt.s32.f32 %v10232
        %v10240 = vmul.f32 %v10239, %v10237
        %v10241 = vxor.u32 %v10240, 2147483648
        %v10242 = vsel %vm10121, %v10241, %v10240
        %v10243 = vsub.s32 4, %v10219
        %v10244 = vsel %vm10121, %v10243, %v10219
        %v10245 = vsel %vm10120, %v5690, %v10242
        %v10246 = vsel %vm10120, 0, %v10244
        %v10247 = vmul.f32 %v10245, %v10245
        %v10248 = vmul.f32 %v10247, -0.001358992
        %v10249 = vadd.f32 %v10248, 0.041655596
        %v10250 = vmul.f32 %v10247, %v10249
        %v10251 = vadd.f32 %v10250, -0.4999988
        %v10252 = vmul.f32 %v10247, %v10251
        %v10253 = vadd.f32 1.0, %v10252
        %v10254 = vmul.f32 %v10245, %v10245
        %v10255 = vmul.f32 %v10254, -0.00019511016
        %v10256 = vadd.f32 %v10255, 0.008332121
        %v10257 = vmul.f32 %v10254, %v10256
        %v10258 = vadd.f32 %v10257, -0.16666654
        %v10259 = vmul.f32 %v10254, %v10258
        %v10260 = vadd.f32 %v10259, 1.0
        %v10261 = vmul.f32 %v10260, %v10245
        %vm10262 = vweird.f32 %v5690
        %v10263 = vadd.s32 %v10246, 3
        %v10264 = vand.u32 %v10263, 3
        %vm10265 = vcmp.lt.s32.totalorder %v10264, 2
        %vm10266 = vcmp.eq.s32.totalorder %v10264, 0
        %v10267 = vxor.u32 %v10261, 2147483648
        %v10268 = vsel %vm10266, %v10253, %v10267
        %vm10269 = vcmp.eq.s32.totalorder %v10264, 2
        %v10270 = vxor.u32 %v10253, 2147483648
        %v10271 = vsel %vm10269, %v10270, %v10261
        %v10272 = vsel %vm10265, %v10268, %v10271
        %v10273 = vsel %vm10262, nan, %v10272
        %v10274 = vand.u32 2147483647, %v5719
        %vm10275 = vcmp.le.f32.partialorder %v10274, 0.7853982
        %vm10276 = vcmp.lt.s32.totalorder %v5719, 0
        %v10277 = vand.u32 %v5719, 2139095040
        %v10278 = vshrl.u32 %v10277, 23
        %v10279 = vsub.s32 %v10278, 127
        %v10280 = vand.u32 2147483647, %v5719
        %v10281 = vand.u32 %v10280, 8388607
        %v10282 = vor.u32 %v10281, 8388608
        %v10283 = vsub.s32 0, %v10282
        %v10284 = vadd.s32 %v10279, 1
        %vm10285 = vcmp.gt.s32.totalorder %v10284, 0
        %v10286 = vsel %vm10285, %v10284, 0
        %v10287 = vshrl.u32 %v10286, 5
        %v10288 = vand.u32 %v10286, 31
        %v10289 = vsub.s32 32, %v10288
        %v10290 = vshrl.u32 683565275, %v10289
        %v10291 = vshll.u32 683565275, %v10288
        %v10292 = vshrl.u32 2475754826, %v10289
        %v10293 = vor.u32 %v10291, %v10292
        %v10294 = vshll.u32 2475754826, %v10288
        %v10295 = vshrl.u32 2131351028, %v10289
        %v10296 = vor.u32 %v10294, %v10295
        %v10297 = vshll.u32 2131351028, %v10288
        %v10298 = vshrl.u32 2102212464, %v10289
        %v10299 = vor.u32 %v10297, %v10298
        %v10300 = vshll.u32 2102212464, %v10288
        %v10301 = vshrl.u32 920167782, %v10289
        %v10302 = vor.u32 %v10300, %v10301
        %v10303 = vshll.u32 920167782, %v10288
        %v10304 = vshrl.u32 1326507024, %v10289
        %v10305 = vor.u32 %v10303, %v10304
        %vm10306 = vcmp.lt.s32.totalorder %v10287, 1
        %vm10307 = vcmp.lt.s32.totalorder %v10287, 2
        %vm10308 = vcmp.lt.s32.totalorder %v10287, 3
        %vm10309 = vcmp.lt.s32.totalorder %v10287, 4
        %v10310 = vsel %vm10306, %v10290, %v10293
        %v10311 = vsel %vm10309, %v10299, 2102212464
        %v10312 = vsel %vm10308, %v10296, %v10311
        %v10313 = vsel %vm10307, %v10310, %v10312
        %v10314 = vsel %vm10306, %v10293, %v10296
        %v10315 = vsel %vm10309, %v10302, 920167782
        %v10316 = vsel %vm10308, %v10299, %v10315
        %v10317 = vsel %vm10307, %v10314, %v10316
        %v10318 = vsel %vm10306, %v10296, %v10299
        %v10319 = vsel %vm10309, %v10305, 1326507024
        %v10320 = vsel %vm10308, %v10302, %v10319
        %v10321 = vsel %vm10307, %v10318, %v10320
        %v10322 = vshll.u32 %v10282, 8
        %v10323 = vand.u32 %v10322, 65535
        %v10324 = vshrl.u32 %v10322, 16
        %v10325 = vand.u32 %v10321, 65535
        %v10326 = vshrl.u32 %v10321, 16
        %v10327 = vmul.u32 %v10323, %v10325
        %v10328 = vmul.u32 %v10323, %v10326
        %v10329 = vmul.u32 %v10324, %v10325
        %v10330 = vmul.u32 %v10324, %v10326
        %v10331 = vshll.u32 %v10328, 16
        %v10332 = vshrl.u32 %v10328, 16
        %v10333 = vshll.u32 %v10329, 16
        %v10334 = vshrl.u32 %v10329, 16
        %vm10335 = vc.u32 %v10327, %v10331
        %v10336 = vsel %vm10335, 1, 0
        %v10337 = vadd.s32 %v10327, %v10331
        %v10338 = vadd.s32 %v10330, %v10336
        %vm10339 = vc.u32 %v10337, %v10333
        %v10340 = vsel %vm10339, 1, 0
        %v10341 = vadd.s32 %v10337, %v10333
        %v10342 = vadd.s32 %v10338, %v10340
        %v10343 = vadd.s32 %v10342, %v10332
        %v10344 = vadd.s32 %v10343, %v10334
        %v10345 = vand.u32 %v10322, 65535
        %v10346 = vshrl.u32 %v10322, 16
        %v10347 = vand.u32 %v10317, 65535
        %v10348 = vshrl.u32 %v10317, 16
        %v10349 = vmul.u32 %v10345, %v10347
        %v10350 = vmul.u32 %v10345, %v10348
        %v10351 = vmul.u32 %v10346, %v10347
        %v10352 = vmul.u32 %v10346, %v10348
        %v10353 = vshll.u32 %v10350, 16
        %v10354 = vshrl.u32 %v10350, 16
        %v10355 = vshll.u32 %v10351, 16
        %v10356 = vshrl.u32 %v10351, 16
        %vm10357 = vc.u32 %v10349, %v10353
        %v10358 = vsel %vm10357, 1, 0
        %v10359 = vadd.s32 %v10349, %v10353
        %v10360 = vadd.s32 %v10352, %v10358
        %vm10361 = vc.u32 %v10359, %v10355
        %v10362 = vsel %vm10361, 1, 0
        %v10363 = vadd.s32 %v10359, %v10355
        %v10364 = vadd.s32 %v10360, %v10362
        %v10365 = vadd.s32 %v10364, %v10354
        %v10366 = vadd.s32 %v10365, %v10356
        %v10367 = vmul.u32 %v10322, %v10313
        %v10368 = vadd.s32 %v10344, %v10363
        %vm10369 = vc.u32 %v10344, %v10363
        %v10370 = vadd.s32 %v10366, 1
        %v10371 = vsel %vm10369, %v10370, %v10366
        %v10372 = vadd.s32 %v10367, %v10371
        %v10373 = vadd.s32 %v10372, 536870912
        %v10374 = vshrl.u32 %v10373, 30
        %v10375 = vshll.u32 %v10374, 30
        %v10376 = vsub.s32 %v10372, %v10375
        %vm10377 = vcmp.lt.s32.totalorder %v10376, 0
        %v10378 = vsub.s32 0, %v10376
        %v10379 = vsel %vm10377, %v10378, %v10376
        %v10380 = vclz %v10379
        %v10381 = vsub.s32 %v10380, 2
        %vm10382 = vcmp.gt.s32.totalorder 0, %v10381
        %v10383 = vsel %vm10382, 0, %v10381
        %v10384 = vsub.s32 32, %v10383
        %v10385 = vshll.u32 %v10376, %v10383
        %v10386 = vshrl.u32 %v10368, %v10384
        %v10387 = vor.u32 %v10385, %v10386
        %v10388 = vsub.s32 4294967266, %v10383
        %v10389 = vadd.s32 %v10388, 127
        %v10390 = vshll.u32 %v10389, 23
        %v10391 = vor.u32 4788187, %v10390
        %v10392 = vand.u32 2147483647, %v10391
        %v10394 = vcvt.s32.f32 %v10387
        %v10395 = vmul.f32 %v10394, %v10392
        %v10396 = vxor.u32 %v10395, 2147483648
        %v10397 = vsel %vm10276, %v10396, %v10395
        %v10398 = vsub.s32 4, %v10374
        %v10399 = vsel %vm10276, %v10398, %v10374
        %v10400 = vsel %vm10275, %v5719, %v10397
        %v10401 = vsel %vm10275, 0, %v10399
        %v10402 = vmul.f32 %v10400, %v10400
        %v10403 = vmul.f32 %v10402, -0.001358992
        %v10404 = vadd.f32 %v10403, 0.041655596
        %v10405 = vmul.f32 %v10402, %v10404
        %v10406 = vadd.f32 %v10405, -0.4999988
        %v10407 = vmul.f32 %v10402, %v10406
        %v10408 = vadd.f32 1.0, %v10407
        %v10409 = vmul.f32 %v10400, %v10400
        %v10410 = vmul.f32 %v10409, -0.00019511016
        %v10411 = vadd.f32 %v10410, 0.008332121
        %v10412 = vmul.f32 %v10409, %v10411
        %v10413 = vadd.f32 %v10412, -0.16666654
        %v10414 = vmul.f32 %v10409, %v10413
        %v10415 = vadd.f32 %v10414, 1.0
        %v10416 = vmul.f32 %v10415, %v10400
        %vm10417 = vweird.f32 %v5719
        %v10418 = vadd.s32 %v10401, 3
        %v10419 = vand.u32 %v10418, 3
        %vm10420 = vcmp.lt.s32.totalorder %v10419, 2
        %vm10421 = vcmp.eq.s32.totalorder %v10419, 0
        %v10422 = vxor.u32 %v10416, 2147483648
        %v10423 = vsel %vm10421, %v10408, %v10422
        %vm10424 = vcmp.eq.s32.totalorder %v10419, 2
        %v10425 = vxor.u32 %v10408, 2147483648
        %v10426 = vsel %vm10424, %v10425, %v10416
        %v10427 = vsel %vm10420, %v10423, %v10426
        %v10428 = vsel %vm10417, nan, %v10427
        %v10429 = vand.u32 2147483647, %v5748
        %vm10430 = vcmp.le.f32.partialorder %v10429, 0.7853982
        %vm10431 = vcmp.lt.s32.totalorder %v5748, 0
        %v10432 = vand.u32 %v5748, 2139095040
        %v10433 = vshrl.u32 %v10432, 23
        %v10434 = vsub.s32 %v10433, 127
        %v10435 = vand.u32 2147483647, %v5748
        %v10436 = vand.u32 %v10435, 8388607
        %v10437 = vor.u32 %v10436, 8388608
        %v10438 = vsub.s32 0, %v10437
        %v10439 = vadd.s32 %v10434, 1
        %vm10440 = vcmp.gt.s32.totalorder %v10439, 0
        %v10441 = vsel %vm10440, %v10439, 0
        %v10442 = vshrl.u32 %v10441, 5
        %v10443 = vand.u32 %v10441, 31
        %v10444 = vsub.s32 32, %v10443
        %v10445 = vshrl.u32 683565275, %v10444
        %v10446 = vshll.u32 683565275, %v10443
        %v10447 = vshrl.u32 2475754826, %v10444
        %v10448 = vor.u32 %v10446, %v10447
        %v10449 = vshll.u32 2475754826, %v10443
        %v10450 = vshrl.u32 2131351028, %v10444
        %v10451 = vor.u32 %v10449, %v10450
        %v10452 = vshll.u32 2131351028, %v10443
        %v10453 = vshrl.u32 2102212464, %v10444
        %v10454 = vor.u32 %v10452, %v10453
        %v10455 = vshll.u32 2102212464, %v10443
        %v10456 = vshrl.u32 920167782, %v10444
        %v10457 = vor.u32 %v10455, %v10456
        %v10458 = vshll.u32 920167782, %v10443
        %v10459 = vshrl.u32 1326507024, %v10444
        %v10460 = vor.u32 %v10458, %v10459
        %vm10461 = vcmp.lt.s32.totalorder %v10442, 1
        %vm10462 = vcmp.lt.s32.totalorder %v10442, 2
        %vm10463 = vcmp.lt.s32.totalorder %v10442, 3
        %vm10464 = vcmp.lt.s32.totalorder %v10442, 4
        %v10465 = vsel %vm10461, %v10445, %v10448
        %v10466 = vsel %vm10464, %v10454, 2102212464
        %v10467 = vsel %vm10463, %v10451, %v10466
        %v10468 = vsel %vm10462, %v10465, %v10467
        %v10469 = vsel %vm10461, %v10448, %v10451
        %v10470 = vsel %vm10464, %v10457, 920167782
        %v10471 = vsel %vm10463, %v10454, %v10470
        %v10472 = vsel %vm10462, %v10469, %v10471
        %v10473 = vsel %vm10461, %v10451, %v10454
        %v10474 = vsel %vm10464, %v10460, 1326507024
        %v10475 = vsel %vm10463, %v10457, %v10474
        %v10476 = vsel %vm10462, %v10473, %v10475
        %v10477 = vshll.u32 %v10437, 8
        %v10478 = vand.u32 %v10477, 65535
        %v10479 = vshrl.u32 %v10477, 16
        %v10480 = vand.u32 %v10476, 65535
        %v10481 = vshrl.u32 %v10476, 16
        %v10482 = vmul.u32 %v10478, %v10480
        %v10483 = vmul.u32 %v10478, %v10481
        %v10484 = vmul.u32 %v10479, %v10480
        %v10485 = vmul.u32 %v10479, %v10481
        %v10486 = vshll.u32 %v10483, 16
        %v10487 = vshrl.u32 %v10483, 16
        %v10488 = vshll.u32 %v10484, 16
        %v10489 = vshrl.u32 %v10484, 16
        %vm10490 = vc.u32 %v10482, %v10486
        %v10491 = vsel %vm10490, 1, 0
        %v10492 = vadd.s32 %v10482, %v10486
        %v10493 = vadd.s32 %v10485, %v10491
        %vm10494 = vc.u32 %v10492, %v10488
        %v10495 = vsel %vm10494, 1, 0
        %v10496 = vadd.s32 %v10492, %v10488
        %v10497 = vadd.s32 %v10493, %v10495
        %v10498 = vadd.s32 %v10497, %v10487
        %v10499 = vadd.s32 %v10498, %v10489
        %v10500 = vand.u32 %v10477, 65535
        %v10501 = vshrl.u32 %v10477, 16
        %v10502 = vand.u32 %v10472, 65535
        %v10503 = vshrl.u32 %v10472, 16
        %v10504 = vmul.u32 %v10500, %v10502
        %v10505 = vmul.u32 %v10500, %v10503
        %v10506 = vmul.u32 %v10501, %v10502
        %v10507 = vmul.u32 %v10501, %v10503
        %v10508 = vshll.u32 %v10505, 16
        %v10509 = vshrl.u32 %v10505, 16
        %v10510 = vshll.u32 %v10506, 16
        %v10511 = vshrl.u32 %v10506, 16
        %vm10512 = vc.u32 %v10504, %v10508
        %v10513 = vsel %vm10512, 1, 0
        %v10514 = vadd.s32 %v10504, %v10508
        %v10515 = vadd.s32 %v10507, %v10513
        %vm10516 = vc.u32 %v10514, %v10510
        %v10517 = vsel %vm10516, 1, 0
        %v10518 = vadd.s32 %v10514, %v10510
        %v10519 = vadd.s32 %v10515, %v10517
        %v10520 = vadd.s32 %v10519, %v10509
        %v10521 = vadd.s32 %v10520, %v10511
        %v10522 = vmul.u32 %v10477, %v10468
        %v10523 = vadd.s32 %v10499, %v10518
        %vm10524 = vc.u32 %v10499, %v10518
        %v10525 = vadd.s32 %v10521, 1
        %v10526 = vsel %vm10524, %v10525, %v10521
        %v10527 = vadd.s32 %v10522, %v10526
        %v10528 = vadd.s32 %v10527, 536870912
        %v10529 = vshrl.u32 %v10528, 30
        %v10530 = vshll.u32 %v10529, 30
        %v10531 = vsub.s32 %v10527, %v10530
        %vm10532 = vcmp.lt.s32.totalorder %v10531, 0
        %v10533 = vsub.s32 0, %v10531
        %v10534 = vsel %vm10532, %v10533, %v10531
        %v10535 = vclz %v10534
        %v10536 = vsub.s32 %v10535, 2
        %vm10537 = vcmp.gt.s32.totalorder 0, %v10536
        %v10538 = vsel %vm10537, 0, %v10536
        %v10539 = vsub.s32 32, %v10538
        %v10540 = vshll.u32 %v10531, %v10538
        %v10541 = vshrl.u32 %v10523, %v10539
        %v10542 = vor.u32 %v10540, %v10541
        %v10543 = vsub.s32 4294967266, %v10538
        %v10544 = vadd.s32 %v10543, 127
        %v10545 = vshll.u32 %v10544, 23
        %v10546 = vor.u32 4788187, %v10545
        %v10547 = vand.u32 2147483647, %v10546
        %v10549 = vcvt.s32.f32 %v10542
        %v10550 = vmul.f32 %v10549, %v10547
        %v10551 = vxor.u32 %v10550, 2147483648
        %v10552 = vsel %vm10431, %v10551, %v10550
        %v10553 = vsub.s32 4, %v10529
        %v10554 = vsel %vm10431, %v10553, %v10529
        %v10555 = vsel %vm10430, %v5748, %v10552
        %v10556 = vsel %vm10430, 0, %v10554
        %v10557 = vmul.f32 %v10555, %v10555
        %v10558 = vmul.f32 %v10557, -0.001358992
        %v10559 = vadd.f32 %v10558, 0.041655596
        %v10560 = vmul.f32 %v10557, %v10559
        %v10561 = vadd.f32 %v10560, -0.4999988
        %v10562 = vmul.f32 %v10557, %v10561
        %v10563 = vadd.f32 1.0, %v10562
        %v10564 = vmul.f32 %v10555, %v10555
        %v10565 = vmul.f32 %v10564, -0.00019511016
        %v10566 = vadd.f32 %v10565, 0.008332121
        %v10567 = vmul.f32 %v10564, %v10566
        %v10568 = vadd.f32 %v10567, -0.16666654
        %v10569 = vmul.f32 %v10564, %v10568
        %v10570 = vadd.f32 %v10569, 1.0
        %v10571 = vmul.f32 %v10570, %v10555
        %vm10572 = vweird.f32 %v5748
        %v10573 = vadd.s32 %v10556, 3
        %v10574 = vand.u32 %v10573, 3
        %vm10575 = vcmp.lt.s32.totalorder %v10574, 2
        %vm10576 = vcmp.eq.s32.totalorder %v10574, 0
        %v10577 = vxor.u32 %v10571, 2147483648
        %v10578 = vsel %vm10576, %v10563, %v10577
        %vm10579 = vcmp.eq.s32.totalorder %v10574, 2
        %v10580 = vxor.u32 %v10563, 2147483648
        %v10581 = vsel %vm10579, %v10580, %v10571
        %v10582 = vsel %vm10575, %v10578, %v10581
        %v10583 = vsel %vm10572, nan, %v10582
        %v10584 = vand.u32 2147483647, %v5777
        %vm10585 = vcmp.le.f32.partialorder %v10584, 0.7853982
        %vm10586 = vcmp.lt.s32.totalorder %v5777, 0
        %v10587 = vand.u32 %v5777, 2139095040
        %v10588 = vshrl.u32 %v10587, 23
        %v10589 = vsub.s32 %v10588, 127
        %v10590 = vand.u32 2147483647, %v5777
        %v10591 = vand.u32 %v10590, 8388607
        %v10592 = vor.u32 %v10591, 8388608
        %v10593 = vsub.s32 0, %v10592
        %v10594 = vadd.s32 %v10589, 1
        %vm10595 = vcmp.gt.s32.totalorder %v10594, 0
        %v10596 = vsel %vm10595, %v10594, 0
        %v10597 = vshrl.u32 %v10596, 5
        %v10598 = vand.u32 %v10596, 31
        %v10599 = vsub.s32 32, %v10598
        %v10600 = vshrl.u32 683565275, %v10599
        %v10601 = vshll.u32 683565275, %v10598
        %v10602 = vshrl.u32 2475754826, %v10599
        %v10603 = vor.u32 %v10601, %v10602
        %v10604 = vshll.u32 2475754826, %v10598
        %v10605 = vshrl.u32 2131351028, %v10599
        %v10606 = vor.u32 %v10604, %v10605
        %v10607 = vshll.u32 2131351028, %v10598
        %v10608 = vshrl.u32 2102212464, %v10599
        %v10609 = vor.u32 %v10607, %v10608
        %v10610 = vshll.u32 2102212464, %v10598
        %v10611 = vshrl.u32 920167782, %v10599
        %v10612 = vor.u32 %v10610, %v10611
        %v10613 = vshll.u32 920167782, %v10598
        %v10614 = vshrl.u32 1326507024, %v10599
        %v10615 = vor.u32 %v10613, %v10614
        %vm10616 = vcmp.lt.s32.totalorder %v10597, 1
        %vm10617 = vcmp.lt.s32.totalorder %v10597, 2
        %vm10618 = vcmp.lt.s32.totalorder %v10597, 3
        %vm10619 = vcmp.lt.s32.totalorder %v10597, 4
        %v10620 = vsel %vm10616, %v10600, %v10603
        %v10621 = vsel %vm10619, %v10609, 2102212464
        %v10622 = vsel %vm10618, %v10606, %v10621
        %v10623 = vsel %vm10617, %v10620, %v10622
        %v10624 = vsel %vm10616, %v10603, %v10606
        %v10625 = vsel %vm10619, %v10612, 920167782
        %v10626 = vsel %vm10618, %v10609, %v10625
        %v10627 = vsel %vm10617, %v10624, %v10626
        %v10628 = vsel %vm10616, %v10606, %v10609
        %v10629 = vsel %vm10619, %v10615, 1326507024
        %v10630 = vsel %vm10618, %v10612, %v10629
        %v10631 = vsel %vm10617, %v10628, %v10630
        %v10632 = vshll.u32 %v10592, 8
        %v10633 = vand.u32 %v10632, 65535
        %v10634 = vshrl.u32 %v10632, 16
        %v10635 = vand.u32 %v10631, 65535
        %v10636 = vshrl.u32 %v10631, 16
        %v10637 = vmul.u32 %v10633, %v10635
        %v10638 = vmul.u32 %v10633, %v10636
        %v10639 = vmul.u32 %v10634, %v10635
        %v10640 = vmul.u32 %v10634, %v10636
        %v10641 = vshll.u32 %v10638, 16
        %v10642 = vshrl.u32 %v10638, 16
        %v10643 = vshll.u32 %v10639, 16
        %v10644 = vshrl.u32 %v10639, 16
        %vm10645 = vc.u32 %v10637, %v10641
        %v10646 = vsel %vm10645, 1, 0
        %v10647 = vadd.s32 %v10637, %v10641
        %v10648 = vadd.s32 %v10640, %v10646
        %vm10649 = vc.u32 %v10647, %v10643
        %v10650 = vsel %vm10649, 1, 0
        %v10651 = vadd.s32 %v10647, %v10643
        %v10652 = vadd.s32 %v10648, %v10650
        %v10653 = vadd.s32 %v10652, %v10642
        %v10654 = vadd.s32 %v10653, %v10644
        %v10655 = vand.u32 %v10632, 65535
        %v10656 = vshrl.u32 %v10632, 16
        %v10657 = vand.u32 %v10627, 65535
        %v10658 = vshrl.u32 %v10627, 16
        %v10659 = vmul.u32 %v10655, %v10657
        %v10660 = vmul.u32 %v10655, %v10658
        %v10661 = vmul.u32 %v10656, %v10657
        %v10662 = vmul.u32 %v10656, %v10658
        %v10663 = vshll.u32 %v10660, 16
        %v10664 = vshrl.u32 %v10660, 16
        %v10665 = vshll.u32 %v10661, 16
        %v10666 = vshrl.u32 %v10661, 16
        %vm10667 = vc.u32 %v10659, %v10663
        %v10668 = vsel %vm10667, 1, 0
        %v10669 = vadd.s32 %v10659, %v10663
        %v10670 = vadd.s32 %v10662, %v10668
        %vm10671 = vc.u32 %v10669, %v10665
        %v10672 = vsel %vm10671, 1, 0
        %v10673 = vadd.s32 %v10669, %v10665
        %v10674 = vadd.s32 %v10670, %v10672
        %v10675 = vadd.s32 %v10674, %v10664
        %v10676 = vadd.s32 %v10675, %v10666
        %v10677 = vmul.u32 %v10632, %v10623
        %v10678 = vadd.s32 %v10654, %v10673
        %vm10679 = vc.u32 %v10654, %v10673
        %v10680 = vadd.s32 %v10676, 1
        %v10681 = vsel %vm10679, %v10680, %v10676
        %v10682 = vadd.s32 %v10677, %v10681
        %v10683 = vadd.s32 %v10682, 536870912
        %v10684 = vshrl.u32 %v10683, 30
        %v10685 = vshll.u32 %v10684, 30
        %v10686 = vsub.s32 %v10682, %v10685
        %vm10687 = vcmp.lt.s32.totalorder %v10686, 0
        %v10688 = vsub.s32 0, %v10686
        %v10689 = vsel %vm10687, %v10688, %v10686
        %v10690 = vclz %v10689
        %v10691 = vsub.s32 %v10690, 2
        %vm10692 = vcmp.gt.s32.totalorder 0, %v10691
        %v10693 = vsel %vm10692, 0, %v10691
        %v10694 = vsub.s32 32, %v10693
        %v10695 = vshll.u32 %v10686, %v10693
        %v10696 = vshrl.u32 %v10678, %v10694
        %v10697 = vor.u32 %v10695, %v10696
        %v10698 = vsub.s32 4294967266, %v10693
        %v10699 = vadd.s32 %v10698, 127
        %v10700 = vshll.u32 %v10699, 23
        %v10701 = vor.u32 4788187, %v10700
        %v10702 = vand.u32 2147483647, %v10701
        %v10704 = vcvt.s32.f32 %v10697
        %v10705 = vmul.f32 %v10704, %v10702
        %v10706 = vxor.u32 %v10705, 2147483648
        %v10707 = vsel %vm10586, %v10706, %v10705
        %v10708 = vsub.s32 4, %v10684
        %v10709 = vsel %vm10586, %v10708, %v10684
        %v10710 = vsel %vm10585, %v5777, %v10707
        %v10711 = vsel %vm10585, 0, %v10709
        %v10712 = vmul.f32 %v10710, %v10710
        %v10713 = vmul.f32 %v10712, -0.001358992
        %v10714 = vadd.f32 %v10713, 0.041655596
        %v10715 = vmul.f32 %v10712, %v10714
        %v10716 = vadd.f32 %v10715, -0.4999988
        %v10717 = vmul.f32 %v10712, %v10716
        %v10718 = vadd.f32 1.0, %v10717
        %v10719 = vmul.f32 %v10710, %v10710
        %v10720 = vmul.f32 %v10719, -0.00019511016
        %v10721 = vadd.f32 %v10720, 0.008332121
        %v10722 = vmul.f32 %v10719, %v10721
        %v10723 = vadd.f32 %v10722, -0.16666654
        %v10724 = vmul.f32 %v10719, %v10723
        %v10725 = vadd.f32 %v10724, 1.0
        %v10726 = vmul.f32 %v10725, %v10710
        %vm10727 = vweird.f32 %v5777
        %v10728 = vadd.s32 %v10711, 3
        %v10729 = vand.u32 %v10728, 3
        %vm10730 = vcmp.lt.s32.totalorder %v10729, 2
        %vm10731 = vcmp.eq.s32.totalorder %v10729, 0
        %v10732 = vxor.u32 %v10726, 2147483648
        %v10733 = vsel %vm10731, %v10718, %v10732
        %vm10734 = vcmp.eq.s32.totalorder %v10729, 2
        %v10735 = vxor.u32 %v10718, 2147483648
        %v10736 = vsel %vm10734, %v10735, %v10726
        %v10737 = vsel %vm10730, %v10733, %v10736
        %v10738 = vsel %vm10727, nan, %v10737
        %v10739 = vld [vmem:[%s6] sm:$0x1]
        %v10740 = vld [vmem:[#allocation2] sm:$0x1]
        %10742 = vset.pattern.permute.xlu0 0
        %10743 = vperm.xlu0 %10742, %v10740
        %v10744 = vpop.permute.xlu0 %10743
        %v10746 = vperm.slane %v10744, 0
        %v10748 = vsel %vm5534, %v10739, 0
        %10750 = vmatpush.msra.mxu0 0.0
        %10751 = vmatpush.msra.mxu0 0.0
        %10752 = vmatpush.msra.mxu0 0.0
        %10753 = vmatpush.msra.mxu0 0.0
        %10754 = vmatpush.msra.mxu0 0.0
        %10755 = vmatpush.msra.mxu0 0.0
        %10756 = vmatpush.msra.mxu0 0.0
        %10757 = vmatpush.msra.mxu0 0.0
        %10758 = vmatpush.msra.mxu0 0.0
        %10759 = vmatpush.msra.mxu0 0.0
        %10760 = vmatpush.msra.mxu0 0.0
        %10761 = vmatpush.msra.mxu0 0.0
        %10762 = vmatpush.msra.mxu0 %v9653
        %10763 = vmatpush.msra.mxu0 %v8413
        %10764 = vmatpush.msra.mxu0 %v7173
        %10765 = vmatpush.msra.mxu0 %v5933
        %10766 = vmatmul.f32.gmra.mxu0 %v10748
        %v10767 = vpop.f32.mrf.mxu0
        %v10768 = vadd.f32 %v10746, %v10767
        %10769 = vdwg.mxu0
        %10770 = vmatpush.msra.mxu0 0.0
        %10771 = vmatpush.msra.mxu0 0.0
        %10772 = vmatpush.msra.mxu0 0.0
        %10773 = vmatpush.msra.mxu0 0.0
        %10774 = vmatpush.msra.mxu0 0.0
        %10775 = vmatpush.msra.mxu0 0.0
        %10776 = vmatpush.msra.mxu0 0.0
        %10777 = vmatpush.msra.mxu0 0.0
        %10778 = vmatpush.msra.mxu0 0.0
        %10779 = vmatpush.msra.mxu0 0.0
        %10780 = vmatpush.msra.mxu0 0.0
        %10781 = vmatpush.msra.mxu0 0.0
        %10782 = vmatpush.msra.mxu0 %v9808
        %10783 = vmatpush.msra.mxu0 %v8568
        %10784 = vmatpush.msra.mxu0 %v7328
        %10785 = vmatpush.msra.mxu0 %v6088
        %10786 = vmatmul.f32.gmra.mxu0 %v10748
        %v10787 = vpop.f32.mrf.mxu0
        %v10788 = vadd.f32 %v10746, %v10787
        %10789 = vdwg.mxu0
        %10790 = vmatpush.msra.mxu0 0.0
        %10791 = vmatpush.msra.mxu0 0.0
        %10792 = vmatpush.msra.mxu0 0.0
        %10793 = vmatpush.msra.mxu0 0.0
        %10794 = vmatpush.msra.mxu0 0.0
        %10795 = vmatpush.msra.mxu0 0.0
        %10796 = vmatpush.msra.mxu0 0.0
        %10797 = vmatpush.msra.mxu0 0.0
        %10798 = vmatpush.msra.mxu0 0.0
        %10799 = vmatpush.msra.mxu0 0.0
        %10800 = vmatpush.msra.mxu0 0.0
        %10801 = vmatpush.msra.mxu0 0.0
        %10802 = vmatpush.msra.mxu0 %v9963
        %10803 = vmatpush.msra.mxu0 %v8723
        %10804 = vmatpush.msra.mxu0 %v7483
        %10805 = vmatpush.msra.mxu0 %v6243
        %10806 = vmatmul.f32.gmra.mxu0 %v10748
        %v10807 = vpop.f32.mrf.mxu0
        %v10808 = vadd.f32 %v10746, %v10807
        %10809 = vdwg.mxu0
        %10810 = vmatpush.msra.mxu0 0.0
        %10811 = vmatpush.msra.mxu0 0.0
        %10812 = vmatpush.msra.mxu0 0.0
        %10813 = vmatpush.msra.mxu0 0.0
        %10814 = vmatpush.msra.mxu0 0.0
        %10815 = vmatpush.msra.mxu0 0.0
        %10816 = vmatpush.msra.mxu0 0.0
        %10817 = vmatpush.msra.mxu0 0.0
        %10818 = vmatpush.msra.mxu0 0.0
        %10819 = vmatpush.msra.mxu0 0.0
        %10820 = vmatpush.msra.mxu0 0.0
        %10821 = vmatpush.msra.mxu0 0.0
        %10822 = vmatpush.msra.mxu0 %v10118
        %10823 = vmatpush.msra.mxu0 %v8878
        %10824 = vmatpush.msra.mxu0 %v7638
        %10825 = vmatpush.msra.mxu0 %v6398
        %10826 = vmatmul.f32.gmra.mxu0 %v10748
        %v10827 = vpop.f32.mrf.mxu0
        %v10828 = vadd.f32 %v10746, %v10827
        %10829 = vdwg.mxu0
        %10830 = vmatpush.msra.mxu0 0.0
        %10831 = vmatpush.msra.mxu0 0.0
        %10832 = vmatpush.msra.mxu0 0.0
        %10833 = vmatpush.msra.mxu0 0.0
        %10834 = vmatpush.msra.mxu0 0.0
        %10835 = vmatpush.msra.mxu0 0.0
        %10836 = vmatpush.msra.mxu0 0.0
        %10837 = vmatpush.msra.mxu0 0.0
        %10838 = vmatpush.msra.mxu0 0.0
        %10839 = vmatpush.msra.mxu0 0.0
        %10840 = vmatpush.msra.mxu0 0.0
        %10841 = vmatpush.msra.mxu0 0.0
        %10842 = vmatpush.msra.mxu0 %v10273
        %10843 = vmatpush.msra.mxu0 %v9033
        %10844 = vmatpush.msra.mxu0 %v7793
        %10845 = vmatpush.msra.mxu0 %v6553
        %10846 = vmatmul.f32.gmra.mxu0 %v10748
        %v10847 = vpop.f32.mrf.mxu0
        %v10848 = vadd.f32 %v10746, %v10847
        %10849 = vdwg.mxu0
        %10850 = vmatpush.msra.mxu0 0.0
        %10851 = vmatpush.msra.mxu0 0.0
        %10852 = vmatpush.msra.mxu0 0.0
        %10853 = vmatpush.msra.mxu0 0.0
        %10854 = vmatpush.msra.mxu0 0.0
        %10855 = vmatpush.msra.mxu0 0.0
        %10856 = vmatpush.msra.mxu0 0.0
        %10857 = vmatpush.msra.mxu0 0.0
        %10858 = vmatpush.msra.mxu0 0.0
        %10859 = vmatpush.msra.mxu0 0.0
        %10860 = vmatpush.msra.mxu0 0.0
        %10861 = vmatpush.msra.mxu0 0.0
        %10862 = vmatpush.msra.mxu0 %v10428
        %10863 = vmatpush.msra.mxu0 %v9188
        %10864 = vmatpush.msra.mxu0 %v7948
        %10865 = vmatpush.msra.mxu0 %v6708
        %10866 = vmatmul.f32.gmra.mxu0 %v10748
        %v10867 = vpop.f32.mrf.mxu0
        %v10868 = vadd.f32 %v10746, %v10867
        %10869 = vdwg.mxu0
        %10870 = vmatpush.msra.mxu0 0.0
        %10871 = vmatpush.msra.mxu0 0.0
        %10872 = vmatpush.msra.mxu0 0.0
        %10873 = vmatpush.msra.mxu0 0.0
        %10874 = vmatpush.msra.mxu0 0.0
        %10875 = vmatpush.msra.mxu0 0.0
        %10876 = vmatpush.msra.mxu0 0.0
        %10877 = vmatpush.msra.mxu0 0.0
        %10878 = vmatpush.msra.mxu0 0.0
        %10879 = vmatpush.msra.mxu0 0.0
        %10880 = vmatpush.msra.mxu0 0.0
        %10881 = vmatpush.msra.mxu0 0.0
        %10882 = vmatpush.msra.mxu0 %v10583
        %10883 = vmatpush.msra.mxu0 %v9343
        %10884 = vmatpush.msra.mxu0 %v8103
        %10885 = vmatpush.msra.mxu0 %v6863
        %10886 = vmatmul.f32.gmra.mxu0 %v10748
        %v10887 = vpop.f32.mrf.mxu0
        %v10888 = vadd.f32 %v10746, %v10887
        %10889 = vdwg.mxu0
        %10890 = vmatpush.msra.mxu0 0.0
        %10891 = vmatpush.msra.mxu0 0.0
        %10892 = vmatpush.msra.mxu0 0.0
        %10893 = vmatpush.msra.mxu0 0.0
        %10894 = vmatpush.msra.mxu0 0.0
        %10895 = vmatpush.msra.mxu0 0.0
        %10896 = vmatpush.msra.mxu0 0.0
        %10897 = vmatpush.msra.mxu0 0.0
        %10898 = vmatpush.msra.mxu0 0.0
        %10899 = vmatpush.msra.mxu0 0.0
        %10900 = vmatpush.msra.mxu0 0.0
        %10901 = vmatpush.msra.mxu0 0.0
        %10902 = vmatpush.msra.mxu0 %v10738
        %10903 = vmatpush.msra.mxu0 %v9498
        %10904 = vmatpush.msra.mxu0 %v8258
        %10905 = vmatpush.msra.mxu0 %v7018
        %10906 = vmatmul.f32.gmra.mxu0 %v10748
        %v10907 = vpop.f32.mrf.mxu0
        %v10908 = vadd.f32 %v10746, %v10907
        %10909 = vdwg.mxu0
        %v10918 = vrot.slane %v10788, 7
        %v10919 = vrot.slane %v10808, 6
        %v10920 = vrot.slane %v10828, 5
        %v10921 = vrot.slane %v10848, 4
        %v10922 = vrot.slane %v10868, 3
        %v10923 = vrot.slane %v10888, 2
        %v10924 = vrot.slane %v10908, 1
        %vm10925 = vcmask 1040384
        %v10926 = vsel %vm10925, %v10768, %v10918
        %vm10927 = vcmask 1042434
        %v10928 = vsel %vm10927, %v10919, %v10920
        %vm10929 = vcmask 1041408
        %v10930 = vsel %vm10929, %v10926, %v10928
        %vm10931 = vcmask 1044484
        %v10932 = vsel %vm10931, %v10921, %v10922
        %vm10933 = vcmask 1046534
        %v10934 = vsel %vm10933, %v10923, %v10924
        %vm10935 = vcmask 1045508
        %v10936 = vsel %vm10935, %v10932, %v10934
        %vm10937 = vcmask 1043456
        %v10938 = vsel %vm10937, %v10930, %v10936
        %10940 = vst [vmem:[%s301] sm:$0xff] %v10938
        %s10941 = sand.u32 %s205, 1
        %s10942 = scalar_lea.sflag [#allocation4], %s10941
        %s10943 = sand.u32 %s205, 1
        %s10944 = smul.addr %s10943, 8
        %s10945 = scalar_lea.vmem [#allocation3], %s10944
        // Predicated region
        $region53: #{tpu_custom_call.1} parent=51 // pred_check
          %p10946 = pneg %p215
        $region54: #{tpu_custom_call.1} parent=51 // pred_check_branch
          %10948 = sbr.rel (%p10946) target = $region56
        $region55: #{tpu_custom_call.1} parent=51 // pred_region
          %s10949 = smul.u32 8, %s24
          %10951 = vsyncadd %s10942, 0
          %s10952 = scalar_lea.hbm %s8, %s10949
          %s10954 = sshll.u32 %s10945, 4
          %s10955 = int_to_ptr.vmem [resolvable:$true] %s10954
          %s10956 = sshll.u32 %s10952, 4
          %s10957 = int_to_ptr.hbm [resolvable:$true] %s10956
          %10959 = dma.vmem_to_hbm [thread:$0]  %s10955, 128, %s10957, %s10942
        $region56: #{tpu_custom_call.1} parent=51 // pred_fallthru
          _
      $region52: #{tpu_custom_call.1} parent=5 // pred_fallthru
        _
      %p10960 = scmp.le.s32.totalorder 2, %s19
      // Predicated region
      $region57: #{tpu_custom_call.1} parent=5 // pred_check
        %p10961 = pneg %p10960
      $region58: #{tpu_custom_call.1} parent=5 // pred_check_branch
        %10963 = sbr.rel (%p10961) target = $region60
      $region59: #{tpu_custom_call.1} parent=5 // pred_region
        %s10964 = ssub.s32 %s19, 2
        // Predicated region
        $region61: #{tpu_custom_call.1} parent=59 // pred_check
          %p10965 = pneg %p221
        $region62: #{tpu_custom_call.1} parent=59 // pred_check_branch
          %10967 = sbr.rel (%p10965) target = $region64
        $region63: #{tpu_custom_call.1} parent=59 // pred_region
          %s10968 = sand.u32 %s206, 1
          %s10969 = scalar_lea.sflag [#allocation4], %s10968
          %s10970 = sand.u32 %s206, 1
          %s10971 = smul.addr %s10970, 8
          %s10972 = scalar_lea.vmem [#allocation3], %s10971
          %10974 = dma.done %s10969, 128
        $region64: #{tpu_custom_call.1} parent=59 // pred_fallthru
          _
      $region60: #{tpu_custom_call.1} parent=5 // pred_fallthru
        _
    $region6: #{tpu_custom_call.1} parent=1 // loop_footer
      %s23 = sadd.s32 1, %s19
    $region7: #{tpu_custom_call.1} parent=1 // loop_footer_branch
      %18 = sbr.rel target = $region3
    $region8: #{tpu_custom_call.1} parent=1 // loop_exit
      _
    %10975 = vsyncpa [#allocation4], 1
    %s10976 = scalar_lea.sflag [#allocation4], 1
    %10977 = vsyncpa %s10976, 1

</llo_original>
